<compile_context>
chip_gen: v5e
topology: v5e:2x2
jax: 0.10.0
libtpu: 0.0.40
codegen_flags: <defaults>
</compile_context>

<pallas_src>
import jax
import jax.numpy as jnp
from jax.experimental import pallas as pl
from jax.experimental.pallas import tpu as pltpu


# ----------------------------------------------------------------------------
# Fused forward kernel (one batch tile per grid step; batch = lane dim)
# ----------------------------------------------------------------------------
def _fused_mnist_kernel(x_ref, w1t_ref, b1p_ref, w2t_ref, b2p_ref,
                        f1w_ref, f1b_ref, f2w_ref, f2b_ref,
                        out_ref, p1_ref, p2_ref):
    # Architecture constants (hard-coded by the PyTorch module).
    S = x_ref.shape[0] // 28    # Cin * 32 : one (zero-padded) input image row
    C1P = 128                   # conv1 pooled row block: 10 ch * 12 cols + 8 pad
    C2H = 80                    # conv2 pooled row block: 20 ch *  4 cols

    w1t = w1t_ref[...]          # (512, 6*S)  bf16 merged row-Toeplitz (both pool taps)
    b1p = b1p_ref[...]          # (128, 1)    f32
    w2t = w2t_ref[...]          # (320, 768)  bf16 merged row-Toeplitz
    b2p = b2p_ref[...]          # (80, 1)     f32

    # ---- conv1 (5x5 valid) + MaxPool2d(2) + ReLU: ONE matmul per pooled row --
    for i in range(12):
        win = x_ref[2 * i * S:(2 * i + 6) * S, :]                   # (6*S, TB) bf16
        y = jnp.dot(w1t, win, preferred_element_type=jnp.float32)   # (512, TB) f32
        m = jnp.maximum(y[:2 * C1P, :], y[2 * C1P:, :])             # max over row tap
        m = jnp.maximum(m[:C1P, :], m[C1P:, :])                     # max over col tap
        p1_ref[i * C1P:(i + 1) * C1P, :] = (
            jnp.maximum(m + b1p, 0.0).astype(p1_ref.dtype))         # pad rows stay 0

    # ---- conv2 (5x5 valid) + MaxPool2d(2) + ReLU: ONE matmul per pooled row --
    for i in range(4):
        win = p1_ref[2 * i * C1P:(2 * i + 6) * C1P, :]              # (768, TB) bf16
        z = jnp.dot(w2t, win, preferred_element_type=jnp.float32)   # (320, TB) f32
        m = jnp.maximum(z[:2 * C2H, :], z[2 * C2H:, :])             # max over row tap
        m = jnp.maximum(m[:C2H, :], m[C2H:, :])                     # max over col tap
        p2_ref[i * C2H:(i + 1) * C2H, :] = (
            jnp.maximum(m + b2p, 0.0).astype(p2_ref.dtype))

    # ---- fc1 -> ReLU -> fc2 (flatten order folded into packed fc1 weight) ---
    feat = p2_ref[...]                                              # (320, TB) bf16
    h = jnp.dot(f1w_ref[...], feat,
                preferred_element_type=jnp.float32) + f1b_ref[...]  # (50, TB) f32
    h = jnp.maximum(h, 0.0).astype(jnp.bfloat16)
    out = jnp.dot(f2w_ref[...], h,
                  preferred_element_type=jnp.float32) + f2b_ref[...]
    out_ref[...] = out.astype(out_ref.dtype)                        # (nc, TB) f32


# ----------------------------------------------------------------------------
# Weight packing (done once, outside the forward pass)
# ----------------------------------------------------------------------------
def _pack_conv_pool(w, wcol, jp, out_pad_to=None, in_pad_to=None):
    """Merged row-Toeplitz for 'valid 5x5 conv + 2x2 max-pool' over a 6-row
    union window.

    Rows ordered (di, dj, [cout, j] padded)  [di/dj = pool row/col taps];
    Cols ordered (rh, [cin, w] padded)       [rh = row inside 6-row window].
    """
    cout, cin, k, _ = w.shape
    R = k + 1                                                  # 6 union rows
    di = jnp.arange(2).reshape(2, 1, 1, 1, 1, 1, 1)
    dj = jnp.arange(2).reshape(1, 2, 1, 1, 1, 1, 1)
    co = jnp.arange(cout).reshape(1, 1, cout, 1, 1, 1, 1)
    j = jnp.arange(jp).reshape(1, 1, 1, jp, 1, 1, 1)
    rh = jnp.arange(R).reshape(1, 1, 1, 1, R, 1, 1)
    ci = jnp.arange(cin).reshape(1, 1, 1, 1, 1, cin, 1)
    wc = jnp.arange(wcol).reshape(1, 1, 1, 1, 1, 1, wcol)
    kh = rh - di
    kw = wc - (2 * j + dj)
    mask = (kh >= 0) & (kh < k) & (kw >= 0) & (kw < k)
    vals = w[co, ci, jnp.clip(kh, 0, k - 1), jnp.clip(kw, 0, k - 1)]
    vals = jnp.where(mask, vals, 0.0)                          # (2,2,co,jp,R,ci,wcol)
    og, ig = cout * jp, cin * wcol
    vals = vals.reshape(2, 2, og, R, ig)
    if out_pad_to is not None and out_pad_to > og:
        vals = jnp.pad(vals, ((0, 0), (0, 0), (0, out_pad_to - og), (0, 0), (0, 0)))
        og = out_pad_to
    if in_pad_to is not None and in_pad_to > ig:
        vals = jnp.pad(vals, ((0, 0), (0, 0), (0, 0), (0, 0), (0, in_pad_to - ig)))
        ig = in_pad_to
    return vals.reshape(4 * og, R * ig).astype(jnp.float32)


def pack_params(params):
    """Pack PyTorch-layout parameters into kernel-ready VMEM-resident matrices."""
    nc = params["fc2_w"].shape[0]
    # fc1 columns permuted from PyTorch flatten order (c, h, w) to the
    # kernel's pooled-activation order (h, c, w):
    f1w = (params["fc1_w"].reshape(50, 20, 4, 4)
           .transpose(0, 2, 1, 3).reshape(50, 320))
    return {
        # conv1: rows (di,dj,[10ch*12col pad->128]); cols (rh=6, cin, 32)
        "w1t": _pack_conv_pool(params["conv1_w"], wcol=32, jp=12,
                               out_pad_to=128).astype(jnp.bfloat16),
        "b1p": jnp.pad(jnp.repeat(params["conv1_b"], 12), (0, 8))
                  .reshape(128, 1).astype(jnp.float32),
        # conv2: rows (di,dj,20ch*4col=80); cols (rh=6, [10ch*12col pad->128])
        "w2t": _pack_conv_pool(params["conv2_w"], wcol=12, jp=4,
                               in_pad_to=128).astype(jnp.bfloat16),
        "b2p": jnp.repeat(params["conv2_b"], 4).reshape(80, 1).astype(jnp.float32),
        "f1w": f1w.astype(jnp.bfloat16),
        "f1b": params["fc1_b"].reshape(50, 1).astype(jnp.float32),
        "f2w": params["fc2_w"].astype(jnp.bfloat16),                 # (nc, 50)
        "f2b": params["fc2_b"].reshape(nc, 1).astype(jnp.float32),
    }


# ----------------------------------------------------------------------------
# Forward wrapper
# ----------------------------------------------------------------------------
def _round_up(n, m):
    return ((n + m - 1) // m) * m


def _choose_batch_tile(B):
    """Largest lane-dense batch tile that still leaves >= 2 grid steps
    (so v7x's two TensorCores both get work); small batches pad up to 128."""
    if B <= 128:
        return 128
    for tb in (512, 256, 128):
        if B >= 2 * tb:
            return tb
    return 128


def mnist_cnn_forward(packed, x):
    """x: (B, Cin, 28, 28) float32 -> logits (B, num_classes) float32."""
    B, Cin, H, W = x.shape
    assert (H, W) == (28, 28), "MnistCNN requires 28x28 inputs (fc1 expects 320)"
    nc = packed["f2w"].shape[0]

    tb = _choose_batch_tile(B)
    Bp = _round_up(B, tb)
    rows = 28 * Cin * 32

    # One-time input layout prep: pad W 28->32, put batch in lanes, flatten
    # rows as (h, cin, w) so every conv row window is a contiguous sublane
    # slab; cast to bf16 to halve the input DMA.
    xp = jnp.pad(x.astype(jnp.float32),
                 ((0, Bp - B), (0, 0), (0, 0), (0, 32 - W)))
    xp = xp.transpose(2, 1, 3, 0).reshape(rows, Bp).astype(jnp.bfloat16)

    out = pl.pallas_call(
        _fused_mnist_kernel,
        out_shape=jax.ShapeDtypeStruct((nc, Bp), jnp.float32),
        grid=(Bp // tb,),
        in_specs=[
            pl.BlockSpec((rows, tb), lambda b: (0, b)),            # input tile
            pl.BlockSpec(packed["w1t"].shape, lambda b: (0, 0)),   # weights stay
            pl.BlockSpec(packed["b1p"].shape, lambda b: (0, 0)),   # VMEM-resident
            pl.BlockSpec(packed["w2t"].shape, lambda b: (0, 0)),
            pl.BlockSpec(packed["b2p"].shape, lambda b: (0, 0)),
            pl.BlockSpec(packed["f1w"].shape, lambda b: (0, 0)),
            pl.BlockSpec(packed["f1b"].shape, lambda b: (0, 0)),
            pl.BlockSpec(packed["f2w"].shape, lambda b: (0, 0)),
            pl.BlockSpec(packed["f2b"].shape, lambda b: (0, 0)),
        ],
        out_specs=pl.BlockSpec((nc, tb), lambda b: (0, b)),
        scratch_shapes=[
            pltpu.VMEM((12 * 128, tb), jnp.bfloat16),   # pooled conv1 (padded rows)
            pltpu.VMEM((320, tb), jnp.bfloat16),        # pooled conv2 / flat feats
        ],
        compiler_params=pltpu.CompilerParams(
            dimension_semantics=("parallel",),          # megacore on v7x
            vmem_limit_bytes=32 * 1024 * 1024,          # fits v5e/v6e/v7x budgets
        ),
    )(xp, packed["w1t"], packed["b1p"], packed["w2t"], packed["b2p"],
      packed["f1w"], packed["f1b"], packed["f2w"], packed["f2b"])

    return out.T[:B]


# ----------------------------------------------------------------------------
# Parameter init (PyTorch layouts) and pure-JAX f32 reference for validation
# ----------------------------------------------------------------------------
def init_params(key, in_channels=1, num_classes=10):
    ks = jax.random.split(key, 8)
    return {
        "conv1_w": 0.1 * jax.random.normal(ks[0], (10, in_channels, 5, 5), jnp.float32),
        "conv1_b": 0.1 * jax.random.normal(ks[1], (10,), jnp.float32),
        "conv2_w": 0.05 * jax.random.normal(ks[2], (20, 10, 5, 5), jnp.float32),
        "conv2_b": 0.1 * jax.random.normal(ks[3], (20,), jnp.float32),
        "fc1_w": 0.05 * jax.random.normal(ks[4], (50, 320), jnp.float32),
        "fc1_b": 0.1 * jax.random.normal(ks[5], (50,), jnp.float32),
        "fc2_w": 0.1 * jax.random.normal(ks[6], (num_classes, 50), jnp.float32),
        "fc2_b": 0.1 * jax.random.normal(ks[7], (num_classes,), jnp.float32),
    }


def _reference_forward(params, x):
    y = jax.lax.conv_general_dilated(
        x, params["conv1_w"], window_strides=(1, 1), padding="VALID",
        dimension_numbers=("NCHW", "OIHW", "NCHW"))
    y = y + params["conv1_b"].reshape(1, -1, 1, 1)
    y = jax.lax.reduce_window(y, -jnp.inf, jax.lax.max,
                              (1, 1, 2, 2), (1, 1, 2, 2), "VALID")
    y = jnp.maximum(y, 0.0)
    y = jax.lax.conv_general_dilated(
        y, params["conv2_w"], window_strides=(1, 1), padding="VALID",
        dimension_numbers=("NCHW", "OIHW", "NCHW"))
    y = y + params["conv2_b"].reshape(1, -1, 1, 1)
    y = jax.lax.reduce_window(y, -jnp.inf, jax.lax.max,
                              (1, 1, 2, 2), (1, 1, 2, 2), "VALID")
    y = jnp.maximum(y, 0.0)
    y = y.reshape(y.shape[0], -1)                         # (c, h, w) flatten
    y = jnp.maximum(y @ params["fc1_w"].T + params["fc1_b"], 0.0)
    return y @ params["fc2_w"].T + params["fc2_b"]


if __name__ == "__main__":
    key = jax.random.PRNGKey(0)
    k_param, k_x = jax.random.split(key)
    params = init_params(k_param, in_channels=1, num_classes=10)
    packed = pack_params(params)

    # MNIST-shaped input: fc1 expects 20*4*4 = 320 features -> spatial is 28.
    x = jax.random.normal(k_x, (2, 1, 28, 28), jnp.float32)

    fwd = jax.jit(mnist_cnn_forward)
    out = jax.block_until_ready(fwd(packed, x))
    assert out.shape == (2, 10), out.shape
    assert out.dtype == jnp.float32

    # bf16 MXU operands (f32 accumulation) -> compare against f32 reference
    # with a correspondingly loosened tolerance.
    ref = jax.block_until_ready(_reference_forward(params, x))
    assert jnp.allclose(out, ref, atol=5e-2, rtol=5e-2), (
        "max abs diff vs reference: %e" % float(jnp.max(jnp.abs(out - ref))))

    print("KERNEL_OK")
</pallas_src>

<mosaic_0001>
module attributes {stable_mosaic.version = 11 : i64} {
  func.func @_fused_mnist_kernel(%arg0: i32, %arg1: memref<896x128xbf16, #tpu.memory_space<vmem>>, %arg2: memref<512x192xbf16, #tpu.memory_space<vmem>>, %arg3: memref<128x1xf32, #tpu.memory_space<vmem>>, %arg4: memref<320x768xbf16, #tpu.memory_space<vmem>>, %arg5: memref<80x1xf32, #tpu.memory_space<vmem>>, %arg6: memref<50x320xbf16, #tpu.memory_space<vmem>>, %arg7: memref<50x1xf32, #tpu.memory_space<vmem>>, %arg8: memref<10x50xbf16, #tpu.memory_space<vmem>>, %arg9: memref<10x1xf32, #tpu.memory_space<vmem>>, %arg10: memref<10x128xf32, #tpu.memory_space<vmem>>, %arg11: memref<1536x128xbf16, #tpu.memory_space<vmem>>, %arg12: memref<320x128xbf16, #tpu.memory_space<vmem>>) attributes {dimension_semantics = [#tpu.dimension_semantics<parallel>], iteration_bounds = array<i64: 1>, scalar_prefetch = 0 : i64, scratch_operands = 2 : i64, tpu.core_type = #tpu.core_type<tc>, window_params = [{transform_indices = @transform_0, window_bounds = array<i64: 896, 128>}, {pipeline_mode = #tpu.pipeline_mode<synchronous>, transform_indices = @transform_1, window_bounds = array<i64: 512, 192>}, {pipeline_mode = #tpu.pipeline_mode<synchronous>, transform_indices = @transform_2, window_bounds = array<i64: 128, 1>}, {pipeline_mode = #tpu.pipeline_mode<synchronous>, transform_indices = @transform_3, window_bounds = array<i64: 320, 768>}, {pipeline_mode = #tpu.pipeline_mode<synchronous>, transform_indices = @transform_4, window_bounds = array<i64: 80, 1>}, {pipeline_mode = #tpu.pipeline_mode<synchronous>, transform_indices = @transform_5, window_bounds = array<i64: 50, 320>}, {pipeline_mode = #tpu.pipeline_mode<synchronous>, transform_indices = @transform_6, window_bounds = array<i64: 50, 1>}, {pipeline_mode = #tpu.pipeline_mode<synchronous>, transform_indices = @transform_7, window_bounds = array<i64: 10, 50>}, {pipeline_mode = #tpu.pipeline_mode<synchronous>, transform_indices = @transform_8, window_bounds = array<i64: 10, 1>}, {transform_indices = @transform_9, window_bounds = array<i64: 10, 128>}]} {
    %c0 = arith.constant 0 : index
    %c0_0 = arith.constant 0 : index
    %0 = vector.load %arg2[%c0, %c0_0] : memref<512x192xbf16, #tpu.memory_space<vmem>>, vector<512x192xbf16>
    %c0_1 = arith.constant 0 : index
    %c0_2 = arith.constant 0 : index
    %1 = vector.load %arg3[%c0_1, %c0_2] : memref<128x1xf32, #tpu.memory_space<vmem>>, vector<128x1xf32>
    %c0_3 = arith.constant 0 : index
    %c0_4 = arith.constant 0 : index
    %2 = vector.load %arg4[%c0_3, %c0_4] : memref<320x768xbf16, #tpu.memory_space<vmem>>, vector<320x768xbf16>
    %c0_5 = arith.constant 0 : index
    %c0_6 = arith.constant 0 : index
    %3 = vector.load %arg5[%c0_5, %c0_6] : memref<80x1xf32, #tpu.memory_space<vmem>>, vector<80x1xf32>
    %c0_7 = arith.constant 0 : index
    %c0_8 = arith.constant 0 : index
    %4 = vector.load %arg1[%c0_7, %c0_8] : memref<896x128xbf16, #tpu.memory_space<vmem>>, vector<192x128xbf16>
    %cst = arith.constant dense<0.000000e+00> : vector<512x128xf32>
    %5 = tpu.matmul %0, %4, %cst {dimension_numbers = #tpu.dot_dimension_numbers<[1], [0], [0], [1], [0, 0, 1, 1], [], []>} : vector<512x192xbf16>, vector<192x128xbf16>, vector<512x128xf32> -> vector<512x128xf32>
    %6 = vector.extract_strided_slice %5 {offsets = [0, 0], sizes = [256, 128], strides = [1, 1]} : vector<512x128xf32> to vector<256x128xf32>
    %7 = vector.extract_strided_slice %5 {offsets = [256, 0], sizes = [256, 128], strides = [1, 1]} : vector<512x128xf32> to vector<256x128xf32>
    %8 = arith.maximumf %6, %7 : vector<256x128xf32>
    %9 = vector.extract_strided_slice %8 {offsets = [0, 0], sizes = [128, 128], strides = [1, 1]} : vector<256x128xf32> to vector<128x128xf32>
    %10 = vector.extract_strided_slice %8 {offsets = [128, 0], sizes = [128, 128], strides = [1, 1]} : vector<256x128xf32> to vector<128x128xf32>
    %11 = arith.maximumf %9, %10 : vector<128x128xf32>
    %12 = vector.broadcast %1 : vector<128x1xf32> to vector<128x128xf32>
    %13 = arith.addf %11, %12 : vector<128x128xf32>
    %cst_9 = arith.constant 0.000000e+00 : f32
    %14 = vector.broadcast %cst_9 : f32 to vector<128x128xf32>
    %15 = arith.maximumf %13, %14 : vector<128x128xf32>
    %16 = arith.truncf %15 : vector<128x128xf32> to vector<128x128xbf16>
    %c0_10 = arith.constant 0 : index
    %c0_11 = arith.constant 0 : index
    %17 = vector.load %arg11[%c0_10, %c0_11] : memref<1536x128xbf16, #tpu.memory_space<vmem>>, vector<128x128xbf16>
    tpu.vector_store %arg11[%c0_10, %c0_11], %16 {strides = array<i32>} : memref<1536x128xbf16, #tpu.memory_space<vmem>>, vector<128x128xbf16>,
    %c64 = arith.constant 64 : index
    %c0_12 = arith.constant 0 : index
    %18 = vector.load %arg1[%c64, %c0_12] : memref<896x128xbf16, #tpu.memory_space<vmem>>, vector<192x128xbf16>
    %cst_13 = arith.constant dense<0.000000e+00> : vector<512x128xf32>
    %19 = tpu.matmul %0, %18, %cst_13 {dimension_numbers = #tpu.dot_dimension_numbers<[1], [0], [0], [1], [0, 0, 1, 1], [], []>} : vector<512x192xbf16>, vector<192x128xbf16>, vector<512x128xf32> -> vector<512x128xf32>
    %20 = vector.extract_strided_slice %19 {offsets = [0, 0], sizes = [256, 128], strides = [1, 1]} : vector<512x128xf32> to vector<256x128xf32>
    %21 = vector.extract_strided_slice %19 {offsets = [256, 0], sizes = [256, 128], strides = [1, 1]} : vector<512x128xf32> to vector<256x128xf32>
    %22 = arith.maximumf %20, %21 : vector<256x128xf32>
    %23 = vector.extract_strided_slice %22 {offsets = [0, 0], sizes = [128, 128], strides = [1, 1]} : vector<256x128xf32> to vector<128x128xf32>
    %24 = vector.extract_strided_slice %22 {offsets = [128, 0], sizes = [128, 128], strides = [1, 1]} : vector<256x128xf32> to vector<128x128xf32>
    %25 = arith.maximumf %23, %24 : vector<128x128xf32>
    %26 = vector.broadcast %1 : vector<128x1xf32> to vector<128x128xf32>
    %27 = arith.addf %25, %26 : vector<128x128xf32>
    %cst_14 = arith.constant 0.000000e+00 : f32
    %28 = vector.broadcast %cst_14 : f32 to vector<128x128xf32>
    %29 = arith.maximumf %27, %28 : vector<128x128xf32>
    %30 = arith.truncf %29 : vector<128x128xf32> to vector<128x128xbf16>
    %c128 = arith.constant 128 : index
    %c0_15 = arith.constant 0 : index
    %31 = vector.load %arg11[%c128, %c0_15] : memref<1536x128xbf16, #tpu.memory_space<vmem>>, vector<128x128xbf16>
    tpu.vector_store %arg11[%c128, %c0_15], %30 {strides = array<i32>} : memref<1536x128xbf16, #tpu.memory_space<vmem>>, vector<128x128xbf16>,
    %c128_16 = arith.constant 128 : index
    %c0_17 = arith.constant 0 : index
    %32 = vector.load %arg1[%c128_16, %c0_17] : memref<896x128xbf16, #tpu.memory_space<vmem>>, vector<192x128xbf16>
    %cst_18 = arith.constant dense<0.000000e+00> : vector<512x128xf32>
    %33 = tpu.matmul %0, %32, %cst_18 {dimension_numbers = #tpu.dot_dimension_numbers<[1], [0], [0], [1], [0, 0, 1, 1], [], []>} : vector<512x192xbf16>, vector<192x128xbf16>, vector<512x128xf32> -> vector<512x128xf32>
    %34 = vector.extract_strided_slice %33 {offsets = [0, 0], sizes = [256, 128], strides = [1, 1]} : vector<512x128xf32> to vector<256x128xf32>
    %35 = vector.extract_strided_slice %33 {offsets = [256, 0], sizes = [256, 128], strides = [1, 1]} : vector<512x128xf32> to vector<256x128xf32>
    %36 = arith.maximumf %34, %35 : vector<256x128xf32>
    %37 = vector.extract_strided_slice %36 {offsets = [0, 0], sizes = [128, 128], strides = [1, 1]} : vector<256x128xf32> to vector<128x128xf32>
    %38 = vector.extract_strided_slice %36 {offsets = [128, 0], sizes = [128, 128], strides = [1, 1]} : vector<256x128xf32> to vector<128x128xf32>
    %39 = arith.maximumf %37, %38 : vector<128x128xf32>
    %40 = vector.broadcast %1 : vector<128x1xf32> to vector<128x128xf32>
    %41 = arith.addf %39, %40 : vector<128x128xf32>
    %cst_19 = arith.constant 0.000000e+00 : f32
    %42 = vector.broadcast %cst_19 : f32 to vector<128x128xf32>
    %43 = arith.maximumf %41, %42 : vector<128x128xf32>
    %44 = arith.truncf %43 : vector<128x128xf32> to vector<128x128xbf16>
    %c256 = arith.constant 256 : index
    %c0_20 = arith.constant 0 : index
    %45 = vector.load %arg11[%c256, %c0_20] : memref<1536x128xbf16, #tpu.memory_space<vmem>>, vector<128x128xbf16>
    tpu.vector_store %arg11[%c256, %c0_20], %44 {strides = array<i32>} : memref<1536x128xbf16, #tpu.memory_space<vmem>>, vector<128x128xbf16>,
    %c192 = arith.constant 192 : index
    %c0_21 = arith.constant 0 : index
    %46 = vector.load %arg1[%c192, %c0_21] : memref<896x128xbf16, #tpu.memory_space<vmem>>, vector<192x128xbf16>
    %cst_22 = arith.constant dense<0.000000e+00> : vector<512x128xf32>
    %47 = tpu.matmul %0, %46, %cst_22 {dimension_numbers = #tpu.dot_dimension_numbers<[1], [0], [0], [1], [0, 0, 1, 1], [], []>} : vector<512x192xbf16>, vector<192x128xbf16>, vector<512x128xf32> -> vector<512x128xf32>
    %48 = vector.extract_strided_slice %47 {offsets = [0, 0], sizes = [256, 128], strides = [1, 1]} : vector<512x128xf32> to vector<256x128xf32>
    %49 = vector.extract_strided_slice %47 {offsets = [256, 0], sizes = [256, 128], strides = [1, 1]} : vector<512x128xf32> to vector<256x128xf32>
    %50 = arith.maximumf %48, %49 : vector<256x128xf32>
    %51 = vector.extract_strided_slice %50 {offsets = [0, 0], sizes = [128, 128], strides = [1, 1]} : vector<256x128xf32> to vector<128x128xf32>
    %52 = vector.extract_strided_slice %50 {offsets = [128, 0], sizes = [128, 128], strides = [1, 1]} : vector<256x128xf32> to vector<128x128xf32>
    %53 = arith.maximumf %51, %52 : vector<128x128xf32>
    %54 = vector.broadcast %1 : vector<128x1xf32> to vector<128x128xf32>
    %55 = arith.addf %53, %54 : vector<128x128xf32>
    %cst_23 = arith.constant 0.000000e+00 : f32
    %56 = vector.broadcast %cst_23 : f32 to vector<128x128xf32>
    %57 = arith.maximumf %55, %56 : vector<128x128xf32>
    %58 = arith.truncf %57 : vector<128x128xf32> to vector<128x128xbf16>
    %c384 = arith.constant 384 : index
    %c0_24 = arith.constant 0 : index
    %59 = vector.load %arg11[%c384, %c0_24] : memref<1536x128xbf16, #tpu.memory_space<vmem>>, vector<128x128xbf16>
    tpu.vector_store %arg11[%c384, %c0_24], %58 {strides = array<i32>} : memref<1536x128xbf16, #tpu.memory_space<vmem>>, vector<128x128xbf16>,
    %c256_25 = arith.constant 256 : index
    %c0_26 = arith.constant 0 : index
    %60 = vector.load %arg1[%c256_25, %c0_26] : memref<896x128xbf16, #tpu.memory_space<vmem>>, vector<192x128xbf16>
    %cst_27 = arith.constant dense<0.000000e+00> : vector<512x128xf32>
    %61 = tpu.matmul %0, %60, %cst_27 {dimension_numbers = #tpu.dot_dimension_numbers<[1], [0], [0], [1], [0, 0, 1, 1], [], []>} : vector<512x192xbf16>, vector<192x128xbf16>, vector<512x128xf32> -> vector<512x128xf32>
    %62 = vector.extract_strided_slice %61 {offsets = [0, 0], sizes = [256, 128], strides = [1, 1]} : vector<512x128xf32> to vector<256x128xf32>
    %63 = vector.extract_strided_slice %61 {offsets = [256, 0], sizes = [256, 128], strides = [1, 1]} : vector<512x128xf32> to vector<256x128xf32>
    %64 = arith.maximumf %62, %63 : vector<256x128xf32>
    %65 = vector.extract_strided_slice %64 {offsets = [0, 0], sizes = [128, 128], strides = [1, 1]} : vector<256x128xf32> to vector<128x128xf32>
    %66 = vector.extract_strided_slice %64 {offsets = [128, 0], sizes = [128, 128], strides = [1, 1]} : vector<256x128xf32> to vector<128x128xf32>
    %67 = arith.maximumf %65, %66 : vector<128x128xf32>
    %68 = vector.broadcast %1 : vector<128x1xf32> to vector<128x128xf32>
    %69 = arith.addf %67, %68 : vector<128x128xf32>
    %cst_28 = arith.constant 0.000000e+00 : f32
    %70 = vector.broadcast %cst_28 : f32 to vector<128x128xf32>
    %71 = arith.maximumf %69, %70 : vector<128x128xf32>
    %72 = arith.truncf %71 : vector<128x128xf32> to vector<128x128xbf16>
    %c512 = arith.constant 512 : index
    %c0_29 = arith.constant 0 : index
    %73 = vector.load %arg11[%c512, %c0_29] : memref<1536x128xbf16, #tpu.memory_space<vmem>>, vector<128x128xbf16>
    tpu.vector_store %arg11[%c512, %c0_29], %72 {strides = array<i32>} : memref<1536x128xbf16, #tpu.memory_space<vmem>>, vector<128x128xbf16>,
    %c320 = arith.constant 320 : index
    %c0_30 = arith.constant 0 : index
    %74 = vector.load %arg1[%c320, %c0_30] : memref<896x128xbf16, #tpu.memory_space<vmem>>, vector<192x128xbf16>
    %cst_31 = arith.constant dense<0.000000e+00> : vector<512x128xf32>
    %75 = tpu.matmul %0, %74, %cst_31 {dimension_numbers = #tpu.dot_dimension_numbers<[1], [0], [0], [1], [0, 0, 1, 1], [], []>} : vector<512x192xbf16>, vector<192x128xbf16>, vector<512x128xf32> -> vector<512x128xf32>
    %76 = vector.extract_strided_slice %75 {offsets = [0, 0], sizes = [256, 128], strides = [1, 1]} : vector<512x128xf32> to vector<256x128xf32>
    %77 = vector.extract_strided_slice %75 {offsets = [256, 0], sizes = [256, 128], strides = [1, 1]} : vector<512x128xf32> to vector<256x128xf32>
    %78 = arith.maximumf %76, %77 : vector<256x128xf32>
    %79 = vector.extract_strided_slice %78 {offsets = [0, 0], sizes = [128, 128], strides = [1, 1]} : vector<256x128xf32> to vector<128x128xf32>
    %80 = vector.extract_strided_slice %78 {offsets = [128, 0], sizes = [128, 128], strides = [1, 1]} : vector<256x128xf32> to vector<128x128xf32>
    %81 = arith.maximumf %79, %80 : vector<128x128xf32>
    %82 = vector.broadcast %1 : vector<128x1xf32> to vector<128x128xf32>
    %83 = arith.addf %81, %82 : vector<128x128xf32>
    %cst_32 = arith.constant 0.000000e+00 : f32
    %84 = vector.broadcast %cst_32 : f32 to vector<128x128xf32>
    %85 = arith.maximumf %83, %84 : vector<128x128xf32>
    %86 = arith.truncf %85 : vector<128x128xf32> to vector<128x128xbf16>
    %c640 = arith.constant 640 : index
    %c0_33 = arith.constant 0 : index
    %87 = vector.load %arg11[%c640, %c0_33] : memref<1536x128xbf16, #tpu.memory_space<vmem>>, vector<128x128xbf16>
    tpu.vector_store %arg11[%c640, %c0_33], %86 {strides = array<i32>} : memref<1536x128xbf16, #tpu.memory_space<vmem>>, vector<128x128xbf16>,
    %c384_34 = arith.constant 384 : index
    %c0_35 = arith.constant 0 : index
    %88 = vector.load %arg1[%c384_34, %c0_35] : memref<896x128xbf16, #tpu.memory_space<vmem>>, vector<192x128xbf16>
    %cst_36 = arith.constant dense<0.000000e+00> : vector<512x128xf32>
    %89 = tpu.matmul %0, %88, %cst_36 {dimension_numbers = #tpu.dot_dimension_numbers<[1], [0], [0], [1], [0, 0, 1, 1], [], []>} : vector<512x192xbf16>, vector<192x128xbf16>, vector<512x128xf32> -> vector<512x128xf32>
    %90 = vector.extract_strided_slice %89 {offsets = [0, 0], sizes = [256, 128], strides = [1, 1]} : vector<512x128xf32> to vector<256x128xf32>
    %91 = vector.extract_strided_slice %89 {offsets = [256, 0], sizes = [256, 128], strides = [1, 1]} : vector<512x128xf32> to vector<256x128xf32>
    %92 = arith.maximumf %90, %91 : vector<256x128xf32>
    %93 = vector.extract_strided_slice %92 {offsets = [0, 0], sizes = [128, 128], strides = [1, 1]} : vector<256x128xf32> to vector<128x128xf32>
    %94 = vector.extract_strided_slice %92 {offsets = [128, 0], sizes = [128, 128], strides = [1, 1]} : vector<256x128xf32> to vector<128x128xf32>
    %95 = arith.maximumf %93, %94 : vector<128x128xf32>
    %96 = vector.broadcast %1 : vector<128x1xf32> to vector<128x128xf32>
    %97 = arith.addf %95, %96 : vector<128x128xf32>
    %cst_37 = arith.constant 0.000000e+00 : f32
    %98 = vector.broadcast %cst_37 : f32 to vector<128x128xf32>
    %99 = arith.maximumf %97, %98 : vector<128x128xf32>
    %100 = arith.truncf %99 : vector<128x128xf32> to vector<128x128xbf16>
    %c768 = arith.constant 768 : index
    %c0_38 = arith.constant 0 : index
    %101 = vector.load %arg11[%c768, %c0_38] : memref<1536x128xbf16, #tpu.memory_space<vmem>>, vector<128x128xbf16>
    tpu.vector_store %arg11[%c768, %c0_38], %100 {strides = array<i32>} : memref<1536x128xbf16, #tpu.memory_space<vmem>>, vector<128x128xbf16>,
    %c448 = arith.constant 448 : index
    %c0_39 = arith.constant 0 : index
    %102 = vector.load %arg1[%c448, %c0_39] : memref<896x128xbf16, #tpu.memory_space<vmem>>, vector<192x128xbf16>
    %cst_40 = arith.constant dense<0.000000e+00> : vector<512x128xf32>
    %103 = tpu.matmul %0, %102, %cst_40 {dimension_numbers = #tpu.dot_dimension_numbers<[1], [0], [0], [1], [0, 0, 1, 1], [], []>} : vector<512x192xbf16>, vector<192x128xbf16>, vector<512x128xf32> -> vector<512x128xf32>
    %104 = vector.extract_strided_slice %103 {offsets = [0, 0], sizes = [256, 128], strides = [1, 1]} : vector<512x128xf32> to vector<256x128xf32>
    %105 = vector.extract_strided_slice %103 {offsets = [256, 0], sizes = [256, 128], strides = [1, 1]} : vector<512x128xf32> to vector<256x128xf32>
    %106 = arith.maximumf %104, %105 : vector<256x128xf32>
    %107 = vector.extract_strided_slice %106 {offsets = [0, 0], sizes = [128, 128], strides = [1, 1]} : vector<256x128xf32> to vector<128x128xf32>
    %108 = vector.extract_strided_slice %106 {offsets = [128, 0], sizes = [128, 128], strides = [1, 1]} : vector<256x128xf32> to vector<128x128xf32>
    %109 = arith.maximumf %107, %108 : vector<128x128xf32>
    %110 = vector.broadcast %1 : vector<128x1xf32> to vector<128x128xf32>
    %111 = arith.addf %109, %110 : vector<128x128xf32>
    %cst_41 = arith.constant 0.000000e+00 : f32
    %112 = vector.broadcast %cst_41 : f32 to vector<128x128xf32>
    %113 = arith.maximumf %111, %112 : vector<128x128xf32>
    %114 = arith.truncf %113 : vector<128x128xf32> to vector<128x128xbf16>
    %c896 = arith.constant 896 : index
    %c0_42 = arith.constant 0 : index
    %115 = vector.load %arg11[%c896, %c0_42] : memref<1536x128xbf16, #tpu.memory_space<vmem>>, vector<128x128xbf16>
    tpu.vector_store %arg11[%c896, %c0_42], %114 {strides = array<i32>} : memref<1536x128xbf16, #tpu.memory_space<vmem>>, vector<128x128xbf16>,
    %c512_43 = arith.constant 512 : index
    %c0_44 = arith.constant 0 : index
    %116 = vector.load %arg1[%c512_43, %c0_44] : memref<896x128xbf16, #tpu.memory_space<vmem>>, vector<192x128xbf16>
    %cst_45 = arith.constant dense<0.000000e+00> : vector<512x128xf32>
    %117 = tpu.matmul %0, %116, %cst_45 {dimension_numbers = #tpu.dot_dimension_numbers<[1], [0], [0], [1], [0, 0, 1, 1], [], []>} : vector<512x192xbf16>, vector<192x128xbf16>, vector<512x128xf32> -> vector<512x128xf32>
    %118 = vector.extract_strided_slice %117 {offsets = [0, 0], sizes = [256, 128], strides = [1, 1]} : vector<512x128xf32> to vector<256x128xf32>
    %119 = vector.extract_strided_slice %117 {offsets = [256, 0], sizes = [256, 128], strides = [1, 1]} : vector<512x128xf32> to vector<256x128xf32>
    %120 = arith.maximumf %118, %119 : vector<256x128xf32>
    %121 = vector.extract_strided_slice %120 {offsets = [0, 0], sizes = [128, 128], strides = [1, 1]} : vector<256x128xf32> to vector<128x128xf32>
    %122 = vector.extract_strided_slice %120 {offsets = [128, 0], sizes = [128, 128], strides = [1, 1]} : vector<256x128xf32> to vector<128x128xf32>
    %123 = arith.maximumf %121, %122 : vector<128x128xf32>
    %124 = vector.broadcast %1 : vector<128x1xf32> to vector<128x128xf32>
    %125 = arith.addf %123, %124 : vector<128x128xf32>
    %cst_46 = arith.constant 0.000000e+00 : f32
    %126 = vector.broadcast %cst_46 : f32 to vector<128x128xf32>
    %127 = arith.maximumf %125, %126 : vector<128x128xf32>
    %128 = arith.truncf %127 : vector<128x128xf32> to vector<128x128xbf16>
    %c1024 = arith.constant 1024 : index
    %c0_47 = arith.constant 0 : index
    %129 = vector.load %arg11[%c1024, %c0_47] : memref<1536x128xbf16, #tpu.memory_space<vmem>>, vector<128x128xbf16>
    tpu.vector_store %arg11[%c1024, %c0_47], %128 {strides = array<i32>} : memref<1536x128xbf16, #tpu.memory_space<vmem>>, vector<128x128xbf16>,
    %c576 = arith.constant 576 : index
    %c0_48 = arith.constant 0 : index
    %130 = vector.load %arg1[%c576, %c0_48] : memref<896x128xbf16, #tpu.memory_space<vmem>>, vector<192x128xbf16>
    %cst_49 = arith.constant dense<0.000000e+00> : vector<512x128xf32>
    %131 = tpu.matmul %0, %130, %cst_49 {dimension_numbers = #tpu.dot_dimension_numbers<[1], [0], [0], [1], [0, 0, 1, 1], [], []>} : vector<512x192xbf16>, vector<192x128xbf16>, vector<512x128xf32> -> vector<512x128xf32>
    %132 = vector.extract_strided_slice %131 {offsets = [0, 0], sizes = [256, 128], strides = [1, 1]} : vector<512x128xf32> to vector<256x128xf32>
    %133 = vector.extract_strided_slice %131 {offsets = [256, 0], sizes = [256, 128], strides = [1, 1]} : vector<512x128xf32> to vector<256x128xf32>
    %134 = arith.maximumf %132, %133 : vector<256x128xf32>
    %135 = vector.extract_strided_slice %134 {offsets = [0, 0], sizes = [128, 128], strides = [1, 1]} : vector<256x128xf32> to vector<128x128xf32>
    %136 = vector.extract_strided_slice %134 {offsets = [128, 0], sizes = [128, 128], strides = [1, 1]} : vector<256x128xf32> to vector<128x128xf32>
    %137 = arith.maximumf %135, %136 : vector<128x128xf32>
    %138 = vector.broadcast %1 : vector<128x1xf32> to vector<128x128xf32>
    %139 = arith.addf %137, %138 : vector<128x128xf32>
    %cst_50 = arith.constant 0.000000e+00 : f32
    %140 = vector.broadcast %cst_50 : f32 to vector<128x128xf32>
    %141 = arith.maximumf %139, %140 : vector<128x128xf32>
    %142 = arith.truncf %141 : vector<128x128xf32> to vector<128x128xbf16>
    %c1152 = arith.constant 1152 : index
    %c0_51 = arith.constant 0 : index
    %143 = vector.load %arg11[%c1152, %c0_51] : memref<1536x128xbf16, #tpu.memory_space<vmem>>, vector<128x128xbf16>
    tpu.vector_store %arg11[%c1152, %c0_51], %142 {strides = array<i32>} : memref<1536x128xbf16, #tpu.memory_space<vmem>>, vector<128x128xbf16>,
    %c640_52 = arith.constant 640 : index
    %c0_53 = arith.constant 0 : index
    %144 = vector.load %arg1[%c640_52, %c0_53] : memref<896x128xbf16, #tpu.memory_space<vmem>>, vector<192x128xbf16>
    %cst_54 = arith.constant dense<0.000000e+00> : vector<512x128xf32>
    %145 = tpu.matmul %0, %144, %cst_54 {dimension_numbers = #tpu.dot_dimension_numbers<[1], [0], [0], [1], [0, 0, 1, 1], [], []>} : vector<512x192xbf16>, vector<192x128xbf16>, vector<512x128xf32> -> vector<512x128xf32>
    %146 = vector.extract_strided_slice %145 {offsets = [0, 0], sizes = [256, 128], strides = [1, 1]} : vector<512x128xf32> to vector<256x128xf32>
    %147 = vector.extract_strided_slice %145 {offsets = [256, 0], sizes = [256, 128], strides = [1, 1]} : vector<512x128xf32> to vector<256x128xf32>
    %148 = arith.maximumf %146, %147 : vector<256x128xf32>
    %149 = vector.extract_strided_slice %148 {offsets = [0, 0], sizes = [128, 128], strides = [1, 1]} : vector<256x128xf32> to vector<128x128xf32>
    %150 = vector.extract_strided_slice %148 {offsets = [128, 0], sizes = [128, 128], strides = [1, 1]} : vector<256x128xf32> to vector<128x128xf32>
    %151 = arith.maximumf %149, %150 : vector<128x128xf32>
    %152 = vector.broadcast %1 : vector<128x1xf32> to vector<128x128xf32>
    %153 = arith.addf %151, %152 : vector<128x128xf32>
    %cst_55 = arith.constant 0.000000e+00 : f32
    %154 = vector.broadcast %cst_55 : f32 to vector<128x128xf32>
    %155 = arith.maximumf %153, %154 : vector<128x128xf32>
    %156 = arith.truncf %155 : vector<128x128xf32> to vector<128x128xbf16>
    %c1280 = arith.constant 1280 : index
    %c0_56 = arith.constant 0 : index
    %157 = vector.load %arg11[%c1280, %c0_56] : memref<1536x128xbf16, #tpu.memory_space<vmem>>, vector<128x128xbf16>
    tpu.vector_store %arg11[%c1280, %c0_56], %156 {strides = array<i32>} : memref<1536x128xbf16, #tpu.memory_space<vmem>>, vector<128x128xbf16>,
    %c704 = arith.constant 704 : index
    %c0_57 = arith.constant 0 : index
    %158 = vector.load %arg1[%c704, %c0_57] : memref<896x128xbf16, #tpu.memory_space<vmem>>, vector<192x128xbf16>
    %cst_58 = arith.constant dense<0.000000e+00> : vector<512x128xf32>
    %159 = tpu.matmul %0, %158, %cst_58 {dimension_numbers = #tpu.dot_dimension_numbers<[1], [0], [0], [1], [0, 0, 1, 1], [], []>} : vector<512x192xbf16>, vector<192x128xbf16>, vector<512x128xf32> -> vector<512x128xf32>
    %160 = vector.extract_strided_slice %159 {offsets = [0, 0], sizes = [256, 128], strides = [1, 1]} : vector<512x128xf32> to vector<256x128xf32>
    %161 = vector.extract_strided_slice %159 {offsets = [256, 0], sizes = [256, 128], strides = [1, 1]} : vector<512x128xf32> to vector<256x128xf32>
    %162 = arith.maximumf %160, %161 : vector<256x128xf32>
    %163 = vector.extract_strided_slice %162 {offsets = [0, 0], sizes = [128, 128], strides = [1, 1]} : vector<256x128xf32> to vector<128x128xf32>
    %164 = vector.extract_strided_slice %162 {offsets = [128, 0], sizes = [128, 128], strides = [1, 1]} : vector<256x128xf32> to vector<128x128xf32>
    %165 = arith.maximumf %163, %164 : vector<128x128xf32>
    %166 = vector.broadcast %1 : vector<128x1xf32> to vector<128x128xf32>
    %167 = arith.addf %165, %166 : vector<128x128xf32>
    %cst_59 = arith.constant 0.000000e+00 : f32
    %168 = vector.broadcast %cst_59 : f32 to vector<128x128xf32>
    %169 = arith.maximumf %167, %168 : vector<128x128xf32>
    %170 = arith.truncf %169 : vector<128x128xf32> to vector<128x128xbf16>
    %c1408 = arith.constant 1408 : index
    %c0_60 = arith.constant 0 : index
    %171 = vector.load %arg11[%c1408, %c0_60] : memref<1536x128xbf16, #tpu.memory_space<vmem>>, vector<128x128xbf16>
    tpu.vector_store %arg11[%c1408, %c0_60], %170 {strides = array<i32>} : memref<1536x128xbf16, #tpu.memory_space<vmem>>, vector<128x128xbf16>,
    %c0_61 = arith.constant 0 : index
    %c0_62 = arith.constant 0 : index
    %172 = vector.load %arg11[%c0_61, %c0_62] : memref<1536x128xbf16, #tpu.memory_space<vmem>>, vector<768x128xbf16>
    %cst_63 = arith.constant dense<0.000000e+00> : vector<320x128xf32>
    %173 = tpu.matmul %2, %172, %cst_63 {dimension_numbers = #tpu.dot_dimension_numbers<[1], [0], [0], [1], [0, 0, 1, 1], [], []>} : vector<320x768xbf16>, vector<768x128xbf16>, vector<320x128xf32> -> vector<320x128xf32>
    %174 = vector.extract_strided_slice %173 {offsets = [0, 0], sizes = [160, 128], strides = [1, 1]} : vector<320x128xf32> to vector<160x128xf32>
    %175 = vector.extract_strided_slice %173 {offsets = [160, 0], sizes = [160, 128], strides = [1, 1]} : vector<320x128xf32> to vector<160x128xf32>
    %176 = arith.maximumf %174, %175 : vector<160x128xf32>
    %177 = vector.extract_strided_slice %176 {offsets = [0, 0], sizes = [80, 128], strides = [1, 1]} : vector<160x128xf32> to vector<80x128xf32>
    %178 = vector.extract_strided_slice %176 {offsets = [80, 0], sizes = [80, 128], strides = [1, 1]} : vector<160x128xf32> to vector<80x128xf32>
    %179 = arith.maximumf %177, %178 : vector<80x128xf32>
    %180 = vector.broadcast %3 : vector<80x1xf32> to vector<80x128xf32>
    %181 = arith.addf %179, %180 : vector<80x128xf32>
    %cst_64 = arith.constant 0.000000e+00 : f32
    %182 = vector.broadcast %cst_64 : f32 to vector<80x128xf32>
    %183 = arith.maximumf %181, %182 : vector<80x128xf32>
    %184 = arith.truncf %183 : vector<80x128xf32> to vector<80x128xbf16>
    %c0_65 = arith.constant 0 : index
    %c0_66 = arith.constant 0 : index
    %185 = vector.load %arg12[%c0_65, %c0_66] : memref<320x128xbf16, #tpu.memory_space<vmem>>, vector<80x128xbf16>
    tpu.vector_store %arg12[%c0_65, %c0_66], %184 {strides = array<i32>} : memref<320x128xbf16, #tpu.memory_space<vmem>>, vector<80x128xbf16>,
    %c256_67 = arith.constant 256 : index
    %c0_68 = arith.constant 0 : index
    %186 = vector.load %arg11[%c256_67, %c0_68] : memref<1536x128xbf16, #tpu.memory_space<vmem>>, vector<768x128xbf16>
    %cst_69 = arith.constant dense<0.000000e+00> : vector<320x128xf32>
    %187 = tpu.matmul %2, %186, %cst_69 {dimension_numbers = #tpu.dot_dimension_numbers<[1], [0], [0], [1], [0, 0, 1, 1], [], []>} : vector<320x768xbf16>, vector<768x128xbf16>, vector<320x128xf32> -> vector<320x128xf32>
    %188 = vector.extract_strided_slice %187 {offsets = [0, 0], sizes = [160, 128], strides = [1, 1]} : vector<320x128xf32> to vector<160x128xf32>
    %189 = vector.extract_strided_slice %187 {offsets = [160, 0], sizes = [160, 128], strides = [1, 1]} : vector<320x128xf32> to vector<160x128xf32>
    %190 = arith.maximumf %188, %189 : vector<160x128xf32>
    %191 = vector.extract_strided_slice %190 {offsets = [0, 0], sizes = [80, 128], strides = [1, 1]} : vector<160x128xf32> to vector<80x128xf32>
    %192 = vector.extract_strided_slice %190 {offsets = [80, 0], sizes = [80, 128], strides = [1, 1]} : vector<160x128xf32> to vector<80x128xf32>
    %193 = arith.maximumf %191, %192 : vector<80x128xf32>
    %194 = vector.broadcast %3 : vector<80x1xf32> to vector<80x128xf32>
    %195 = arith.addf %193, %194 : vector<80x128xf32>
    %cst_70 = arith.constant 0.000000e+00 : f32
    %196 = vector.broadcast %cst_70 : f32 to vector<80x128xf32>
    %197 = arith.maximumf %195, %196 : vector<80x128xf32>
    %198 = arith.truncf %197 : vector<80x128xf32> to vector<80x128xbf16>
    %c80 = arith.constant 80 : index
    %c0_71 = arith.constant 0 : index
    %199 = vector.load %arg12[%c80, %c0_71] : memref<320x128xbf16, #tpu.memory_space<vmem>>, vector<80x128xbf16>
    tpu.vector_store %arg12[%c80, %c0_71], %198 {strides = array<i32>} : memref<320x128xbf16, #tpu.memory_space<vmem>>, vector<80x128xbf16>,
    %c512_72 = arith.constant 512 : index
    %c0_73 = arith.constant 0 : index
    %200 = vector.load %arg11[%c512_72, %c0_73] : memref<1536x128xbf16, #tpu.memory_space<vmem>>, vector<768x128xbf16>
    %cst_74 = arith.constant dense<0.000000e+00> : vector<320x128xf32>
    %201 = tpu.matmul %2, %200, %cst_74 {dimension_numbers = #tpu.dot_dimension_numbers<[1], [0], [0], [1], [0, 0, 1, 1], [], []>} : vector<320x768xbf16>, vector<768x128xbf16>, vector<320x128xf32> -> vector<320x128xf32>
    %202 = vector.extract_strided_slice %201 {offsets = [0, 0], sizes = [160, 128], strides = [1, 1]} : vector<320x128xf32> to vector<160x128xf32>
    %203 = vector.extract_strided_slice %201 {offsets = [160, 0], sizes = [160, 128], strides = [1, 1]} : vector<320x128xf32> to vector<160x128xf32>
    %204 = arith.maximumf %202, %203 : vector<160x128xf32>
    %205 = vector.extract_strided_slice %204 {offsets = [0, 0], sizes = [80, 128], strides = [1, 1]} : vector<160x128xf32> to vector<80x128xf32>
    %206 = vector.extract_strided_slice %204 {offsets = [80, 0], sizes = [80, 128], strides = [1, 1]} : vector<160x128xf32> to vector<80x128xf32>
    %207 = arith.maximumf %205, %206 : vector<80x128xf32>
    %208 = vector.broadcast %3 : vector<80x1xf32> to vector<80x128xf32>
    %209 = arith.addf %207, %208 : vector<80x128xf32>
    %cst_75 = arith.constant 0.000000e+00 : f32
    %210 = vector.broadcast %cst_75 : f32 to vector<80x128xf32>
    %211 = arith.maximumf %209, %210 : vector<80x128xf32>
    %212 = arith.truncf %211 : vector<80x128xf32> to vector<80x128xbf16>
    %c160 = arith.constant 160 : index
    %c0_76 = arith.constant 0 : index
    %213 = vector.load %arg12[%c160, %c0_76] : memref<320x128xbf16, #tpu.memory_space<vmem>>, vector<80x128xbf16>
    tpu.vector_store %arg12[%c160, %c0_76], %212 {strides = array<i32>} : memref<320x128xbf16, #tpu.memory_space<vmem>>, vector<80x128xbf16>,
    %c768_77 = arith.constant 768 : index
    %c0_78 = arith.constant 0 : index
    %214 = vector.load %arg11[%c768_77, %c0_78] : memref<1536x128xbf16, #tpu.memory_space<vmem>>, vector<768x128xbf16>
    %cst_79 = arith.constant dense<0.000000e+00> : vector<320x128xf32>
    %215 = tpu.matmul %2, %214, %cst_79 {dimension_numbers = #tpu.dot_dimension_numbers<[1], [0], [0], [1], [0, 0, 1, 1], [], []>} : vector<320x768xbf16>, vector<768x128xbf16>, vector<320x128xf32> -> vector<320x128xf32>
    %216 = vector.extract_strided_slice %215 {offsets = [0, 0], sizes = [160, 128], strides = [1, 1]} : vector<320x128xf32> to vector<160x128xf32>
    %217 = vector.extract_strided_slice %215 {offsets = [160, 0], sizes = [160, 128], strides = [1, 1]} : vector<320x128xf32> to vector<160x128xf32>
    %218 = arith.maximumf %216, %217 : vector<160x128xf32>
    %219 = vector.extract_strided_slice %218 {offsets = [0, 0], sizes = [80, 128], strides = [1, 1]} : vector<160x128xf32> to vector<80x128xf32>
    %220 = vector.extract_strided_slice %218 {offsets = [80, 0], sizes = [80, 128], strides = [1, 1]} : vector<160x128xf32> to vector<80x128xf32>
    %221 = arith.maximumf %219, %220 : vector<80x128xf32>
    %222 = vector.broadcast %3 : vector<80x1xf32> to vector<80x128xf32>
    %223 = arith.addf %221, %222 : vector<80x128xf32>
    %cst_80 = arith.constant 0.000000e+00 : f32
    %224 = vector.broadcast %cst_80 : f32 to vector<80x128xf32>
    %225 = arith.maximumf %223, %224 : vector<80x128xf32>
    %226 = arith.truncf %225 : vector<80x128xf32> to vector<80x128xbf16>
    %c240 = arith.constant 240 : index
    %c0_81 = arith.constant 0 : index
    %227 = vector.load %arg12[%c240, %c0_81] : memref<320x128xbf16, #tpu.memory_space<vmem>>, vector<80x128xbf16>
    tpu.vector_store %arg12[%c240, %c0_81], %226 {strides = array<i32>} : memref<320x128xbf16, #tpu.memory_space<vmem>>, vector<80x128xbf16>,
    %c0_82 = arith.constant 0 : index
    %c0_83 = arith.constant 0 : index
    %228 = vector.load %arg12[%c0_82, %c0_83] : memref<320x128xbf16, #tpu.memory_space<vmem>>, vector<320x128xbf16>
    %c0_84 = arith.constant 0 : index
    %c0_85 = arith.constant 0 : index
    %229 = vector.load %arg6[%c0_84, %c0_85] : memref<50x320xbf16, #tpu.memory_space<vmem>>, vector<50x320xbf16>
    %cst_86 = arith.constant dense<0.000000e+00> : vector<50x128xf32>
    %230 = tpu.matmul %229, %228, %cst_86 {dimension_numbers = #tpu.dot_dimension_numbers<[1], [0], [0], [1], [0, 0, 1, 1], [], []>} : vector<50x320xbf16>, vector<320x128xbf16>, vector<50x128xf32> -> vector<50x128xf32>
    %c0_87 = arith.constant 0 : index
    %c0_88 = arith.constant 0 : index
    %231 = vector.load %arg7[%c0_87, %c0_88] : memref<50x1xf32, #tpu.memory_space<vmem>>, vector<50x1xf32>
    %232 = vector.broadcast %231 : vector<50x1xf32> to vector<50x128xf32>
    %233 = arith.addf %230, %232 : vector<50x128xf32>
    %cst_89 = arith.constant 0.000000e+00 : f32
    %234 = vector.broadcast %cst_89 : f32 to vector<50x128xf32>
    %235 = arith.maximumf %233, %234 : vector<50x128xf32>
    %236 = arith.truncf %235 : vector<50x128xf32> to vector<50x128xbf16>
    %c0_90 = arith.constant 0 : index
    %c0_91 = arith.constant 0 : index
    %237 = vector.load %arg8[%c0_90, %c0_91] : memref<10x50xbf16, #tpu.memory_space<vmem>>, vector<10x50xbf16>
    %cst_92 = arith.constant dense<0.000000e+00> : vector<10x128xf32>
    %238 = tpu.matmul %237, %236, %cst_92 {dimension_numbers = #tpu.dot_dimension_numbers<[1], [0], [0], [1], [0, 0, 1, 1], [], []>} : vector<10x50xbf16>, vector<50x128xbf16>, vector<10x128xf32> -> vector<10x128xf32>
    %c0_93 = arith.constant 0 : index
    %c0_94 = arith.constant 0 : index
    %239 = vector.load %arg9[%c0_93, %c0_94] : memref<10x1xf32, #tpu.memory_space<vmem>>, vector<10x1xf32>
    %240 = vector.broadcast %239 : vector<10x1xf32> to vector<10x128xf32>
    %241 = arith.addf %238, %240 : vector<10x128xf32>
    %c0_95 = arith.constant 0 : index
    %c0_96 = arith.constant 0 : index
    %242 = vector.load %arg10[%c0_95, %c0_96] : memref<10x128xf32, #tpu.memory_space<vmem>>, vector<10x128xf32>
    tpu.vector_store %arg10[%c0_95, %c0_96], %241 {strides = array<i32>} : memref<10x128xf32, #tpu.memory_space<vmem>>, vector<10x128xf32>,
    return
  }
  func.func @transform_0(%arg0: i32) -> (i32, i32) {
    %c0_i32 = arith.constant 0 : i32
    %c0_i32_0 = arith.constant 0 : i32
    return %c0_i32, %arg0 : i32, i32
  }
  func.func @transform_1(%arg0: i32) -> (i32, i32) {
    %c0_i32 = arith.constant 0 : i32
    %c0_i32_0 = arith.constant 0 : i32
    %c0_i32_1 = arith.constant 0 : i32
    return %c0_i32, %c0_i32_0 : i32, i32
  }
  func.func @transform_2(%arg0: i32) -> (i32, i32) {
    %c0_i32 = arith.constant 0 : i32
    %c0_i32_0 = arith.constant 0 : i32
    %c0_i32_1 = arith.constant 0 : i32
    return %c0_i32, %c0_i32_0 : i32, i32
  }
  func.func @transform_3(%arg0: i32) -> (i32, i32) {
    %c0_i32 = arith.constant 0 : i32
    %c0_i32_0 = arith.constant 0 : i32
    %c0_i32_1 = arith.constant 0 : i32
    return %c0_i32, %c0_i32_0 : i32, i32
  }
  func.func @transform_4(%arg0: i32) -> (i32, i32) {
    %c0_i32 = arith.constant 0 : i32
    %c0_i32_0 = arith.constant 0 : i32
    %c0_i32_1 = arith.constant 0 : i32
    return %c0_i32, %c0_i32_0 : i32, i32
  }
  func.func @transform_5(%arg0: i32) -> (i32, i32) {
    %c0_i32 = arith.constant 0 : i32
    %c0_i32_0 = arith.constant 0 : i32
    %c0_i32_1 = arith.constant 0 : i32
    return %c0_i32, %c0_i32_0 : i32, i32
  }
  func.func @transform_6(%arg0: i32) -> (i32, i32) {
    %c0_i32 = arith.constant 0 : i32
    %c0_i32_0 = arith.constant 0 : i32
    %c0_i32_1 = arith.constant 0 : i32
    return %c0_i32, %c0_i32_0 : i32, i32
  }
  func.func @transform_7(%arg0: i32) -> (i32, i32) {
    %c0_i32 = arith.constant 0 : i32
    %c0_i32_0 = arith.constant 0 : i32
    %c0_i32_1 = arith.constant 0 : i32
    return %c0_i32, %c0_i32_0 : i32, i32
  }
  func.func @transform_8(%arg0: i32) -> (i32, i32) {
    %c0_i32 = arith.constant 0 : i32
    %c0_i32_0 = arith.constant 0 : i32
    %c0_i32_1 = arith.constant 0 : i32
    return %c0_i32, %c0_i32_0 : i32, i32
  }
  func.func @transform_9(%arg0: i32) -> (i32, i32) {
    %c0_i32 = arith.constant 0 : i32
    %c0_i32_0 = arith.constant 0 : i32
    return %c0_i32, %arg0 : i32, i32
  }
}

</mosaic_0001>

<llo_original>
// kernel: mnist_cnn_forward.1
$region0: #{mnist_cnn_forward.1}
  #allocation0 [shape = 'u32[]', space=smem, size = 0x4, offset = 0x4, fixed_abs, tag = 'smem constant byte address 0x4 - core index']
  #allocation1 [shape = 'u32[72,128]{1,0:T(1,128)}', space=vmem, size = 0x9000, scoped, tag = 'internal scratch']
  #allocation2 [shape = 'bf16[1536,128]{1,0:T(8,128)(2,1)}', space=vmem, size = 0x60000, scoped, tag = 'scratch operand']
  #allocation3 [shape = 'bf16[320,128]{1,0:T(8,128)(2,1)}', space=vmem, size = 0x14000, scoped, tag = 'scratch operand']
  %s0 = inlined_call_operand.vmem [shape: bf16[896,128], index: 0, kind: input, shape index: {}]
  %s1 = inlined_call_operand.vmem [shape: bf16[512,192], index: 1, kind: input, shape index: {}]
  %s2 = inlined_call_operand.vmem [shape: f32[128,1], index: 2, kind: input, shape index: {}]
  %s3 = inlined_call_operand.vmem [shape: bf16[320,768], index: 3, kind: input, shape index: {}]
  %s4 = inlined_call_operand.vmem [shape: f32[80,1], index: 4, kind: input, shape index: {}]
  %s5 = inlined_call_operand.vmem [shape: bf16[50,320], index: 5, kind: input, shape index: {}]
  %s6 = inlined_call_operand.vmem [shape: f32[50,1], index: 6, kind: input, shape index: {}]
  %s7 = inlined_call_operand.vmem [shape: bf16[10,50], index: 7, kind: input, shape index: {}]
  %s8 = inlined_call_operand.vmem [shape: f32[10,1], index: 8, kind: input, shape index: {}]
  %s9 = inlined_call_operand.vmem [shape: f32[10,128], index: 9, kind: output, shape index: {}]
  %s10 = sld [smem:[#allocation0]]
  $region46: #{mnist_cnn_forward.1} parent=0
    _
  %s12 = ssub.s32 1, %s10
  %s13 = scalar_select 0, %s12, %s10
  // Predicated region
  $region2: #{mnist_cnn_forward.1} parent=0 // pred_check
    _
  $region3: #{mnist_cnn_forward.1} parent=0 // pred_check_branch
    %15 = sbr.rel (0) target = $region5
  $region4: #{mnist_cnn_forward.1} parent=0 // pred_region
    _
  $region5: #{mnist_cnn_forward.1} parent=0 // pred_fallthru
    _
  // Predicated region
  $region6: #{mnist_cnn_forward.1} parent=0 // pred_check
    _
  $region7: #{mnist_cnn_forward.1} parent=0 // pred_check_branch
    %17 = sbr.rel (0) target = $region9
  $region8: #{mnist_cnn_forward.1} parent=0 // pred_region
    _
  $region9: #{mnist_cnn_forward.1} parent=0 // pred_fallthru
    _
  // Predicated region
  $region10: #{mnist_cnn_forward.1} parent=0 // pred_check
    _
  $region11: #{mnist_cnn_forward.1} parent=0 // pred_check_branch
    %19 = sbr.rel (0) target = $region13
  $region12: #{mnist_cnn_forward.1} parent=0 // pred_region
    _
  $region13: #{mnist_cnn_forward.1} parent=0 // pred_fallthru
    _
  // Predicated region
  $region14: #{mnist_cnn_forward.1} parent=0 // pred_check
    _
  $region15: #{mnist_cnn_forward.1} parent=0 // pred_check_branch
    %21 = sbr.rel (0) target = $region17
  $region16: #{mnist_cnn_forward.1} parent=0 // pred_region
    _
  $region17: #{mnist_cnn_forward.1} parent=0 // pred_fallthru
    _
  // Predicated region
  $region18: #{mnist_cnn_forward.1} parent=0 // pred_check
    _
  $region19: #{mnist_cnn_forward.1} parent=0 // pred_check_branch
    %23 = sbr.rel (0) target = $region21
  $region20: #{mnist_cnn_forward.1} parent=0 // pred_region
    _
  $region21: #{mnist_cnn_forward.1} parent=0 // pred_fallthru
    _
  // Predicated region
  $region22: #{mnist_cnn_forward.1} parent=0 // pred_check
    _
  $region23: #{mnist_cnn_forward.1} parent=0 // pred_check_branch
    %25 = sbr.rel (0) target = $region25
  $region24: #{mnist_cnn_forward.1} parent=0 // pred_region
    _
  $region25: #{mnist_cnn_forward.1} parent=0 // pred_fallthru
    _
  // Predicated region
  $region26: #{mnist_cnn_forward.1} parent=0 // pred_check
    _
  $region27: #{mnist_cnn_forward.1} parent=0 // pred_check_branch
    %27 = sbr.rel (0) target = $region29
  $region28: #{mnist_cnn_forward.1} parent=0 // pred_region
    _
  $region29: #{mnist_cnn_forward.1} parent=0 // pred_fallthru
    _
  // Predicated region
  $region30: #{mnist_cnn_forward.1} parent=0 // pred_check
    _
  $region31: #{mnist_cnn_forward.1} parent=0 // pred_check_branch
    %29 = sbr.rel (0) target = $region33
  $region32: #{mnist_cnn_forward.1} parent=0 // pred_region
    _
  $region33: #{mnist_cnn_forward.1} parent=0 // pred_fallthru
    _
  // Predicated region
  $region34: #{mnist_cnn_forward.1} parent=0 // pred_check
    _
  $region35: #{mnist_cnn_forward.1} parent=0 // pred_check_branch
    %31 = sbr.rel (0) target = $region37
  $region36: #{mnist_cnn_forward.1} parent=0 // pred_region
    _
  $region37: #{mnist_cnn_forward.1} parent=0 // pred_fallthru
    _
  %v33 = vld [vmem:[%s1] sm:$0xff]
  %v34 = vld [vmem:[%s1 + $0x8] sm:$0xff]
  %v35 = vld [vmem:[%s1 + $0x10] sm:$0xff]
  %v36 = vld [vmem:[%s1 + $0x18] sm:$0xff]
  %v37 = vld [vmem:[%s1 + $0x20] sm:$0xff]
  %v38 = vld [vmem:[%s1 + $0x28] sm:$0xff]
  %v39 = vld [vmem:[%s1 + $0x30] sm:$0xff]
  %v40 = vld [vmem:[%s1 + $0x38] sm:$0xff]
  %v41 = vld [vmem:[%s1 + $0x40] sm:$0xff]
  %v42 = vld [vmem:[%s1 + $0x48] sm:$0xff]
  %v43 = vld [vmem:[%s1 + $0x50] sm:$0xff]
  %v44 = vld [vmem:[%s1 + $0x58] sm:$0xff]
  %v45 = vld [vmem:[%s1 + $0x60] sm:$0xff]
  %v46 = vld [vmem:[%s1 + $0x68] sm:$0xff]
  %v47 = vld [vmem:[%s1 + $0x70] sm:$0xff]
  %v48 = vld [vmem:[%s1 + $0x78] sm:$0xff]
  %v49 = vld [vmem:[%s1 + $0x80] sm:$0xff]
  %v50 = vld [vmem:[%s1 + $0x88] sm:$0xff]
  %v51 = vld [vmem:[%s1 + $0x90] sm:$0xff]
  %v52 = vld [vmem:[%s1 + $0x98] sm:$0xff]
  %v53 = vld [vmem:[%s1 + $0xa0] sm:$0xff]
  %v54 = vld [vmem:[%s1 + $0xa8] sm:$0xff]
  %v55 = vld [vmem:[%s1 + $0xb0] sm:$0xff]
  %v56 = vld [vmem:[%s1 + $0xb8] sm:$0xff]
  %v57 = vld [vmem:[%s1 + $0xc0] sm:$0xff]
  %v58 = vld [vmem:[%s1 + $0xc8] sm:$0xff]
  %v59 = vld [vmem:[%s1 + $0xd0] sm:$0xff]
  %v60 = vld [vmem:[%s1 + $0xd8] sm:$0xff]
  %v61 = vld [vmem:[%s1 + $0xe0] sm:$0xff]
  %v62 = vld [vmem:[%s1 + $0xe8] sm:$0xff]
  %v63 = vld [vmem:[%s1 + $0xf0] sm:$0xff]
  %v64 = vld [vmem:[%s1 + $0xf8] sm:$0xff]
  %v65 = vld [vmem:[%s1 + $0x100] sm:$0xff]
  %v66 = vld [vmem:[%s1 + $0x108] sm:$0xff]
  %v67 = vld [vmem:[%s1 + $0x110] sm:$0xff]
  %v68 = vld [vmem:[%s1 + $0x118] sm:$0xff]
  %v69 = vld [vmem:[%s1 + $0x120] sm:$0xff]
  %v70 = vld [vmem:[%s1 + $0x128] sm:$0xff]
  %v71 = vld [vmem:[%s1 + $0x130] sm:$0xff]
  %v72 = vld [vmem:[%s1 + $0x138] sm:$0xff]
  %v73 = vld [vmem:[%s1 + $0x140] sm:$0xff]
  %v74 = vld [vmem:[%s1 + $0x148] sm:$0xff]
  %v75 = vld [vmem:[%s1 + $0x150] sm:$0xff]
  %v76 = vld [vmem:[%s1 + $0x158] sm:$0xff]
  %v77 = vld [vmem:[%s1 + $0x160] sm:$0xff]
  %v78 = vld [vmem:[%s1 + $0x168] sm:$0xff]
  %v79 = vld [vmem:[%s1 + $0x170] sm:$0xff]
  %v80 = vld [vmem:[%s1 + $0x178] sm:$0xff]
  %v81 = vld [vmem:[%s1 + $0x180] sm:$0xff]
  %v82 = vld [vmem:[%s1 + $0x188] sm:$0xff]
  %v83 = vld [vmem:[%s1 + $0x190] sm:$0xff]
  %v84 = vld [vmem:[%s1 + $0x198] sm:$0xff]
  %v85 = vld [vmem:[%s1 + $0x1a0] sm:$0xff]
  %v86 = vld [vmem:[%s1 + $0x1a8] sm:$0xff]
  %v87 = vld [vmem:[%s1 + $0x1b0] sm:$0xff]
  %v88 = vld [vmem:[%s1 + $0x1b8] sm:$0xff]
  %v89 = vld [vmem:[%s1 + $0x1c0] sm:$0xff]
  %v90 = vld [vmem:[%s1 + $0x1c8] sm:$0xff]
  %v91 = vld [vmem:[%s1 + $0x1d0] sm:$0xff]
  %v92 = vld [vmem:[%s1 + $0x1d8] sm:$0xff]
  %v93 = vld [vmem:[%s1 + $0x1e0] sm:$0xff]
  %v94 = vld [vmem:[%s1 + $0x1e8] sm:$0xff]
  %v95 = vld [vmem:[%s1 + $0x1f0] sm:$0xff]
  %v96 = vld [vmem:[%s1 + $0x1f8] sm:$0xff]
  %v97 = vld [vmem:[%s2] sm:$0xff]
  %v98 = vld [vmem:[%s2 + $0x8] sm:$0xff]
  %v99 = vld [vmem:[%s2 + $0x10] sm:$0xff]
  %v100 = vld [vmem:[%s2 + $0x18] sm:$0xff]
  %v101 = vld [vmem:[%s2 + $0x20] sm:$0xff]
  %v102 = vld [vmem:[%s2 + $0x28] sm:$0xff]
  %v103 = vld [vmem:[%s2 + $0x30] sm:$0xff]
  %v104 = vld [vmem:[%s2 + $0x38] sm:$0xff]
  %v105 = vld [vmem:[%s2 + $0x40] sm:$0xff]
  %v106 = vld [vmem:[%s2 + $0x48] sm:$0xff]
  %v107 = vld [vmem:[%s2 + $0x50] sm:$0xff]
  %v108 = vld [vmem:[%s2 + $0x58] sm:$0xff]
  %v109 = vld [vmem:[%s2 + $0x60] sm:$0xff]
  %v110 = vld [vmem:[%s2 + $0x68] sm:$0xff]
  %v111 = vld [vmem:[%s2 + $0x70] sm:$0xff]
  %v112 = vld [vmem:[%s2 + $0x78] sm:$0xff]
  %v113 = vld [vmem:[%s3] sm:$0xff]
  %v114 = vld [vmem:[%s3 + $0x8] sm:$0xff]
  %v115 = vld [vmem:[%s3 + $0x10] sm:$0xff]
  %v116 = vld [vmem:[%s3 + $0x18] sm:$0xff]
  %v117 = vld [vmem:[%s3 + $0x20] sm:$0xff]
  %v118 = vld [vmem:[%s3 + $0x28] sm:$0xff]
  %v119 = vld [vmem:[%s3 + $0x30] sm:$0xff]
  %v120 = vld [vmem:[%s3 + $0x38] sm:$0xff]
  %v121 = vld [vmem:[%s3 + $0x40] sm:$0xff]
  %v122 = vld [vmem:[%s3 + $0x48] sm:$0xff]
  %v123 = vld [vmem:[%s3 + $0x50] sm:$0xff]
  %v124 = vld [vmem:[%s3 + $0x58] sm:$0xff]
  %v125 = vld [vmem:[%s3 + $0x60] sm:$0xff]
  %v126 = vld [vmem:[%s3 + $0x68] sm:$0xff]
  %v127 = vld [vmem:[%s3 + $0x70] sm:$0xff]
  %v128 = vld [vmem:[%s3 + $0x78] sm:$0xff]
  %v129 = vld [vmem:[%s3 + $0x80] sm:$0xff]
  %v130 = vld [vmem:[%s3 + $0x88] sm:$0xff]
  %v131 = vld [vmem:[%s3 + $0x90] sm:$0xff]
  %v132 = vld [vmem:[%s3 + $0x98] sm:$0xff]
  %v133 = vld [vmem:[%s3 + $0xa0] sm:$0xff]
  %v134 = vld [vmem:[%s3 + $0xa8] sm:$0xff]
  %v135 = vld [vmem:[%s3 + $0xb0] sm:$0xff]
  %v136 = vld [vmem:[%s3 + $0xb8] sm:$0xff]
  %v137 = vld [vmem:[%s3 + $0xc0] sm:$0xff]
  %v138 = vld [vmem:[%s3 + $0xc8] sm:$0xff]
  %v139 = vld [vmem:[%s3 + $0xd0] sm:$0xff]
  %v140 = vld [vmem:[%s3 + $0xd8] sm:$0xff]
  %v141 = vld [vmem:[%s3 + $0xe0] sm:$0xff]
  %v142 = vld [vmem:[%s3 + $0xe8] sm:$0xff]
  %v143 = vld [vmem:[%s3 + $0xf0] sm:$0xff]
  %v144 = vld [vmem:[%s3 + $0xf8] sm:$0xff]
  %v145 = vld [vmem:[%s3 + $0x100] sm:$0xff]
  %v146 = vld [vmem:[%s3 + $0x108] sm:$0xff]
  %v147 = vld [vmem:[%s3 + $0x110] sm:$0xff]
  %v148 = vld [vmem:[%s3 + $0x118] sm:$0xff]
  %v149 = vld [vmem:[%s3 + $0x120] sm:$0xff]
  %v150 = vld [vmem:[%s3 + $0x128] sm:$0xff]
  %v151 = vld [vmem:[%s3 + $0x130] sm:$0xff]
  %v152 = vld [vmem:[%s3 + $0x138] sm:$0xff]
  %v153 = vld [vmem:[%s3 + $0x140] sm:$0xff]
  %v154 = vld [vmem:[%s3 + $0x148] sm:$0xff]
  %v155 = vld [vmem:[%s3 + $0x150] sm:$0xff]
  %v156 = vld [vmem:[%s3 + $0x158] sm:$0xff]
  %v157 = vld [vmem:[%s3 + $0x160] sm:$0xff]
  %v158 = vld [vmem:[%s3 + $0x168] sm:$0xff]
  %v159 = vld [vmem:[%s3 + $0x170] sm:$0xff]
  %v160 = vld [vmem:[%s3 + $0x178] sm:$0xff]
  %v161 = vld [vmem:[%s3 + $0x180] sm:$0xff]
  %v162 = vld [vmem:[%s3 + $0x188] sm:$0xff]
  %v163 = vld [vmem:[%s3 + $0x190] sm:$0xff]
  %v164 = vld [vmem:[%s3 + $0x198] sm:$0xff]
  %v165 = vld [vmem:[%s3 + $0x1a0] sm:$0xff]
  %v166 = vld [vmem:[%s3 + $0x1a8] sm:$0xff]
  %v167 = vld [vmem:[%s3 + $0x1b0] sm:$0xff]
  %v168 = vld [vmem:[%s3 + $0x1b8] sm:$0xff]
  %v169 = vld [vmem:[%s3 + $0x1c0] sm:$0xff]
  %v170 = vld [vmem:[%s3 + $0x1c8] sm:$0xff]
  %v171 = vld [vmem:[%s3 + $0x1d0] sm:$0xff]
  %v172 = vld [vmem:[%s3 + $0x1d8] sm:$0xff]
  %v173 = vld [vmem:[%s3 + $0x1e0] sm:$0xff]
  %v174 = vld [vmem:[%s3 + $0x1e8] sm:$0xff]
  %v175 = vld [vmem:[%s3 + $0x1f0] sm:$0xff]
  %v176 = vld [vmem:[%s3 + $0x1f8] sm:$0xff]
  %v177 = vld [vmem:[%s3 + $0x200] sm:$0xff]
  %v178 = vld [vmem:[%s3 + $0x208] sm:$0xff]
  %v179 = vld [vmem:[%s3 + $0x210] sm:$0xff]
  %v180 = vld [vmem:[%s3 + $0x218] sm:$0xff]
  %v181 = vld [vmem:[%s3 + $0x220] sm:$0xff]
  %v182 = vld [vmem:[%s3 + $0x228] sm:$0xff]
  %v183 = vld [vmem:[%s3 + $0x230] sm:$0xff]
  %v184 = vld [vmem:[%s3 + $0x238] sm:$0xff]
  %v185 = vld [vmem:[%s3 + $0x240] sm:$0xff]
  %v186 = vld [vmem:[%s3 + $0x248] sm:$0xff]
  %v187 = vld [vmem:[%s3 + $0x250] sm:$0xff]
  %v188 = vld [vmem:[%s3 + $0x258] sm:$0xff]
  %v189 = vld [vmem:[%s3 + $0x260] sm:$0xff]
  %v190 = vld [vmem:[%s3 + $0x268] sm:$0xff]
  %v191 = vld [vmem:[%s3 + $0x270] sm:$0xff]
  %v192 = vld [vmem:[%s3 + $0x278] sm:$0xff]
  %v193 = vld [vmem:[%s3 + $0x280] sm:$0xff]
  %v194 = vld [vmem:[%s3 + $0x288] sm:$0xff]
  %v195 = vld [vmem:[%s3 + $0x290] sm:$0xff]
  %v196 = vld [vmem:[%s3 + $0x298] sm:$0xff]
  %v197 = vld [vmem:[%s3 + $0x2a0] sm:$0xff]
  %v198 = vld [vmem:[%s3 + $0x2a8] sm:$0xff]
  %v199 = vld [vmem:[%s3 + $0x2b0] sm:$0xff]
  %v200 = vld [vmem:[%s3 + $0x2b8] sm:$0xff]
  %v201 = vld [vmem:[%s3 + $0x2c0] sm:$0xff]
  %v202 = vld [vmem:[%s3 + $0x2c8] sm:$0xff]
  %v203 = vld [vmem:[%s3 + $0x2d0] sm:$0xff]
  %v204 = vld [vmem:[%s3 + $0x2d8] sm:$0xff]
  %v205 = vld [vmem:[%s3 + $0x2e0] sm:$0xff]
  %v206 = vld [vmem:[%s3 + $0x2e8] sm:$0xff]
  %v207 = vld [vmem:[%s3 + $0x2f0] sm:$0xff]
  %v208 = vld [vmem:[%s3 + $0x2f8] sm:$0xff]
  %v209 = vld [vmem:[%s3 + $0x300] sm:$0xff]
  %v210 = vld [vmem:[%s3 + $0x308] sm:$0xff]
  %v211 = vld [vmem:[%s3 + $0x310] sm:$0xff]
  %v212 = vld [vmem:[%s3 + $0x318] sm:$0xff]
  %v213 = vld [vmem:[%s3 + $0x320] sm:$0xff]
  %v214 = vld [vmem:[%s3 + $0x328] sm:$0xff]
  %v215 = vld [vmem:[%s3 + $0x330] sm:$0xff]
  %v216 = vld [vmem:[%s3 + $0x338] sm:$0xff]
  %v217 = vld [vmem:[%s3 + $0x340] sm:$0xff]
  %v218 = vld [vmem:[%s3 + $0x348] sm:$0xff]
  %v219 = vld [vmem:[%s3 + $0x350] sm:$0xff]
  %v220 = vld [vmem:[%s3 + $0x358] sm:$0xff]
  %v221 = vld [vmem:[%s3 + $0x360] sm:$0xff]
  %v222 = vld [vmem:[%s3 + $0x368] sm:$0xff]
  %v223 = vld [vmem:[%s3 + $0x370] sm:$0xff]
  %v224 = vld [vmem:[%s3 + $0x378] sm:$0xff]
  %v225 = vld [vmem:[%s3 + $0x380] sm:$0xff]
  %v226 = vld [vmem:[%s3 + $0x388] sm:$0xff]
  %v227 = vld [vmem:[%s3 + $0x390] sm:$0xff]
  %v228 = vld [vmem:[%s3 + $0x398] sm:$0xff]
  %v229 = vld [vmem:[%s3 + $0x3a0] sm:$0xff]
  %v230 = vld [vmem:[%s3 + $0x3a8] sm:$0xff]
  %v231 = vld [vmem:[%s3 + $0x3b0] sm:$0xff]
  %v232 = vld [vmem:[%s3 + $0x3b8] sm:$0xff]
  %v233 = vld [vmem:[%s4] sm:$0xff]
  %v234 = vld [vmem:[%s4 + $0x8] sm:$0xff]
  %v235 = vld [vmem:[%s4 + $0x10] sm:$0xff]
  %v236 = vld [vmem:[%s4 + $0x18] sm:$0xff]
  %v237 = vld [vmem:[%s4 + $0x20] sm:$0xff]
  %v238 = vld [vmem:[%s4 + $0x28] sm:$0xff]
  %v239 = vld [vmem:[%s4 + $0x30] sm:$0xff]
  %v240 = vld [vmem:[%s4 + $0x38] sm:$0xff]
  %v241 = vld [vmem:[%s4 + $0x40] sm:$0xff]
  %v242 = vld [vmem:[%s4 + $0x48] sm:$0xff]
  %v243 = vld [vmem:[%s0] sm:$0xf]
  %v244 = vld [vmem:[%s0 + $0x4] sm:$0xf]
  %v245 = vld [vmem:[%s0 + $0x8] sm:$0xf]
  %v246 = vld [vmem:[%s0 + $0xc] sm:$0xf]
  %v247 = vld [vmem:[%s0 + $0x10] sm:$0xf]
  %v248 = vld [vmem:[%s0 + $0x14] sm:$0xf]
  %v249 = vld [vmem:[%s0 + $0x18] sm:$0xf]
  %v250 = vld [vmem:[%s0 + $0x1c] sm:$0xf]
  %v251 = vld [vmem:[%s0 + $0x20] sm:$0xf]
  %v252 = vld [vmem:[%s0 + $0x24] sm:$0xf]
  %v253 = vld [vmem:[%s0 + $0x28] sm:$0xf]
  %v254 = vld [vmem:[%s0 + $0x2c] sm:$0xf]
  %v255 = vld [vmem:[%s0 + $0x30] sm:$0xf]
  %v256 = vld [vmem:[%s0 + $0x34] sm:$0xf]
  %v257 = vld [vmem:[%s0 + $0x38] sm:$0xf]
  %v258 = vld [vmem:[%s0 + $0x3c] sm:$0xf]
  %v259 = vld [vmem:[%s0 + $0x40] sm:$0xf]
  %v260 = vld [vmem:[%s0 + $0x44] sm:$0xf]
  %v261 = vld [vmem:[%s0 + $0x48] sm:$0xf]
  %v262 = vld [vmem:[%s0 + $0x4c] sm:$0xf]
  %v263 = vld [vmem:[%s0 + $0x50] sm:$0xf]
  %v264 = vld [vmem:[%s0 + $0x54] sm:$0xf]
  %v265 = vld [vmem:[%s0 + $0x58] sm:$0xf]
  %v266 = vld [vmem:[%s0 + $0x5c] sm:$0xf]
  %v331 = vunpack.c.l.b16 %v33
  %v332 = vunpack.c.h.b16 %v33
  %v333 = vunpack.c.l.b16 %v34
  %v334 = vunpack.c.h.b16 %v34
  %v335 = vunpack.c.l.b16 %v35
  %v336 = vunpack.c.h.b16 %v35
  %v337 = vunpack.c.l.b16 %v36
  %v338 = vunpack.c.h.b16 %v36
  %v339 = vunpack.c.l.b16 %v37
  %v340 = vunpack.c.h.b16 %v37
  %v341 = vunpack.c.l.b16 %v38
  %v342 = vunpack.c.h.b16 %v38
  %v343 = vunpack.c.l.b16 %v39
  %v344 = vunpack.c.h.b16 %v39
  %v345 = vunpack.c.l.b16 %v40
  %v346 = vunpack.c.h.b16 %v40
  %v347 = vunpack.c.l.b16 %v41
  %v348 = vunpack.c.h.b16 %v41
  %v349 = vunpack.c.l.b16 %v42
  %v350 = vunpack.c.h.b16 %v42
  %v351 = vunpack.c.l.b16 %v43
  %v352 = vunpack.c.h.b16 %v43
  %v353 = vunpack.c.l.b16 %v44
  %v354 = vunpack.c.h.b16 %v44
  %v355 = vunpack.c.l.b16 %v45
  %v356 = vunpack.c.h.b16 %v45
  %v357 = vunpack.c.l.b16 %v46
  %v358 = vunpack.c.h.b16 %v46
  %v359 = vunpack.c.l.b16 %v47
  %v360 = vunpack.c.h.b16 %v47
  %v361 = vunpack.c.l.b16 %v48
  %v362 = vunpack.c.h.b16 %v48
  %v363 = vunpack.c.l.b16 %v49
  %v364 = vunpack.c.h.b16 %v49
  %v365 = vunpack.c.l.b16 %v50
  %v366 = vunpack.c.h.b16 %v50
  %v367 = vunpack.c.l.b16 %v51
  %v368 = vunpack.c.h.b16 %v51
  %v369 = vunpack.c.l.b16 %v52
  %v370 = vunpack.c.h.b16 %v52
  %v371 = vunpack.c.l.b16 %v53
  %v372 = vunpack.c.h.b16 %v53
  %v373 = vunpack.c.l.b16 %v54
  %v374 = vunpack.c.h.b16 %v54
  %v375 = vunpack.c.l.b16 %v55
  %v376 = vunpack.c.h.b16 %v55
  %v377 = vunpack.c.l.b16 %v56
  %v378 = vunpack.c.h.b16 %v56
  %v379 = vunpack.c.l.b16 %v57
  %v380 = vunpack.c.h.b16 %v57
  %v381 = vunpack.c.l.b16 %v58
  %v382 = vunpack.c.h.b16 %v58
  %v383 = vunpack.c.l.b16 %v59
  %v384 = vunpack.c.h.b16 %v59
  %v385 = vunpack.c.l.b16 %v60
  %v386 = vunpack.c.h.b16 %v60
  %v387 = vunpack.c.l.b16 %v61
  %v388 = vunpack.c.h.b16 %v61
  %v389 = vunpack.c.l.b16 %v62
  %v390 = vunpack.c.h.b16 %v62
  %v391 = vunpack.c.l.b16 %v63
  %v392 = vunpack.c.h.b16 %v63
  %v393 = vunpack.c.l.b16 %v64
  %v394 = vunpack.c.h.b16 %v64
  %v395 = vunpack.c.l.b16 %v65
  %v396 = vunpack.c.h.b16 %v65
  %v397 = vunpack.c.l.b16 %v66
  %v398 = vunpack.c.h.b16 %v66
  %v399 = vunpack.c.l.b16 %v67
  %v400 = vunpack.c.h.b16 %v67
  %v401 = vunpack.c.l.b16 %v68
  %v402 = vunpack.c.h.b16 %v68
  %v403 = vunpack.c.l.b16 %v69
  %v404 = vunpack.c.h.b16 %v69
  %v405 = vunpack.c.l.b16 %v70
  %v406 = vunpack.c.h.b16 %v70
  %v407 = vunpack.c.l.b16 %v71
  %v408 = vunpack.c.h.b16 %v71
  %v409 = vunpack.c.l.b16 %v72
  %v410 = vunpack.c.h.b16 %v72
  %v411 = vunpack.c.l.b16 %v73
  %v412 = vunpack.c.h.b16 %v73
  %v413 = vunpack.c.l.b16 %v74
  %v414 = vunpack.c.h.b16 %v74
  %v415 = vunpack.c.l.b16 %v75
  %v416 = vunpack.c.h.b16 %v75
  %v417 = vunpack.c.l.b16 %v76
  %v418 = vunpack.c.h.b16 %v76
  %v419 = vunpack.c.l.b16 %v77
  %v420 = vunpack.c.h.b16 %v77
  %v421 = vunpack.c.l.b16 %v78
  %v422 = vunpack.c.h.b16 %v78
  %v423 = vunpack.c.l.b16 %v79
  %v424 = vunpack.c.h.b16 %v79
  %v425 = vunpack.c.l.b16 %v80
  %v426 = vunpack.c.h.b16 %v80
  %v427 = vunpack.c.l.b16 %v81
  %v428 = vunpack.c.h.b16 %v81
  %v429 = vunpack.c.l.b16 %v82
  %v430 = vunpack.c.h.b16 %v82
  %v431 = vunpack.c.l.b16 %v83
  %v432 = vunpack.c.h.b16 %v83
  %v433 = vunpack.c.l.b16 %v84
  %v434 = vunpack.c.h.b16 %v84
  %v435 = vunpack.c.l.b16 %v85
  %v436 = vunpack.c.h.b16 %v85
  %v437 = vunpack.c.l.b16 %v86
  %v438 = vunpack.c.h.b16 %v86
  %v439 = vunpack.c.l.b16 %v87
  %v440 = vunpack.c.h.b16 %v87
  %v441 = vunpack.c.l.b16 %v88
  %v442 = vunpack.c.h.b16 %v88
  %v443 = vunpack.c.l.b16 %v89
  %v444 = vunpack.c.h.b16 %v89
  %v445 = vunpack.c.l.b16 %v90
  %v446 = vunpack.c.h.b16 %v90
  %v447 = vunpack.c.l.b16 %v91
  %v448 = vunpack.c.h.b16 %v91
  %v449 = vunpack.c.l.b16 %v92
  %v450 = vunpack.c.h.b16 %v92
  %v451 = vunpack.c.l.b16 %v93
  %v452 = vunpack.c.h.b16 %v93
  %v453 = vunpack.c.l.b16 %v94
  %v454 = vunpack.c.h.b16 %v94
  %v455 = vunpack.c.l.b16 %v95
  %v456 = vunpack.c.h.b16 %v95
  %v457 = vunpack.c.l.b16 %v96
  %v458 = vunpack.c.h.b16 %v96
  %v459 = vpack.c.b16 %v333, %v331
  %v460 = vpack.c.b16 %v334, %v332
  %v461 = vpack.c.b16 %v337, %v335
  %v462 = vpack.c.b16 %v338, %v336
  %v463 = vpack.c.b16 %v341, %v339
  %v464 = vpack.c.b16 %v342, %v340
  %v465 = vpack.c.b16 %v345, %v343
  %v466 = vpack.c.b16 %v346, %v344
  %v467 = vpack.c.b16 %v349, %v347
  %v468 = vpack.c.b16 %v350, %v348
  %v469 = vpack.c.b16 %v353, %v351
  %v470 = vpack.c.b16 %v354, %v352
  %v471 = vpack.c.b16 %v357, %v355
  %v472 = vpack.c.b16 %v358, %v356
  %v473 = vpack.c.b16 %v361, %v359
  %v474 = vpack.c.b16 %v362, %v360
  %v475 = vpack.c.b16 %v365, %v363
  %v476 = vpack.c.b16 %v366, %v364
  %v477 = vpack.c.b16 %v369, %v367
  %v478 = vpack.c.b16 %v370, %v368
  %v479 = vpack.c.b16 %v373, %v371
  %v480 = vpack.c.b16 %v374, %v372
  %v481 = vpack.c.b16 %v377, %v375
  %v482 = vpack.c.b16 %v378, %v376
  %v483 = vpack.c.b16 %v381, %v379
  %v484 = vpack.c.b16 %v382, %v380
  %v485 = vpack.c.b16 %v385, %v383
  %v486 = vpack.c.b16 %v386, %v384
  %v487 = vpack.c.b16 %v389, %v387
  %v488 = vpack.c.b16 %v390, %v388
  %v489 = vpack.c.b16 %v393, %v391
  %v490 = vpack.c.b16 %v394, %v392
  %v491 = vpack.c.b16 %v397, %v395
  %v492 = vpack.c.b16 %v398, %v396
  %v493 = vpack.c.b16 %v401, %v399
  %v494 = vpack.c.b16 %v402, %v400
  %v495 = vpack.c.b16 %v405, %v403
  %v496 = vpack.c.b16 %v406, %v404
  %v497 = vpack.c.b16 %v409, %v407
  %v498 = vpack.c.b16 %v410, %v408
  %v499 = vpack.c.b16 %v413, %v411
  %v500 = vpack.c.b16 %v414, %v412
  %v501 = vpack.c.b16 %v417, %v415
  %v502 = vpack.c.b16 %v418, %v416
  %v503 = vpack.c.b16 %v421, %v419
  %v504 = vpack.c.b16 %v422, %v420
  %v505 = vpack.c.b16 %v425, %v423
  %v506 = vpack.c.b16 %v426, %v424
  %v507 = vpack.c.b16 %v429, %v427
  %v508 = vpack.c.b16 %v430, %v428
  %v509 = vpack.c.b16 %v433, %v431
  %v510 = vpack.c.b16 %v434, %v432
  %v511 = vpack.c.b16 %v437, %v435
  %v512 = vpack.c.b16 %v438, %v436
  %v513 = vpack.c.b16 %v441, %v439
  %v514 = vpack.c.b16 %v442, %v440
  %v515 = vpack.c.b16 %v445, %v443
  %v516 = vpack.c.b16 %v446, %v444
  %v517 = vpack.c.b16 %v449, %v447
  %v518 = vpack.c.b16 %v450, %v448
  %v519 = vpack.c.b16 %v453, %v451
  %v520 = vpack.c.b16 %v454, %v452
  %v521 = vpack.c.b16 %v457, %v455
  %v522 = vpack.c.b16 %v458, %v456
  %v579 = vunpack.c.l.b16 %v243
  %v580 = vunpack.c.l.b16 %v244
  %v581 = vunpack.c.l.b16 %v245
  %v582 = vunpack.c.l.b16 %v246
  %v583 = vunpack.c.l.b16 %v247
  %v584 = vunpack.c.l.b16 %v248
  %v585 = vunpack.c.l.b16 %v249
  %v586 = vunpack.c.l.b16 %v250
  %v587 = vunpack.c.l.b16 %v251
  %v588 = vunpack.c.l.b16 %v252
  %v589 = vunpack.c.l.b16 %v253
  %v590 = vunpack.c.l.b16 %v254
  %v591 = vunpack.c.l.b16 %v255
  %v592 = vunpack.c.l.b16 %v256
  %v593 = vunpack.c.l.b16 %v257
  %v594 = vunpack.c.l.b16 %v258
  %v595 = vunpack.c.l.b16 %v259
  %v596 = vunpack.c.l.b16 %v260
  %v597 = vunpack.c.l.b16 %v261
  %v598 = vunpack.c.l.b16 %v262
  %v599 = vunpack.c.l.b16 %v263
  %v600 = vunpack.c.l.b16 %v264
  %v601 = vunpack.c.l.b16 %v265
  %v602 = vunpack.c.l.b16 %v266
  %v603 = vpack.c.b16 %v580, %v579
  %v604 = vpack.c.b16 %v582, %v581
  %v605 = vpack.c.b16 %v584, %v583
  %v606 = vpack.c.b16 %v586, %v585
  %v607 = vpack.c.b16 %v588, %v587
  %v608 = vpack.c.b16 %v590, %v589
  %v609 = vpack.c.b16 %v592, %v591
  %v610 = vpack.c.b16 %v594, %v593
  %v611 = vpack.c.b16 %v596, %v595
  %v612 = vpack.c.b16 %v598, %v597
  %v613 = vpack.c.b16 %v600, %v599
  %v614 = vpack.c.b16 %v602, %v601
  %vm627 = vcmask 523264
  %v629 = vsel %vm627, %v460, 0
  %v632 = vsel %vm627, %v462, 0
  %v635 = vsel %vm627, %v464, 0
  %v638 = vsel %vm627, %v466, 0
  %v641 = vsel %vm627, %v468, 0
  %v644 = vsel %vm627, %v470, 0
  %v647 = vsel %vm627, %v472, 0
  %v650 = vsel %vm627, %v474, 0
  %v653 = vsel %vm627, %v476, 0
  %v656 = vsel %vm627, %v478, 0
  %v659 = vsel %vm627, %v480, 0
  %v662 = vsel %vm627, %v482, 0
  %v665 = vsel %vm627, %v484, 0
  %v668 = vsel %vm627, %v486, 0
  %v671 = vsel %vm627, %v488, 0
  %v674 = vsel %vm627, %v490, 0
  %v677 = vsel %vm627, %v492, 0
  %v680 = vsel %vm627, %v494, 0
  %v683 = vsel %vm627, %v496, 0
  %v686 = vsel %vm627, %v498, 0
  %v689 = vsel %vm627, %v500, 0
  %v692 = vsel %vm627, %v502, 0
  %v695 = vsel %vm627, %v504, 0
  %v698 = vsel %vm627, %v506, 0
  %v701 = vsel %vm627, %v508, 0
  %v704 = vsel %vm627, %v510, 0
  %v707 = vsel %vm627, %v512, 0
  %v710 = vsel %vm627, %v514, 0
  %v713 = vsel %vm627, %v516, 0
  %v716 = vsel %vm627, %v518, 0
  %v719 = vsel %vm627, %v520, 0
  %v722 = vsel %vm627, %v522, 0
  %724 = vmatpush.bf16.msra.mxu0 %v610
  %725 = vmatpush.bf16.msra.mxu0 %v609
  %726 = vmatpush.bf16.msra.mxu0 %v608
  %727 = vmatpush.bf16.msra.mxu0 %v607
  %728 = vmatpush.bf16.msra.mxu0 %v606
  %729 = vmatpush.bf16.msra.mxu0 %v605
  %730 = vmatpush.bf16.msra.mxu0 %v604
  %731 = vmatpush.bf16.msra.mxu0 %v603
  %732 = vmatmul.bf16.gmra.mxu0 %v459
  %v733 = vpop.f32.mrf.mxu0
  %v734 = vadd.f32 0.0, %v733
  %v735 = vpop.f32.mrf.mxu0
  %v736 = vadd.f32 0.0, %v735
  %737 = vmatmul.bf16.gmra.mxu0 %v461
  %v738 = vpop.f32.mrf.mxu0
  %v739 = vadd.f32 0.0, %v738
  %v740 = vpop.f32.mrf.mxu0
  %v741 = vadd.f32 0.0, %v740
  %742 = vmatmul.bf16.gmra.mxu0 %v463
  %v743 = vpop.f32.mrf.mxu0
  %v744 = vadd.f32 0.0, %v743
  %v745 = vpop.f32.mrf.mxu0
  %v746 = vadd.f32 0.0, %v745
  %747 = vmatmul.bf16.gmra.mxu0 %v465
  %v748 = vpop.f32.mrf.mxu0
  %v749 = vadd.f32 0.0, %v748
  %v750 = vpop.f32.mrf.mxu0
  %v751 = vadd.f32 0.0, %v750
  %752 = vmatmul.bf16.gmra.mxu0 %v467
  %v753 = vpop.f32.mrf.mxu0
  %v754 = vadd.f32 0.0, %v753
  %v755 = vpop.f32.mrf.mxu0
  %v756 = vadd.f32 0.0, %v755
  %757 = vmatmul.bf16.gmra.mxu0 %v469
  %v758 = vpop.f32.mrf.mxu0
  %v759 = vadd.f32 0.0, %v758
  %v760 = vpop.f32.mrf.mxu0
  %v761 = vadd.f32 0.0, %v760
  %762 = vmatmul.bf16.gmra.mxu0 %v471
  %v763 = vpop.f32.mrf.mxu0
  %v764 = vadd.f32 0.0, %v763
  %v765 = vpop.f32.mrf.mxu0
  %v766 = vadd.f32 0.0, %v765
  %767 = vmatmul.bf16.gmra.mxu0 %v473
  %v768 = vpop.f32.mrf.mxu0
  %v769 = vadd.f32 0.0, %v768
  %v770 = vpop.f32.mrf.mxu0
  %v771 = vadd.f32 0.0, %v770
  %772 = vmatmul.bf16.gmra.mxu0 %v475
  %v773 = vpop.f32.mrf.mxu0
  %v774 = vadd.f32 0.0, %v773
  %v775 = vpop.f32.mrf.mxu0
  %v776 = vadd.f32 0.0, %v775
  %777 = vmatmul.bf16.gmra.mxu0 %v477
  %v778 = vpop.f32.mrf.mxu0
  %v779 = vadd.f32 0.0, %v778
  %v780 = vpop.f32.mrf.mxu0
  %v781 = vadd.f32 0.0, %v780
  %782 = vmatmul.bf16.gmra.mxu0 %v479
  %v783 = vpop.f32.mrf.mxu0
  %v784 = vadd.f32 0.0, %v783
  %v785 = vpop.f32.mrf.mxu0
  %v786 = vadd.f32 0.0, %v785
  %787 = vmatmul.bf16.gmra.mxu0 %v481
  %v788 = vpop.f32.mrf.mxu0
  %v789 = vadd.f32 0.0, %v788
  %v790 = vpop.f32.mrf.mxu0
  %v791 = vadd.f32 0.0, %v790
  %792 = vmatmul.bf16.gmra.mxu0 %v483
  %v793 = vpop.f32.mrf.mxu0
  %v794 = vadd.f32 0.0, %v793
  %v795 = vpop.f32.mrf.mxu0
  %v796 = vadd.f32 0.0, %v795
  %797 = vmatmul.bf16.gmra.mxu0 %v485
  %v798 = vpop.f32.mrf.mxu0
  %v799 = vadd.f32 0.0, %v798
  %v800 = vpop.f32.mrf.mxu0
  %v801 = vadd.f32 0.0, %v800
  %802 = vmatmul.bf16.gmra.mxu0 %v487
  %v803 = vpop.f32.mrf.mxu0
  %v804 = vadd.f32 0.0, %v803
  %v805 = vpop.f32.mrf.mxu0
  %v806 = vadd.f32 0.0, %v805
  %807 = vmatmul.bf16.gmra.mxu0 %v489
  %v808 = vpop.f32.mrf.mxu0
  %v809 = vadd.f32 0.0, %v808
  %v810 = vpop.f32.mrf.mxu0
  %v811 = vadd.f32 0.0, %v810
  %812 = vmatmul.bf16.gmra.mxu0 %v491
  %v813 = vpop.f32.mrf.mxu0
  %v814 = vadd.f32 0.0, %v813
  %v815 = vpop.f32.mrf.mxu0
  %v816 = vadd.f32 0.0, %v815
  %817 = vmatmul.bf16.gmra.mxu0 %v493
  %v818 = vpop.f32.mrf.mxu0
  %v819 = vadd.f32 0.0, %v818
  %v820 = vpop.f32.mrf.mxu0
  %v821 = vadd.f32 0.0, %v820
  %822 = vmatmul.bf16.gmra.mxu0 %v495
  %v823 = vpop.f32.mrf.mxu0
  %v824 = vadd.f32 0.0, %v823
  %v825 = vpop.f32.mrf.mxu0
  %v826 = vadd.f32 0.0, %v825
  %827 = vmatmul.bf16.gmra.mxu0 %v497
  %v828 = vpop.f32.mrf.mxu0
  %v829 = vadd.f32 0.0, %v828
  %v830 = vpop.f32.mrf.mxu0
  %v831 = vadd.f32 0.0, %v830
  %832 = vmatmul.bf16.gmra.mxu0 %v499
  %v833 = vpop.f32.mrf.mxu0
  %v834 = vadd.f32 0.0, %v833
  %v835 = vpop.f32.mrf.mxu0
  %v836 = vadd.f32 0.0, %v835
  %837 = vmatmul.bf16.gmra.mxu0 %v501
  %v838 = vpop.f32.mrf.mxu0
  %v839 = vadd.f32 0.0, %v838
  %v840 = vpop.f32.mrf.mxu0
  %v841 = vadd.f32 0.0, %v840
  %842 = vmatmul.bf16.gmra.mxu0 %v503
  %v843 = vpop.f32.mrf.mxu0
  %v844 = vadd.f32 0.0, %v843
  %v845 = vpop.f32.mrf.mxu0
  %v846 = vadd.f32 0.0, %v845
  %847 = vmatmul.bf16.gmra.mxu0 %v505
  %v848 = vpop.f32.mrf.mxu0
  %v849 = vadd.f32 0.0, %v848
  %v850 = vpop.f32.mrf.mxu0
  %v851 = vadd.f32 0.0, %v850
  %852 = vmatmul.bf16.gmra.mxu0 %v507
  %v853 = vpop.f32.mrf.mxu0
  %v854 = vadd.f32 0.0, %v853
  %v855 = vpop.f32.mrf.mxu0
  %v856 = vadd.f32 0.0, %v855
  %857 = vmatmul.bf16.gmra.mxu0 %v509
  %v858 = vpop.f32.mrf.mxu0
  %v859 = vadd.f32 0.0, %v858
  %v860 = vpop.f32.mrf.mxu0
  %v861 = vadd.f32 0.0, %v860
  %862 = vmatmul.bf16.gmra.mxu0 %v511
  %v863 = vpop.f32.mrf.mxu0
  %v864 = vadd.f32 0.0, %v863
  %v865 = vpop.f32.mrf.mxu0
  %v866 = vadd.f32 0.0, %v865
  %867 = vmatmul.bf16.gmra.mxu0 %v513
  %v868 = vpop.f32.mrf.mxu0
  %v869 = vadd.f32 0.0, %v868
  %v870 = vpop.f32.mrf.mxu0
  %v871 = vadd.f32 0.0, %v870
  %872 = vmatmul.bf16.gmra.mxu0 %v515
  %v873 = vpop.f32.mrf.mxu0
  %v874 = vadd.f32 0.0, %v873
  %v875 = vpop.f32.mrf.mxu0
  %v876 = vadd.f32 0.0, %v875
  %877 = vmatmul.bf16.gmra.mxu0 %v517
  %v878 = vpop.f32.mrf.mxu0
  %v879 = vadd.f32 0.0, %v878
  %v880 = vpop.f32.mrf.mxu0
  %v881 = vadd.f32 0.0, %v880
  %882 = vmatmul.bf16.gmra.mxu0 %v519
  %v883 = vpop.f32.mrf.mxu0
  %v884 = vadd.f32 0.0, %v883
  %v885 = vpop.f32.mrf.mxu0
  %v886 = vadd.f32 0.0, %v885
  %887 = vmatmul.bf16.gmra.mxu0 %v521
  %v888 = vpop.f32.mrf.mxu0
  %v889 = vadd.f32 0.0, %v888
  %v890 = vpop.f32.mrf.mxu0
  %v891 = vadd.f32 0.0, %v890
  %892 = vdwg.mxu0
  %893 = vmatpush.bf16.msra.mxu0 0
  %894 = vmatpush.bf16.msra.mxu0 0
  %895 = vmatpush.bf16.msra.mxu0 0
  %896 = vmatpush.bf16.msra.mxu0 0
  %897 = vmatpush.bf16.msra.mxu0 %v614
  %898 = vmatpush.bf16.msra.mxu0 %v613
  %899 = vmatpush.bf16.msra.mxu0 %v612
  %900 = vmatpush.bf16.msra.mxu0 %v611
  %901 = vmatmul.bf16.gmra.mxu0 %v629
  %v902 = vpop.f32.mrf.mxu0
  %v903 = vadd.f32 %v734, %v902
  %v904 = vpop.f32.mrf.mxu0
  %v905 = vadd.f32 %v736, %v904
  %906 = vmatmul.bf16.gmra.mxu0 %v632
  %v907 = vpop.f32.mrf.mxu0
  %v908 = vadd.f32 %v739, %v907
  %v909 = vpop.f32.mrf.mxu0
  %v910 = vadd.f32 %v741, %v909
  %911 = vmatmul.bf16.gmra.mxu0 %v635
  %v912 = vpop.f32.mrf.mxu0
  %v913 = vadd.f32 %v744, %v912
  %v914 = vpop.f32.mrf.mxu0
  %v915 = vadd.f32 %v746, %v914
  %916 = vmatmul.bf16.gmra.mxu0 %v638
  %v917 = vpop.f32.mrf.mxu0
  %v918 = vadd.f32 %v749, %v917
  %v919 = vpop.f32.mrf.mxu0
  %v920 = vadd.f32 %v751, %v919
  %921 = vmatmul.bf16.gmra.mxu0 %v641
  %v922 = vpop.f32.mrf.mxu0
  %v923 = vadd.f32 %v754, %v922
  %v924 = vpop.f32.mrf.mxu0
  %v925 = vadd.f32 %v756, %v924
  %926 = vmatmul.bf16.gmra.mxu0 %v644
  %v927 = vpop.f32.mrf.mxu0
  %v928 = vadd.f32 %v759, %v927
  %v929 = vpop.f32.mrf.mxu0
  %v930 = vadd.f32 %v761, %v929
  %931 = vmatmul.bf16.gmra.mxu0 %v647
  %v932 = vpop.f32.mrf.mxu0
  %v933 = vadd.f32 %v764, %v932
  %v934 = vpop.f32.mrf.mxu0
  %v935 = vadd.f32 %v766, %v934
  %936 = vmatmul.bf16.gmra.mxu0 %v650
  %v937 = vpop.f32.mrf.mxu0
  %v938 = vadd.f32 %v769, %v937
  %v939 = vpop.f32.mrf.mxu0
  %v940 = vadd.f32 %v771, %v939
  %941 = vmatmul.bf16.gmra.mxu0 %v653
  %v942 = vpop.f32.mrf.mxu0
  %v943 = vadd.f32 %v774, %v942
  %v944 = vpop.f32.mrf.mxu0
  %v945 = vadd.f32 %v776, %v944
  %946 = vmatmul.bf16.gmra.mxu0 %v656
  %v947 = vpop.f32.mrf.mxu0
  %v948 = vadd.f32 %v779, %v947
  %v949 = vpop.f32.mrf.mxu0
  %v950 = vadd.f32 %v781, %v949
  %951 = vmatmul.bf16.gmra.mxu0 %v659
  %v952 = vpop.f32.mrf.mxu0
  %v953 = vadd.f32 %v784, %v952
  %v954 = vpop.f32.mrf.mxu0
  %v955 = vadd.f32 %v786, %v954
  %956 = vmatmul.bf16.gmra.mxu0 %v662
  %v957 = vpop.f32.mrf.mxu0
  %v958 = vadd.f32 %v789, %v957
  %v959 = vpop.f32.mrf.mxu0
  %v960 = vadd.f32 %v791, %v959
  %961 = vmatmul.bf16.gmra.mxu0 %v665
  %v962 = vpop.f32.mrf.mxu0
  %v963 = vadd.f32 %v794, %v962
  %v964 = vpop.f32.mrf.mxu0
  %v965 = vadd.f32 %v796, %v964
  %966 = vmatmul.bf16.gmra.mxu0 %v668
  %v967 = vpop.f32.mrf.mxu0
  %v968 = vadd.f32 %v799, %v967
  %v969 = vpop.f32.mrf.mxu0
  %v970 = vadd.f32 %v801, %v969
  %971 = vmatmul.bf16.gmra.mxu0 %v671
  %v972 = vpop.f32.mrf.mxu0
  %v973 = vadd.f32 %v804, %v972
  %v974 = vpop.f32.mrf.mxu0
  %v975 = vadd.f32 %v806, %v974
  %976 = vmatmul.bf16.gmra.mxu0 %v674
  %v977 = vpop.f32.mrf.mxu0
  %v978 = vadd.f32 %v809, %v977
  %v979 = vpop.f32.mrf.mxu0
  %v980 = vadd.f32 %v811, %v979
  %981 = vmatmul.bf16.gmra.mxu0 %v677
  %v982 = vpop.f32.mrf.mxu0
  %v983 = vadd.f32 %v814, %v982
  %v984 = vpop.f32.mrf.mxu0
  %v985 = vadd.f32 %v816, %v984
  %986 = vmatmul.bf16.gmra.mxu0 %v680
  %v987 = vpop.f32.mrf.mxu0
  %v988 = vadd.f32 %v819, %v987
  %v989 = vpop.f32.mrf.mxu0
  %v990 = vadd.f32 %v821, %v989
  %991 = vmatmul.bf16.gmra.mxu0 %v683
  %v992 = vpop.f32.mrf.mxu0
  %v993 = vadd.f32 %v824, %v992
  %v994 = vpop.f32.mrf.mxu0
  %v995 = vadd.f32 %v826, %v994
  %996 = vmatmul.bf16.gmra.mxu0 %v686
  %v997 = vpop.f32.mrf.mxu0
  %v998 = vadd.f32 %v829, %v997
  %v999 = vpop.f32.mrf.mxu0
  %v1000 = vadd.f32 %v831, %v999
  %1001 = vmatmul.bf16.gmra.mxu0 %v689
  %v1002 = vpop.f32.mrf.mxu0
  %v1003 = vadd.f32 %v834, %v1002
  %v1004 = vpop.f32.mrf.mxu0
  %v1005 = vadd.f32 %v836, %v1004
  %1006 = vmatmul.bf16.gmra.mxu0 %v692
  %v1007 = vpop.f32.mrf.mxu0
  %v1008 = vadd.f32 %v839, %v1007
  %v1009 = vpop.f32.mrf.mxu0
  %v1010 = vadd.f32 %v841, %v1009
  %1011 = vmatmul.bf16.gmra.mxu0 %v695
  %v1012 = vpop.f32.mrf.mxu0
  %v1013 = vadd.f32 %v844, %v1012
  %v1014 = vpop.f32.mrf.mxu0
  %v1015 = vadd.f32 %v846, %v1014
  %1016 = vmatmul.bf16.gmra.mxu0 %v698
  %v1017 = vpop.f32.mrf.mxu0
  %v1018 = vadd.f32 %v849, %v1017
  %v1019 = vpop.f32.mrf.mxu0
  %v1020 = vadd.f32 %v851, %v1019
  %1021 = vmatmul.bf16.gmra.mxu0 %v701
  %v1022 = vpop.f32.mrf.mxu0
  %v1023 = vadd.f32 %v854, %v1022
  %v1024 = vpop.f32.mrf.mxu0
  %v1025 = vadd.f32 %v856, %v1024
  %1026 = vmatmul.bf16.gmra.mxu0 %v704
  %v1027 = vpop.f32.mrf.mxu0
  %v1028 = vadd.f32 %v859, %v1027
  %v1029 = vpop.f32.mrf.mxu0
  %v1030 = vadd.f32 %v861, %v1029
  %1031 = vmatmul.bf16.gmra.mxu0 %v707
  %v1032 = vpop.f32.mrf.mxu0
  %v1033 = vadd.f32 %v864, %v1032
  %v1034 = vpop.f32.mrf.mxu0
  %v1035 = vadd.f32 %v866, %v1034
  %1036 = vmatmul.bf16.gmra.mxu0 %v710
  %v1037 = vpop.f32.mrf.mxu0
  %v1038 = vadd.f32 %v869, %v1037
  %v1039 = vpop.f32.mrf.mxu0
  %v1040 = vadd.f32 %v871, %v1039
  %1041 = vmatmul.bf16.gmra.mxu0 %v713
  %v1042 = vpop.f32.mrf.mxu0
  %v1043 = vadd.f32 %v874, %v1042
  %v1044 = vpop.f32.mrf.mxu0
  %v1045 = vadd.f32 %v876, %v1044
  %1046 = vmatmul.bf16.gmra.mxu0 %v716
  %v1047 = vpop.f32.mrf.mxu0
  %v1048 = vadd.f32 %v879, %v1047
  %v1049 = vpop.f32.mrf.mxu0
  %v1050 = vadd.f32 %v881, %v1049
  %1051 = vmatmul.bf16.gmra.mxu0 %v719
  %v1052 = vpop.f32.mrf.mxu0
  %v1053 = vadd.f32 %v884, %v1052
  %v1054 = vpop.f32.mrf.mxu0
  %v1055 = vadd.f32 %v886, %v1054
  %1056 = vmatmul.bf16.gmra.mxu0 %v722
  %v1057 = vpop.f32.mrf.mxu0
  %v1058 = vadd.f32 %v889, %v1057
  %v1059 = vpop.f32.mrf.mxu0
  %v1060 = vadd.f32 %v891, %v1059
  %1061 = vdwg.mxu0
  %v1062 = vmax.f32 %v903, %v983
  %v1063 = vmax.f32 %v905, %v985
  %v1064 = vmax.f32 %v908, %v988
  %v1065 = vmax.f32 %v910, %v990
  %v1066 = vmax.f32 %v913, %v993
  %v1067 = vmax.f32 %v915, %v995
  %v1068 = vmax.f32 %v918, %v998
  %v1069 = vmax.f32 %v920, %v1000
  %v1070 = vmax.f32 %v923, %v1003
  %v1071 = vmax.f32 %v925, %v1005
  %v1072 = vmax.f32 %v928, %v1008
  %v1073 = vmax.f32 %v930, %v1010
  %v1074 = vmax.f32 %v933, %v1013
  %v1075 = vmax.f32 %v935, %v1015
  %v1076 = vmax.f32 %v938, %v1018
  %v1077 = vmax.f32 %v940, %v1020
  %v1078 = vmax.f32 %v943, %v1023
  %v1079 = vmax.f32 %v945, %v1025
  %v1080 = vmax.f32 %v948, %v1028
  %v1081 = vmax.f32 %v950, %v1030
  %v1082 = vmax.f32 %v953, %v1033
  %v1083 = vmax.f32 %v955, %v1035
  %v1084 = vmax.f32 %v958, %v1038
  %v1085 = vmax.f32 %v960, %v1040
  %v1086 = vmax.f32 %v963, %v1043
  %v1087 = vmax.f32 %v965, %v1045
  %v1088 = vmax.f32 %v968, %v1048
  %v1089 = vmax.f32 %v970, %v1050
  %v1090 = vmax.f32 %v973, %v1053
  %v1091 = vmax.f32 %v975, %v1055
  %v1092 = vmax.f32 %v978, %v1058
  %v1093 = vmax.f32 %v980, %v1060
  %v1094 = vmax.f32 %v1062, %v1078
  %v1095 = vmax.f32 %v1063, %v1079
  %v1096 = vmax.f32 %v1064, %v1080
  %v1097 = vmax.f32 %v1065, %v1081
  %v1098 = vmax.f32 %v1066, %v1082
  %v1099 = vmax.f32 %v1067, %v1083
  %v1100 = vmax.f32 %v1068, %v1084
  %v1101 = vmax.f32 %v1069, %v1085
  %v1102 = vmax.f32 %v1070, %v1086
  %v1103 = vmax.f32 %v1071, %v1087
  %v1104 = vmax.f32 %v1072, %v1088
  %v1105 = vmax.f32 %v1073, %v1089
  %v1106 = vmax.f32 %v1074, %v1090
  %v1107 = vmax.f32 %v1075, %v1091
  %v1108 = vmax.f32 %v1076, %v1092
  %v1109 = vmax.f32 %v1077, %v1093
  %1111 = vset.pattern.permute.xlu0 0
  %1112 = vperm.xlu0 %1111, %v97
  %v1113 = vpop.permute.xlu0 %1112
  %1116 = vset.pattern.permute.xlu0 0
  %1117 = vperm.xlu0 %1116, %v98
  %v1118 = vpop.permute.xlu0 %1117
  %1121 = vset.pattern.permute.xlu0 0
  %1122 = vperm.xlu0 %1121, %v99
  %v1123 = vpop.permute.xlu0 %1122
  %1126 = vset.pattern.permute.xlu0 0
  %1127 = vperm.xlu0 %1126, %v100
  %v1128 = vpop.permute.xlu0 %1127
  %1131 = vset.pattern.permute.xlu0 0
  %1132 = vperm.xlu0 %1131, %v101
  %v1133 = vpop.permute.xlu0 %1132
  %1136 = vset.pattern.permute.xlu0 0
  %1137 = vperm.xlu0 %1136, %v102
  %v1138 = vpop.permute.xlu0 %1137
  %1141 = vset.pattern.permute.xlu0 0
  %1142 = vperm.xlu0 %1141, %v103
  %v1143 = vpop.permute.xlu0 %1142
  %1146 = vset.pattern.permute.xlu0 0
  %1147 = vperm.xlu0 %1146, %v104
  %v1148 = vpop.permute.xlu0 %1147
  %1151 = vset.pattern.permute.xlu0 0
  %1152 = vperm.xlu0 %1151, %v105
  %v1153 = vpop.permute.xlu0 %1152
  %1156 = vset.pattern.permute.xlu0 0
  %1157 = vperm.xlu0 %1156, %v106
  %v1158 = vpop.permute.xlu0 %1157
  %1161 = vset.pattern.permute.xlu0 0
  %1162 = vperm.xlu0 %1161, %v107
  %v1163 = vpop.permute.xlu0 %1162
  %1166 = vset.pattern.permute.xlu0 0
  %1167 = vperm.xlu0 %1166, %v108
  %v1168 = vpop.permute.xlu0 %1167
  %1171 = vset.pattern.permute.xlu0 0
  %1172 = vperm.xlu0 %1171, %v109
  %v1173 = vpop.permute.xlu0 %1172
  %1176 = vset.pattern.permute.xlu0 0
  %1177 = vperm.xlu0 %1176, %v110
  %v1178 = vpop.permute.xlu0 %1177
  %1181 = vset.pattern.permute.xlu0 0
  %1182 = vperm.xlu0 %1181, %v111
  %v1183 = vpop.permute.xlu0 %1182
  %1186 = vset.pattern.permute.xlu0 0
  %1187 = vperm.xlu0 %1186, %v112
  %v1188 = vpop.permute.xlu0 %1187
  %v1190 = vadd.f32 %v1094, %v1113
  %v1191 = vadd.f32 %v1095, %v1118
  %v1192 = vadd.f32 %v1096, %v1123
  %v1193 = vadd.f32 %v1097, %v1128
  %v1194 = vadd.f32 %v1098, %v1133
  %v1195 = vadd.f32 %v1099, %v1138
  %v1196 = vadd.f32 %v1100, %v1143
  %v1197 = vadd.f32 %v1101, %v1148
  %v1198 = vadd.f32 %v1102, %v1153
  %v1199 = vadd.f32 %v1103, %v1158
  %v1200 = vadd.f32 %v1104, %v1163
  %v1201 = vadd.f32 %v1105, %v1168
  %v1202 = vadd.f32 %v1106, %v1173
  %v1203 = vadd.f32 %v1107, %v1178
  %v1204 = vadd.f32 %v1108, %v1183
  %v1205 = vadd.f32 %v1109, %v1188
  %v1206 = vmax.f32 %v1190, 0.0
  %v1207 = vmax.f32 %v1191, 0.0
  %v1208 = vmax.f32 %v1192, 0.0
  %v1209 = vmax.f32 %v1193, 0.0
  %v1210 = vmax.f32 %v1194, 0.0
  %v1211 = vmax.f32 %v1195, 0.0
  %v1212 = vmax.f32 %v1196, 0.0
  %v1213 = vmax.f32 %v1197, 0.0
  %v1214 = vmax.f32 %v1198, 0.0
  %v1215 = vmax.f32 %v1199, 0.0
  %v1216 = vmax.f32 %v1200, 0.0
  %v1217 = vmax.f32 %v1201, 0.0
  %v1218 = vmax.f32 %v1202, 0.0
  %v1219 = vmax.f32 %v1203, 0.0
  %v1220 = vmax.f32 %v1204, 0.0
  %v1221 = vmax.f32 %v1205, 0.0
  %v1222 = vpack.c.bf16 %v1206, %v1206
  %v1223 = vpack.c.bf16 %v1207, %v1207
  %v1224 = vpack.c.bf16 %v1208, %v1208
  %v1225 = vpack.c.bf16 %v1209, %v1209
  %v1226 = vpack.c.bf16 %v1210, %v1210
  %v1227 = vpack.c.bf16 %v1211, %v1211
  %v1228 = vpack.c.bf16 %v1212, %v1212
  %v1229 = vpack.c.bf16 %v1213, %v1213
  %v1230 = vpack.c.bf16 %v1214, %v1214
  %v1231 = vpack.c.bf16 %v1215, %v1215
  %v1232 = vpack.c.bf16 %v1216, %v1216
  %v1233 = vpack.c.bf16 %v1217, %v1217
  %v1234 = vpack.c.bf16 %v1218, %v1218
  %v1235 = vpack.c.bf16 %v1219, %v1219
  %v1236 = vpack.c.bf16 %v1220, %v1220
  %v1237 = vpack.c.bf16 %v1221, %v1221
  %1238 = vst [vmem:[#allocation2] sm:$0xf] %v1222
  %1239 = vst [vmem:[#allocation2 + $0x4] sm:$0xf] %v1223
  %1240 = vst [vmem:[#allocation2 + $0x8] sm:$0xf] %v1224
  %1241 = vst [vmem:[#allocation2 + $0xc] sm:$0xf] %v1225
  %1242 = vst [vmem:[#allocation2 + $0x10] sm:$0xf] %v1226
  %1243 = vst [vmem:[#allocation2 + $0x14] sm:$0xf] %v1227
  %1244 = vst [vmem:[#allocation2 + $0x18] sm:$0xf] %v1228
  %1245 = vst [vmem:[#allocation2 + $0x1c] sm:$0xf] %v1229
  %1246 = vst [vmem:[#allocation2 + $0x20] sm:$0xf] %v1230
  %1247 = vst [vmem:[#allocation2 + $0x24] sm:$0xf] %v1231
  %1248 = vst [vmem:[#allocation2 + $0x28] sm:$0xf] %v1232
  %1249 = vst [vmem:[#allocation2 + $0x2c] sm:$0xf] %v1233
  %1250 = vst [vmem:[#allocation2 + $0x30] sm:$0xf] %v1234
  %1251 = vst [vmem:[#allocation2 + $0x34] sm:$0xf] %v1235
  %1252 = vst [vmem:[#allocation2 + $0x38] sm:$0xf] %v1236
  %1253 = vst [vmem:[#allocation2 + $0x3c] sm:$0xf] %v1237
  %v1254 = vld [vmem:[%s0 + $0x20] sm:$0xf]
  %v1255 = vld [vmem:[%s0 + $0x24] sm:$0xf]
  %v1256 = vld [vmem:[%s0 + $0x28] sm:$0xf]
  %v1257 = vld [vmem:[%s0 + $0x2c] sm:$0xf]
  %v1258 = vld [vmem:[%s0 + $0x30] sm:$0xf]
  %v1259 = vld [vmem:[%s0 + $0x34] sm:$0xf]
  %v1260 = vld [vmem:[%s0 + $0x38] sm:$0xf]
  %v1261 = vld [vmem:[%s0 + $0x3c] sm:$0xf]
  %v1262 = vld [vmem:[%s0 + $0x40] sm:$0xf]
  %v1263 = vld [vmem:[%s0 + $0x44] sm:$0xf]
  %v1264 = vld [vmem:[%s0 + $0x48] sm:$0xf]
  %v1265 = vld [vmem:[%s0 + $0x4c] sm:$0xf]
  %v1266 = vld [vmem:[%s0 + $0x50] sm:$0xf]
  %v1267 = vld [vmem:[%s0 + $0x54] sm:$0xf]
  %v1268 = vld [vmem:[%s0 + $0x58] sm:$0xf]
  %v1269 = vld [vmem:[%s0 + $0x5c] sm:$0xf]
  %v1270 = vld [vmem:[%s0 + $0x60] sm:$0xf]
  %v1271 = vld [vmem:[%s0 + $0x64] sm:$0xf]
  %v1272 = vld [vmem:[%s0 + $0x68] sm:$0xf]
  %v1273 = vld [vmem:[%s0 + $0x6c] sm:$0xf]
  %v1274 = vld [vmem:[%s0 + $0x70] sm:$0xf]
  %v1275 = vld [vmem:[%s0 + $0x74] sm:$0xf]
  %v1276 = vld [vmem:[%s0 + $0x78] sm:$0xf]
  %v1277 = vld [vmem:[%s0 + $0x7c] sm:$0xf]
  %v1302 = vunpack.c.l.b16 %v1254
  %v1303 = vunpack.c.l.b16 %v1255
  %v1304 = vunpack.c.l.b16 %v1256
  %v1305 = vunpack.c.l.b16 %v1257
  %v1306 = vunpack.c.l.b16 %v1258
  %v1307 = vunpack.c.l.b16 %v1259
  %v1308 = vunpack.c.l.b16 %v1260
  %v1309 = vunpack.c.l.b16 %v1261
  %v1310 = vunpack.c.l.b16 %v1262
  %v1311 = vunpack.c.l.b16 %v1263
  %v1312 = vunpack.c.l.b16 %v1264
  %v1313 = vunpack.c.l.b16 %v1265
  %v1314 = vunpack.c.l.b16 %v1266
  %v1315 = vunpack.c.l.b16 %v1267
  %v1316 = vunpack.c.l.b16 %v1268
  %v1317 = vunpack.c.l.b16 %v1269
  %v1318 = vunpack.c.l.b16 %v1270
  %v1319 = vunpack.c.l.b16 %v1271
  %v1320 = vunpack.c.l.b16 %v1272
  %v1321 = vunpack.c.l.b16 %v1273
  %v1322 = vunpack.c.l.b16 %v1274
  %v1323 = vunpack.c.l.b16 %v1275
  %v1324 = vunpack.c.l.b16 %v1276
  %v1325 = vunpack.c.l.b16 %v1277
  %v1326 = vpack.c.b16 %v1303, %v1302
  %v1327 = vpack.c.b16 %v1305, %v1304
  %v1328 = vpack.c.b16 %v1307, %v1306
  %v1329 = vpack.c.b16 %v1309, %v1308
  %v1330 = vpack.c.b16 %v1311, %v1310
  %v1331 = vpack.c.b16 %v1313, %v1312
  %v1332 = vpack.c.b16 %v1315, %v1314
  %v1333 = vpack.c.b16 %v1317, %v1316
  %v1334 = vpack.c.b16 %v1319, %v1318
  %v1335 = vpack.c.b16 %v1321, %v1320
  %v1336 = vpack.c.b16 %v1323, %v1322
  %v1337 = vpack.c.b16 %v1325, %v1324
  %1350 = vmatpush.bf16.msra.mxu0 %v1333
  %1351 = vmatpush.bf16.msra.mxu0 %v1332
  %1352 = vmatpush.bf16.msra.mxu0 %v1331
  %1353 = vmatpush.bf16.msra.mxu0 %v1330
  %1354 = vmatpush.bf16.msra.mxu0 %v1329
  %1355 = vmatpush.bf16.msra.mxu0 %v1328
  %1356 = vmatpush.bf16.msra.mxu0 %v1327
  %1357 = vmatpush.bf16.msra.mxu0 %v1326
  %1358 = vmatmul.bf16.gmra.mxu0 %v459
  %v1359 = vpop.f32.mrf.mxu0
  %v1360 = vadd.f32 0.0, %v1359
  %v1361 = vpop.f32.mrf.mxu0
  %v1362 = vadd.f32 0.0, %v1361
  %1363 = vmatmul.bf16.gmra.mxu0 %v461
  %v1364 = vpop.f32.mrf.mxu0
  %v1365 = vadd.f32 0.0, %v1364
  %v1366 = vpop.f32.mrf.mxu0
  %v1367 = vadd.f32 0.0, %v1366
  %1368 = vmatmul.bf16.gmra.mxu0 %v463
  %v1369 = vpop.f32.mrf.mxu0
  %v1370 = vadd.f32 0.0, %v1369
  %v1371 = vpop.f32.mrf.mxu0
  %v1372 = vadd.f32 0.0, %v1371
  %1373 = vmatmul.bf16.gmra.mxu0 %v465
  %v1374 = vpop.f32.mrf.mxu0
  %v1375 = vadd.f32 0.0, %v1374
  %v1376 = vpop.f32.mrf.mxu0
  %v1377 = vadd.f32 0.0, %v1376
  %1378 = vmatmul.bf16.gmra.mxu0 %v467
  %v1379 = vpop.f32.mrf.mxu0
  %v1380 = vadd.f32 0.0, %v1379
  %v1381 = vpop.f32.mrf.mxu0
  %v1382 = vadd.f32 0.0, %v1381
  %1383 = vmatmul.bf16.gmra.mxu0 %v469
  %v1384 = vpop.f32.mrf.mxu0
  %v1385 = vadd.f32 0.0, %v1384
  %v1386 = vpop.f32.mrf.mxu0
  %v1387 = vadd.f32 0.0, %v1386
  %1388 = vmatmul.bf16.gmra.mxu0 %v471
  %v1389 = vpop.f32.mrf.mxu0
  %v1390 = vadd.f32 0.0, %v1389
  %v1391 = vpop.f32.mrf.mxu0
  %v1392 = vadd.f32 0.0, %v1391
  %1393 = vmatmul.bf16.gmra.mxu0 %v473
  %v1394 = vpop.f32.mrf.mxu0
  %v1395 = vadd.f32 0.0, %v1394
  %v1396 = vpop.f32.mrf.mxu0
  %v1397 = vadd.f32 0.0, %v1396
  %1398 = vmatmul.bf16.gmra.mxu0 %v475
  %v1399 = vpop.f32.mrf.mxu0
  %v1400 = vadd.f32 0.0, %v1399
  %v1401 = vpop.f32.mrf.mxu0
  %v1402 = vadd.f32 0.0, %v1401
  %1403 = vmatmul.bf16.gmra.mxu0 %v477
  %v1404 = vpop.f32.mrf.mxu0
  %v1405 = vadd.f32 0.0, %v1404
  %v1406 = vpop.f32.mrf.mxu0
  %v1407 = vadd.f32 0.0, %v1406
  %1408 = vmatmul.bf16.gmra.mxu0 %v479
  %v1409 = vpop.f32.mrf.mxu0
  %v1410 = vadd.f32 0.0, %v1409
  %v1411 = vpop.f32.mrf.mxu0
  %v1412 = vadd.f32 0.0, %v1411
  %1413 = vmatmul.bf16.gmra.mxu0 %v481
  %v1414 = vpop.f32.mrf.mxu0
  %v1415 = vadd.f32 0.0, %v1414
  %v1416 = vpop.f32.mrf.mxu0
  %v1417 = vadd.f32 0.0, %v1416
  %1418 = vmatmul.bf16.gmra.mxu0 %v483
  %v1419 = vpop.f32.mrf.mxu0
  %v1420 = vadd.f32 0.0, %v1419
  %v1421 = vpop.f32.mrf.mxu0
  %v1422 = vadd.f32 0.0, %v1421
  %1423 = vmatmul.bf16.gmra.mxu0 %v485
  %v1424 = vpop.f32.mrf.mxu0
  %v1425 = vadd.f32 0.0, %v1424
  %v1426 = vpop.f32.mrf.mxu0
  %v1427 = vadd.f32 0.0, %v1426
  %1428 = vmatmul.bf16.gmra.mxu0 %v487
  %v1429 = vpop.f32.mrf.mxu0
  %v1430 = vadd.f32 0.0, %v1429
  %v1431 = vpop.f32.mrf.mxu0
  %v1432 = vadd.f32 0.0, %v1431
  %1433 = vmatmul.bf16.gmra.mxu0 %v489
  %v1434 = vpop.f32.mrf.mxu0
  %v1435 = vadd.f32 0.0, %v1434
  %v1436 = vpop.f32.mrf.mxu0
  %v1437 = vadd.f32 0.0, %v1436
  %1438 = vmatmul.bf16.gmra.mxu0 %v491
  %v1439 = vpop.f32.mrf.mxu0
  %v1440 = vadd.f32 0.0, %v1439
  %v1441 = vpop.f32.mrf.mxu0
  %v1442 = vadd.f32 0.0, %v1441
  %1443 = vmatmul.bf16.gmra.mxu0 %v493
  %v1444 = vpop.f32.mrf.mxu0
  %v1445 = vadd.f32 0.0, %v1444
  %v1446 = vpop.f32.mrf.mxu0
  %v1447 = vadd.f32 0.0, %v1446
  %1448 = vmatmul.bf16.gmra.mxu0 %v495
  %v1449 = vpop.f32.mrf.mxu0
  %v1450 = vadd.f32 0.0, %v1449
  %v1451 = vpop.f32.mrf.mxu0
  %v1452 = vadd.f32 0.0, %v1451
  %1453 = vmatmul.bf16.gmra.mxu0 %v497
  %v1454 = vpop.f32.mrf.mxu0
  %v1455 = vadd.f32 0.0, %v1454
  %v1456 = vpop.f32.mrf.mxu0
  %v1457 = vadd.f32 0.0, %v1456
  %1458 = vmatmul.bf16.gmra.mxu0 %v499
  %v1459 = vpop.f32.mrf.mxu0
  %v1460 = vadd.f32 0.0, %v1459
  %v1461 = vpop.f32.mrf.mxu0
  %v1462 = vadd.f32 0.0, %v1461
  %1463 = vmatmul.bf16.gmra.mxu0 %v501
  %v1464 = vpop.f32.mrf.mxu0
  %v1465 = vadd.f32 0.0, %v1464
  %v1466 = vpop.f32.mrf.mxu0
  %v1467 = vadd.f32 0.0, %v1466
  %1468 = vmatmul.bf16.gmra.mxu0 %v503
  %v1469 = vpop.f32.mrf.mxu0
  %v1470 = vadd.f32 0.0, %v1469
  %v1471 = vpop.f32.mrf.mxu0
  %v1472 = vadd.f32 0.0, %v1471
  %1473 = vmatmul.bf16.gmra.mxu0 %v505
  %v1474 = vpop.f32.mrf.mxu0
  %v1475 = vadd.f32 0.0, %v1474
  %v1476 = vpop.f32.mrf.mxu0
  %v1477 = vadd.f32 0.0, %v1476
  %1478 = vmatmul.bf16.gmra.mxu0 %v507
  %v1479 = vpop.f32.mrf.mxu0
  %v1480 = vadd.f32 0.0, %v1479
  %v1481 = vpop.f32.mrf.mxu0
  %v1482 = vadd.f32 0.0, %v1481
  %1483 = vmatmul.bf16.gmra.mxu0 %v509
  %v1484 = vpop.f32.mrf.mxu0
  %v1485 = vadd.f32 0.0, %v1484
  %v1486 = vpop.f32.mrf.mxu0
  %v1487 = vadd.f32 0.0, %v1486
  %1488 = vmatmul.bf16.gmra.mxu0 %v511
  %v1489 = vpop.f32.mrf.mxu0
  %v1490 = vadd.f32 0.0, %v1489
  %v1491 = vpop.f32.mrf.mxu0
  %v1492 = vadd.f32 0.0, %v1491
  %1493 = vmatmul.bf16.gmra.mxu0 %v513
  %v1494 = vpop.f32.mrf.mxu0
  %v1495 = vadd.f32 0.0, %v1494
  %v1496 = vpop.f32.mrf.mxu0
  %v1497 = vadd.f32 0.0, %v1496
  %1498 = vmatmul.bf16.gmra.mxu0 %v515
  %v1499 = vpop.f32.mrf.mxu0
  %v1500 = vadd.f32 0.0, %v1499
  %v1501 = vpop.f32.mrf.mxu0
  %v1502 = vadd.f32 0.0, %v1501
  %1503 = vmatmul.bf16.gmra.mxu0 %v517
  %v1504 = vpop.f32.mrf.mxu0
  %v1505 = vadd.f32 0.0, %v1504
  %v1506 = vpop.f32.mrf.mxu0
  %v1507 = vadd.f32 0.0, %v1506
  %1508 = vmatmul.bf16.gmra.mxu0 %v519
  %v1509 = vpop.f32.mrf.mxu0
  %v1510 = vadd.f32 0.0, %v1509
  %v1511 = vpop.f32.mrf.mxu0
  %v1512 = vadd.f32 0.0, %v1511
  %1513 = vmatmul.bf16.gmra.mxu0 %v521
  %v1514 = vpop.f32.mrf.mxu0
  %v1515 = vadd.f32 0.0, %v1514
  %v1516 = vpop.f32.mrf.mxu0
  %v1517 = vadd.f32 0.0, %v1516
  %1518 = vdwg.mxu0
  %1519 = vmatpush.bf16.msra.mxu0 0
  %1520 = vmatpush.bf16.msra.mxu0 0
  %1521 = vmatpush.bf16.msra.mxu0 0
  %1522 = vmatpush.bf16.msra.mxu0 0
  %1523 = vmatpush.bf16.msra.mxu0 %v1337
  %1524 = vmatpush.bf16.msra.mxu0 %v1336
  %1525 = vmatpush.bf16.msra.mxu0 %v1335
  %1526 = vmatpush.bf16.msra.mxu0 %v1334
  %1527 = vmatmul.bf16.gmra.mxu0 %v629
  %v1528 = vpop.f32.mrf.mxu0
  %v1529 = vadd.f32 %v1360, %v1528
  %v1530 = vpop.f32.mrf.mxu0
  %v1531 = vadd.f32 %v1362, %v1530
  %1532 = vmatmul.bf16.gmra.mxu0 %v632
  %v1533 = vpop.f32.mrf.mxu0
  %v1534 = vadd.f32 %v1365, %v1533
  %v1535 = vpop.f32.mrf.mxu0
  %v1536 = vadd.f32 %v1367, %v1535
  %1537 = vmatmul.bf16.gmra.mxu0 %v635
  %v1538 = vpop.f32.mrf.mxu0
  %v1539 = vadd.f32 %v1370, %v1538
  %v1540 = vpop.f32.mrf.mxu0
  %v1541 = vadd.f32 %v1372, %v1540
  %1542 = vmatmul.bf16.gmra.mxu0 %v638
  %v1543 = vpop.f32.mrf.mxu0
  %v1544 = vadd.f32 %v1375, %v1543
  %v1545 = vpop.f32.mrf.mxu0
  %v1546 = vadd.f32 %v1377, %v1545
  %1547 = vmatmul.bf16.gmra.mxu0 %v641
  %v1548 = vpop.f32.mrf.mxu0
  %v1549 = vadd.f32 %v1380, %v1548
  %v1550 = vpop.f32.mrf.mxu0
  %v1551 = vadd.f32 %v1382, %v1550
  %1552 = vmatmul.bf16.gmra.mxu0 %v644
  %v1553 = vpop.f32.mrf.mxu0
  %v1554 = vadd.f32 %v1385, %v1553
  %v1555 = vpop.f32.mrf.mxu0
  %v1556 = vadd.f32 %v1387, %v1555
  %1557 = vmatmul.bf16.gmra.mxu0 %v647
  %v1558 = vpop.f32.mrf.mxu0
  %v1559 = vadd.f32 %v1390, %v1558
  %v1560 = vpop.f32.mrf.mxu0
  %v1561 = vadd.f32 %v1392, %v1560
  %1562 = vmatmul.bf16.gmra.mxu0 %v650
  %v1563 = vpop.f32.mrf.mxu0
  %v1564 = vadd.f32 %v1395, %v1563
  %v1565 = vpop.f32.mrf.mxu0
  %v1566 = vadd.f32 %v1397, %v1565
  %1567 = vmatmul.bf16.gmra.mxu0 %v653
  %v1568 = vpop.f32.mrf.mxu0
  %v1569 = vadd.f32 %v1400, %v1568
  %v1570 = vpop.f32.mrf.mxu0
  %v1571 = vadd.f32 %v1402, %v1570
  %1572 = vmatmul.bf16.gmra.mxu0 %v656
  %v1573 = vpop.f32.mrf.mxu0
  %v1574 = vadd.f32 %v1405, %v1573
  %v1575 = vpop.f32.mrf.mxu0
  %v1576 = vadd.f32 %v1407, %v1575
  %1577 = vmatmul.bf16.gmra.mxu0 %v659
  %v1578 = vpop.f32.mrf.mxu0
  %v1579 = vadd.f32 %v1410, %v1578
  %v1580 = vpop.f32.mrf.mxu0
  %v1581 = vadd.f32 %v1412, %v1580
  %1582 = vmatmul.bf16.gmra.mxu0 %v662
  %v1583 = vpop.f32.mrf.mxu0
  %v1584 = vadd.f32 %v1415, %v1583
  %v1585 = vpop.f32.mrf.mxu0
  %v1586 = vadd.f32 %v1417, %v1585
  %1587 = vmatmul.bf16.gmra.mxu0 %v665
  %v1588 = vpop.f32.mrf.mxu0
  %v1589 = vadd.f32 %v1420, %v1588
  %v1590 = vpop.f32.mrf.mxu0
  %v1591 = vadd.f32 %v1422, %v1590
  %1592 = vmatmul.bf16.gmra.mxu0 %v668
  %v1593 = vpop.f32.mrf.mxu0
  %v1594 = vadd.f32 %v1425, %v1593
  %v1595 = vpop.f32.mrf.mxu0
  %v1596 = vadd.f32 %v1427, %v1595
  %1597 = vmatmul.bf16.gmra.mxu0 %v671
  %v1598 = vpop.f32.mrf.mxu0
  %v1599 = vadd.f32 %v1430, %v1598
  %v1600 = vpop.f32.mrf.mxu0
  %v1601 = vadd.f32 %v1432, %v1600
  %1602 = vmatmul.bf16.gmra.mxu0 %v674
  %v1603 = vpop.f32.mrf.mxu0
  %v1604 = vadd.f32 %v1435, %v1603
  %v1605 = vpop.f32.mrf.mxu0
  %v1606 = vadd.f32 %v1437, %v1605
  %1607 = vmatmul.bf16.gmra.mxu0 %v677
  %v1608 = vpop.f32.mrf.mxu0
  %v1609 = vadd.f32 %v1440, %v1608
  %v1610 = vpop.f32.mrf.mxu0
  %v1611 = vadd.f32 %v1442, %v1610
  %1612 = vmatmul.bf16.gmra.mxu0 %v680
  %v1613 = vpop.f32.mrf.mxu0
  %v1614 = vadd.f32 %v1445, %v1613
  %v1615 = vpop.f32.mrf.mxu0
  %v1616 = vadd.f32 %v1447, %v1615
  %1617 = vmatmul.bf16.gmra.mxu0 %v683
  %v1618 = vpop.f32.mrf.mxu0
  %v1619 = vadd.f32 %v1450, %v1618
  %v1620 = vpop.f32.mrf.mxu0
  %v1621 = vadd.f32 %v1452, %v1620
  %1622 = vmatmul.bf16.gmra.mxu0 %v686
  %v1623 = vpop.f32.mrf.mxu0
  %v1624 = vadd.f32 %v1455, %v1623
  %v1625 = vpop.f32.mrf.mxu0
  %v1626 = vadd.f32 %v1457, %v1625
  %1627 = vmatmul.bf16.gmra.mxu0 %v689
  %v1628 = vpop.f32.mrf.mxu0
  %v1629 = vadd.f32 %v1460, %v1628
  %v1630 = vpop.f32.mrf.mxu0
  %v1631 = vadd.f32 %v1462, %v1630
  %1632 = vmatmul.bf16.gmra.mxu0 %v692
  %v1633 = vpop.f32.mrf.mxu0
  %v1634 = vadd.f32 %v1465, %v1633
  %v1635 = vpop.f32.mrf.mxu0
  %v1636 = vadd.f32 %v1467, %v1635
  %1637 = vmatmul.bf16.gmra.mxu0 %v695
  %v1638 = vpop.f32.mrf.mxu0
  %v1639 = vadd.f32 %v1470, %v1638
  %v1640 = vpop.f32.mrf.mxu0
  %v1641 = vadd.f32 %v1472, %v1640
  %1642 = vmatmul.bf16.gmra.mxu0 %v698
  %v1643 = vpop.f32.mrf.mxu0
  %v1644 = vadd.f32 %v1475, %v1643
  %v1645 = vpop.f32.mrf.mxu0
  %v1646 = vadd.f32 %v1477, %v1645
  %1647 = vmatmul.bf16.gmra.mxu0 %v701
  %v1648 = vpop.f32.mrf.mxu0
  %v1649 = vadd.f32 %v1480, %v1648
  %v1650 = vpop.f32.mrf.mxu0
  %v1651 = vadd.f32 %v1482, %v1650
  %1652 = vmatmul.bf16.gmra.mxu0 %v704
  %v1653 = vpop.f32.mrf.mxu0
  %v1654 = vadd.f32 %v1485, %v1653
  %v1655 = vpop.f32.mrf.mxu0
  %v1656 = vadd.f32 %v1487, %v1655
  %1657 = vmatmul.bf16.gmra.mxu0 %v707
  %v1658 = vpop.f32.mrf.mxu0
  %v1659 = vadd.f32 %v1490, %v1658
  %v1660 = vpop.f32.mrf.mxu0
  %v1661 = vadd.f32 %v1492, %v1660
  %1662 = vmatmul.bf16.gmra.mxu0 %v710
  %v1663 = vpop.f32.mrf.mxu0
  %v1664 = vadd.f32 %v1495, %v1663
  %v1665 = vpop.f32.mrf.mxu0
  %v1666 = vadd.f32 %v1497, %v1665
  %1667 = vmatmul.bf16.gmra.mxu0 %v713
  %v1668 = vpop.f32.mrf.mxu0
  %v1669 = vadd.f32 %v1500, %v1668
  %v1670 = vpop.f32.mrf.mxu0
  %v1671 = vadd.f32 %v1502, %v1670
  %1672 = vmatmul.bf16.gmra.mxu0 %v716
  %v1673 = vpop.f32.mrf.mxu0
  %v1674 = vadd.f32 %v1505, %v1673
  %v1675 = vpop.f32.mrf.mxu0
  %v1676 = vadd.f32 %v1507, %v1675
  %1677 = vmatmul.bf16.gmra.mxu0 %v719
  %v1678 = vpop.f32.mrf.mxu0
  %v1679 = vadd.f32 %v1510, %v1678
  %v1680 = vpop.f32.mrf.mxu0
  %v1681 = vadd.f32 %v1512, %v1680
  %1682 = vmatmul.bf16.gmra.mxu0 %v722
  %v1683 = vpop.f32.mrf.mxu0
  %v1684 = vadd.f32 %v1515, %v1683
  %v1685 = vpop.f32.mrf.mxu0
  %v1686 = vadd.f32 %v1517, %v1685
  %1687 = vdwg.mxu0
  %v1688 = vmax.f32 %v1529, %v1609
  %v1689 = vmax.f32 %v1531, %v1611
  %v1690 = vmax.f32 %v1534, %v1614
  %v1691 = vmax.f32 %v1536, %v1616
  %v1692 = vmax.f32 %v1539, %v1619
  %v1693 = vmax.f32 %v1541, %v1621
  %v1694 = vmax.f32 %v1544, %v1624
  %v1695 = vmax.f32 %v1546, %v1626
  %v1696 = vmax.f32 %v1549, %v1629
  %v1697 = vmax.f32 %v1551, %v1631
  %v1698 = vmax.f32 %v1554, %v1634
  %v1699 = vmax.f32 %v1556, %v1636
  %v1700 = vmax.f32 %v1559, %v1639
  %v1701 = vmax.f32 %v1561, %v1641
  %v1702 = vmax.f32 %v1564, %v1644
  %v1703 = vmax.f32 %v1566, %v1646
  %v1704 = vmax.f32 %v1569, %v1649
  %v1705 = vmax.f32 %v1571, %v1651
  %v1706 = vmax.f32 %v1574, %v1654
  %v1707 = vmax.f32 %v1576, %v1656
  %v1708 = vmax.f32 %v1579, %v1659
  %v1709 = vmax.f32 %v1581, %v1661
  %v1710 = vmax.f32 %v1584, %v1664
  %v1711 = vmax.f32 %v1586, %v1666
  %v1712 = vmax.f32 %v1589, %v1669
  %v1713 = vmax.f32 %v1591, %v1671
  %v1714 = vmax.f32 %v1594, %v1674
  %v1715 = vmax.f32 %v1596, %v1676
  %v1716 = vmax.f32 %v1599, %v1679
  %v1717 = vmax.f32 %v1601, %v1681
  %v1718 = vmax.f32 %v1604, %v1684
  %v1719 = vmax.f32 %v1606, %v1686
  %v1720 = vmax.f32 %v1688, %v1704
  %v1721 = vmax.f32 %v1689, %v1705
  %v1722 = vmax.f32 %v1690, %v1706
  %v1723 = vmax.f32 %v1691, %v1707
  %v1724 = vmax.f32 %v1692, %v1708
  %v1725 = vmax.f32 %v1693, %v1709
  %v1726 = vmax.f32 %v1694, %v1710
  %v1727 = vmax.f32 %v1695, %v1711
  %v1728 = vmax.f32 %v1696, %v1712
  %v1729 = vmax.f32 %v1697, %v1713
  %v1730 = vmax.f32 %v1698, %v1714
  %v1731 = vmax.f32 %v1699, %v1715
  %v1732 = vmax.f32 %v1700, %v1716
  %v1733 = vmax.f32 %v1701, %v1717
  %v1734 = vmax.f32 %v1702, %v1718
  %v1735 = vmax.f32 %v1703, %v1719
  %v1736 = vadd.f32 %v1720, %v1113
  %v1737 = vadd.f32 %v1721, %v1118
  %v1738 = vadd.f32 %v1722, %v1123
  %v1739 = vadd.f32 %v1723, %v1128
  %v1740 = vadd.f32 %v1724, %v1133
  %v1741 = vadd.f32 %v1725, %v1138
  %v1742 = vadd.f32 %v1726, %v1143
  %v1743 = vadd.f32 %v1727, %v1148
  %v1744 = vadd.f32 %v1728, %v1153
  %v1745 = vadd.f32 %v1729, %v1158
  %v1746 = vadd.f32 %v1730, %v1163
  %v1747 = vadd.f32 %v1731, %v1168
  %v1748 = vadd.f32 %v1732, %v1173
  %v1749 = vadd.f32 %v1733, %v1178
  %v1750 = vadd.f32 %v1734, %v1183
  %v1751 = vadd.f32 %v1735, %v1188
  %v1752 = vmax.f32 %v1736, 0.0
  %v1753 = vmax.f32 %v1737, 0.0
  %v1754 = vmax.f32 %v1738, 0.0
  %v1755 = vmax.f32 %v1739, 0.0
  %v1756 = vmax.f32 %v1740, 0.0
  %v1757 = vmax.f32 %v1741, 0.0
  %v1758 = vmax.f32 %v1742, 0.0
  %v1759 = vmax.f32 %v1743, 0.0
  %v1760 = vmax.f32 %v1744, 0.0
  %v1761 = vmax.f32 %v1745, 0.0
  %v1762 = vmax.f32 %v1746, 0.0
  %v1763 = vmax.f32 %v1747, 0.0
  %v1764 = vmax.f32 %v1748, 0.0
  %v1765 = vmax.f32 %v1749, 0.0
  %v1766 = vmax.f32 %v1750, 0.0
  %v1767 = vmax.f32 %v1751, 0.0
  %v1768 = vpack.c.bf16 %v1752, %v1752
  %v1769 = vpack.c.bf16 %v1753, %v1753
  %v1770 = vpack.c.bf16 %v1754, %v1754
  %v1771 = vpack.c.bf16 %v1755, %v1755
  %v1772 = vpack.c.bf16 %v1756, %v1756
  %v1773 = vpack.c.bf16 %v1757, %v1757
  %v1774 = vpack.c.bf16 %v1758, %v1758
  %v1775 = vpack.c.bf16 %v1759, %v1759
  %v1776 = vpack.c.bf16 %v1760, %v1760
  %v1777 = vpack.c.bf16 %v1761, %v1761
  %v1778 = vpack.c.bf16 %v1762, %v1762
  %v1779 = vpack.c.bf16 %v1763, %v1763
  %v1780 = vpack.c.bf16 %v1764, %v1764
  %v1781 = vpack.c.bf16 %v1765, %v1765
  %v1782 = vpack.c.bf16 %v1766, %v1766
  %v1783 = vpack.c.bf16 %v1767, %v1767
  %1784 = vst [vmem:[#allocation2 + $0x40] sm:$0xf] %v1768
  %1785 = vst [vmem:[#allocation2 + $0x44] sm:$0xf] %v1769
  %1786 = vst [vmem:[#allocation2 + $0x48] sm:$0xf] %v1770
  %1787 = vst [vmem:[#allocation2 + $0x4c] sm:$0xf] %v1771
  %1788 = vst [vmem:[#allocation2 + $0x50] sm:$0xf] %v1772
  %1789 = vst [vmem:[#allocation2 + $0x54] sm:$0xf] %v1773
  %1790 = vst [vmem:[#allocation2 + $0x58] sm:$0xf] %v1774
  %1791 = vst [vmem:[#allocation2 + $0x5c] sm:$0xf] %v1775
  %1792 = vst [vmem:[#allocation2 + $0x60] sm:$0xf] %v1776
  %1793 = vst [vmem:[#allocation2 + $0x64] sm:$0xf] %v1777
  %1794 = vst [vmem:[#allocation2 + $0x68] sm:$0xf] %v1778
  %1795 = vst [vmem:[#allocation2 + $0x6c] sm:$0xf] %v1779
  %1796 = vst [vmem:[#allocation2 + $0x70] sm:$0xf] %v1780
  %1797 = vst [vmem:[#allocation2 + $0x74] sm:$0xf] %v1781
  %1798 = vst [vmem:[#allocation2 + $0x78] sm:$0xf] %v1782
  %1799 = vst [vmem:[#allocation2 + $0x7c] sm:$0xf] %v1783
  %v1800 = vld [vmem:[%s0 + $0x40] sm:$0xf]
  %v1801 = vld [vmem:[%s0 + $0x44] sm:$0xf]
  %v1802 = vld [vmem:[%s0 + $0x48] sm:$0xf]
  %v1803 = vld [vmem:[%s0 + $0x4c] sm:$0xf]
  %v1804 = vld [vmem:[%s0 + $0x50] sm:$0xf]
  %v1805 = vld [vmem:[%s0 + $0x54] sm:$0xf]
  %v1806 = vld [vmem:[%s0 + $0x58] sm:$0xf]
  %v1807 = vld [vmem:[%s0 + $0x5c] sm:$0xf]
  %v1808 = vld [vmem:[%s0 + $0x60] sm:$0xf]
  %v1809 = vld [vmem:[%s0 + $0x64] sm:$0xf]
  %v1810 = vld [vmem:[%s0 + $0x68] sm:$0xf]
  %v1811 = vld [vmem:[%s0 + $0x6c] sm:$0xf]
  %v1812 = vld [vmem:[%s0 + $0x70] sm:$0xf]
  %v1813 = vld [vmem:[%s0 + $0x74] sm:$0xf]
  %v1814 = vld [vmem:[%s0 + $0x78] sm:$0xf]
  %v1815 = vld [vmem:[%s0 + $0x7c] sm:$0xf]
  %v1816 = vld [vmem:[%s0 + $0x80] sm:$0xf]
  %v1817 = vld [vmem:[%s0 + $0x84] sm:$0xf]
  %v1818 = vld [vmem:[%s0 + $0x88] sm:$0xf]
  %v1819 = vld [vmem:[%s0 + $0x8c] sm:$0xf]
  %v1820 = vld [vmem:[%s0 + $0x90] sm:$0xf]
  %v1821 = vld [vmem:[%s0 + $0x94] sm:$0xf]
  %v1822 = vld [vmem:[%s0 + $0x98] sm:$0xf]
  %v1823 = vld [vmem:[%s0 + $0x9c] sm:$0xf]
  %v1848 = vunpack.c.l.b16 %v1800
  %v1849 = vunpack.c.l.b16 %v1801
  %v1850 = vunpack.c.l.b16 %v1802
  %v1851 = vunpack.c.l.b16 %v1803
  %v1852 = vunpack.c.l.b16 %v1804
  %v1853 = vunpack.c.l.b16 %v1805
  %v1854 = vunpack.c.l.b16 %v1806
  %v1855 = vunpack.c.l.b16 %v1807
  %v1856 = vunpack.c.l.b16 %v1808
  %v1857 = vunpack.c.l.b16 %v1809
  %v1858 = vunpack.c.l.b16 %v1810
  %v1859 = vunpack.c.l.b16 %v1811
  %v1860 = vunpack.c.l.b16 %v1812
  %v1861 = vunpack.c.l.b16 %v1813
  %v1862 = vunpack.c.l.b16 %v1814
  %v1863 = vunpack.c.l.b16 %v1815
  %v1864 = vunpack.c.l.b16 %v1816
  %v1865 = vunpack.c.l.b16 %v1817
  %v1866 = vunpack.c.l.b16 %v1818
  %v1867 = vunpack.c.l.b16 %v1819
  %v1868 = vunpack.c.l.b16 %v1820
  %v1869 = vunpack.c.l.b16 %v1821
  %v1870 = vunpack.c.l.b16 %v1822
  %v1871 = vunpack.c.l.b16 %v1823
  %v1872 = vpack.c.b16 %v1849, %v1848
  %v1873 = vpack.c.b16 %v1851, %v1850
  %v1874 = vpack.c.b16 %v1853, %v1852
  %v1875 = vpack.c.b16 %v1855, %v1854
  %v1876 = vpack.c.b16 %v1857, %v1856
  %v1877 = vpack.c.b16 %v1859, %v1858
  %v1878 = vpack.c.b16 %v1861, %v1860
  %v1879 = vpack.c.b16 %v1863, %v1862
  %v1880 = vpack.c.b16 %v1865, %v1864
  %v1881 = vpack.c.b16 %v1867, %v1866
  %v1882 = vpack.c.b16 %v1869, %v1868
  %v1883 = vpack.c.b16 %v1871, %v1870
  %1896 = vmatpush.bf16.msra.mxu0 %v1879
  %1897 = vmatpush.bf16.msra.mxu0 %v1878
  %1898 = vmatpush.bf16.msra.mxu0 %v1877
  %1899 = vmatpush.bf16.msra.mxu0 %v1876
  %1900 = vmatpush.bf16.msra.mxu0 %v1875
  %1901 = vmatpush.bf16.msra.mxu0 %v1874
  %1902 = vmatpush.bf16.msra.mxu0 %v1873
  %1903 = vmatpush.bf16.msra.mxu0 %v1872
  %1904 = vmatmul.bf16.gmra.mxu0 %v459
  %v1905 = vpop.f32.mrf.mxu0
  %v1906 = vadd.f32 0.0, %v1905
  %v1907 = vpop.f32.mrf.mxu0
  %v1908 = vadd.f32 0.0, %v1907
  %1909 = vmatmul.bf16.gmra.mxu0 %v461
  %v1910 = vpop.f32.mrf.mxu0
  %v1911 = vadd.f32 0.0, %v1910
  %v1912 = vpop.f32.mrf.mxu0
  %v1913 = vadd.f32 0.0, %v1912
  %1914 = vmatmul.bf16.gmra.mxu0 %v463
  %v1915 = vpop.f32.mrf.mxu0
  %v1916 = vadd.f32 0.0, %v1915
  %v1917 = vpop.f32.mrf.mxu0
  %v1918 = vadd.f32 0.0, %v1917
  %1919 = vmatmul.bf16.gmra.mxu0 %v465
  %v1920 = vpop.f32.mrf.mxu0
  %v1921 = vadd.f32 0.0, %v1920
  %v1922 = vpop.f32.mrf.mxu0
  %v1923 = vadd.f32 0.0, %v1922
  %1924 = vmatmul.bf16.gmra.mxu0 %v467
  %v1925 = vpop.f32.mrf.mxu0
  %v1926 = vadd.f32 0.0, %v1925
  %v1927 = vpop.f32.mrf.mxu0
  %v1928 = vadd.f32 0.0, %v1927
  %1929 = vmatmul.bf16.gmra.mxu0 %v469
  %v1930 = vpop.f32.mrf.mxu0
  %v1931 = vadd.f32 0.0, %v1930
  %v1932 = vpop.f32.mrf.mxu0
  %v1933 = vadd.f32 0.0, %v1932
  %1934 = vmatmul.bf16.gmra.mxu0 %v471
  %v1935 = vpop.f32.mrf.mxu0
  %v1936 = vadd.f32 0.0, %v1935
  %v1937 = vpop.f32.mrf.mxu0
  %v1938 = vadd.f32 0.0, %v1937
  %1939 = vmatmul.bf16.gmra.mxu0 %v473
  %v1940 = vpop.f32.mrf.mxu0
  %v1941 = vadd.f32 0.0, %v1940
  %v1942 = vpop.f32.mrf.mxu0
  %v1943 = vadd.f32 0.0, %v1942
  %1944 = vmatmul.bf16.gmra.mxu0 %v475
  %v1945 = vpop.f32.mrf.mxu0
  %v1946 = vadd.f32 0.0, %v1945
  %v1947 = vpop.f32.mrf.mxu0
  %v1948 = vadd.f32 0.0, %v1947
  %1949 = vmatmul.bf16.gmra.mxu0 %v477
  %v1950 = vpop.f32.mrf.mxu0
  %v1951 = vadd.f32 0.0, %v1950
  %v1952 = vpop.f32.mrf.mxu0
  %v1953 = vadd.f32 0.0, %v1952
  %1954 = vmatmul.bf16.gmra.mxu0 %v479
  %v1955 = vpop.f32.mrf.mxu0
  %v1956 = vadd.f32 0.0, %v1955
  %v1957 = vpop.f32.mrf.mxu0
  %v1958 = vadd.f32 0.0, %v1957
  %1959 = vmatmul.bf16.gmra.mxu0 %v481
  %v1960 = vpop.f32.mrf.mxu0
  %v1961 = vadd.f32 0.0, %v1960
  %v1962 = vpop.f32.mrf.mxu0
  %v1963 = vadd.f32 0.0, %v1962
  %1964 = vmatmul.bf16.gmra.mxu0 %v483
  %v1965 = vpop.f32.mrf.mxu0
  %v1966 = vadd.f32 0.0, %v1965
  %v1967 = vpop.f32.mrf.mxu0
  %v1968 = vadd.f32 0.0, %v1967
  %1969 = vmatmul.bf16.gmra.mxu0 %v485
  %v1970 = vpop.f32.mrf.mxu0
  %v1971 = vadd.f32 0.0, %v1970
  %v1972 = vpop.f32.mrf.mxu0
  %v1973 = vadd.f32 0.0, %v1972
  %1974 = vmatmul.bf16.gmra.mxu0 %v487
  %v1975 = vpop.f32.mrf.mxu0
  %v1976 = vadd.f32 0.0, %v1975
  %v1977 = vpop.f32.mrf.mxu0
  %v1978 = vadd.f32 0.0, %v1977
  %1979 = vmatmul.bf16.gmra.mxu0 %v489
  %v1980 = vpop.f32.mrf.mxu0
  %v1981 = vadd.f32 0.0, %v1980
  %v1982 = vpop.f32.mrf.mxu0
  %v1983 = vadd.f32 0.0, %v1982
  %1984 = vmatmul.bf16.gmra.mxu0 %v491
  %v1985 = vpop.f32.mrf.mxu0
  %v1986 = vadd.f32 0.0, %v1985
  %v1987 = vpop.f32.mrf.mxu0
  %v1988 = vadd.f32 0.0, %v1987
  %1989 = vmatmul.bf16.gmra.mxu0 %v493
  %v1990 = vpop.f32.mrf.mxu0
  %v1991 = vadd.f32 0.0, %v1990
  %v1992 = vpop.f32.mrf.mxu0
  %v1993 = vadd.f32 0.0, %v1992
  %1994 = vmatmul.bf16.gmra.mxu0 %v495
  %v1995 = vpop.f32.mrf.mxu0
  %v1996 = vadd.f32 0.0, %v1995
  %v1997 = vpop.f32.mrf.mxu0
  %v1998 = vadd.f32 0.0, %v1997
  %1999 = vmatmul.bf16.gmra.mxu0 %v497
  %v2000 = vpop.f32.mrf.mxu0
  %v2001 = vadd.f32 0.0, %v2000
  %v2002 = vpop.f32.mrf.mxu0
  %v2003 = vadd.f32 0.0, %v2002
  %2004 = vmatmul.bf16.gmra.mxu0 %v499
  %v2005 = vpop.f32.mrf.mxu0
  %v2006 = vadd.f32 0.0, %v2005
  %v2007 = vpop.f32.mrf.mxu0
  %v2008 = vadd.f32 0.0, %v2007
  %2009 = vmatmul.bf16.gmra.mxu0 %v501
  %v2010 = vpop.f32.mrf.mxu0
  %v2011 = vadd.f32 0.0, %v2010
  %v2012 = vpop.f32.mrf.mxu0
  %v2013 = vadd.f32 0.0, %v2012
  %2014 = vmatmul.bf16.gmra.mxu0 %v503
  %v2015 = vpop.f32.mrf.mxu0
  %v2016 = vadd.f32 0.0, %v2015
  %v2017 = vpop.f32.mrf.mxu0
  %v2018 = vadd.f32 0.0, %v2017
  %2019 = vmatmul.bf16.gmra.mxu0 %v505
  %v2020 = vpop.f32.mrf.mxu0
  %v2021 = vadd.f32 0.0, %v2020
  %v2022 = vpop.f32.mrf.mxu0
  %v2023 = vadd.f32 0.0, %v2022
  %2024 = vmatmul.bf16.gmra.mxu0 %v507
  %v2025 = vpop.f32.mrf.mxu0
  %v2026 = vadd.f32 0.0, %v2025
  %v2027 = vpop.f32.mrf.mxu0
  %v2028 = vadd.f32 0.0, %v2027
  %2029 = vmatmul.bf16.gmra.mxu0 %v509
  %v2030 = vpop.f32.mrf.mxu0
  %v2031 = vadd.f32 0.0, %v2030
  %v2032 = vpop.f32.mrf.mxu0
  %v2033 = vadd.f32 0.0, %v2032
  %2034 = vmatmul.bf16.gmra.mxu0 %v511
  %v2035 = vpop.f32.mrf.mxu0
  %v2036 = vadd.f32 0.0, %v2035
  %v2037 = vpop.f32.mrf.mxu0
  %v2038 = vadd.f32 0.0, %v2037
  %2039 = vmatmul.bf16.gmra.mxu0 %v513
  %v2040 = vpop.f32.mrf.mxu0
  %v2041 = vadd.f32 0.0, %v2040
  %v2042 = vpop.f32.mrf.mxu0
  %v2043 = vadd.f32 0.0, %v2042
  %2044 = vmatmul.bf16.gmra.mxu0 %v515
  %v2045 = vpop.f32.mrf.mxu0
  %v2046 = vadd.f32 0.0, %v2045
  %v2047 = vpop.f32.mrf.mxu0
  %v2048 = vadd.f32 0.0, %v2047
  %2049 = vmatmul.bf16.gmra.mxu0 %v517
  %v2050 = vpop.f32.mrf.mxu0
  %v2051 = vadd.f32 0.0, %v2050
  %v2052 = vpop.f32.mrf.mxu0
  %v2053 = vadd.f32 0.0, %v2052
  %2054 = vmatmul.bf16.gmra.mxu0 %v519
  %v2055 = vpop.f32.mrf.mxu0
  %v2056 = vadd.f32 0.0, %v2055
  %v2057 = vpop.f32.mrf.mxu0
  %v2058 = vadd.f32 0.0, %v2057
  %2059 = vmatmul.bf16.gmra.mxu0 %v521
  %v2060 = vpop.f32.mrf.mxu0
  %v2061 = vadd.f32 0.0, %v2060
  %v2062 = vpop.f32.mrf.mxu0
  %v2063 = vadd.f32 0.0, %v2062
  %2064 = vdwg.mxu0
  %2065 = vmatpush.bf16.msra.mxu0 0
  %2066 = vmatpush.bf16.msra.mxu0 0
  %2067 = vmatpush.bf16.msra.mxu0 0
  %2068 = vmatpush.bf16.msra.mxu0 0
  %2069 = vmatpush.bf16.msra.mxu0 %v1883
  %2070 = vmatpush.bf16.msra.mxu0 %v1882
  %2071 = vmatpush.bf16.msra.mxu0 %v1881
  %2072 = vmatpush.bf16.msra.mxu0 %v1880
  %2073 = vmatmul.bf16.gmra.mxu0 %v629
  %v2074 = vpop.f32.mrf.mxu0
  %v2075 = vadd.f32 %v1906, %v2074
  %v2076 = vpop.f32.mrf.mxu0
  %v2077 = vadd.f32 %v1908, %v2076
  %2078 = vmatmul.bf16.gmra.mxu0 %v632
  %v2079 = vpop.f32.mrf.mxu0
  %v2080 = vadd.f32 %v1911, %v2079
  %v2081 = vpop.f32.mrf.mxu0
  %v2082 = vadd.f32 %v1913, %v2081
  %2083 = vmatmul.bf16.gmra.mxu0 %v635
  %v2084 = vpop.f32.mrf.mxu0
  %v2085 = vadd.f32 %v1916, %v2084
  %v2086 = vpop.f32.mrf.mxu0
  %v2087 = vadd.f32 %v1918, %v2086
  %2088 = vmatmul.bf16.gmra.mxu0 %v638
  %v2089 = vpop.f32.mrf.mxu0
  %v2090 = vadd.f32 %v1921, %v2089
  %v2091 = vpop.f32.mrf.mxu0
  %v2092 = vadd.f32 %v1923, %v2091
  %2093 = vmatmul.bf16.gmra.mxu0 %v641
  %v2094 = vpop.f32.mrf.mxu0
  %v2095 = vadd.f32 %v1926, %v2094
  %v2096 = vpop.f32.mrf.mxu0
  %v2097 = vadd.f32 %v1928, %v2096
  %2098 = vmatmul.bf16.gmra.mxu0 %v644
  %v2099 = vpop.f32.mrf.mxu0
  %v2100 = vadd.f32 %v1931, %v2099
  %v2101 = vpop.f32.mrf.mxu0
  %v2102 = vadd.f32 %v1933, %v2101
  %2103 = vmatmul.bf16.gmra.mxu0 %v647
  %v2104 = vpop.f32.mrf.mxu0
  %v2105 = vadd.f32 %v1936, %v2104
  %v2106 = vpop.f32.mrf.mxu0
  %v2107 = vadd.f32 %v1938, %v2106
  %2108 = vmatmul.bf16.gmra.mxu0 %v650
  %v2109 = vpop.f32.mrf.mxu0
  %v2110 = vadd.f32 %v1941, %v2109
  %v2111 = vpop.f32.mrf.mxu0
  %v2112 = vadd.f32 %v1943, %v2111
  %2113 = vmatmul.bf16.gmra.mxu0 %v653
  %v2114 = vpop.f32.mrf.mxu0
  %v2115 = vadd.f32 %v1946, %v2114
  %v2116 = vpop.f32.mrf.mxu0
  %v2117 = vadd.f32 %v1948, %v2116
  %2118 = vmatmul.bf16.gmra.mxu0 %v656
  %v2119 = vpop.f32.mrf.mxu0
  %v2120 = vadd.f32 %v1951, %v2119
  %v2121 = vpop.f32.mrf.mxu0
  %v2122 = vadd.f32 %v1953, %v2121
  %2123 = vmatmul.bf16.gmra.mxu0 %v659
  %v2124 = vpop.f32.mrf.mxu0
  %v2125 = vadd.f32 %v1956, %v2124
  %v2126 = vpop.f32.mrf.mxu0
  %v2127 = vadd.f32 %v1958, %v2126
  %2128 = vmatmul.bf16.gmra.mxu0 %v662
  %v2129 = vpop.f32.mrf.mxu0
  %v2130 = vadd.f32 %v1961, %v2129
  %v2131 = vpop.f32.mrf.mxu0
  %v2132 = vadd.f32 %v1963, %v2131
  %2133 = vmatmul.bf16.gmra.mxu0 %v665
  %v2134 = vpop.f32.mrf.mxu0
  %v2135 = vadd.f32 %v1966, %v2134
  %v2136 = vpop.f32.mrf.mxu0
  %v2137 = vadd.f32 %v1968, %v2136
  %2138 = vmatmul.bf16.gmra.mxu0 %v668
  %v2139 = vpop.f32.mrf.mxu0
  %v2140 = vadd.f32 %v1971, %v2139
  %v2141 = vpop.f32.mrf.mxu0
  %v2142 = vadd.f32 %v1973, %v2141
  %2143 = vmatmul.bf16.gmra.mxu0 %v671
  %v2144 = vpop.f32.mrf.mxu0
  %v2145 = vadd.f32 %v1976, %v2144
  %v2146 = vpop.f32.mrf.mxu0
  %v2147 = vadd.f32 %v1978, %v2146
  %2148 = vmatmul.bf16.gmra.mxu0 %v674
  %v2149 = vpop.f32.mrf.mxu0
  %v2150 = vadd.f32 %v1981, %v2149
  %v2151 = vpop.f32.mrf.mxu0
  %v2152 = vadd.f32 %v1983, %v2151
  %2153 = vmatmul.bf16.gmra.mxu0 %v677
  %v2154 = vpop.f32.mrf.mxu0
  %v2155 = vadd.f32 %v1986, %v2154
  %v2156 = vpop.f32.mrf.mxu0
  %v2157 = vadd.f32 %v1988, %v2156
  %2158 = vmatmul.bf16.gmra.mxu0 %v680
  %v2159 = vpop.f32.mrf.mxu0
  %v2160 = vadd.f32 %v1991, %v2159
  %v2161 = vpop.f32.mrf.mxu0
  %v2162 = vadd.f32 %v1993, %v2161
  %2163 = vmatmul.bf16.gmra.mxu0 %v683
  %v2164 = vpop.f32.mrf.mxu0
  %v2165 = vadd.f32 %v1996, %v2164
  %v2166 = vpop.f32.mrf.mxu0
  %v2167 = vadd.f32 %v1998, %v2166
  %2168 = vmatmul.bf16.gmra.mxu0 %v686
  %v2169 = vpop.f32.mrf.mxu0
  %v2170 = vadd.f32 %v2001, %v2169
  %v2171 = vpop.f32.mrf.mxu0
  %v2172 = vadd.f32 %v2003, %v2171
  %2173 = vmatmul.bf16.gmra.mxu0 %v689
  %v2174 = vpop.f32.mrf.mxu0
  %v2175 = vadd.f32 %v2006, %v2174
  %v2176 = vpop.f32.mrf.mxu0
  %v2177 = vadd.f32 %v2008, %v2176
  %2178 = vmatmul.bf16.gmra.mxu0 %v692
  %v2179 = vpop.f32.mrf.mxu0
  %v2180 = vadd.f32 %v2011, %v2179
  %v2181 = vpop.f32.mrf.mxu0
  %v2182 = vadd.f32 %v2013, %v2181
  %2183 = vmatmul.bf16.gmra.mxu0 %v695
  %v2184 = vpop.f32.mrf.mxu0
  %v2185 = vadd.f32 %v2016, %v2184
  %v2186 = vpop.f32.mrf.mxu0
  %v2187 = vadd.f32 %v2018, %v2186
  %2188 = vmatmul.bf16.gmra.mxu0 %v698
  %v2189 = vpop.f32.mrf.mxu0
  %v2190 = vadd.f32 %v2021, %v2189
  %v2191 = vpop.f32.mrf.mxu0
  %v2192 = vadd.f32 %v2023, %v2191
  %2193 = vmatmul.bf16.gmra.mxu0 %v701
  %v2194 = vpop.f32.mrf.mxu0
  %v2195 = vadd.f32 %v2026, %v2194
  %v2196 = vpop.f32.mrf.mxu0
  %v2197 = vadd.f32 %v2028, %v2196
  %2198 = vmatmul.bf16.gmra.mxu0 %v704
  %v2199 = vpop.f32.mrf.mxu0
  %v2200 = vadd.f32 %v2031, %v2199
  %v2201 = vpop.f32.mrf.mxu0
  %v2202 = vadd.f32 %v2033, %v2201
  %2203 = vmatmul.bf16.gmra.mxu0 %v707
  %v2204 = vpop.f32.mrf.mxu0
  %v2205 = vadd.f32 %v2036, %v2204
  %v2206 = vpop.f32.mrf.mxu0
  %v2207 = vadd.f32 %v2038, %v2206
  %2208 = vmatmul.bf16.gmra.mxu0 %v710
  %v2209 = vpop.f32.mrf.mxu0
  %v2210 = vadd.f32 %v2041, %v2209
  %v2211 = vpop.f32.mrf.mxu0
  %v2212 = vadd.f32 %v2043, %v2211
  %2213 = vmatmul.bf16.gmra.mxu0 %v713
  %v2214 = vpop.f32.mrf.mxu0
  %v2215 = vadd.f32 %v2046, %v2214
  %v2216 = vpop.f32.mrf.mxu0
  %v2217 = vadd.f32 %v2048, %v2216
  %2218 = vmatmul.bf16.gmra.mxu0 %v716
  %v2219 = vpop.f32.mrf.mxu0
  %v2220 = vadd.f32 %v2051, %v2219
  %v2221 = vpop.f32.mrf.mxu0
  %v2222 = vadd.f32 %v2053, %v2221
  %2223 = vmatmul.bf16.gmra.mxu0 %v719
  %v2224 = vpop.f32.mrf.mxu0
  %v2225 = vadd.f32 %v2056, %v2224
  %v2226 = vpop.f32.mrf.mxu0
  %v2227 = vadd.f32 %v2058, %v2226
  %2228 = vmatmul.bf16.gmra.mxu0 %v722
  %v2229 = vpop.f32.mrf.mxu0
  %v2230 = vadd.f32 %v2061, %v2229
  %v2231 = vpop.f32.mrf.mxu0
  %v2232 = vadd.f32 %v2063, %v2231
  %2233 = vdwg.mxu0
  %v2234 = vmax.f32 %v2075, %v2155
  %v2235 = vmax.f32 %v2077, %v2157
  %v2236 = vmax.f32 %v2080, %v2160
  %v2237 = vmax.f32 %v2082, %v2162
  %v2238 = vmax.f32 %v2085, %v2165
  %v2239 = vmax.f32 %v2087, %v2167
  %v2240 = vmax.f32 %v2090, %v2170
  %v2241 = vmax.f32 %v2092, %v2172
  %v2242 = vmax.f32 %v2095, %v2175
  %v2243 = vmax.f32 %v2097, %v2177
  %v2244 = vmax.f32 %v2100, %v2180
  %v2245 = vmax.f32 %v2102, %v2182
  %v2246 = vmax.f32 %v2105, %v2185
  %v2247 = vmax.f32 %v2107, %v2187
  %v2248 = vmax.f32 %v2110, %v2190
  %v2249 = vmax.f32 %v2112, %v2192
  %v2250 = vmax.f32 %v2115, %v2195
  %v2251 = vmax.f32 %v2117, %v2197
  %v2252 = vmax.f32 %v2120, %v2200
  %v2253 = vmax.f32 %v2122, %v2202
  %v2254 = vmax.f32 %v2125, %v2205
  %v2255 = vmax.f32 %v2127, %v2207
  %v2256 = vmax.f32 %v2130, %v2210
  %v2257 = vmax.f32 %v2132, %v2212
  %v2258 = vmax.f32 %v2135, %v2215
  %v2259 = vmax.f32 %v2137, %v2217
  %v2260 = vmax.f32 %v2140, %v2220
  %v2261 = vmax.f32 %v2142, %v2222
  %v2262 = vmax.f32 %v2145, %v2225
  %v2263 = vmax.f32 %v2147, %v2227
  %v2264 = vmax.f32 %v2150, %v2230
  %v2265 = vmax.f32 %v2152, %v2232
  %v2266 = vmax.f32 %v2234, %v2250
  %v2267 = vmax.f32 %v2235, %v2251
  %v2268 = vmax.f32 %v2236, %v2252
  %v2269 = vmax.f32 %v2237, %v2253
  %v2270 = vmax.f32 %v2238, %v2254
  %v2271 = vmax.f32 %v2239, %v2255
  %v2272 = vmax.f32 %v2240, %v2256
  %v2273 = vmax.f32 %v2241, %v2257
  %v2274 = vmax.f32 %v2242, %v2258
  %v2275 = vmax.f32 %v2243, %v2259
  %v2276 = vmax.f32 %v2244, %v2260
  %v2277 = vmax.f32 %v2245, %v2261
  %v2278 = vmax.f32 %v2246, %v2262
  %v2279 = vmax.f32 %v2247, %v2263
  %v2280 = vmax.f32 %v2248, %v2264
  %v2281 = vmax.f32 %v2249, %v2265
  %v2282 = vadd.f32 %v2266, %v1113
  %v2283 = vadd.f32 %v2267, %v1118
  %v2284 = vadd.f32 %v2268, %v1123
  %v2285 = vadd.f32 %v2269, %v1128
  %v2286 = vadd.f32 %v2270, %v1133
  %v2287 = vadd.f32 %v2271, %v1138
  %v2288 = vadd.f32 %v2272, %v1143
  %v2289 = vadd.f32 %v2273, %v1148
  %v2290 = vadd.f32 %v2274, %v1153
  %v2291 = vadd.f32 %v2275, %v1158
  %v2292 = vadd.f32 %v2276, %v1163
  %v2293 = vadd.f32 %v2277, %v1168
  %v2294 = vadd.f32 %v2278, %v1173
  %v2295 = vadd.f32 %v2279, %v1178
  %v2296 = vadd.f32 %v2280, %v1183
  %v2297 = vadd.f32 %v2281, %v1188
  %v2298 = vmax.f32 %v2282, 0.0
  %v2299 = vmax.f32 %v2283, 0.0
  %v2300 = vmax.f32 %v2284, 0.0
  %v2301 = vmax.f32 %v2285, 0.0
  %v2302 = vmax.f32 %v2286, 0.0
  %v2303 = vmax.f32 %v2287, 0.0
  %v2304 = vmax.f32 %v2288, 0.0
  %v2305 = vmax.f32 %v2289, 0.0
  %v2306 = vmax.f32 %v2290, 0.0
  %v2307 = vmax.f32 %v2291, 0.0
  %v2308 = vmax.f32 %v2292, 0.0
  %v2309 = vmax.f32 %v2293, 0.0
  %v2310 = vmax.f32 %v2294, 0.0
  %v2311 = vmax.f32 %v2295, 0.0
  %v2312 = vmax.f32 %v2296, 0.0
  %v2313 = vmax.f32 %v2297, 0.0
  %v2314 = vpack.c.bf16 %v2298, %v2298
  %v2315 = vpack.c.bf16 %v2299, %v2299
  %v2316 = vpack.c.bf16 %v2300, %v2300
  %v2317 = vpack.c.bf16 %v2301, %v2301
  %v2318 = vpack.c.bf16 %v2302, %v2302
  %v2319 = vpack.c.bf16 %v2303, %v2303
  %v2320 = vpack.c.bf16 %v2304, %v2304
  %v2321 = vpack.c.bf16 %v2305, %v2305
  %v2322 = vpack.c.bf16 %v2306, %v2306
  %v2323 = vpack.c.bf16 %v2307, %v2307
  %v2324 = vpack.c.bf16 %v2308, %v2308
  %v2325 = vpack.c.bf16 %v2309, %v2309
  %v2326 = vpack.c.bf16 %v2310, %v2310
  %v2327 = vpack.c.bf16 %v2311, %v2311
  %v2328 = vpack.c.bf16 %v2312, %v2312
  %v2329 = vpack.c.bf16 %v2313, %v2313
  %2330 = vst [vmem:[#allocation2 + $0x80] sm:$0xf] %v2314
  %2331 = vst [vmem:[#allocation2 + $0x84] sm:$0xf] %v2315
  %2332 = vst [vmem:[#allocation2 + $0x88] sm:$0xf] %v2316
  %2333 = vst [vmem:[#allocation2 + $0x8c] sm:$0xf] %v2317
  %2334 = vst [vmem:[#allocation2 + $0x90] sm:$0xf] %v2318
  %2335 = vst [vmem:[#allocation2 + $0x94] sm:$0xf] %v2319
  %2336 = vst [vmem:[#allocation2 + $0x98] sm:$0xf] %v2320
  %2337 = vst [vmem:[#allocation2 + $0x9c] sm:$0xf] %v2321
  %2338 = vst [vmem:[#allocation2 + $0xa0] sm:$0xf] %v2322
  %2339 = vst [vmem:[#allocation2 + $0xa4] sm:$0xf] %v2323
  %2340 = vst [vmem:[#allocation2 + $0xa8] sm:$0xf] %v2324
  %2341 = vst [vmem:[#allocation2 + $0xac] sm:$0xf] %v2325
  %2342 = vst [vmem:[#allocation2 + $0xb0] sm:$0xf] %v2326
  %2343 = vst [vmem:[#allocation2 + $0xb4] sm:$0xf] %v2327
  %2344 = vst [vmem:[#allocation2 + $0xb8] sm:$0xf] %v2328
  %2345 = vst [vmem:[#allocation2 + $0xbc] sm:$0xf] %v2329
  %v2346 = vld [vmem:[%s0 + $0x60] sm:$0xf]
  %v2347 = vld [vmem:[%s0 + $0x64] sm:$0xf]
  %v2348 = vld [vmem:[%s0 + $0x68] sm:$0xf]
  %v2349 = vld [vmem:[%s0 + $0x6c] sm:$0xf]
  %v2350 = vld [vmem:[%s0 + $0x70] sm:$0xf]
  %v2351 = vld [vmem:[%s0 + $0x74] sm:$0xf]
  %v2352 = vld [vmem:[%s0 + $0x78] sm:$0xf]
  %v2353 = vld [vmem:[%s0 + $0x7c] sm:$0xf]
  %v2354 = vld [vmem:[%s0 + $0x80] sm:$0xf]
  %v2355 = vld [vmem:[%s0 + $0x84] sm:$0xf]
  %v2356 = vld [vmem:[%s0 + $0x88] sm:$0xf]
  %v2357 = vld [vmem:[%s0 + $0x8c] sm:$0xf]
  %v2358 = vld [vmem:[%s0 + $0x90] sm:$0xf]
  %v2359 = vld [vmem:[%s0 + $0x94] sm:$0xf]
  %v2360 = vld [vmem:[%s0 + $0x98] sm:$0xf]
  %v2361 = vld [vmem:[%s0 + $0x9c] sm:$0xf]
  %v2362 = vld [vmem:[%s0 + $0xa0] sm:$0xf]
  %v2363 = vld [vmem:[%s0 + $0xa4] sm:$0xf]
  %v2364 = vld [vmem:[%s0 + $0xa8] sm:$0xf]
  %v2365 = vld [vmem:[%s0 + $0xac] sm:$0xf]
  %v2366 = vld [vmem:[%s0 + $0xb0] sm:$0xf]
  %v2367 = vld [vmem:[%s0 + $0xb4] sm:$0xf]
  %v2368 = vld [vmem:[%s0 + $0xb8] sm:$0xf]
  %v2369 = vld [vmem:[%s0 + $0xbc] sm:$0xf]
  %v2394 = vunpack.c.l.b16 %v2346
  %v2395 = vunpack.c.l.b16 %v2347
  %v2396 = vunpack.c.l.b16 %v2348
  %v2397 = vunpack.c.l.b16 %v2349
  %v2398 = vunpack.c.l.b16 %v2350
  %v2399 = vunpack.c.l.b16 %v2351
  %v2400 = vunpack.c.l.b16 %v2352
  %v2401 = vunpack.c.l.b16 %v2353
  %v2402 = vunpack.c.l.b16 %v2354
  %v2403 = vunpack.c.l.b16 %v2355
  %v2404 = vunpack.c.l.b16 %v2356
  %v2405 = vunpack.c.l.b16 %v2357
  %v2406 = vunpack.c.l.b16 %v2358
  %v2407 = vunpack.c.l.b16 %v2359
  %v2408 = vunpack.c.l.b16 %v2360
  %v2409 = vunpack.c.l.b16 %v2361
  %v2410 = vunpack.c.l.b16 %v2362
  %v2411 = vunpack.c.l.b16 %v2363
  %v2412 = vunpack.c.l.b16 %v2364
  %v2413 = vunpack.c.l.b16 %v2365
  %v2414 = vunpack.c.l.b16 %v2366
  %v2415 = vunpack.c.l.b16 %v2367
  %v2416 = vunpack.c.l.b16 %v2368
  %v2417 = vunpack.c.l.b16 %v2369
  %v2418 = vpack.c.b16 %v2395, %v2394
  %v2419 = vpack.c.b16 %v2397, %v2396
  %v2420 = vpack.c.b16 %v2399, %v2398
  %v2421 = vpack.c.b16 %v2401, %v2400
  %v2422 = vpack.c.b16 %v2403, %v2402
  %v2423 = vpack.c.b16 %v2405, %v2404
  %v2424 = vpack.c.b16 %v2407, %v2406
  %v2425 = vpack.c.b16 %v2409, %v2408
  %v2426 = vpack.c.b16 %v2411, %v2410
  %v2427 = vpack.c.b16 %v2413, %v2412
  %v2428 = vpack.c.b16 %v2415, %v2414
  %v2429 = vpack.c.b16 %v2417, %v2416
  %2442 = vmatpush.bf16.msra.mxu0 %v2425
  %2443 = vmatpush.bf16.msra.mxu0 %v2424
  %2444 = vmatpush.bf16.msra.mxu0 %v2423
  %2445 = vmatpush.bf16.msra.mxu0 %v2422
  %2446 = vmatpush.bf16.msra.mxu0 %v2421
  %2447 = vmatpush.bf16.msra.mxu0 %v2420
  %2448 = vmatpush.bf16.msra.mxu0 %v2419
  %2449 = vmatpush.bf16.msra.mxu0 %v2418
  %2450 = vmatmul.bf16.gmra.mxu0 %v459
  %v2451 = vpop.f32.mrf.mxu0
  %v2452 = vadd.f32 0.0, %v2451
  %v2453 = vpop.f32.mrf.mxu0
  %v2454 = vadd.f32 0.0, %v2453
  %2455 = vmatmul.bf16.gmra.mxu0 %v461
  %v2456 = vpop.f32.mrf.mxu0
  %v2457 = vadd.f32 0.0, %v2456
  %v2458 = vpop.f32.mrf.mxu0
  %v2459 = vadd.f32 0.0, %v2458
  %2460 = vmatmul.bf16.gmra.mxu0 %v463
  %v2461 = vpop.f32.mrf.mxu0
  %v2462 = vadd.f32 0.0, %v2461
  %v2463 = vpop.f32.mrf.mxu0
  %v2464 = vadd.f32 0.0, %v2463
  %2465 = vmatmul.bf16.gmra.mxu0 %v465
  %v2466 = vpop.f32.mrf.mxu0
  %v2467 = vadd.f32 0.0, %v2466
  %v2468 = vpop.f32.mrf.mxu0
  %v2469 = vadd.f32 0.0, %v2468
  %2470 = vmatmul.bf16.gmra.mxu0 %v467
  %v2471 = vpop.f32.mrf.mxu0
  %v2472 = vadd.f32 0.0, %v2471
  %v2473 = vpop.f32.mrf.mxu0
  %v2474 = vadd.f32 0.0, %v2473
  %2475 = vmatmul.bf16.gmra.mxu0 %v469
  %v2476 = vpop.f32.mrf.mxu0
  %v2477 = vadd.f32 0.0, %v2476
  %v2478 = vpop.f32.mrf.mxu0
  %v2479 = vadd.f32 0.0, %v2478
  %2480 = vmatmul.bf16.gmra.mxu0 %v471
  %v2481 = vpop.f32.mrf.mxu0
  %v2482 = vadd.f32 0.0, %v2481
  %v2483 = vpop.f32.mrf.mxu0
  %v2484 = vadd.f32 0.0, %v2483
  %2485 = vmatmul.bf16.gmra.mxu0 %v473
  %v2486 = vpop.f32.mrf.mxu0
  %v2487 = vadd.f32 0.0, %v2486
  %v2488 = vpop.f32.mrf.mxu0
  %v2489 = vadd.f32 0.0, %v2488
  %2490 = vmatmul.bf16.gmra.mxu0 %v475
  %v2491 = vpop.f32.mrf.mxu0
  %v2492 = vadd.f32 0.0, %v2491
  %v2493 = vpop.f32.mrf.mxu0
  %v2494 = vadd.f32 0.0, %v2493
  %2495 = vmatmul.bf16.gmra.mxu0 %v477
  %v2496 = vpop.f32.mrf.mxu0
  %v2497 = vadd.f32 0.0, %v2496
  %v2498 = vpop.f32.mrf.mxu0
  %v2499 = vadd.f32 0.0, %v2498
  %2500 = vmatmul.bf16.gmra.mxu0 %v479
  %v2501 = vpop.f32.mrf.mxu0
  %v2502 = vadd.f32 0.0, %v2501
  %v2503 = vpop.f32.mrf.mxu0
  %v2504 = vadd.f32 0.0, %v2503
  %2505 = vmatmul.bf16.gmra.mxu0 %v481
  %v2506 = vpop.f32.mrf.mxu0
  %v2507 = vadd.f32 0.0, %v2506
  %v2508 = vpop.f32.mrf.mxu0
  %v2509 = vadd.f32 0.0, %v2508
  %2510 = vmatmul.bf16.gmra.mxu0 %v483
  %v2511 = vpop.f32.mrf.mxu0
  %v2512 = vadd.f32 0.0, %v2511
  %v2513 = vpop.f32.mrf.mxu0
  %v2514 = vadd.f32 0.0, %v2513
  %2515 = vmatmul.bf16.gmra.mxu0 %v485
  %v2516 = vpop.f32.mrf.mxu0
  %v2517 = vadd.f32 0.0, %v2516
  %v2518 = vpop.f32.mrf.mxu0
  %v2519 = vadd.f32 0.0, %v2518
  %2520 = vmatmul.bf16.gmra.mxu0 %v487
  %v2521 = vpop.f32.mrf.mxu0
  %v2522 = vadd.f32 0.0, %v2521
  %v2523 = vpop.f32.mrf.mxu0
  %v2524 = vadd.f32 0.0, %v2523
  %2525 = vmatmul.bf16.gmra.mxu0 %v489
  %v2526 = vpop.f32.mrf.mxu0
  %v2527 = vadd.f32 0.0, %v2526
  %v2528 = vpop.f32.mrf.mxu0
  %v2529 = vadd.f32 0.0, %v2528
  %2530 = vmatmul.bf16.gmra.mxu0 %v491
  %v2531 = vpop.f32.mrf.mxu0
  %v2532 = vadd.f32 0.0, %v2531
  %v2533 = vpop.f32.mrf.mxu0
  %v2534 = vadd.f32 0.0, %v2533
  %2535 = vmatmul.bf16.gmra.mxu0 %v493
  %v2536 = vpop.f32.mrf.mxu0
  %v2537 = vadd.f32 0.0, %v2536
  %v2538 = vpop.f32.mrf.mxu0
  %v2539 = vadd.f32 0.0, %v2538
  %2540 = vmatmul.bf16.gmra.mxu0 %v495
  %v2541 = vpop.f32.mrf.mxu0
  %v2542 = vadd.f32 0.0, %v2541
  %v2543 = vpop.f32.mrf.mxu0
  %v2544 = vadd.f32 0.0, %v2543
  %2545 = vmatmul.bf16.gmra.mxu0 %v497
  %v2546 = vpop.f32.mrf.mxu0
  %v2547 = vadd.f32 0.0, %v2546
  %v2548 = vpop.f32.mrf.mxu0
  %v2549 = vadd.f32 0.0, %v2548
  %2550 = vmatmul.bf16.gmra.mxu0 %v499
  %v2551 = vpop.f32.mrf.mxu0
  %v2552 = vadd.f32 0.0, %v2551
  %v2553 = vpop.f32.mrf.mxu0
  %v2554 = vadd.f32 0.0, %v2553
  %2555 = vmatmul.bf16.gmra.mxu0 %v501
  %v2556 = vpop.f32.mrf.mxu0
  %v2557 = vadd.f32 0.0, %v2556
  %v2558 = vpop.f32.mrf.mxu0
  %v2559 = vadd.f32 0.0, %v2558
  %2560 = vmatmul.bf16.gmra.mxu0 %v503
  %v2561 = vpop.f32.mrf.mxu0
  %v2562 = vadd.f32 0.0, %v2561
  %v2563 = vpop.f32.mrf.mxu0
  %v2564 = vadd.f32 0.0, %v2563
  %2565 = vmatmul.bf16.gmra.mxu0 %v505
  %v2566 = vpop.f32.mrf.mxu0
  %v2567 = vadd.f32 0.0, %v2566
  %v2568 = vpop.f32.mrf.mxu0
  %v2569 = vadd.f32 0.0, %v2568
  %2570 = vmatmul.bf16.gmra.mxu0 %v507
  %v2571 = vpop.f32.mrf.mxu0
  %v2572 = vadd.f32 0.0, %v2571
  %v2573 = vpop.f32.mrf.mxu0
  %v2574 = vadd.f32 0.0, %v2573
  %2575 = vmatmul.bf16.gmra.mxu0 %v509
  %v2576 = vpop.f32.mrf.mxu0
  %v2577 = vadd.f32 0.0, %v2576
  %v2578 = vpop.f32.mrf.mxu0
  %v2579 = vadd.f32 0.0, %v2578
  %2580 = vmatmul.bf16.gmra.mxu0 %v511
  %v2581 = vpop.f32.mrf.mxu0
  %v2582 = vadd.f32 0.0, %v2581
  %v2583 = vpop.f32.mrf.mxu0
  %v2584 = vadd.f32 0.0, %v2583
  %2585 = vmatmul.bf16.gmra.mxu0 %v513
  %v2586 = vpop.f32.mrf.mxu0
  %v2587 = vadd.f32 0.0, %v2586
  %v2588 = vpop.f32.mrf.mxu0
  %v2589 = vadd.f32 0.0, %v2588
  %2590 = vmatmul.bf16.gmra.mxu0 %v515
  %v2591 = vpop.f32.mrf.mxu0
  %v2592 = vadd.f32 0.0, %v2591
  %v2593 = vpop.f32.mrf.mxu0
  %v2594 = vadd.f32 0.0, %v2593
  %2595 = vmatmul.bf16.gmra.mxu0 %v517
  %v2596 = vpop.f32.mrf.mxu0
  %v2597 = vadd.f32 0.0, %v2596
  %v2598 = vpop.f32.mrf.mxu0
  %v2599 = vadd.f32 0.0, %v2598
  %2600 = vmatmul.bf16.gmra.mxu0 %v519
  %v2601 = vpop.f32.mrf.mxu0
  %v2602 = vadd.f32 0.0, %v2601
  %v2603 = vpop.f32.mrf.mxu0
  %v2604 = vadd.f32 0.0, %v2603
  %2605 = vmatmul.bf16.gmra.mxu0 %v521
  %v2606 = vpop.f32.mrf.mxu0
  %v2607 = vadd.f32 0.0, %v2606
  %v2608 = vpop.f32.mrf.mxu0
  %v2609 = vadd.f32 0.0, %v2608
  %2610 = vdwg.mxu0
  %2611 = vmatpush.bf16.msra.mxu0 0
  %2612 = vmatpush.bf16.msra.mxu0 0
  %2613 = vmatpush.bf16.msra.mxu0 0
  %2614 = vmatpush.bf16.msra.mxu0 0
  %2615 = vmatpush.bf16.msra.mxu0 %v2429
  %2616 = vmatpush.bf16.msra.mxu0 %v2428
  %2617 = vmatpush.bf16.msra.mxu0 %v2427
  %2618 = vmatpush.bf16.msra.mxu0 %v2426
  %2619 = vmatmul.bf16.gmra.mxu0 %v629
  %v2620 = vpop.f32.mrf.mxu0
  %v2621 = vadd.f32 %v2452, %v2620
  %v2622 = vpop.f32.mrf.mxu0
  %v2623 = vadd.f32 %v2454, %v2622
  %2624 = vmatmul.bf16.gmra.mxu0 %v632
  %v2625 = vpop.f32.mrf.mxu0
  %v2626 = vadd.f32 %v2457, %v2625
  %v2627 = vpop.f32.mrf.mxu0
  %v2628 = vadd.f32 %v2459, %v2627
  %2629 = vmatmul.bf16.gmra.mxu0 %v635
  %v2630 = vpop.f32.mrf.mxu0
  %v2631 = vadd.f32 %v2462, %v2630
  %v2632 = vpop.f32.mrf.mxu0
  %v2633 = vadd.f32 %v2464, %v2632
  %2634 = vmatmul.bf16.gmra.mxu0 %v638
  %v2635 = vpop.f32.mrf.mxu0
  %v2636 = vadd.f32 %v2467, %v2635
  %v2637 = vpop.f32.mrf.mxu0
  %v2638 = vadd.f32 %v2469, %v2637
  %2639 = vmatmul.bf16.gmra.mxu0 %v641
  %v2640 = vpop.f32.mrf.mxu0
  %v2641 = vadd.f32 %v2472, %v2640
  %v2642 = vpop.f32.mrf.mxu0
  %v2643 = vadd.f32 %v2474, %v2642
  %2644 = vmatmul.bf16.gmra.mxu0 %v644
  %v2645 = vpop.f32.mrf.mxu0
  %v2646 = vadd.f32 %v2477, %v2645
  %v2647 = vpop.f32.mrf.mxu0
  %v2648 = vadd.f32 %v2479, %v2647
  %2649 = vmatmul.bf16.gmra.mxu0 %v647
  %v2650 = vpop.f32.mrf.mxu0
  %v2651 = vadd.f32 %v2482, %v2650
  %v2652 = vpop.f32.mrf.mxu0
  %v2653 = vadd.f32 %v2484, %v2652
  %2654 = vmatmul.bf16.gmra.mxu0 %v650
  %v2655 = vpop.f32.mrf.mxu0
  %v2656 = vadd.f32 %v2487, %v2655
  %v2657 = vpop.f32.mrf.mxu0
  %v2658 = vadd.f32 %v2489, %v2657
  %2659 = vmatmul.bf16.gmra.mxu0 %v653
  %v2660 = vpop.f32.mrf.mxu0
  %v2661 = vadd.f32 %v2492, %v2660
  %v2662 = vpop.f32.mrf.mxu0
  %v2663 = vadd.f32 %v2494, %v2662
  %2664 = vmatmul.bf16.gmra.mxu0 %v656
  %v2665 = vpop.f32.mrf.mxu0
  %v2666 = vadd.f32 %v2497, %v2665
  %v2667 = vpop.f32.mrf.mxu0
  %v2668 = vadd.f32 %v2499, %v2667
  %2669 = vmatmul.bf16.gmra.mxu0 %v659
  %v2670 = vpop.f32.mrf.mxu0
  %v2671 = vadd.f32 %v2502, %v2670
  %v2672 = vpop.f32.mrf.mxu0
  %v2673 = vadd.f32 %v2504, %v2672
  %2674 = vmatmul.bf16.gmra.mxu0 %v662
  %v2675 = vpop.f32.mrf.mxu0
  %v2676 = vadd.f32 %v2507, %v2675
  %v2677 = vpop.f32.mrf.mxu0
  %v2678 = vadd.f32 %v2509, %v2677
  %2679 = vmatmul.bf16.gmra.mxu0 %v665
  %v2680 = vpop.f32.mrf.mxu0
  %v2681 = vadd.f32 %v2512, %v2680
  %v2682 = vpop.f32.mrf.mxu0
  %v2683 = vadd.f32 %v2514, %v2682
  %2684 = vmatmul.bf16.gmra.mxu0 %v668
  %v2685 = vpop.f32.mrf.mxu0
  %v2686 = vadd.f32 %v2517, %v2685
  %v2687 = vpop.f32.mrf.mxu0
  %v2688 = vadd.f32 %v2519, %v2687
  %2689 = vmatmul.bf16.gmra.mxu0 %v671
  %v2690 = vpop.f32.mrf.mxu0
  %v2691 = vadd.f32 %v2522, %v2690
  %v2692 = vpop.f32.mrf.mxu0
  %v2693 = vadd.f32 %v2524, %v2692
  %2694 = vmatmul.bf16.gmra.mxu0 %v674
  %v2695 = vpop.f32.mrf.mxu0
  %v2696 = vadd.f32 %v2527, %v2695
  %v2697 = vpop.f32.mrf.mxu0
  %v2698 = vadd.f32 %v2529, %v2697
  %2699 = vmatmul.bf16.gmra.mxu0 %v677
  %v2700 = vpop.f32.mrf.mxu0
  %v2701 = vadd.f32 %v2532, %v2700
  %v2702 = vpop.f32.mrf.mxu0
  %v2703 = vadd.f32 %v2534, %v2702
  %2704 = vmatmul.bf16.gmra.mxu0 %v680
  %v2705 = vpop.f32.mrf.mxu0
  %v2706 = vadd.f32 %v2537, %v2705
  %v2707 = vpop.f32.mrf.mxu0
  %v2708 = vadd.f32 %v2539, %v2707
  %2709 = vmatmul.bf16.gmra.mxu0 %v683
  %v2710 = vpop.f32.mrf.mxu0
  %v2711 = vadd.f32 %v2542, %v2710
  %v2712 = vpop.f32.mrf.mxu0
  %v2713 = vadd.f32 %v2544, %v2712
  %2714 = vmatmul.bf16.gmra.mxu0 %v686
  %v2715 = vpop.f32.mrf.mxu0
  %v2716 = vadd.f32 %v2547, %v2715
  %v2717 = vpop.f32.mrf.mxu0
  %v2718 = vadd.f32 %v2549, %v2717
  %2719 = vmatmul.bf16.gmra.mxu0 %v689
  %v2720 = vpop.f32.mrf.mxu0
  %v2721 = vadd.f32 %v2552, %v2720
  %v2722 = vpop.f32.mrf.mxu0
  %v2723 = vadd.f32 %v2554, %v2722
  %2724 = vmatmul.bf16.gmra.mxu0 %v692
  %v2725 = vpop.f32.mrf.mxu0
  %v2726 = vadd.f32 %v2557, %v2725
  %v2727 = vpop.f32.mrf.mxu0
  %v2728 = vadd.f32 %v2559, %v2727
  %2729 = vmatmul.bf16.gmra.mxu0 %v695
  %v2730 = vpop.f32.mrf.mxu0
  %v2731 = vadd.f32 %v2562, %v2730
  %v2732 = vpop.f32.mrf.mxu0
  %v2733 = vadd.f32 %v2564, %v2732
  %2734 = vmatmul.bf16.gmra.mxu0 %v698
  %v2735 = vpop.f32.mrf.mxu0
  %v2736 = vadd.f32 %v2567, %v2735
  %v2737 = vpop.f32.mrf.mxu0
  %v2738 = vadd.f32 %v2569, %v2737
  %2739 = vmatmul.bf16.gmra.mxu0 %v701
  %v2740 = vpop.f32.mrf.mxu0
  %v2741 = vadd.f32 %v2572, %v2740
  %v2742 = vpop.f32.mrf.mxu0
  %v2743 = vadd.f32 %v2574, %v2742
  %2744 = vmatmul.bf16.gmra.mxu0 %v704
  %v2745 = vpop.f32.mrf.mxu0
  %v2746 = vadd.f32 %v2577, %v2745
  %v2747 = vpop.f32.mrf.mxu0
  %v2748 = vadd.f32 %v2579, %v2747
  %2749 = vmatmul.bf16.gmra.mxu0 %v707
  %v2750 = vpop.f32.mrf.mxu0
  %v2751 = vadd.f32 %v2582, %v2750
  %v2752 = vpop.f32.mrf.mxu0
  %v2753 = vadd.f32 %v2584, %v2752
  %2754 = vmatmul.bf16.gmra.mxu0 %v710
  %v2755 = vpop.f32.mrf.mxu0
  %v2756 = vadd.f32 %v2587, %v2755
  %v2757 = vpop.f32.mrf.mxu0
  %v2758 = vadd.f32 %v2589, %v2757
  %2759 = vmatmul.bf16.gmra.mxu0 %v713
  %v2760 = vpop.f32.mrf.mxu0
  %v2761 = vadd.f32 %v2592, %v2760
  %v2762 = vpop.f32.mrf.mxu0
  %v2763 = vadd.f32 %v2594, %v2762
  %2764 = vmatmul.bf16.gmra.mxu0 %v716
  %v2765 = vpop.f32.mrf.mxu0
  %v2766 = vadd.f32 %v2597, %v2765
  %v2767 = vpop.f32.mrf.mxu0
  %v2768 = vadd.f32 %v2599, %v2767
  %2769 = vmatmul.bf16.gmra.mxu0 %v719
  %v2770 = vpop.f32.mrf.mxu0
  %v2771 = vadd.f32 %v2602, %v2770
  %v2772 = vpop.f32.mrf.mxu0
  %v2773 = vadd.f32 %v2604, %v2772
  %2774 = vmatmul.bf16.gmra.mxu0 %v722
  %v2775 = vpop.f32.mrf.mxu0
  %v2776 = vadd.f32 %v2607, %v2775
  %v2777 = vpop.f32.mrf.mxu0
  %v2778 = vadd.f32 %v2609, %v2777
  %2779 = vdwg.mxu0
  %v2780 = vmax.f32 %v2621, %v2701
  %v2781 = vmax.f32 %v2623, %v2703
  %v2782 = vmax.f32 %v2626, %v2706
  %v2783 = vmax.f32 %v2628, %v2708
  %v2784 = vmax.f32 %v2631, %v2711
  %v2785 = vmax.f32 %v2633, %v2713
  %v2786 = vmax.f32 %v2636, %v2716
  %v2787 = vmax.f32 %v2638, %v2718
  %v2788 = vmax.f32 %v2641, %v2721
  %v2789 = vmax.f32 %v2643, %v2723
  %v2790 = vmax.f32 %v2646, %v2726
  %v2791 = vmax.f32 %v2648, %v2728
  %v2792 = vmax.f32 %v2651, %v2731
  %v2793 = vmax.f32 %v2653, %v2733
  %v2794 = vmax.f32 %v2656, %v2736
  %v2795 = vmax.f32 %v2658, %v2738
  %v2796 = vmax.f32 %v2661, %v2741
  %v2797 = vmax.f32 %v2663, %v2743
  %v2798 = vmax.f32 %v2666, %v2746
  %v2799 = vmax.f32 %v2668, %v2748
  %v2800 = vmax.f32 %v2671, %v2751
  %v2801 = vmax.f32 %v2673, %v2753
  %v2802 = vmax.f32 %v2676, %v2756
  %v2803 = vmax.f32 %v2678, %v2758
  %v2804 = vmax.f32 %v2681, %v2761
  %v2805 = vmax.f32 %v2683, %v2763
  %v2806 = vmax.f32 %v2686, %v2766
  %v2807 = vmax.f32 %v2688, %v2768
  %v2808 = vmax.f32 %v2691, %v2771
  %v2809 = vmax.f32 %v2693, %v2773
  %v2810 = vmax.f32 %v2696, %v2776
  %v2811 = vmax.f32 %v2698, %v2778
  %v2812 = vmax.f32 %v2780, %v2796
  %v2813 = vmax.f32 %v2781, %v2797
  %v2814 = vmax.f32 %v2782, %v2798
  %v2815 = vmax.f32 %v2783, %v2799
  %v2816 = vmax.f32 %v2784, %v2800
  %v2817 = vmax.f32 %v2785, %v2801
  %v2818 = vmax.f32 %v2786, %v2802
  %v2819 = vmax.f32 %v2787, %v2803
  %v2820 = vmax.f32 %v2788, %v2804
  %v2821 = vmax.f32 %v2789, %v2805
  %v2822 = vmax.f32 %v2790, %v2806
  %v2823 = vmax.f32 %v2791, %v2807
  %v2824 = vmax.f32 %v2792, %v2808
  %v2825 = vmax.f32 %v2793, %v2809
  %v2826 = vmax.f32 %v2794, %v2810
  %v2827 = vmax.f32 %v2795, %v2811
  %v2828 = vadd.f32 %v2812, %v1113
  %v2829 = vadd.f32 %v2813, %v1118
  %v2830 = vadd.f32 %v2814, %v1123
  %v2831 = vadd.f32 %v2815, %v1128
  %v2832 = vadd.f32 %v2816, %v1133
  %v2833 = vadd.f32 %v2817, %v1138
  %v2834 = vadd.f32 %v2818, %v1143
  %v2835 = vadd.f32 %v2819, %v1148
  %v2836 = vadd.f32 %v2820, %v1153
  %v2837 = vadd.f32 %v2821, %v1158
  %v2838 = vadd.f32 %v2822, %v1163
  %v2839 = vadd.f32 %v2823, %v1168
  %v2840 = vadd.f32 %v2824, %v1173
  %v2841 = vadd.f32 %v2825, %v1178
  %v2842 = vadd.f32 %v2826, %v1183
  %v2843 = vadd.f32 %v2827, %v1188
  %v2844 = vmax.f32 %v2828, 0.0
  %v2845 = vmax.f32 %v2829, 0.0
  %v2846 = vmax.f32 %v2830, 0.0
  %v2847 = vmax.f32 %v2831, 0.0
  %v2848 = vmax.f32 %v2832, 0.0
  %v2849 = vmax.f32 %v2833, 0.0
  %v2850 = vmax.f32 %v2834, 0.0
  %v2851 = vmax.f32 %v2835, 0.0
  %v2852 = vmax.f32 %v2836, 0.0
  %v2853 = vmax.f32 %v2837, 0.0
  %v2854 = vmax.f32 %v2838, 0.0
  %v2855 = vmax.f32 %v2839, 0.0
  %v2856 = vmax.f32 %v2840, 0.0
  %v2857 = vmax.f32 %v2841, 0.0
  %v2858 = vmax.f32 %v2842, 0.0
  %v2859 = vmax.f32 %v2843, 0.0
  %v2860 = vpack.c.bf16 %v2844, %v2844
  %v2861 = vpack.c.bf16 %v2845, %v2845
  %v2862 = vpack.c.bf16 %v2846, %v2846
  %v2863 = vpack.c.bf16 %v2847, %v2847
  %v2864 = vpack.c.bf16 %v2848, %v2848
  %v2865 = vpack.c.bf16 %v2849, %v2849
  %v2866 = vpack.c.bf16 %v2850, %v2850
  %v2867 = vpack.c.bf16 %v2851, %v2851
  %v2868 = vpack.c.bf16 %v2852, %v2852
  %v2869 = vpack.c.bf16 %v2853, %v2853
  %v2870 = vpack.c.bf16 %v2854, %v2854
  %v2871 = vpack.c.bf16 %v2855, %v2855
  %v2872 = vpack.c.bf16 %v2856, %v2856
  %v2873 = vpack.c.bf16 %v2857, %v2857
  %v2874 = vpack.c.bf16 %v2858, %v2858
  %v2875 = vpack.c.bf16 %v2859, %v2859
  %2876 = vst [vmem:[#allocation2 + $0xc0] sm:$0xf] %v2860
  %2877 = vst [vmem:[#allocation2 + $0xc4] sm:$0xf] %v2861
  %2878 = vst [vmem:[#allocation2 + $0xc8] sm:$0xf] %v2862
  %2879 = vst [vmem:[#allocation2 + $0xcc] sm:$0xf] %v2863
  %2880 = vst [vmem:[#allocation2 + $0xd0] sm:$0xf] %v2864
  %2881 = vst [vmem:[#allocation2 + $0xd4] sm:$0xf] %v2865
  %2882 = vst [vmem:[#allocation2 + $0xd8] sm:$0xf] %v2866
  %2883 = vst [vmem:[#allocation2 + $0xdc] sm:$0xf] %v2867
  %2884 = vst [vmem:[#allocation2 + $0xe0] sm:$0xf] %v2868
  %2885 = vst [vmem:[#allocation2 + $0xe4] sm:$0xf] %v2869
  %2886 = vst [vmem:[#allocation2 + $0xe8] sm:$0xf] %v2870
  %2887 = vst [vmem:[#allocation2 + $0xec] sm:$0xf] %v2871
  %2888 = vst [vmem:[#allocation2 + $0xf0] sm:$0xf] %v2872
  %2889 = vst [vmem:[#allocation2 + $0xf4] sm:$0xf] %v2873
  %2890 = vst [vmem:[#allocation2 + $0xf8] sm:$0xf] %v2874
  %2891 = vst [vmem:[#allocation2 + $0xfc] sm:$0xf] %v2875
  %v2892 = vld [vmem:[%s0 + $0x80] sm:$0xf]
  %v2893 = vld [vmem:[%s0 + $0x84] sm:$0xf]
  %v2894 = vld [vmem:[%s0 + $0x88] sm:$0xf]
  %v2895 = vld [vmem:[%s0 + $0x8c] sm:$0xf]
  %v2896 = vld [vmem:[%s0 + $0x90] sm:$0xf]
  %v2897 = vld [vmem:[%s0 + $0x94] sm:$0xf]
  %v2898 = vld [vmem:[%s0 + $0x98] sm:$0xf]
  %v2899 = vld [vmem:[%s0 + $0x9c] sm:$0xf]
  %v2900 = vld [vmem:[%s0 + $0xa0] sm:$0xf]
  %v2901 = vld [vmem:[%s0 + $0xa4] sm:$0xf]
  %v2902 = vld [vmem:[%s0 + $0xa8] sm:$0xf]
  %v2903 = vld [vmem:[%s0 + $0xac] sm:$0xf]
  %v2904 = vld [vmem:[%s0 + $0xb0] sm:$0xf]
  %v2905 = vld [vmem:[%s0 + $0xb4] sm:$0xf]
  %v2906 = vld [vmem:[%s0 + $0xb8] sm:$0xf]
  %v2907 = vld [vmem:[%s0 + $0xbc] sm:$0xf]
  %v2908 = vld [vmem:[%s0 + $0xc0] sm:$0xf]
  %v2909 = vld [vmem:[%s0 + $0xc4] sm:$0xf]
  %v2910 = vld [vmem:[%s0 + $0xc8] sm:$0xf]
  %v2911 = vld [vmem:[%s0 + $0xcc] sm:$0xf]
  %v2912 = vld [vmem:[%s0 + $0xd0] sm:$0xf]
  %v2913 = vld [vmem:[%s0 + $0xd4] sm:$0xf]
  %v2914 = vld [vmem:[%s0 + $0xd8] sm:$0xf]
  %v2915 = vld [vmem:[%s0 + $0xdc] sm:$0xf]
  %v2940 = vunpack.c.l.b16 %v2892
  %v2941 = vunpack.c.l.b16 %v2893
  %v2942 = vunpack.c.l.b16 %v2894
  %v2943 = vunpack.c.l.b16 %v2895
  %v2944 = vunpack.c.l.b16 %v2896
  %v2945 = vunpack.c.l.b16 %v2897
  %v2946 = vunpack.c.l.b16 %v2898
  %v2947 = vunpack.c.l.b16 %v2899
  %v2948 = vunpack.c.l.b16 %v2900
  %v2949 = vunpack.c.l.b16 %v2901
  %v2950 = vunpack.c.l.b16 %v2902
  %v2951 = vunpack.c.l.b16 %v2903
  %v2952 = vunpack.c.l.b16 %v2904
  %v2953 = vunpack.c.l.b16 %v2905
  %v2954 = vunpack.c.l.b16 %v2906
  %v2955 = vunpack.c.l.b16 %v2907
  %v2956 = vunpack.c.l.b16 %v2908
  %v2957 = vunpack.c.l.b16 %v2909
  %v2958 = vunpack.c.l.b16 %v2910
  %v2959 = vunpack.c.l.b16 %v2911
  %v2960 = vunpack.c.l.b16 %v2912
  %v2961 = vunpack.c.l.b16 %v2913
  %v2962 = vunpack.c.l.b16 %v2914
  %v2963 = vunpack.c.l.b16 %v2915
  %v2964 = vpack.c.b16 %v2941, %v2940
  %v2965 = vpack.c.b16 %v2943, %v2942
  %v2966 = vpack.c.b16 %v2945, %v2944
  %v2967 = vpack.c.b16 %v2947, %v2946
  %v2968 = vpack.c.b16 %v2949, %v2948
  %v2969 = vpack.c.b16 %v2951, %v2950
  %v2970 = vpack.c.b16 %v2953, %v2952
  %v2971 = vpack.c.b16 %v2955, %v2954
  %v2972 = vpack.c.b16 %v2957, %v2956
  %v2973 = vpack.c.b16 %v2959, %v2958
  %v2974 = vpack.c.b16 %v2961, %v2960
  %v2975 = vpack.c.b16 %v2963, %v2962
  %2988 = vmatpush.bf16.msra.mxu0 %v2971
  %2989 = vmatpush.bf16.msra.mxu0 %v2970
  %2990 = vmatpush.bf16.msra.mxu0 %v2969
  %2991 = vmatpush.bf16.msra.mxu0 %v2968
  %2992 = vmatpush.bf16.msra.mxu0 %v2967
  %2993 = vmatpush.bf16.msra.mxu0 %v2966
  %2994 = vmatpush.bf16.msra.mxu0 %v2965
  %2995 = vmatpush.bf16.msra.mxu0 %v2964
  %2996 = vmatmul.bf16.gmra.mxu0 %v459
  %v2997 = vpop.f32.mrf.mxu0
  %v2998 = vadd.f32 0.0, %v2997
  %v2999 = vpop.f32.mrf.mxu0
  %v3000 = vadd.f32 0.0, %v2999
  %3001 = vmatmul.bf16.gmra.mxu0 %v461
  %v3002 = vpop.f32.mrf.mxu0
  %v3003 = vadd.f32 0.0, %v3002
  %v3004 = vpop.f32.mrf.mxu0
  %v3005 = vadd.f32 0.0, %v3004
  %3006 = vmatmul.bf16.gmra.mxu0 %v463
  %v3007 = vpop.f32.mrf.mxu0
  %v3008 = vadd.f32 0.0, %v3007
  %v3009 = vpop.f32.mrf.mxu0
  %v3010 = vadd.f32 0.0, %v3009
  %3011 = vmatmul.bf16.gmra.mxu0 %v465
  %v3012 = vpop.f32.mrf.mxu0
  %v3013 = vadd.f32 0.0, %v3012
  %v3014 = vpop.f32.mrf.mxu0
  %v3015 = vadd.f32 0.0, %v3014
  %3016 = vmatmul.bf16.gmra.mxu0 %v467
  %v3017 = vpop.f32.mrf.mxu0
  %v3018 = vadd.f32 0.0, %v3017
  %v3019 = vpop.f32.mrf.mxu0
  %v3020 = vadd.f32 0.0, %v3019
  %3021 = vmatmul.bf16.gmra.mxu0 %v469
  %v3022 = vpop.f32.mrf.mxu0
  %v3023 = vadd.f32 0.0, %v3022
  %v3024 = vpop.f32.mrf.mxu0
  %v3025 = vadd.f32 0.0, %v3024
  %3026 = vmatmul.bf16.gmra.mxu0 %v471
  %v3027 = vpop.f32.mrf.mxu0
  %v3028 = vadd.f32 0.0, %v3027
  %v3029 = vpop.f32.mrf.mxu0
  %v3030 = vadd.f32 0.0, %v3029
  %3031 = vmatmul.bf16.gmra.mxu0 %v473
  %v3032 = vpop.f32.mrf.mxu0
  %v3033 = vadd.f32 0.0, %v3032
  %v3034 = vpop.f32.mrf.mxu0
  %v3035 = vadd.f32 0.0, %v3034
  %3036 = vmatmul.bf16.gmra.mxu0 %v475
  %v3037 = vpop.f32.mrf.mxu0
  %v3038 = vadd.f32 0.0, %v3037
  %v3039 = vpop.f32.mrf.mxu0
  %v3040 = vadd.f32 0.0, %v3039
  %3041 = vmatmul.bf16.gmra.mxu0 %v477
  %v3042 = vpop.f32.mrf.mxu0
  %v3043 = vadd.f32 0.0, %v3042
  %v3044 = vpop.f32.mrf.mxu0
  %v3045 = vadd.f32 0.0, %v3044
  %3046 = vmatmul.bf16.gmra.mxu0 %v479
  %v3047 = vpop.f32.mrf.mxu0
  %v3048 = vadd.f32 0.0, %v3047
  %v3049 = vpop.f32.mrf.mxu0
  %v3050 = vadd.f32 0.0, %v3049
  %3051 = vmatmul.bf16.gmra.mxu0 %v481
  %v3052 = vpop.f32.mrf.mxu0
  %v3053 = vadd.f32 0.0, %v3052
  %v3054 = vpop.f32.mrf.mxu0
  %v3055 = vadd.f32 0.0, %v3054
  %3056 = vmatmul.bf16.gmra.mxu0 %v483
  %v3057 = vpop.f32.mrf.mxu0
  %v3058 = vadd.f32 0.0, %v3057
  %v3059 = vpop.f32.mrf.mxu0
  %v3060 = vadd.f32 0.0, %v3059
  %3061 = vmatmul.bf16.gmra.mxu0 %v485
  %v3062 = vpop.f32.mrf.mxu0
  %v3063 = vadd.f32 0.0, %v3062
  %v3064 = vpop.f32.mrf.mxu0
  %v3065 = vadd.f32 0.0, %v3064
  %3066 = vmatmul.bf16.gmra.mxu0 %v487
  %v3067 = vpop.f32.mrf.mxu0
  %v3068 = vadd.f32 0.0, %v3067
  %v3069 = vpop.f32.mrf.mxu0
  %v3070 = vadd.f32 0.0, %v3069
  %3071 = vmatmul.bf16.gmra.mxu0 %v489
  %v3072 = vpop.f32.mrf.mxu0
  %v3073 = vadd.f32 0.0, %v3072
  %v3074 = vpop.f32.mrf.mxu0
  %v3075 = vadd.f32 0.0, %v3074
  %3076 = vmatmul.bf16.gmra.mxu0 %v491
  %v3077 = vpop.f32.mrf.mxu0
  %v3078 = vadd.f32 0.0, %v3077
  %v3079 = vpop.f32.mrf.mxu0
  %v3080 = vadd.f32 0.0, %v3079
  %3081 = vmatmul.bf16.gmra.mxu0 %v493
  %v3082 = vpop.f32.mrf.mxu0
  %v3083 = vadd.f32 0.0, %v3082
  %v3084 = vpop.f32.mrf.mxu0
  %v3085 = vadd.f32 0.0, %v3084
  %3086 = vmatmul.bf16.gmra.mxu0 %v495
  %v3087 = vpop.f32.mrf.mxu0
  %v3088 = vadd.f32 0.0, %v3087
  %v3089 = vpop.f32.mrf.mxu0
  %v3090 = vadd.f32 0.0, %v3089
  %3091 = vmatmul.bf16.gmra.mxu0 %v497
  %v3092 = vpop.f32.mrf.mxu0
  %v3093 = vadd.f32 0.0, %v3092
  %v3094 = vpop.f32.mrf.mxu0
  %v3095 = vadd.f32 0.0, %v3094
  %3096 = vmatmul.bf16.gmra.mxu0 %v499
  %v3097 = vpop.f32.mrf.mxu0
  %v3098 = vadd.f32 0.0, %v3097
  %v3099 = vpop.f32.mrf.mxu0
  %v3100 = vadd.f32 0.0, %v3099
  %3101 = vmatmul.bf16.gmra.mxu0 %v501
  %v3102 = vpop.f32.mrf.mxu0
  %v3103 = vadd.f32 0.0, %v3102
  %v3104 = vpop.f32.mrf.mxu0
  %v3105 = vadd.f32 0.0, %v3104
  %3106 = vmatmul.bf16.gmra.mxu0 %v503
  %v3107 = vpop.f32.mrf.mxu0
  %v3108 = vadd.f32 0.0, %v3107
  %v3109 = vpop.f32.mrf.mxu0
  %v3110 = vadd.f32 0.0, %v3109
  %3111 = vmatmul.bf16.gmra.mxu0 %v505
  %v3112 = vpop.f32.mrf.mxu0
  %v3113 = vadd.f32 0.0, %v3112
  %v3114 = vpop.f32.mrf.mxu0
  %v3115 = vadd.f32 0.0, %v3114
  %3116 = vmatmul.bf16.gmra.mxu0 %v507
  %v3117 = vpop.f32.mrf.mxu0
  %v3118 = vadd.f32 0.0, %v3117
  %v3119 = vpop.f32.mrf.mxu0
  %v3120 = vadd.f32 0.0, %v3119
  %3121 = vmatmul.bf16.gmra.mxu0 %v509
  %v3122 = vpop.f32.mrf.mxu0
  %v3123 = vadd.f32 0.0, %v3122
  %v3124 = vpop.f32.mrf.mxu0
  %v3125 = vadd.f32 0.0, %v3124
  %3126 = vmatmul.bf16.gmra.mxu0 %v511
  %v3127 = vpop.f32.mrf.mxu0
  %v3128 = vadd.f32 0.0, %v3127
  %v3129 = vpop.f32.mrf.mxu0
  %v3130 = vadd.f32 0.0, %v3129
  %3131 = vmatmul.bf16.gmra.mxu0 %v513
  %v3132 = vpop.f32.mrf.mxu0
  %v3133 = vadd.f32 0.0, %v3132
  %v3134 = vpop.f32.mrf.mxu0
  %v3135 = vadd.f32 0.0, %v3134
  %3136 = vmatmul.bf16.gmra.mxu0 %v515
  %v3137 = vpop.f32.mrf.mxu0
  %v3138 = vadd.f32 0.0, %v3137
  %v3139 = vpop.f32.mrf.mxu0
  %v3140 = vadd.f32 0.0, %v3139
  %3141 = vmatmul.bf16.gmra.mxu0 %v517
  %v3142 = vpop.f32.mrf.mxu0
  %v3143 = vadd.f32 0.0, %v3142
  %v3144 = vpop.f32.mrf.mxu0
  %v3145 = vadd.f32 0.0, %v3144
  %3146 = vmatmul.bf16.gmra.mxu0 %v519
  %v3147 = vpop.f32.mrf.mxu0
  %v3148 = vadd.f32 0.0, %v3147
  %v3149 = vpop.f32.mrf.mxu0
  %v3150 = vadd.f32 0.0, %v3149
  %3151 = vmatmul.bf16.gmra.mxu0 %v521
  %v3152 = vpop.f32.mrf.mxu0
  %v3153 = vadd.f32 0.0, %v3152
  %v3154 = vpop.f32.mrf.mxu0
  %v3155 = vadd.f32 0.0, %v3154
  %3156 = vdwg.mxu0
  %3157 = vmatpush.bf16.msra.mxu0 0
  %3158 = vmatpush.bf16.msra.mxu0 0
  %3159 = vmatpush.bf16.msra.mxu0 0
  %3160 = vmatpush.bf16.msra.mxu0 0
  %3161 = vmatpush.bf16.msra.mxu0 %v2975
  %3162 = vmatpush.bf16.msra.mxu0 %v2974
  %3163 = vmatpush.bf16.msra.mxu0 %v2973
  %3164 = vmatpush.bf16.msra.mxu0 %v2972
  %3165 = vmatmul.bf16.gmra.mxu0 %v629
  %v3166 = vpop.f32.mrf.mxu0
  %v3167 = vadd.f32 %v2998, %v3166
  %v3168 = vpop.f32.mrf.mxu0
  %v3169 = vadd.f32 %v3000, %v3168
  %3170 = vmatmul.bf16.gmra.mxu0 %v632
  %v3171 = vpop.f32.mrf.mxu0
  %v3172 = vadd.f32 %v3003, %v3171
  %v3173 = vpop.f32.mrf.mxu0
  %v3174 = vadd.f32 %v3005, %v3173
  %3175 = vmatmul.bf16.gmra.mxu0 %v635
  %v3176 = vpop.f32.mrf.mxu0
  %v3177 = vadd.f32 %v3008, %v3176
  %v3178 = vpop.f32.mrf.mxu0
  %v3179 = vadd.f32 %v3010, %v3178
  %3180 = vmatmul.bf16.gmra.mxu0 %v638
  %v3181 = vpop.f32.mrf.mxu0
  %v3182 = vadd.f32 %v3013, %v3181
  %v3183 = vpop.f32.mrf.mxu0
  %v3184 = vadd.f32 %v3015, %v3183
  %3185 = vmatmul.bf16.gmra.mxu0 %v641
  %v3186 = vpop.f32.mrf.mxu0
  %v3187 = vadd.f32 %v3018, %v3186
  %v3188 = vpop.f32.mrf.mxu0
  %v3189 = vadd.f32 %v3020, %v3188
  %3190 = vmatmul.bf16.gmra.mxu0 %v644
  %v3191 = vpop.f32.mrf.mxu0
  %v3192 = vadd.f32 %v3023, %v3191
  %v3193 = vpop.f32.mrf.mxu0
  %v3194 = vadd.f32 %v3025, %v3193
  %3195 = vmatmul.bf16.gmra.mxu0 %v647
  %v3196 = vpop.f32.mrf.mxu0
  %v3197 = vadd.f32 %v3028, %v3196
  %v3198 = vpop.f32.mrf.mxu0
  %v3199 = vadd.f32 %v3030, %v3198
  %3200 = vmatmul.bf16.gmra.mxu0 %v650
  %v3201 = vpop.f32.mrf.mxu0
  %v3202 = vadd.f32 %v3033, %v3201
  %v3203 = vpop.f32.mrf.mxu0
  %v3204 = vadd.f32 %v3035, %v3203
  %3205 = vmatmul.bf16.gmra.mxu0 %v653
  %v3206 = vpop.f32.mrf.mxu0
  %v3207 = vadd.f32 %v3038, %v3206
  %v3208 = vpop.f32.mrf.mxu0
  %v3209 = vadd.f32 %v3040, %v3208
  %3210 = vmatmul.bf16.gmra.mxu0 %v656
  %v3211 = vpop.f32.mrf.mxu0
  %v3212 = vadd.f32 %v3043, %v3211
  %v3213 = vpop.f32.mrf.mxu0
  %v3214 = vadd.f32 %v3045, %v3213
  %3215 = vmatmul.bf16.gmra.mxu0 %v659
  %v3216 = vpop.f32.mrf.mxu0
  %v3217 = vadd.f32 %v3048, %v3216
  %v3218 = vpop.f32.mrf.mxu0
  %v3219 = vadd.f32 %v3050, %v3218
  %3220 = vmatmul.bf16.gmra.mxu0 %v662
  %v3221 = vpop.f32.mrf.mxu0
  %v3222 = vadd.f32 %v3053, %v3221
  %v3223 = vpop.f32.mrf.mxu0
  %v3224 = vadd.f32 %v3055, %v3223
  %3225 = vmatmul.bf16.gmra.mxu0 %v665
  %v3226 = vpop.f32.mrf.mxu0
  %v3227 = vadd.f32 %v3058, %v3226
  %v3228 = vpop.f32.mrf.mxu0
  %v3229 = vadd.f32 %v3060, %v3228
  %3230 = vmatmul.bf16.gmra.mxu0 %v668
  %v3231 = vpop.f32.mrf.mxu0
  %v3232 = vadd.f32 %v3063, %v3231
  %v3233 = vpop.f32.mrf.mxu0
  %v3234 = vadd.f32 %v3065, %v3233
  %3235 = vmatmul.bf16.gmra.mxu0 %v671
  %v3236 = vpop.f32.mrf.mxu0
  %v3237 = vadd.f32 %v3068, %v3236
  %v3238 = vpop.f32.mrf.mxu0
  %v3239 = vadd.f32 %v3070, %v3238
  %3240 = vmatmul.bf16.gmra.mxu0 %v674
  %v3241 = vpop.f32.mrf.mxu0
  %v3242 = vadd.f32 %v3073, %v3241
  %v3243 = vpop.f32.mrf.mxu0
  %v3244 = vadd.f32 %v3075, %v3243
  %3245 = vmatmul.bf16.gmra.mxu0 %v677
  %v3246 = vpop.f32.mrf.mxu0
  %v3247 = vadd.f32 %v3078, %v3246
  %v3248 = vpop.f32.mrf.mxu0
  %v3249 = vadd.f32 %v3080, %v3248
  %3250 = vmatmul.bf16.gmra.mxu0 %v680
  %v3251 = vpop.f32.mrf.mxu0
  %v3252 = vadd.f32 %v3083, %v3251
  %v3253 = vpop.f32.mrf.mxu0
  %v3254 = vadd.f32 %v3085, %v3253
  %3255 = vmatmul.bf16.gmra.mxu0 %v683
  %v3256 = vpop.f32.mrf.mxu0
  %v3257 = vadd.f32 %v3088, %v3256
  %v3258 = vpop.f32.mrf.mxu0
  %v3259 = vadd.f32 %v3090, %v3258
  %3260 = vmatmul.bf16.gmra.mxu0 %v686
  %v3261 = vpop.f32.mrf.mxu0
  %v3262 = vadd.f32 %v3093, %v3261
  %v3263 = vpop.f32.mrf.mxu0
  %v3264 = vadd.f32 %v3095, %v3263
  %3265 = vmatmul.bf16.gmra.mxu0 %v689
  %v3266 = vpop.f32.mrf.mxu0
  %v3267 = vadd.f32 %v3098, %v3266
  %v3268 = vpop.f32.mrf.mxu0
  %v3269 = vadd.f32 %v3100, %v3268
  %3270 = vmatmul.bf16.gmra.mxu0 %v692
  %v3271 = vpop.f32.mrf.mxu0
  %v3272 = vadd.f32 %v3103, %v3271
  %v3273 = vpop.f32.mrf.mxu0
  %v3274 = vadd.f32 %v3105, %v3273
  %3275 = vmatmul.bf16.gmra.mxu0 %v695
  %v3276 = vpop.f32.mrf.mxu0
  %v3277 = vadd.f32 %v3108, %v3276
  %v3278 = vpop.f32.mrf.mxu0
  %v3279 = vadd.f32 %v3110, %v3278
  %3280 = vmatmul.bf16.gmra.mxu0 %v698
  %v3281 = vpop.f32.mrf.mxu0
  %v3282 = vadd.f32 %v3113, %v3281
  %v3283 = vpop.f32.mrf.mxu0
  %v3284 = vadd.f32 %v3115, %v3283
  %3285 = vmatmul.bf16.gmra.mxu0 %v701
  %v3286 = vpop.f32.mrf.mxu0
  %v3287 = vadd.f32 %v3118, %v3286
  %v3288 = vpop.f32.mrf.mxu0
  %v3289 = vadd.f32 %v3120, %v3288
  %3290 = vmatmul.bf16.gmra.mxu0 %v704
  %v3291 = vpop.f32.mrf.mxu0
  %v3292 = vadd.f32 %v3123, %v3291
  %v3293 = vpop.f32.mrf.mxu0
  %v3294 = vadd.f32 %v3125, %v3293
  %3295 = vmatmul.bf16.gmra.mxu0 %v707
  %v3296 = vpop.f32.mrf.mxu0
  %v3297 = vadd.f32 %v3128, %v3296
  %v3298 = vpop.f32.mrf.mxu0
  %v3299 = vadd.f32 %v3130, %v3298
  %3300 = vmatmul.bf16.gmra.mxu0 %v710
  %v3301 = vpop.f32.mrf.mxu0
  %v3302 = vadd.f32 %v3133, %v3301
  %v3303 = vpop.f32.mrf.mxu0
  %v3304 = vadd.f32 %v3135, %v3303
  %3305 = vmatmul.bf16.gmra.mxu0 %v713
  %v3306 = vpop.f32.mrf.mxu0
  %v3307 = vadd.f32 %v3138, %v3306
  %v3308 = vpop.f32.mrf.mxu0
  %v3309 = vadd.f32 %v3140, %v3308
  %3310 = vmatmul.bf16.gmra.mxu0 %v716
  %v3311 = vpop.f32.mrf.mxu0
  %v3312 = vadd.f32 %v3143, %v3311
  %v3313 = vpop.f32.mrf.mxu0
  %v3314 = vadd.f32 %v3145, %v3313
  %3315 = vmatmul.bf16.gmra.mxu0 %v719
  %v3316 = vpop.f32.mrf.mxu0
  %v3317 = vadd.f32 %v3148, %v3316
  %v3318 = vpop.f32.mrf.mxu0
  %v3319 = vadd.f32 %v3150, %v3318
  %3320 = vmatmul.bf16.gmra.mxu0 %v722
  %v3321 = vpop.f32.mrf.mxu0
  %v3322 = vadd.f32 %v3153, %v3321
  %v3323 = vpop.f32.mrf.mxu0
  %v3324 = vadd.f32 %v3155, %v3323
  %3325 = vdwg.mxu0
  %v3326 = vmax.f32 %v3167, %v3247
  %v3327 = vmax.f32 %v3169, %v3249
  %v3328 = vmax.f32 %v3172, %v3252
  %v3329 = vmax.f32 %v3174, %v3254
  %v3330 = vmax.f32 %v3177, %v3257
  %v3331 = vmax.f32 %v3179, %v3259
  %v3332 = vmax.f32 %v3182, %v3262
  %v3333 = vmax.f32 %v3184, %v3264
  %v3334 = vmax.f32 %v3187, %v3267
  %v3335 = vmax.f32 %v3189, %v3269
  %v3336 = vmax.f32 %v3192, %v3272
  %v3337 = vmax.f32 %v3194, %v3274
  %v3338 = vmax.f32 %v3197, %v3277
  %v3339 = vmax.f32 %v3199, %v3279
  %v3340 = vmax.f32 %v3202, %v3282
  %v3341 = vmax.f32 %v3204, %v3284
  %v3342 = vmax.f32 %v3207, %v3287
  %v3343 = vmax.f32 %v3209, %v3289
  %v3344 = vmax.f32 %v3212, %v3292
  %v3345 = vmax.f32 %v3214, %v3294
  %v3346 = vmax.f32 %v3217, %v3297
  %v3347 = vmax.f32 %v3219, %v3299
  %v3348 = vmax.f32 %v3222, %v3302
  %v3349 = vmax.f32 %v3224, %v3304
  %v3350 = vmax.f32 %v3227, %v3307
  %v3351 = vmax.f32 %v3229, %v3309
  %v3352 = vmax.f32 %v3232, %v3312
  %v3353 = vmax.f32 %v3234, %v3314
  %v3354 = vmax.f32 %v3237, %v3317
  %v3355 = vmax.f32 %v3239, %v3319
  %v3356 = vmax.f32 %v3242, %v3322
  %v3357 = vmax.f32 %v3244, %v3324
  %v3358 = vmax.f32 %v3326, %v3342
  %v3359 = vmax.f32 %v3327, %v3343
  %v3360 = vmax.f32 %v3328, %v3344
  %v3361 = vmax.f32 %v3329, %v3345
  %v3362 = vmax.f32 %v3330, %v3346
  %v3363 = vmax.f32 %v3331, %v3347
  %v3364 = vmax.f32 %v3332, %v3348
  %v3365 = vmax.f32 %v3333, %v3349
  %v3366 = vmax.f32 %v3334, %v3350
  %v3367 = vmax.f32 %v3335, %v3351
  %v3368 = vmax.f32 %v3336, %v3352
  %v3369 = vmax.f32 %v3337, %v3353
  %v3370 = vmax.f32 %v3338, %v3354
  %v3371 = vmax.f32 %v3339, %v3355
  %v3372 = vmax.f32 %v3340, %v3356
  %v3373 = vmax.f32 %v3341, %v3357
  %v3374 = vadd.f32 %v3358, %v1113
  %v3375 = vadd.f32 %v3359, %v1118
  %v3376 = vadd.f32 %v3360, %v1123
  %v3377 = vadd.f32 %v3361, %v1128
  %v3378 = vadd.f32 %v3362, %v1133
  %v3379 = vadd.f32 %v3363, %v1138
  %v3380 = vadd.f32 %v3364, %v1143
  %v3381 = vadd.f32 %v3365, %v1148
  %v3382 = vadd.f32 %v3366, %v1153
  %v3383 = vadd.f32 %v3367, %v1158
  %v3384 = vadd.f32 %v3368, %v1163
  %v3385 = vadd.f32 %v3369, %v1168
  %v3386 = vadd.f32 %v3370, %v1173
  %v3387 = vadd.f32 %v3371, %v1178
  %v3388 = vadd.f32 %v3372, %v1183
  %v3389 = vadd.f32 %v3373, %v1188
  %v3390 = vmax.f32 %v3374, 0.0
  %v3391 = vmax.f32 %v3375, 0.0
  %v3392 = vmax.f32 %v3376, 0.0
  %v3393 = vmax.f32 %v3377, 0.0
  %v3394 = vmax.f32 %v3378, 0.0
  %v3395 = vmax.f32 %v3379, 0.0
  %v3396 = vmax.f32 %v3380, 0.0
  %v3397 = vmax.f32 %v3381, 0.0
  %v3398 = vmax.f32 %v3382, 0.0
  %v3399 = vmax.f32 %v3383, 0.0
  %v3400 = vmax.f32 %v3384, 0.0
  %v3401 = vmax.f32 %v3385, 0.0
  %v3402 = vmax.f32 %v3386, 0.0
  %v3403 = vmax.f32 %v3387, 0.0
  %v3404 = vmax.f32 %v3388, 0.0
  %v3405 = vmax.f32 %v3389, 0.0
  %v3406 = vpack.c.bf16 %v3390, %v3390
  %v3407 = vpack.c.bf16 %v3391, %v3391
  %v3408 = vpack.c.bf16 %v3392, %v3392
  %v3409 = vpack.c.bf16 %v3393, %v3393
  %v3410 = vpack.c.bf16 %v3394, %v3394
  %v3411 = vpack.c.bf16 %v3395, %v3395
  %v3412 = vpack.c.bf16 %v3396, %v3396
  %v3413 = vpack.c.bf16 %v3397, %v3397
  %v3414 = vpack.c.bf16 %v3398, %v3398
  %v3415 = vpack.c.bf16 %v3399, %v3399
  %v3416 = vpack.c.bf16 %v3400, %v3400
  %v3417 = vpack.c.bf16 %v3401, %v3401
  %v3418 = vpack.c.bf16 %v3402, %v3402
  %v3419 = vpack.c.bf16 %v3403, %v3403
  %v3420 = vpack.c.bf16 %v3404, %v3404
  %v3421 = vpack.c.bf16 %v3405, %v3405
  %3422 = vst [vmem:[#allocation2 + $0x100] sm:$0xf] %v3406
  %3423 = vst [vmem:[#allocation2 + $0x104] sm:$0xf] %v3407
  %3424 = vst [vmem:[#allocation2 + $0x108] sm:$0xf] %v3408
  %3425 = vst [vmem:[#allocation2 + $0x10c] sm:$0xf] %v3409
  %3426 = vst [vmem:[#allocation2 + $0x110] sm:$0xf] %v3410
  %3427 = vst [vmem:[#allocation2 + $0x114] sm:$0xf] %v3411
  %3428 = vst [vmem:[#allocation2 + $0x118] sm:$0xf] %v3412
  %3429 = vst [vmem:[#allocation2 + $0x11c] sm:$0xf] %v3413
  %3430 = vst [vmem:[#allocation2 + $0x120] sm:$0xf] %v3414
  %3431 = vst [vmem:[#allocation2 + $0x124] sm:$0xf] %v3415
  %3432 = vst [vmem:[#allocation2 + $0x128] sm:$0xf] %v3416
  %3433 = vst [vmem:[#allocation2 + $0x12c] sm:$0xf] %v3417
  %3434 = vst [vmem:[#allocation2 + $0x130] sm:$0xf] %v3418
  %3435 = vst [vmem:[#allocation2 + $0x134] sm:$0xf] %v3419
  %3436 = vst [vmem:[#allocation2 + $0x138] sm:$0xf] %v3420
  %3437 = vst [vmem:[#allocation2 + $0x13c] sm:$0xf] %v3421
  %v3438 = vld [vmem:[%s0 + $0xa0] sm:$0xf]
  %v3439 = vld [vmem:[%s0 + $0xa4] sm:$0xf]
  %v3440 = vld [vmem:[%s0 + $0xa8] sm:$0xf]
  %v3441 = vld [vmem:[%s0 + $0xac] sm:$0xf]
  %v3442 = vld [vmem:[%s0 + $0xb0] sm:$0xf]
  %v3443 = vld [vmem:[%s0 + $0xb4] sm:$0xf]
  %v3444 = vld [vmem:[%s0 + $0xb8] sm:$0xf]
  %v3445 = vld [vmem:[%s0 + $0xbc] sm:$0xf]
  %v3446 = vld [vmem:[%s0 + $0xc0] sm:$0xf]
  %v3447 = vld [vmem:[%s0 + $0xc4] sm:$0xf]
  %v3448 = vld [vmem:[%s0 + $0xc8] sm:$0xf]
  %v3449 = vld [vmem:[%s0 + $0xcc] sm:$0xf]
  %v3450 = vld [vmem:[%s0 + $0xd0] sm:$0xf]
  %v3451 = vld [vmem:[%s0 + $0xd4] sm:$0xf]
  %v3452 = vld [vmem:[%s0 + $0xd8] sm:$0xf]
  %v3453 = vld [vmem:[%s0 + $0xdc] sm:$0xf]
  %v3454 = vld [vmem:[%s0 + $0xe0] sm:$0xf]
  %v3455 = vld [vmem:[%s0 + $0xe4] sm:$0xf]
  %v3456 = vld [vmem:[%s0 + $0xe8] sm:$0xf]
  %v3457 = vld [vmem:[%s0 + $0xec] sm:$0xf]
  %v3458 = vld [vmem:[%s0 + $0xf0] sm:$0xf]
  %v3459 = vld [vmem:[%s0 + $0xf4] sm:$0xf]
  %v3460 = vld [vmem:[%s0 + $0xf8] sm:$0xf]
  %v3461 = vld [vmem:[%s0 + $0xfc] sm:$0xf]
  %v3486 = vunpack.c.l.b16 %v3438
  %v3487 = vunpack.c.l.b16 %v3439
  %v3488 = vunpack.c.l.b16 %v3440
  %v3489 = vunpack.c.l.b16 %v3441
  %v3490 = vunpack.c.l.b16 %v3442
  %v3491 = vunpack.c.l.b16 %v3443
  %v3492 = vunpack.c.l.b16 %v3444
  %v3493 = vunpack.c.l.b16 %v3445
  %v3494 = vunpack.c.l.b16 %v3446
  %v3495 = vunpack.c.l.b16 %v3447
  %v3496 = vunpack.c.l.b16 %v3448
  %v3497 = vunpack.c.l.b16 %v3449
  %v3498 = vunpack.c.l.b16 %v3450
  %v3499 = vunpack.c.l.b16 %v3451
  %v3500 = vunpack.c.l.b16 %v3452
  %v3501 = vunpack.c.l.b16 %v3453
  %v3502 = vunpack.c.l.b16 %v3454
  %v3503 = vunpack.c.l.b16 %v3455
  %v3504 = vunpack.c.l.b16 %v3456
  %v3505 = vunpack.c.l.b16 %v3457
  %v3506 = vunpack.c.l.b16 %v3458
  %v3507 = vunpack.c.l.b16 %v3459
  %v3508 = vunpack.c.l.b16 %v3460
  %v3509 = vunpack.c.l.b16 %v3461
  %v3510 = vpack.c.b16 %v3487, %v3486
  %v3511 = vpack.c.b16 %v3489, %v3488
  %v3512 = vpack.c.b16 %v3491, %v3490
  %v3513 = vpack.c.b16 %v3493, %v3492
  %v3514 = vpack.c.b16 %v3495, %v3494
  %v3515 = vpack.c.b16 %v3497, %v3496
  %v3516 = vpack.c.b16 %v3499, %v3498
  %v3517 = vpack.c.b16 %v3501, %v3500
  %v3518 = vpack.c.b16 %v3503, %v3502
  %v3519 = vpack.c.b16 %v3505, %v3504
  %v3520 = vpack.c.b16 %v3507, %v3506
  %v3521 = vpack.c.b16 %v3509, %v3508
  %3534 = vmatpush.bf16.msra.mxu0 %v3517
  %3535 = vmatpush.bf16.msra.mxu0 %v3516
  %3536 = vmatpush.bf16.msra.mxu0 %v3515
  %3537 = vmatpush.bf16.msra.mxu0 %v3514
  %3538 = vmatpush.bf16.msra.mxu0 %v3513
  %3539 = vmatpush.bf16.msra.mxu0 %v3512
  %3540 = vmatpush.bf16.msra.mxu0 %v3511
  %3541 = vmatpush.bf16.msra.mxu0 %v3510
  %3542 = vmatmul.bf16.gmra.mxu0 %v459
  %v3543 = vpop.f32.mrf.mxu0
  %v3544 = vadd.f32 0.0, %v3543
  %v3545 = vpop.f32.mrf.mxu0
  %v3546 = vadd.f32 0.0, %v3545
  %3547 = vmatmul.bf16.gmra.mxu0 %v461
  %v3548 = vpop.f32.mrf.mxu0
  %v3549 = vadd.f32 0.0, %v3548
  %v3550 = vpop.f32.mrf.mxu0
  %v3551 = vadd.f32 0.0, %v3550
  %3552 = vmatmul.bf16.gmra.mxu0 %v463
  %v3553 = vpop.f32.mrf.mxu0
  %v3554 = vadd.f32 0.0, %v3553
  %v3555 = vpop.f32.mrf.mxu0
  %v3556 = vadd.f32 0.0, %v3555
  %3557 = vmatmul.bf16.gmra.mxu0 %v465
  %v3558 = vpop.f32.mrf.mxu0
  %v3559 = vadd.f32 0.0, %v3558
  %v3560 = vpop.f32.mrf.mxu0
  %v3561 = vadd.f32 0.0, %v3560
  %3562 = vmatmul.bf16.gmra.mxu0 %v467
  %v3563 = vpop.f32.mrf.mxu0
  %v3564 = vadd.f32 0.0, %v3563
  %v3565 = vpop.f32.mrf.mxu0
  %v3566 = vadd.f32 0.0, %v3565
  %3567 = vmatmul.bf16.gmra.mxu0 %v469
  %v3568 = vpop.f32.mrf.mxu0
  %v3569 = vadd.f32 0.0, %v3568
  %v3570 = vpop.f32.mrf.mxu0
  %v3571 = vadd.f32 0.0, %v3570
  %3572 = vmatmul.bf16.gmra.mxu0 %v471
  %v3573 = vpop.f32.mrf.mxu0
  %v3574 = vadd.f32 0.0, %v3573
  %v3575 = vpop.f32.mrf.mxu0
  %v3576 = vadd.f32 0.0, %v3575
  %3577 = vmatmul.bf16.gmra.mxu0 %v473
  %v3578 = vpop.f32.mrf.mxu0
  %v3579 = vadd.f32 0.0, %v3578
  %v3580 = vpop.f32.mrf.mxu0
  %v3581 = vadd.f32 0.0, %v3580
  %3582 = vmatmul.bf16.gmra.mxu0 %v475
  %v3583 = vpop.f32.mrf.mxu0
  %v3584 = vadd.f32 0.0, %v3583
  %v3585 = vpop.f32.mrf.mxu0
  %v3586 = vadd.f32 0.0, %v3585
  %3587 = vmatmul.bf16.gmra.mxu0 %v477
  %v3588 = vpop.f32.mrf.mxu0
  %v3589 = vadd.f32 0.0, %v3588
  %v3590 = vpop.f32.mrf.mxu0
  %v3591 = vadd.f32 0.0, %v3590
  %3592 = vmatmul.bf16.gmra.mxu0 %v479
  %v3593 = vpop.f32.mrf.mxu0
  %v3594 = vadd.f32 0.0, %v3593
  %v3595 = vpop.f32.mrf.mxu0
  %v3596 = vadd.f32 0.0, %v3595
  %3597 = vmatmul.bf16.gmra.mxu0 %v481
  %v3598 = vpop.f32.mrf.mxu0
  %v3599 = vadd.f32 0.0, %v3598
  %v3600 = vpop.f32.mrf.mxu0
  %v3601 = vadd.f32 0.0, %v3600
  %3602 = vmatmul.bf16.gmra.mxu0 %v483
  %v3603 = vpop.f32.mrf.mxu0
  %v3604 = vadd.f32 0.0, %v3603
  %v3605 = vpop.f32.mrf.mxu0
  %v3606 = vadd.f32 0.0, %v3605
  %3607 = vmatmul.bf16.gmra.mxu0 %v485
  %v3608 = vpop.f32.mrf.mxu0
  %v3609 = vadd.f32 0.0, %v3608
  %v3610 = vpop.f32.mrf.mxu0
  %v3611 = vadd.f32 0.0, %v3610
  %3612 = vmatmul.bf16.gmra.mxu0 %v487
  %v3613 = vpop.f32.mrf.mxu0
  %v3614 = vadd.f32 0.0, %v3613
  %v3615 = vpop.f32.mrf.mxu0
  %v3616 = vadd.f32 0.0, %v3615
  %3617 = vmatmul.bf16.gmra.mxu0 %v489
  %v3618 = vpop.f32.mrf.mxu0
  %v3619 = vadd.f32 0.0, %v3618
  %v3620 = vpop.f32.mrf.mxu0
  %v3621 = vadd.f32 0.0, %v3620
  %3622 = vmatmul.bf16.gmra.mxu0 %v491
  %v3623 = vpop.f32.mrf.mxu0
  %v3624 = vadd.f32 0.0, %v3623
  %v3625 = vpop.f32.mrf.mxu0
  %v3626 = vadd.f32 0.0, %v3625
  %3627 = vmatmul.bf16.gmra.mxu0 %v493
  %v3628 = vpop.f32.mrf.mxu0
  %v3629 = vadd.f32 0.0, %v3628
  %v3630 = vpop.f32.mrf.mxu0
  %v3631 = vadd.f32 0.0, %v3630
  %3632 = vmatmul.bf16.gmra.mxu0 %v495
  %v3633 = vpop.f32.mrf.mxu0
  %v3634 = vadd.f32 0.0, %v3633
  %v3635 = vpop.f32.mrf.mxu0
  %v3636 = vadd.f32 0.0, %v3635
  %3637 = vmatmul.bf16.gmra.mxu0 %v497
  %v3638 = vpop.f32.mrf.mxu0
  %v3639 = vadd.f32 0.0, %v3638
  %v3640 = vpop.f32.mrf.mxu0
  %v3641 = vadd.f32 0.0, %v3640
  %3642 = vmatmul.bf16.gmra.mxu0 %v499
  %v3643 = vpop.f32.mrf.mxu0
  %v3644 = vadd.f32 0.0, %v3643
  %v3645 = vpop.f32.mrf.mxu0
  %v3646 = vadd.f32 0.0, %v3645
  %3647 = vmatmul.bf16.gmra.mxu0 %v501
  %v3648 = vpop.f32.mrf.mxu0
  %v3649 = vadd.f32 0.0, %v3648
  %v3650 = vpop.f32.mrf.mxu0
  %v3651 = vadd.f32 0.0, %v3650
  %3652 = vmatmul.bf16.gmra.mxu0 %v503
  %v3653 = vpop.f32.mrf.mxu0
  %v3654 = vadd.f32 0.0, %v3653
  %v3655 = vpop.f32.mrf.mxu0
  %v3656 = vadd.f32 0.0, %v3655
  %3657 = vmatmul.bf16.gmra.mxu0 %v505
  %v3658 = vpop.f32.mrf.mxu0
  %v3659 = vadd.f32 0.0, %v3658
  %v3660 = vpop.f32.mrf.mxu0
  %v3661 = vadd.f32 0.0, %v3660
  %3662 = vmatmul.bf16.gmra.mxu0 %v507
  %v3663 = vpop.f32.mrf.mxu0
  %v3664 = vadd.f32 0.0, %v3663
  %v3665 = vpop.f32.mrf.mxu0
  %v3666 = vadd.f32 0.0, %v3665
  %3667 = vmatmul.bf16.gmra.mxu0 %v509
  %v3668 = vpop.f32.mrf.mxu0
  %v3669 = vadd.f32 0.0, %v3668
  %v3670 = vpop.f32.mrf.mxu0
  %v3671 = vadd.f32 0.0, %v3670
  %3672 = vmatmul.bf16.gmra.mxu0 %v511
  %v3673 = vpop.f32.mrf.mxu0
  %v3674 = vadd.f32 0.0, %v3673
  %v3675 = vpop.f32.mrf.mxu0
  %v3676 = vadd.f32 0.0, %v3675
  %3677 = vmatmul.bf16.gmra.mxu0 %v513
  %v3678 = vpop.f32.mrf.mxu0
  %v3679 = vadd.f32 0.0, %v3678
  %v3680 = vpop.f32.mrf.mxu0
  %v3681 = vadd.f32 0.0, %v3680
  %3682 = vmatmul.bf16.gmra.mxu0 %v515
  %v3683 = vpop.f32.mrf.mxu0
  %v3684 = vadd.f32 0.0, %v3683
  %v3685 = vpop.f32.mrf.mxu0
  %v3686 = vadd.f32 0.0, %v3685
  %3687 = vmatmul.bf16.gmra.mxu0 %v517
  %v3688 = vpop.f32.mrf.mxu0
  %v3689 = vadd.f32 0.0, %v3688
  %v3690 = vpop.f32.mrf.mxu0
  %v3691 = vadd.f32 0.0, %v3690
  %3692 = vmatmul.bf16.gmra.mxu0 %v519
  %v3693 = vpop.f32.mrf.mxu0
  %v3694 = vadd.f32 0.0, %v3693
  %v3695 = vpop.f32.mrf.mxu0
  %v3696 = vadd.f32 0.0, %v3695
  %3697 = vmatmul.bf16.gmra.mxu0 %v521
  %v3698 = vpop.f32.mrf.mxu0
  %v3699 = vadd.f32 0.0, %v3698
  %v3700 = vpop.f32.mrf.mxu0
  %v3701 = vadd.f32 0.0, %v3700
  %3702 = vdwg.mxu0
  %3703 = vmatpush.bf16.msra.mxu0 0
  %3704 = vmatpush.bf16.msra.mxu0 0
  %3705 = vmatpush.bf16.msra.mxu0 0
  %3706 = vmatpush.bf16.msra.mxu0 0
  %3707 = vmatpush.bf16.msra.mxu0 %v3521
  %3708 = vmatpush.bf16.msra.mxu0 %v3520
  %3709 = vmatpush.bf16.msra.mxu0 %v3519
  %3710 = vmatpush.bf16.msra.mxu0 %v3518
  %3711 = vmatmul.bf16.gmra.mxu0 %v629
  %v3712 = vpop.f32.mrf.mxu0
  %v3713 = vadd.f32 %v3544, %v3712
  %v3714 = vpop.f32.mrf.mxu0
  %v3715 = vadd.f32 %v3546, %v3714
  %3716 = vmatmul.bf16.gmra.mxu0 %v632
  %v3717 = vpop.f32.mrf.mxu0
  %v3718 = vadd.f32 %v3549, %v3717
  %v3719 = vpop.f32.mrf.mxu0
  %v3720 = vadd.f32 %v3551, %v3719
  %3721 = vmatmul.bf16.gmra.mxu0 %v635
  %v3722 = vpop.f32.mrf.mxu0
  %v3723 = vadd.f32 %v3554, %v3722
  %v3724 = vpop.f32.mrf.mxu0
  %v3725 = vadd.f32 %v3556, %v3724
  %3726 = vmatmul.bf16.gmra.mxu0 %v638
  %v3727 = vpop.f32.mrf.mxu0
  %v3728 = vadd.f32 %v3559, %v3727
  %v3729 = vpop.f32.mrf.mxu0
  %v3730 = vadd.f32 %v3561, %v3729
  %3731 = vmatmul.bf16.gmra.mxu0 %v641
  %v3732 = vpop.f32.mrf.mxu0
  %v3733 = vadd.f32 %v3564, %v3732
  %v3734 = vpop.f32.mrf.mxu0
  %v3735 = vadd.f32 %v3566, %v3734
  %3736 = vmatmul.bf16.gmra.mxu0 %v644
  %v3737 = vpop.f32.mrf.mxu0
  %v3738 = vadd.f32 %v3569, %v3737
  %v3739 = vpop.f32.mrf.mxu0
  %v3740 = vadd.f32 %v3571, %v3739
  %3741 = vmatmul.bf16.gmra.mxu0 %v647
  %v3742 = vpop.f32.mrf.mxu0
  %v3743 = vadd.f32 %v3574, %v3742
  %v3744 = vpop.f32.mrf.mxu0
  %v3745 = vadd.f32 %v3576, %v3744
  %3746 = vmatmul.bf16.gmra.mxu0 %v650
  %v3747 = vpop.f32.mrf.mxu0
  %v3748 = vadd.f32 %v3579, %v3747
  %v3749 = vpop.f32.mrf.mxu0
  %v3750 = vadd.f32 %v3581, %v3749
  %3751 = vmatmul.bf16.gmra.mxu0 %v653
  %v3752 = vpop.f32.mrf.mxu0
  %v3753 = vadd.f32 %v3584, %v3752
  %v3754 = vpop.f32.mrf.mxu0
  %v3755 = vadd.f32 %v3586, %v3754
  %3756 = vmatmul.bf16.gmra.mxu0 %v656
  %v3757 = vpop.f32.mrf.mxu0
  %v3758 = vadd.f32 %v3589, %v3757
  %v3759 = vpop.f32.mrf.mxu0
  %v3760 = vadd.f32 %v3591, %v3759
  %3761 = vmatmul.bf16.gmra.mxu0 %v659
  %v3762 = vpop.f32.mrf.mxu0
  %v3763 = vadd.f32 %v3594, %v3762
  %v3764 = vpop.f32.mrf.mxu0
  %v3765 = vadd.f32 %v3596, %v3764
  %3766 = vmatmul.bf16.gmra.mxu0 %v662
  %v3767 = vpop.f32.mrf.mxu0
  %v3768 = vadd.f32 %v3599, %v3767
  %v3769 = vpop.f32.mrf.mxu0
  %v3770 = vadd.f32 %v3601, %v3769
  %3771 = vmatmul.bf16.gmra.mxu0 %v665
  %v3772 = vpop.f32.mrf.mxu0
  %v3773 = vadd.f32 %v3604, %v3772
  %v3774 = vpop.f32.mrf.mxu0
  %v3775 = vadd.f32 %v3606, %v3774
  %3776 = vmatmul.bf16.gmra.mxu0 %v668
  %v3777 = vpop.f32.mrf.mxu0
  %v3778 = vadd.f32 %v3609, %v3777
  %v3779 = vpop.f32.mrf.mxu0
  %v3780 = vadd.f32 %v3611, %v3779
  %3781 = vmatmul.bf16.gmra.mxu0 %v671
  %v3782 = vpop.f32.mrf.mxu0
  %v3783 = vadd.f32 %v3614, %v3782
  %v3784 = vpop.f32.mrf.mxu0
  %v3785 = vadd.f32 %v3616, %v3784
  %3786 = vmatmul.bf16.gmra.mxu0 %v674
  %v3787 = vpop.f32.mrf.mxu0
  %v3788 = vadd.f32 %v3619, %v3787
  %v3789 = vpop.f32.mrf.mxu0
  %v3790 = vadd.f32 %v3621, %v3789
  %3791 = vmatmul.bf16.gmra.mxu0 %v677
  %v3792 = vpop.f32.mrf.mxu0
  %v3793 = vadd.f32 %v3624, %v3792
  %v3794 = vpop.f32.mrf.mxu0
  %v3795 = vadd.f32 %v3626, %v3794
  %3796 = vmatmul.bf16.gmra.mxu0 %v680
  %v3797 = vpop.f32.mrf.mxu0
  %v3798 = vadd.f32 %v3629, %v3797
  %v3799 = vpop.f32.mrf.mxu0
  %v3800 = vadd.f32 %v3631, %v3799
  %3801 = vmatmul.bf16.gmra.mxu0 %v683
  %v3802 = vpop.f32.mrf.mxu0
  %v3803 = vadd.f32 %v3634, %v3802
  %v3804 = vpop.f32.mrf.mxu0
  %v3805 = vadd.f32 %v3636, %v3804
  %3806 = vmatmul.bf16.gmra.mxu0 %v686
  %v3807 = vpop.f32.mrf.mxu0
  %v3808 = vadd.f32 %v3639, %v3807
  %v3809 = vpop.f32.mrf.mxu0
  %v3810 = vadd.f32 %v3641, %v3809
  %3811 = vmatmul.bf16.gmra.mxu0 %v689
  %v3812 = vpop.f32.mrf.mxu0
  %v3813 = vadd.f32 %v3644, %v3812
  %v3814 = vpop.f32.mrf.mxu0
  %v3815 = vadd.f32 %v3646, %v3814
  %3816 = vmatmul.bf16.gmra.mxu0 %v692
  %v3817 = vpop.f32.mrf.mxu0
  %v3818 = vadd.f32 %v3649, %v3817
  %v3819 = vpop.f32.mrf.mxu0
  %v3820 = vadd.f32 %v3651, %v3819
  %3821 = vmatmul.bf16.gmra.mxu0 %v695
  %v3822 = vpop.f32.mrf.mxu0
  %v3823 = vadd.f32 %v3654, %v3822
  %v3824 = vpop.f32.mrf.mxu0
  %v3825 = vadd.f32 %v3656, %v3824
  %3826 = vmatmul.bf16.gmra.mxu0 %v698
  %v3827 = vpop.f32.mrf.mxu0
  %v3828 = vadd.f32 %v3659, %v3827
  %v3829 = vpop.f32.mrf.mxu0
  %v3830 = vadd.f32 %v3661, %v3829
  %3831 = vmatmul.bf16.gmra.mxu0 %v701
  %v3832 = vpop.f32.mrf.mxu0
  %v3833 = vadd.f32 %v3664, %v3832
  %v3834 = vpop.f32.mrf.mxu0
  %v3835 = vadd.f32 %v3666, %v3834
  %3836 = vmatmul.bf16.gmra.mxu0 %v704
  %v3837 = vpop.f32.mrf.mxu0
  %v3838 = vadd.f32 %v3669, %v3837
  %v3839 = vpop.f32.mrf.mxu0
  %v3840 = vadd.f32 %v3671, %v3839
  %3841 = vmatmul.bf16.gmra.mxu0 %v707
  %v3842 = vpop.f32.mrf.mxu0
  %v3843 = vadd.f32 %v3674, %v3842
  %v3844 = vpop.f32.mrf.mxu0
  %v3845 = vadd.f32 %v3676, %v3844
  %3846 = vmatmul.bf16.gmra.mxu0 %v710
  %v3847 = vpop.f32.mrf.mxu0
  %v3848 = vadd.f32 %v3679, %v3847
  %v3849 = vpop.f32.mrf.mxu0
  %v3850 = vadd.f32 %v3681, %v3849
  %3851 = vmatmul.bf16.gmra.mxu0 %v713
  %v3852 = vpop.f32.mrf.mxu0
  %v3853 = vadd.f32 %v3684, %v3852
  %v3854 = vpop.f32.mrf.mxu0
  %v3855 = vadd.f32 %v3686, %v3854
  %3856 = vmatmul.bf16.gmra.mxu0 %v716
  %v3857 = vpop.f32.mrf.mxu0
  %v3858 = vadd.f32 %v3689, %v3857
  %v3859 = vpop.f32.mrf.mxu0
  %v3860 = vadd.f32 %v3691, %v3859
  %3861 = vmatmul.bf16.gmra.mxu0 %v719
  %v3862 = vpop.f32.mrf.mxu0
  %v3863 = vadd.f32 %v3694, %v3862
  %v3864 = vpop.f32.mrf.mxu0
  %v3865 = vadd.f32 %v3696, %v3864
  %3866 = vmatmul.bf16.gmra.mxu0 %v722
  %v3867 = vpop.f32.mrf.mxu0
  %v3868 = vadd.f32 %v3699, %v3867
  %v3869 = vpop.f32.mrf.mxu0
  %v3870 = vadd.f32 %v3701, %v3869
  %3871 = vdwg.mxu0
  %v3872 = vmax.f32 %v3713, %v3793
  %v3873 = vmax.f32 %v3715, %v3795
  %v3874 = vmax.f32 %v3718, %v3798
  %v3875 = vmax.f32 %v3720, %v3800
  %v3876 = vmax.f32 %v3723, %v3803
  %v3877 = vmax.f32 %v3725, %v3805
  %v3878 = vmax.f32 %v3728, %v3808
  %v3879 = vmax.f32 %v3730, %v3810
  %v3880 = vmax.f32 %v3733, %v3813
  %v3881 = vmax.f32 %v3735, %v3815
  %v3882 = vmax.f32 %v3738, %v3818
  %v3883 = vmax.f32 %v3740, %v3820
  %v3884 = vmax.f32 %v3743, %v3823
  %v3885 = vmax.f32 %v3745, %v3825
  %v3886 = vmax.f32 %v3748, %v3828
  %v3887 = vmax.f32 %v3750, %v3830
  %v3888 = vmax.f32 %v3753, %v3833
  %v3889 = vmax.f32 %v3755, %v3835
  %v3890 = vmax.f32 %v3758, %v3838
  %v3891 = vmax.f32 %v3760, %v3840
  %v3892 = vmax.f32 %v3763, %v3843
  %v3893 = vmax.f32 %v3765, %v3845
  %v3894 = vmax.f32 %v3768, %v3848
  %v3895 = vmax.f32 %v3770, %v3850
  %v3896 = vmax.f32 %v3773, %v3853
  %v3897 = vmax.f32 %v3775, %v3855
  %v3898 = vmax.f32 %v3778, %v3858
  %v3899 = vmax.f32 %v3780, %v3860
  %v3900 = vmax.f32 %v3783, %v3863
  %v3901 = vmax.f32 %v3785, %v3865
  %v3902 = vmax.f32 %v3788, %v3868
  %v3903 = vmax.f32 %v3790, %v3870
  %v3904 = vmax.f32 %v3872, %v3888
  %v3905 = vmax.f32 %v3873, %v3889
  %v3906 = vmax.f32 %v3874, %v3890
  %v3907 = vmax.f32 %v3875, %v3891
  %v3908 = vmax.f32 %v3876, %v3892
  %v3909 = vmax.f32 %v3877, %v3893
  %v3910 = vmax.f32 %v3878, %v3894
  %v3911 = vmax.f32 %v3879, %v3895
  %v3912 = vmax.f32 %v3880, %v3896
  %v3913 = vmax.f32 %v3881, %v3897
  %v3914 = vmax.f32 %v3882, %v3898
  %v3915 = vmax.f32 %v3883, %v3899
  %v3916 = vmax.f32 %v3884, %v3900
  %v3917 = vmax.f32 %v3885, %v3901
  %v3918 = vmax.f32 %v3886, %v3902
  %v3919 = vmax.f32 %v3887, %v3903
  %v3920 = vadd.f32 %v3904, %v1113
  %v3921 = vadd.f32 %v3905, %v1118
  %v3922 = vadd.f32 %v3906, %v1123
  %v3923 = vadd.f32 %v3907, %v1128
  %v3924 = vadd.f32 %v3908, %v1133
  %v3925 = vadd.f32 %v3909, %v1138
  %v3926 = vadd.f32 %v3910, %v1143
  %v3927 = vadd.f32 %v3911, %v1148
  %v3928 = vadd.f32 %v3912, %v1153
  %v3929 = vadd.f32 %v3913, %v1158
  %v3930 = vadd.f32 %v3914, %v1163
  %v3931 = vadd.f32 %v3915, %v1168
  %v3932 = vadd.f32 %v3916, %v1173
  %v3933 = vadd.f32 %v3917, %v1178
  %v3934 = vadd.f32 %v3918, %v1183
  %v3935 = vadd.f32 %v3919, %v1188
  %v3936 = vmax.f32 %v3920, 0.0
  %v3937 = vmax.f32 %v3921, 0.0
  %v3938 = vmax.f32 %v3922, 0.0
  %v3939 = vmax.f32 %v3923, 0.0
  %v3940 = vmax.f32 %v3924, 0.0
  %v3941 = vmax.f32 %v3925, 0.0
  %v3942 = vmax.f32 %v3926, 0.0
  %v3943 = vmax.f32 %v3927, 0.0
  %v3944 = vmax.f32 %v3928, 0.0
  %v3945 = vmax.f32 %v3929, 0.0
  %v3946 = vmax.f32 %v3930, 0.0
  %v3947 = vmax.f32 %v3931, 0.0
  %v3948 = vmax.f32 %v3932, 0.0
  %v3949 = vmax.f32 %v3933, 0.0
  %v3950 = vmax.f32 %v3934, 0.0
  %v3951 = vmax.f32 %v3935, 0.0
  %v3952 = vpack.c.bf16 %v3936, %v3936
  %v3953 = vpack.c.bf16 %v3937, %v3937
  %v3954 = vpack.c.bf16 %v3938, %v3938
  %v3955 = vpack.c.bf16 %v3939, %v3939
  %v3956 = vpack.c.bf16 %v3940, %v3940
  %v3957 = vpack.c.bf16 %v3941, %v3941
  %v3958 = vpack.c.bf16 %v3942, %v3942
  %v3959 = vpack.c.bf16 %v3943, %v3943
  %v3960 = vpack.c.bf16 %v3944, %v3944
  %v3961 = vpack.c.bf16 %v3945, %v3945
  %v3962 = vpack.c.bf16 %v3946, %v3946
  %v3963 = vpack.c.bf16 %v3947, %v3947
  %v3964 = vpack.c.bf16 %v3948, %v3948
  %v3965 = vpack.c.bf16 %v3949, %v3949
  %v3966 = vpack.c.bf16 %v3950, %v3950
  %v3967 = vpack.c.bf16 %v3951, %v3951
  %3968 = vst [vmem:[#allocation2 + $0x140] sm:$0xf] %v3952
  %3969 = vst [vmem:[#allocation2 + $0x144] sm:$0xf] %v3953
  %3970 = vst [vmem:[#allocation2 + $0x148] sm:$0xf] %v3954
  %3971 = vst [vmem:[#allocation2 + $0x14c] sm:$0xf] %v3955
  %3972 = vst [vmem:[#allocation2 + $0x150] sm:$0xf] %v3956
  %3973 = vst [vmem:[#allocation2 + $0x154] sm:$0xf] %v3957
  %3974 = vst [vmem:[#allocation2 + $0x158] sm:$0xf] %v3958
  %3975 = vst [vmem:[#allocation2 + $0x15c] sm:$0xf] %v3959
  %3976 = vst [vmem:[#allocation2 + $0x160] sm:$0xf] %v3960
  %3977 = vst [vmem:[#allocation2 + $0x164] sm:$0xf] %v3961
  %3978 = vst [vmem:[#allocation2 + $0x168] sm:$0xf] %v3962
  %3979 = vst [vmem:[#allocation2 + $0x16c] sm:$0xf] %v3963
  %3980 = vst [vmem:[#allocation2 + $0x170] sm:$0xf] %v3964
  %3981 = vst [vmem:[#allocation2 + $0x174] sm:$0xf] %v3965
  %3982 = vst [vmem:[#allocation2 + $0x178] sm:$0xf] %v3966
  %3983 = vst [vmem:[#allocation2 + $0x17c] sm:$0xf] %v3967
  %v3984 = vld [vmem:[%s0 + $0xc0] sm:$0xf]
  %v3985 = vld [vmem:[%s0 + $0xc4] sm:$0xf]
  %v3986 = vld [vmem:[%s0 + $0xc8] sm:$0xf]
  %v3987 = vld [vmem:[%s0 + $0xcc] sm:$0xf]
  %v3988 = vld [vmem:[%s0 + $0xd0] sm:$0xf]
  %v3989 = vld [vmem:[%s0 + $0xd4] sm:$0xf]
  %v3990 = vld [vmem:[%s0 + $0xd8] sm:$0xf]
  %v3991 = vld [vmem:[%s0 + $0xdc] sm:$0xf]
  %v3992 = vld [vmem:[%s0 + $0xe0] sm:$0xf]
  %v3993 = vld [vmem:[%s0 + $0xe4] sm:$0xf]
  %v3994 = vld [vmem:[%s0 + $0xe8] sm:$0xf]
  %v3995 = vld [vmem:[%s0 + $0xec] sm:$0xf]
  %v3996 = vld [vmem:[%s0 + $0xf0] sm:$0xf]
  %v3997 = vld [vmem:[%s0 + $0xf4] sm:$0xf]
  %v3998 = vld [vmem:[%s0 + $0xf8] sm:$0xf]
  %v3999 = vld [vmem:[%s0 + $0xfc] sm:$0xf]
  %v4000 = vld [vmem:[%s0 + $0x100] sm:$0xf]
  %v4001 = vld [vmem:[%s0 + $0x104] sm:$0xf]
  %v4002 = vld [vmem:[%s0 + $0x108] sm:$0xf]
  %v4003 = vld [vmem:[%s0 + $0x10c] sm:$0xf]
  %v4004 = vld [vmem:[%s0 + $0x110] sm:$0xf]
  %v4005 = vld [vmem:[%s0 + $0x114] sm:$0xf]
  %v4006 = vld [vmem:[%s0 + $0x118] sm:$0xf]
  %v4007 = vld [vmem:[%s0 + $0x11c] sm:$0xf]
  %v4032 = vunpack.c.l.b16 %v3984
  %v4033 = vunpack.c.l.b16 %v3985
  %v4034 = vunpack.c.l.b16 %v3986
  %v4035 = vunpack.c.l.b16 %v3987
  %v4036 = vunpack.c.l.b16 %v3988
  %v4037 = vunpack.c.l.b16 %v3989
  %v4038 = vunpack.c.l.b16 %v3990
  %v4039 = vunpack.c.l.b16 %v3991
  %v4040 = vunpack.c.l.b16 %v3992
  %v4041 = vunpack.c.l.b16 %v3993
  %v4042 = vunpack.c.l.b16 %v3994
  %v4043 = vunpack.c.l.b16 %v3995
  %v4044 = vunpack.c.l.b16 %v3996
  %v4045 = vunpack.c.l.b16 %v3997
  %v4046 = vunpack.c.l.b16 %v3998
  %v4047 = vunpack.c.l.b16 %v3999
  %v4048 = vunpack.c.l.b16 %v4000
  %v4049 = vunpack.c.l.b16 %v4001
  %v4050 = vunpack.c.l.b16 %v4002
  %v4051 = vunpack.c.l.b16 %v4003
  %v4052 = vunpack.c.l.b16 %v4004
  %v4053 = vunpack.c.l.b16 %v4005
  %v4054 = vunpack.c.l.b16 %v4006
  %v4055 = vunpack.c.l.b16 %v4007
  %v4056 = vpack.c.b16 %v4033, %v4032
  %v4057 = vpack.c.b16 %v4035, %v4034
  %v4058 = vpack.c.b16 %v4037, %v4036
  %v4059 = vpack.c.b16 %v4039, %v4038
  %v4060 = vpack.c.b16 %v4041, %v4040
  %v4061 = vpack.c.b16 %v4043, %v4042
  %v4062 = vpack.c.b16 %v4045, %v4044
  %v4063 = vpack.c.b16 %v4047, %v4046
  %v4064 = vpack.c.b16 %v4049, %v4048
  %v4065 = vpack.c.b16 %v4051, %v4050
  %v4066 = vpack.c.b16 %v4053, %v4052
  %v4067 = vpack.c.b16 %v4055, %v4054
  %4080 = vmatpush.bf16.msra.mxu0 %v4063
  %4081 = vmatpush.bf16.msra.mxu0 %v4062
  %4082 = vmatpush.bf16.msra.mxu0 %v4061
  %4083 = vmatpush.bf16.msra.mxu0 %v4060
  %4084 = vmatpush.bf16.msra.mxu0 %v4059
  %4085 = vmatpush.bf16.msra.mxu0 %v4058
  %4086 = vmatpush.bf16.msra.mxu0 %v4057
  %4087 = vmatpush.bf16.msra.mxu0 %v4056
  %4088 = vmatmul.bf16.gmra.mxu0 %v459
  %v4089 = vpop.f32.mrf.mxu0
  %v4090 = vadd.f32 0.0, %v4089
  %v4091 = vpop.f32.mrf.mxu0
  %v4092 = vadd.f32 0.0, %v4091
  %4093 = vmatmul.bf16.gmra.mxu0 %v461
  %v4094 = vpop.f32.mrf.mxu0
  %v4095 = vadd.f32 0.0, %v4094
  %v4096 = vpop.f32.mrf.mxu0
  %v4097 = vadd.f32 0.0, %v4096
  %4098 = vmatmul.bf16.gmra.mxu0 %v463
  %v4099 = vpop.f32.mrf.mxu0
  %v4100 = vadd.f32 0.0, %v4099
  %v4101 = vpop.f32.mrf.mxu0
  %v4102 = vadd.f32 0.0, %v4101
  %4103 = vmatmul.bf16.gmra.mxu0 %v465
  %v4104 = vpop.f32.mrf.mxu0
  %v4105 = vadd.f32 0.0, %v4104
  %v4106 = vpop.f32.mrf.mxu0
  %v4107 = vadd.f32 0.0, %v4106
  %4108 = vmatmul.bf16.gmra.mxu0 %v467
  %v4109 = vpop.f32.mrf.mxu0
  %v4110 = vadd.f32 0.0, %v4109
  %v4111 = vpop.f32.mrf.mxu0
  %v4112 = vadd.f32 0.0, %v4111
  %4113 = vmatmul.bf16.gmra.mxu0 %v469
  %v4114 = vpop.f32.mrf.mxu0
  %v4115 = vadd.f32 0.0, %v4114
  %v4116 = vpop.f32.mrf.mxu0
  %v4117 = vadd.f32 0.0, %v4116
  %4118 = vmatmul.bf16.gmra.mxu0 %v471
  %v4119 = vpop.f32.mrf.mxu0
  %v4120 = vadd.f32 0.0, %v4119
  %v4121 = vpop.f32.mrf.mxu0
  %v4122 = vadd.f32 0.0, %v4121
  %4123 = vmatmul.bf16.gmra.mxu0 %v473
  %v4124 = vpop.f32.mrf.mxu0
  %v4125 = vadd.f32 0.0, %v4124
  %v4126 = vpop.f32.mrf.mxu0
  %v4127 = vadd.f32 0.0, %v4126
  %4128 = vmatmul.bf16.gmra.mxu0 %v475
  %v4129 = vpop.f32.mrf.mxu0
  %v4130 = vadd.f32 0.0, %v4129
  %v4131 = vpop.f32.mrf.mxu0
  %v4132 = vadd.f32 0.0, %v4131
  %4133 = vmatmul.bf16.gmra.mxu0 %v477
  %v4134 = vpop.f32.mrf.mxu0
  %v4135 = vadd.f32 0.0, %v4134
  %v4136 = vpop.f32.mrf.mxu0
  %v4137 = vadd.f32 0.0, %v4136
  %4138 = vmatmul.bf16.gmra.mxu0 %v479
  %v4139 = vpop.f32.mrf.mxu0
  %v4140 = vadd.f32 0.0, %v4139
  %v4141 = vpop.f32.mrf.mxu0
  %v4142 = vadd.f32 0.0, %v4141
  %4143 = vmatmul.bf16.gmra.mxu0 %v481
  %v4144 = vpop.f32.mrf.mxu0
  %v4145 = vadd.f32 0.0, %v4144
  %v4146 = vpop.f32.mrf.mxu0
  %v4147 = vadd.f32 0.0, %v4146
  %4148 = vmatmul.bf16.gmra.mxu0 %v483
  %v4149 = vpop.f32.mrf.mxu0
  %v4150 = vadd.f32 0.0, %v4149
  %v4151 = vpop.f32.mrf.mxu0
  %v4152 = vadd.f32 0.0, %v4151
  %4153 = vmatmul.bf16.gmra.mxu0 %v485
  %v4154 = vpop.f32.mrf.mxu0
  %v4155 = vadd.f32 0.0, %v4154
  %v4156 = vpop.f32.mrf.mxu0
  %v4157 = vadd.f32 0.0, %v4156
  %4158 = vmatmul.bf16.gmra.mxu0 %v487
  %v4159 = vpop.f32.mrf.mxu0
  %v4160 = vadd.f32 0.0, %v4159
  %v4161 = vpop.f32.mrf.mxu0
  %v4162 = vadd.f32 0.0, %v4161
  %4163 = vmatmul.bf16.gmra.mxu0 %v489
  %v4164 = vpop.f32.mrf.mxu0
  %v4165 = vadd.f32 0.0, %v4164
  %v4166 = vpop.f32.mrf.mxu0
  %v4167 = vadd.f32 0.0, %v4166
  %4168 = vmatmul.bf16.gmra.mxu0 %v491
  %v4169 = vpop.f32.mrf.mxu0
  %v4170 = vadd.f32 0.0, %v4169
  %v4171 = vpop.f32.mrf.mxu0
  %v4172 = vadd.f32 0.0, %v4171
  %4173 = vmatmul.bf16.gmra.mxu0 %v493
  %v4174 = vpop.f32.mrf.mxu0
  %v4175 = vadd.f32 0.0, %v4174
  %v4176 = vpop.f32.mrf.mxu0
  %v4177 = vadd.f32 0.0, %v4176
  %4178 = vmatmul.bf16.gmra.mxu0 %v495
  %v4179 = vpop.f32.mrf.mxu0
  %v4180 = vadd.f32 0.0, %v4179
  %v4181 = vpop.f32.mrf.mxu0
  %v4182 = vadd.f32 0.0, %v4181
  %4183 = vmatmul.bf16.gmra.mxu0 %v497
  %v4184 = vpop.f32.mrf.mxu0
  %v4185 = vadd.f32 0.0, %v4184
  %v4186 = vpop.f32.mrf.mxu0
  %v4187 = vadd.f32 0.0, %v4186
  %4188 = vmatmul.bf16.gmra.mxu0 %v499
  %v4189 = vpop.f32.mrf.mxu0
  %v4190 = vadd.f32 0.0, %v4189
  %v4191 = vpop.f32.mrf.mxu0
  %v4192 = vadd.f32 0.0, %v4191
  %4193 = vmatmul.bf16.gmra.mxu0 %v501
  %v4194 = vpop.f32.mrf.mxu0
  %v4195 = vadd.f32 0.0, %v4194
  %v4196 = vpop.f32.mrf.mxu0
  %v4197 = vadd.f32 0.0, %v4196
  %4198 = vmatmul.bf16.gmra.mxu0 %v503
  %v4199 = vpop.f32.mrf.mxu0
  %v4200 = vadd.f32 0.0, %v4199
  %v4201 = vpop.f32.mrf.mxu0
  %v4202 = vadd.f32 0.0, %v4201
  %4203 = vmatmul.bf16.gmra.mxu0 %v505
  %v4204 = vpop.f32.mrf.mxu0
  %v4205 = vadd.f32 0.0, %v4204
  %v4206 = vpop.f32.mrf.mxu0
  %v4207 = vadd.f32 0.0, %v4206
  %4208 = vmatmul.bf16.gmra.mxu0 %v507
  %v4209 = vpop.f32.mrf.mxu0
  %v4210 = vadd.f32 0.0, %v4209
  %v4211 = vpop.f32.mrf.mxu0
  %v4212 = vadd.f32 0.0, %v4211
  %4213 = vmatmul.bf16.gmra.mxu0 %v509
  %v4214 = vpop.f32.mrf.mxu0
  %v4215 = vadd.f32 0.0, %v4214
  %v4216 = vpop.f32.mrf.mxu0
  %v4217 = vadd.f32 0.0, %v4216
  %4218 = vmatmul.bf16.gmra.mxu0 %v511
  %v4219 = vpop.f32.mrf.mxu0
  %v4220 = vadd.f32 0.0, %v4219
  %v4221 = vpop.f32.mrf.mxu0
  %v4222 = vadd.f32 0.0, %v4221
  %4223 = vmatmul.bf16.gmra.mxu0 %v513
  %v4224 = vpop.f32.mrf.mxu0
  %v4225 = vadd.f32 0.0, %v4224
  %v4226 = vpop.f32.mrf.mxu0
  %v4227 = vadd.f32 0.0, %v4226
  %4228 = vmatmul.bf16.gmra.mxu0 %v515
  %v4229 = vpop.f32.mrf.mxu0
  %v4230 = vadd.f32 0.0, %v4229
  %v4231 = vpop.f32.mrf.mxu0
  %v4232 = vadd.f32 0.0, %v4231
  %4233 = vmatmul.bf16.gmra.mxu0 %v517
  %v4234 = vpop.f32.mrf.mxu0
  %v4235 = vadd.f32 0.0, %v4234
  %v4236 = vpop.f32.mrf.mxu0
  %v4237 = vadd.f32 0.0, %v4236
  %4238 = vmatmul.bf16.gmra.mxu0 %v519
  %v4239 = vpop.f32.mrf.mxu0
  %v4240 = vadd.f32 0.0, %v4239
  %v4241 = vpop.f32.mrf.mxu0
  %v4242 = vadd.f32 0.0, %v4241
  %4243 = vmatmul.bf16.gmra.mxu0 %v521
  %v4244 = vpop.f32.mrf.mxu0
  %v4245 = vadd.f32 0.0, %v4244
  %v4246 = vpop.f32.mrf.mxu0
  %v4247 = vadd.f32 0.0, %v4246
  %4248 = vdwg.mxu0
  %4249 = vmatpush.bf16.msra.mxu0 0
  %4250 = vmatpush.bf16.msra.mxu0 0
  %4251 = vmatpush.bf16.msra.mxu0 0
  %4252 = vmatpush.bf16.msra.mxu0 0
  %4253 = vmatpush.bf16.msra.mxu0 %v4067
  %4254 = vmatpush.bf16.msra.mxu0 %v4066
  %4255 = vmatpush.bf16.msra.mxu0 %v4065
  %4256 = vmatpush.bf16.msra.mxu0 %v4064
  %4257 = vmatmul.bf16.gmra.mxu0 %v629
  %v4258 = vpop.f32.mrf.mxu0
  %v4259 = vadd.f32 %v4090, %v4258
  %v4260 = vpop.f32.mrf.mxu0
  %v4261 = vadd.f32 %v4092, %v4260
  %4262 = vmatmul.bf16.gmra.mxu0 %v632
  %v4263 = vpop.f32.mrf.mxu0
  %v4264 = vadd.f32 %v4095, %v4263
  %v4265 = vpop.f32.mrf.mxu0
  %v4266 = vadd.f32 %v4097, %v4265
  %4267 = vmatmul.bf16.gmra.mxu0 %v635
  %v4268 = vpop.f32.mrf.mxu0
  %v4269 = vadd.f32 %v4100, %v4268
  %v4270 = vpop.f32.mrf.mxu0
  %v4271 = vadd.f32 %v4102, %v4270
  %4272 = vmatmul.bf16.gmra.mxu0 %v638
  %v4273 = vpop.f32.mrf.mxu0
  %v4274 = vadd.f32 %v4105, %v4273
  %v4275 = vpop.f32.mrf.mxu0
  %v4276 = vadd.f32 %v4107, %v4275
  %4277 = vmatmul.bf16.gmra.mxu0 %v641
  %v4278 = vpop.f32.mrf.mxu0
  %v4279 = vadd.f32 %v4110, %v4278
  %v4280 = vpop.f32.mrf.mxu0
  %v4281 = vadd.f32 %v4112, %v4280
  %4282 = vmatmul.bf16.gmra.mxu0 %v644
  %v4283 = vpop.f32.mrf.mxu0
  %v4284 = vadd.f32 %v4115, %v4283
  %v4285 = vpop.f32.mrf.mxu0
  %v4286 = vadd.f32 %v4117, %v4285
  %4287 = vmatmul.bf16.gmra.mxu0 %v647
  %v4288 = vpop.f32.mrf.mxu0
  %v4289 = vadd.f32 %v4120, %v4288
  %v4290 = vpop.f32.mrf.mxu0
  %v4291 = vadd.f32 %v4122, %v4290
  %4292 = vmatmul.bf16.gmra.mxu0 %v650
  %v4293 = vpop.f32.mrf.mxu0
  %v4294 = vadd.f32 %v4125, %v4293
  %v4295 = vpop.f32.mrf.mxu0
  %v4296 = vadd.f32 %v4127, %v4295
  %4297 = vmatmul.bf16.gmra.mxu0 %v653
  %v4298 = vpop.f32.mrf.mxu0
  %v4299 = vadd.f32 %v4130, %v4298
  %v4300 = vpop.f32.mrf.mxu0
  %v4301 = vadd.f32 %v4132, %v4300
  %4302 = vmatmul.bf16.gmra.mxu0 %v656
  %v4303 = vpop.f32.mrf.mxu0
  %v4304 = vadd.f32 %v4135, %v4303
  %v4305 = vpop.f32.mrf.mxu0
  %v4306 = vadd.f32 %v4137, %v4305
  %4307 = vmatmul.bf16.gmra.mxu0 %v659
  %v4308 = vpop.f32.mrf.mxu0
  %v4309 = vadd.f32 %v4140, %v4308
  %v4310 = vpop.f32.mrf.mxu0
  %v4311 = vadd.f32 %v4142, %v4310
  %4312 = vmatmul.bf16.gmra.mxu0 %v662
  %v4313 = vpop.f32.mrf.mxu0
  %v4314 = vadd.f32 %v4145, %v4313
  %v4315 = vpop.f32.mrf.mxu0
  %v4316 = vadd.f32 %v4147, %v4315
  %4317 = vmatmul.bf16.gmra.mxu0 %v665
  %v4318 = vpop.f32.mrf.mxu0
  %v4319 = vadd.f32 %v4150, %v4318
  %v4320 = vpop.f32.mrf.mxu0
  %v4321 = vadd.f32 %v4152, %v4320
  %4322 = vmatmul.bf16.gmra.mxu0 %v668
  %v4323 = vpop.f32.mrf.mxu0
  %v4324 = vadd.f32 %v4155, %v4323
  %v4325 = vpop.f32.mrf.mxu0
  %v4326 = vadd.f32 %v4157, %v4325
  %4327 = vmatmul.bf16.gmra.mxu0 %v671
  %v4328 = vpop.f32.mrf.mxu0
  %v4329 = vadd.f32 %v4160, %v4328
  %v4330 = vpop.f32.mrf.mxu0
  %v4331 = vadd.f32 %v4162, %v4330
  %4332 = vmatmul.bf16.gmra.mxu0 %v674
  %v4333 = vpop.f32.mrf.mxu0
  %v4334 = vadd.f32 %v4165, %v4333
  %v4335 = vpop.f32.mrf.mxu0
  %v4336 = vadd.f32 %v4167, %v4335
  %4337 = vmatmul.bf16.gmra.mxu0 %v677
  %v4338 = vpop.f32.mrf.mxu0
  %v4339 = vadd.f32 %v4170, %v4338
  %v4340 = vpop.f32.mrf.mxu0
  %v4341 = vadd.f32 %v4172, %v4340
  %4342 = vmatmul.bf16.gmra.mxu0 %v680
  %v4343 = vpop.f32.mrf.mxu0
  %v4344 = vadd.f32 %v4175, %v4343
  %v4345 = vpop.f32.mrf.mxu0
  %v4346 = vadd.f32 %v4177, %v4345
  %4347 = vmatmul.bf16.gmra.mxu0 %v683
  %v4348 = vpop.f32.mrf.mxu0
  %v4349 = vadd.f32 %v4180, %v4348
  %v4350 = vpop.f32.mrf.mxu0
  %v4351 = vadd.f32 %v4182, %v4350
  %4352 = vmatmul.bf16.gmra.mxu0 %v686
  %v4353 = vpop.f32.mrf.mxu0
  %v4354 = vadd.f32 %v4185, %v4353
  %v4355 = vpop.f32.mrf.mxu0
  %v4356 = vadd.f32 %v4187, %v4355
  %4357 = vmatmul.bf16.gmra.mxu0 %v689
  %v4358 = vpop.f32.mrf.mxu0
  %v4359 = vadd.f32 %v4190, %v4358
  %v4360 = vpop.f32.mrf.mxu0
  %v4361 = vadd.f32 %v4192, %v4360
  %4362 = vmatmul.bf16.gmra.mxu0 %v692
  %v4363 = vpop.f32.mrf.mxu0
  %v4364 = vadd.f32 %v4195, %v4363
  %v4365 = vpop.f32.mrf.mxu0
  %v4366 = vadd.f32 %v4197, %v4365
  %4367 = vmatmul.bf16.gmra.mxu0 %v695
  %v4368 = vpop.f32.mrf.mxu0
  %v4369 = vadd.f32 %v4200, %v4368
  %v4370 = vpop.f32.mrf.mxu0
  %v4371 = vadd.f32 %v4202, %v4370
  %4372 = vmatmul.bf16.gmra.mxu0 %v698
  %v4373 = vpop.f32.mrf.mxu0
  %v4374 = vadd.f32 %v4205, %v4373
  %v4375 = vpop.f32.mrf.mxu0
  %v4376 = vadd.f32 %v4207, %v4375
  %4377 = vmatmul.bf16.gmra.mxu0 %v701
  %v4378 = vpop.f32.mrf.mxu0
  %v4379 = vadd.f32 %v4210, %v4378
  %v4380 = vpop.f32.mrf.mxu0
  %v4381 = vadd.f32 %v4212, %v4380
  %4382 = vmatmul.bf16.gmra.mxu0 %v704
  %v4383 = vpop.f32.mrf.mxu0
  %v4384 = vadd.f32 %v4215, %v4383
  %v4385 = vpop.f32.mrf.mxu0
  %v4386 = vadd.f32 %v4217, %v4385
  %4387 = vmatmul.bf16.gmra.mxu0 %v707
  %v4388 = vpop.f32.mrf.mxu0
  %v4389 = vadd.f32 %v4220, %v4388
  %v4390 = vpop.f32.mrf.mxu0
  %v4391 = vadd.f32 %v4222, %v4390
  %4392 = vmatmul.bf16.gmra.mxu0 %v710
  %v4393 = vpop.f32.mrf.mxu0
  %v4394 = vadd.f32 %v4225, %v4393
  %v4395 = vpop.f32.mrf.mxu0
  %v4396 = vadd.f32 %v4227, %v4395
  %4397 = vmatmul.bf16.gmra.mxu0 %v713
  %v4398 = vpop.f32.mrf.mxu0
  %v4399 = vadd.f32 %v4230, %v4398
  %v4400 = vpop.f32.mrf.mxu0
  %v4401 = vadd.f32 %v4232, %v4400
  %4402 = vmatmul.bf16.gmra.mxu0 %v716
  %v4403 = vpop.f32.mrf.mxu0
  %v4404 = vadd.f32 %v4235, %v4403
  %v4405 = vpop.f32.mrf.mxu0
  %v4406 = vadd.f32 %v4237, %v4405
  %4407 = vmatmul.bf16.gmra.mxu0 %v719
  %v4408 = vpop.f32.mrf.mxu0
  %v4409 = vadd.f32 %v4240, %v4408
  %v4410 = vpop.f32.mrf.mxu0
  %v4411 = vadd.f32 %v4242, %v4410
  %4412 = vmatmul.bf16.gmra.mxu0 %v722
  %v4413 = vpop.f32.mrf.mxu0
  %v4414 = vadd.f32 %v4245, %v4413
  %v4415 = vpop.f32.mrf.mxu0
  %v4416 = vadd.f32 %v4247, %v4415
  %4417 = vdwg.mxu0
  %v4418 = vmax.f32 %v4259, %v4339
  %v4419 = vmax.f32 %v4261, %v4341
  %v4420 = vmax.f32 %v4264, %v4344
  %v4421 = vmax.f32 %v4266, %v4346
  %v4422 = vmax.f32 %v4269, %v4349
  %v4423 = vmax.f32 %v4271, %v4351
  %v4424 = vmax.f32 %v4274, %v4354
  %v4425 = vmax.f32 %v4276, %v4356
  %v4426 = vmax.f32 %v4279, %v4359
  %v4427 = vmax.f32 %v4281, %v4361
  %v4428 = vmax.f32 %v4284, %v4364
  %v4429 = vmax.f32 %v4286, %v4366
  %v4430 = vmax.f32 %v4289, %v4369
  %v4431 = vmax.f32 %v4291, %v4371
  %v4432 = vmax.f32 %v4294, %v4374
  %v4433 = vmax.f32 %v4296, %v4376
  %v4434 = vmax.f32 %v4299, %v4379
  %v4435 = vmax.f32 %v4301, %v4381
  %v4436 = vmax.f32 %v4304, %v4384
  %v4437 = vmax.f32 %v4306, %v4386
  %v4438 = vmax.f32 %v4309, %v4389
  %v4439 = vmax.f32 %v4311, %v4391
  %v4440 = vmax.f32 %v4314, %v4394
  %v4441 = vmax.f32 %v4316, %v4396
  %v4442 = vmax.f32 %v4319, %v4399
  %v4443 = vmax.f32 %v4321, %v4401
  %v4444 = vmax.f32 %v4324, %v4404
  %v4445 = vmax.f32 %v4326, %v4406
  %v4446 = vmax.f32 %v4329, %v4409
  %v4447 = vmax.f32 %v4331, %v4411
  %v4448 = vmax.f32 %v4334, %v4414
  %v4449 = vmax.f32 %v4336, %v4416
  %v4450 = vmax.f32 %v4418, %v4434
  %v4451 = vmax.f32 %v4419, %v4435
  %v4452 = vmax.f32 %v4420, %v4436
  %v4453 = vmax.f32 %v4421, %v4437
  %v4454 = vmax.f32 %v4422, %v4438
  %v4455 = vmax.f32 %v4423, %v4439
  %v4456 = vmax.f32 %v4424, %v4440
  %v4457 = vmax.f32 %v4425, %v4441
  %v4458 = vmax.f32 %v4426, %v4442
  %v4459 = vmax.f32 %v4427, %v4443
  %v4460 = vmax.f32 %v4428, %v4444
  %v4461 = vmax.f32 %v4429, %v4445
  %v4462 = vmax.f32 %v4430, %v4446
  %v4463 = vmax.f32 %v4431, %v4447
  %v4464 = vmax.f32 %v4432, %v4448
  %v4465 = vmax.f32 %v4433, %v4449
  %v4466 = vadd.f32 %v4450, %v1113
  %v4467 = vadd.f32 %v4451, %v1118
  %v4468 = vadd.f32 %v4452, %v1123
  %v4469 = vadd.f32 %v4453, %v1128
  %v4470 = vadd.f32 %v4454, %v1133
  %v4471 = vadd.f32 %v4455, %v1138
  %v4472 = vadd.f32 %v4456, %v1143
  %v4473 = vadd.f32 %v4457, %v1148
  %v4474 = vadd.f32 %v4458, %v1153
  %v4475 = vadd.f32 %v4459, %v1158
  %v4476 = vadd.f32 %v4460, %v1163
  %v4477 = vadd.f32 %v4461, %v1168
  %v4478 = vadd.f32 %v4462, %v1173
  %v4479 = vadd.f32 %v4463, %v1178
  %v4480 = vadd.f32 %v4464, %v1183
  %v4481 = vadd.f32 %v4465, %v1188
  %v4482 = vmax.f32 %v4466, 0.0
  %v4483 = vmax.f32 %v4467, 0.0
  %v4484 = vmax.f32 %v4468, 0.0
  %v4485 = vmax.f32 %v4469, 0.0
  %v4486 = vmax.f32 %v4470, 0.0
  %v4487 = vmax.f32 %v4471, 0.0
  %v4488 = vmax.f32 %v4472, 0.0
  %v4489 = vmax.f32 %v4473, 0.0
  %v4490 = vmax.f32 %v4474, 0.0
  %v4491 = vmax.f32 %v4475, 0.0
  %v4492 = vmax.f32 %v4476, 0.0
  %v4493 = vmax.f32 %v4477, 0.0
  %v4494 = vmax.f32 %v4478, 0.0
  %v4495 = vmax.f32 %v4479, 0.0
  %v4496 = vmax.f32 %v4480, 0.0
  %v4497 = vmax.f32 %v4481, 0.0
  %v4498 = vpack.c.bf16 %v4482, %v4482
  %v4499 = vpack.c.bf16 %v4483, %v4483
  %v4500 = vpack.c.bf16 %v4484, %v4484
  %v4501 = vpack.c.bf16 %v4485, %v4485
  %v4502 = vpack.c.bf16 %v4486, %v4486
  %v4503 = vpack.c.bf16 %v4487, %v4487
  %v4504 = vpack.c.bf16 %v4488, %v4488
  %v4505 = vpack.c.bf16 %v4489, %v4489
  %v4506 = vpack.c.bf16 %v4490, %v4490
  %v4507 = vpack.c.bf16 %v4491, %v4491
  %v4508 = vpack.c.bf16 %v4492, %v4492
  %v4509 = vpack.c.bf16 %v4493, %v4493
  %v4510 = vpack.c.bf16 %v4494, %v4494
  %v4511 = vpack.c.bf16 %v4495, %v4495
  %v4512 = vpack.c.bf16 %v4496, %v4496
  %v4513 = vpack.c.bf16 %v4497, %v4497
  %4514 = vst [vmem:[#allocation2 + $0x180] sm:$0xf] %v4498
  %4515 = vst [vmem:[#allocation2 + $0x184] sm:$0xf] %v4499
  %4516 = vst [vmem:[#allocation2 + $0x188] sm:$0xf] %v4500
  %4517 = vst [vmem:[#allocation2 + $0x18c] sm:$0xf] %v4501
  %4518 = vst [vmem:[#allocation2 + $0x190] sm:$0xf] %v4502
  %4519 = vst [vmem:[#allocation2 + $0x194] sm:$0xf] %v4503
  %4520 = vst [vmem:[#allocation2 + $0x198] sm:$0xf] %v4504
  %4521 = vst [vmem:[#allocation2 + $0x19c] sm:$0xf] %v4505
  %4522 = vst [vmem:[#allocation2 + $0x1a0] sm:$0xf] %v4506
  %4523 = vst [vmem:[#allocation2 + $0x1a4] sm:$0xf] %v4507
  %4524 = vst [vmem:[#allocation2 + $0x1a8] sm:$0xf] %v4508
  %4525 = vst [vmem:[#allocation2 + $0x1ac] sm:$0xf] %v4509
  %4526 = vst [vmem:[#allocation2 + $0x1b0] sm:$0xf] %v4510
  %4527 = vst [vmem:[#allocation2 + $0x1b4] sm:$0xf] %v4511
  %4528 = vst [vmem:[#allocation2 + $0x1b8] sm:$0xf] %v4512
  %4529 = vst [vmem:[#allocation2 + $0x1bc] sm:$0xf] %v4513
  %v4530 = vld [vmem:[%s0 + $0xe0] sm:$0xf]
  %v4531 = vld [vmem:[%s0 + $0xe4] sm:$0xf]
  %v4532 = vld [vmem:[%s0 + $0xe8] sm:$0xf]
  %v4533 = vld [vmem:[%s0 + $0xec] sm:$0xf]
  %v4534 = vld [vmem:[%s0 + $0xf0] sm:$0xf]
  %v4535 = vld [vmem:[%s0 + $0xf4] sm:$0xf]
  %v4536 = vld [vmem:[%s0 + $0xf8] sm:$0xf]
  %v4537 = vld [vmem:[%s0 + $0xfc] sm:$0xf]
  %v4538 = vld [vmem:[%s0 + $0x100] sm:$0xf]
  %v4539 = vld [vmem:[%s0 + $0x104] sm:$0xf]
  %v4540 = vld [vmem:[%s0 + $0x108] sm:$0xf]
  %v4541 = vld [vmem:[%s0 + $0x10c] sm:$0xf]
  %v4542 = vld [vmem:[%s0 + $0x110] sm:$0xf]
  %v4543 = vld [vmem:[%s0 + $0x114] sm:$0xf]
  %v4544 = vld [vmem:[%s0 + $0x118] sm:$0xf]
  %v4545 = vld [vmem:[%s0 + $0x11c] sm:$0xf]
  %v4546 = vld [vmem:[%s0 + $0x120] sm:$0xf]
  %v4547 = vld [vmem:[%s0 + $0x124] sm:$0xf]
  %v4548 = vld [vmem:[%s0 + $0x128] sm:$0xf]
  %v4549 = vld [vmem:[%s0 + $0x12c] sm:$0xf]
  %v4550 = vld [vmem:[%s0 + $0x130] sm:$0xf]
  %v4551 = vld [vmem:[%s0 + $0x134] sm:$0xf]
  %v4552 = vld [vmem:[%s0 + $0x138] sm:$0xf]
  %v4553 = vld [vmem:[%s0 + $0x13c] sm:$0xf]
  %v4578 = vunpack.c.l.b16 %v4530
  %v4579 = vunpack.c.l.b16 %v4531
  %v4580 = vunpack.c.l.b16 %v4532
  %v4581 = vunpack.c.l.b16 %v4533
  %v4582 = vunpack.c.l.b16 %v4534
  %v4583 = vunpack.c.l.b16 %v4535
  %v4584 = vunpack.c.l.b16 %v4536
  %v4585 = vunpack.c.l.b16 %v4537
  %v4586 = vunpack.c.l.b16 %v4538
  %v4587 = vunpack.c.l.b16 %v4539
  %v4588 = vunpack.c.l.b16 %v4540
  %v4589 = vunpack.c.l.b16 %v4541
  %v4590 = vunpack.c.l.b16 %v4542
  %v4591 = vunpack.c.l.b16 %v4543
  %v4592 = vunpack.c.l.b16 %v4544
  %v4593 = vunpack.c.l.b16 %v4545
  %v4594 = vunpack.c.l.b16 %v4546
  %v4595 = vunpack.c.l.b16 %v4547
  %v4596 = vunpack.c.l.b16 %v4548
  %v4597 = vunpack.c.l.b16 %v4549
  %v4598 = vunpack.c.l.b16 %v4550
  %v4599 = vunpack.c.l.b16 %v4551
  %v4600 = vunpack.c.l.b16 %v4552
  %v4601 = vunpack.c.l.b16 %v4553
  %v4602 = vpack.c.b16 %v4579, %v4578
  %v4603 = vpack.c.b16 %v4581, %v4580
  %v4604 = vpack.c.b16 %v4583, %v4582
  %v4605 = vpack.c.b16 %v4585, %v4584
  %v4606 = vpack.c.b16 %v4587, %v4586
  %v4607 = vpack.c.b16 %v4589, %v4588
  %v4608 = vpack.c.b16 %v4591, %v4590
  %v4609 = vpack.c.b16 %v4593, %v4592
  %v4610 = vpack.c.b16 %v4595, %v4594
  %v4611 = vpack.c.b16 %v4597, %v4596
  %v4612 = vpack.c.b16 %v4599, %v4598
  %v4613 = vpack.c.b16 %v4601, %v4600
  %4626 = vmatpush.bf16.msra.mxu0 %v4609
  %4627 = vmatpush.bf16.msra.mxu0 %v4608
  %4628 = vmatpush.bf16.msra.mxu0 %v4607
  %4629 = vmatpush.bf16.msra.mxu0 %v4606
  %4630 = vmatpush.bf16.msra.mxu0 %v4605
  %4631 = vmatpush.bf16.msra.mxu0 %v4604
  %4632 = vmatpush.bf16.msra.mxu0 %v4603
  %4633 = vmatpush.bf16.msra.mxu0 %v4602
  %4634 = vmatmul.bf16.gmra.mxu0 %v459
  %v4635 = vpop.f32.mrf.mxu0
  %v4636 = vadd.f32 0.0, %v4635
  %v4637 = vpop.f32.mrf.mxu0
  %v4638 = vadd.f32 0.0, %v4637
  %4639 = vmatmul.bf16.gmra.mxu0 %v461
  %v4640 = vpop.f32.mrf.mxu0
  %v4641 = vadd.f32 0.0, %v4640
  %v4642 = vpop.f32.mrf.mxu0
  %v4643 = vadd.f32 0.0, %v4642
  %4644 = vmatmul.bf16.gmra.mxu0 %v463
  %v4645 = vpop.f32.mrf.mxu0
  %v4646 = vadd.f32 0.0, %v4645
  %v4647 = vpop.f32.mrf.mxu0
  %v4648 = vadd.f32 0.0, %v4647
  %4649 = vmatmul.bf16.gmra.mxu0 %v465
  %v4650 = vpop.f32.mrf.mxu0
  %v4651 = vadd.f32 0.0, %v4650
  %v4652 = vpop.f32.mrf.mxu0
  %v4653 = vadd.f32 0.0, %v4652
  %4654 = vmatmul.bf16.gmra.mxu0 %v467
  %v4655 = vpop.f32.mrf.mxu0
  %v4656 = vadd.f32 0.0, %v4655
  %v4657 = vpop.f32.mrf.mxu0
  %v4658 = vadd.f32 0.0, %v4657
  %4659 = vmatmul.bf16.gmra.mxu0 %v469
  %v4660 = vpop.f32.mrf.mxu0
  %v4661 = vadd.f32 0.0, %v4660
  %v4662 = vpop.f32.mrf.mxu0
  %v4663 = vadd.f32 0.0, %v4662
  %4664 = vmatmul.bf16.gmra.mxu0 %v471
  %v4665 = vpop.f32.mrf.mxu0
  %v4666 = vadd.f32 0.0, %v4665
  %v4667 = vpop.f32.mrf.mxu0
  %v4668 = vadd.f32 0.0, %v4667
  %4669 = vmatmul.bf16.gmra.mxu0 %v473
  %v4670 = vpop.f32.mrf.mxu0
  %v4671 = vadd.f32 0.0, %v4670
  %v4672 = vpop.f32.mrf.mxu0
  %v4673 = vadd.f32 0.0, %v4672
  %4674 = vmatmul.bf16.gmra.mxu0 %v475
  %v4675 = vpop.f32.mrf.mxu0
  %v4676 = vadd.f32 0.0, %v4675
  %v4677 = vpop.f32.mrf.mxu0
  %v4678 = vadd.f32 0.0, %v4677
  %4679 = vmatmul.bf16.gmra.mxu0 %v477
  %v4680 = vpop.f32.mrf.mxu0
  %v4681 = vadd.f32 0.0, %v4680
  %v4682 = vpop.f32.mrf.mxu0
  %v4683 = vadd.f32 0.0, %v4682
  %4684 = vmatmul.bf16.gmra.mxu0 %v479
  %v4685 = vpop.f32.mrf.mxu0
  %v4686 = vadd.f32 0.0, %v4685
  %v4687 = vpop.f32.mrf.mxu0
  %v4688 = vadd.f32 0.0, %v4687
  %4689 = vmatmul.bf16.gmra.mxu0 %v481
  %v4690 = vpop.f32.mrf.mxu0
  %v4691 = vadd.f32 0.0, %v4690
  %v4692 = vpop.f32.mrf.mxu0
  %v4693 = vadd.f32 0.0, %v4692
  %4694 = vmatmul.bf16.gmra.mxu0 %v483
  %v4695 = vpop.f32.mrf.mxu0
  %v4696 = vadd.f32 0.0, %v4695
  %v4697 = vpop.f32.mrf.mxu0
  %v4698 = vadd.f32 0.0, %v4697
  %4699 = vmatmul.bf16.gmra.mxu0 %v485
  %v4700 = vpop.f32.mrf.mxu0
  %v4701 = vadd.f32 0.0, %v4700
  %v4702 = vpop.f32.mrf.mxu0
  %v4703 = vadd.f32 0.0, %v4702
  %4704 = vmatmul.bf16.gmra.mxu0 %v487
  %v4705 = vpop.f32.mrf.mxu0
  %v4706 = vadd.f32 0.0, %v4705
  %v4707 = vpop.f32.mrf.mxu0
  %v4708 = vadd.f32 0.0, %v4707
  %4709 = vmatmul.bf16.gmra.mxu0 %v489
  %v4710 = vpop.f32.mrf.mxu0
  %v4711 = vadd.f32 0.0, %v4710
  %v4712 = vpop.f32.mrf.mxu0
  %v4713 = vadd.f32 0.0, %v4712
  %4714 = vmatmul.bf16.gmra.mxu0 %v491
  %v4715 = vpop.f32.mrf.mxu0
  %v4716 = vadd.f32 0.0, %v4715
  %v4717 = vpop.f32.mrf.mxu0
  %v4718 = vadd.f32 0.0, %v4717
  %4719 = vmatmul.bf16.gmra.mxu0 %v493
  %v4720 = vpop.f32.mrf.mxu0
  %v4721 = vadd.f32 0.0, %v4720
  %v4722 = vpop.f32.mrf.mxu0
  %v4723 = vadd.f32 0.0, %v4722
  %4724 = vmatmul.bf16.gmra.mxu0 %v495
  %v4725 = vpop.f32.mrf.mxu0
  %v4726 = vadd.f32 0.0, %v4725
  %v4727 = vpop.f32.mrf.mxu0
  %v4728 = vadd.f32 0.0, %v4727
  %4729 = vmatmul.bf16.gmra.mxu0 %v497
  %v4730 = vpop.f32.mrf.mxu0
  %v4731 = vadd.f32 0.0, %v4730
  %v4732 = vpop.f32.mrf.mxu0
  %v4733 = vadd.f32 0.0, %v4732
  %4734 = vmatmul.bf16.gmra.mxu0 %v499
  %v4735 = vpop.f32.mrf.mxu0
  %v4736 = vadd.f32 0.0, %v4735
  %v4737 = vpop.f32.mrf.mxu0
  %v4738 = vadd.f32 0.0, %v4737
  %4739 = vmatmul.bf16.gmra.mxu0 %v501
  %v4740 = vpop.f32.mrf.mxu0
  %v4741 = vadd.f32 0.0, %v4740
  %v4742 = vpop.f32.mrf.mxu0
  %v4743 = vadd.f32 0.0, %v4742
  %4744 = vmatmul.bf16.gmra.mxu0 %v503
  %v4745 = vpop.f32.mrf.mxu0
  %v4746 = vadd.f32 0.0, %v4745
  %v4747 = vpop.f32.mrf.mxu0
  %v4748 = vadd.f32 0.0, %v4747
  %4749 = vmatmul.bf16.gmra.mxu0 %v505
  %v4750 = vpop.f32.mrf.mxu0
  %v4751 = vadd.f32 0.0, %v4750
  %v4752 = vpop.f32.mrf.mxu0
  %v4753 = vadd.f32 0.0, %v4752
  %4754 = vmatmul.bf16.gmra.mxu0 %v507
  %v4755 = vpop.f32.mrf.mxu0
  %v4756 = vadd.f32 0.0, %v4755
  %v4757 = vpop.f32.mrf.mxu0
  %v4758 = vadd.f32 0.0, %v4757
  %4759 = vmatmul.bf16.gmra.mxu0 %v509
  %v4760 = vpop.f32.mrf.mxu0
  %v4761 = vadd.f32 0.0, %v4760
  %v4762 = vpop.f32.mrf.mxu0
  %v4763 = vadd.f32 0.0, %v4762
  %4764 = vmatmul.bf16.gmra.mxu0 %v511
  %v4765 = vpop.f32.mrf.mxu0
  %v4766 = vadd.f32 0.0, %v4765
  %v4767 = vpop.f32.mrf.mxu0
  %v4768 = vadd.f32 0.0, %v4767
  %4769 = vmatmul.bf16.gmra.mxu0 %v513
  %v4770 = vpop.f32.mrf.mxu0
  %v4771 = vadd.f32 0.0, %v4770
  %v4772 = vpop.f32.mrf.mxu0
  %v4773 = vadd.f32 0.0, %v4772
  %4774 = vmatmul.bf16.gmra.mxu0 %v515
  %v4775 = vpop.f32.mrf.mxu0
  %v4776 = vadd.f32 0.0, %v4775
  %v4777 = vpop.f32.mrf.mxu0
  %v4778 = vadd.f32 0.0, %v4777
  %4779 = vmatmul.bf16.gmra.mxu0 %v517
  %v4780 = vpop.f32.mrf.mxu0
  %v4781 = vadd.f32 0.0, %v4780
  %v4782 = vpop.f32.mrf.mxu0
  %v4783 = vadd.f32 0.0, %v4782
  %4784 = vmatmul.bf16.gmra.mxu0 %v519
  %v4785 = vpop.f32.mrf.mxu0
  %v4786 = vadd.f32 0.0, %v4785
  %v4787 = vpop.f32.mrf.mxu0
  %v4788 = vadd.f32 0.0, %v4787
  %4789 = vmatmul.bf16.gmra.mxu0 %v521
  %v4790 = vpop.f32.mrf.mxu0
  %v4791 = vadd.f32 0.0, %v4790
  %v4792 = vpop.f32.mrf.mxu0
  %v4793 = vadd.f32 0.0, %v4792
  %4794 = vdwg.mxu0
  %4795 = vmatpush.bf16.msra.mxu0 0
  %4796 = vmatpush.bf16.msra.mxu0 0
  %4797 = vmatpush.bf16.msra.mxu0 0
  %4798 = vmatpush.bf16.msra.mxu0 0
  %4799 = vmatpush.bf16.msra.mxu0 %v4613
  %4800 = vmatpush.bf16.msra.mxu0 %v4612
  %4801 = vmatpush.bf16.msra.mxu0 %v4611
  %4802 = vmatpush.bf16.msra.mxu0 %v4610
  %4803 = vmatmul.bf16.gmra.mxu0 %v629
  %v4804 = vpop.f32.mrf.mxu0
  %v4805 = vadd.f32 %v4636, %v4804
  %v4806 = vpop.f32.mrf.mxu0
  %v4807 = vadd.f32 %v4638, %v4806
  %4808 = vmatmul.bf16.gmra.mxu0 %v632
  %v4809 = vpop.f32.mrf.mxu0
  %v4810 = vadd.f32 %v4641, %v4809
  %v4811 = vpop.f32.mrf.mxu0
  %v4812 = vadd.f32 %v4643, %v4811
  %4813 = vmatmul.bf16.gmra.mxu0 %v635
  %v4814 = vpop.f32.mrf.mxu0
  %v4815 = vadd.f32 %v4646, %v4814
  %v4816 = vpop.f32.mrf.mxu0
  %v4817 = vadd.f32 %v4648, %v4816
  %4818 = vmatmul.bf16.gmra.mxu0 %v638
  %v4819 = vpop.f32.mrf.mxu0
  %v4820 = vadd.f32 %v4651, %v4819
  %v4821 = vpop.f32.mrf.mxu0
  %v4822 = vadd.f32 %v4653, %v4821
  %4823 = vmatmul.bf16.gmra.mxu0 %v641
  %v4824 = vpop.f32.mrf.mxu0
  %v4825 = vadd.f32 %v4656, %v4824
  %v4826 = vpop.f32.mrf.mxu0
  %v4827 = vadd.f32 %v4658, %v4826
  %4828 = vmatmul.bf16.gmra.mxu0 %v644
  %v4829 = vpop.f32.mrf.mxu0
  %v4830 = vadd.f32 %v4661, %v4829
  %v4831 = vpop.f32.mrf.mxu0
  %v4832 = vadd.f32 %v4663, %v4831
  %4833 = vmatmul.bf16.gmra.mxu0 %v647
  %v4834 = vpop.f32.mrf.mxu0
  %v4835 = vadd.f32 %v4666, %v4834
  %v4836 = vpop.f32.mrf.mxu0
  %v4837 = vadd.f32 %v4668, %v4836
  %4838 = vmatmul.bf16.gmra.mxu0 %v650
  %v4839 = vpop.f32.mrf.mxu0
  %v4840 = vadd.f32 %v4671, %v4839
  %v4841 = vpop.f32.mrf.mxu0
  %v4842 = vadd.f32 %v4673, %v4841
  %4843 = vmatmul.bf16.gmra.mxu0 %v653
  %v4844 = vpop.f32.mrf.mxu0
  %v4845 = vadd.f32 %v4676, %v4844
  %v4846 = vpop.f32.mrf.mxu0
  %v4847 = vadd.f32 %v4678, %v4846
  %4848 = vmatmul.bf16.gmra.mxu0 %v656
  %v4849 = vpop.f32.mrf.mxu0
  %v4850 = vadd.f32 %v4681, %v4849
  %v4851 = vpop.f32.mrf.mxu0
  %v4852 = vadd.f32 %v4683, %v4851
  %4853 = vmatmul.bf16.gmra.mxu0 %v659
  %v4854 = vpop.f32.mrf.mxu0
  %v4855 = vadd.f32 %v4686, %v4854
  %v4856 = vpop.f32.mrf.mxu0
  %v4857 = vadd.f32 %v4688, %v4856
  %4858 = vmatmul.bf16.gmra.mxu0 %v662
  %v4859 = vpop.f32.mrf.mxu0
  %v4860 = vadd.f32 %v4691, %v4859
  %v4861 = vpop.f32.mrf.mxu0
  %v4862 = vadd.f32 %v4693, %v4861
  %4863 = vmatmul.bf16.gmra.mxu0 %v665
  %v4864 = vpop.f32.mrf.mxu0
  %v4865 = vadd.f32 %v4696, %v4864
  %v4866 = vpop.f32.mrf.mxu0
  %v4867 = vadd.f32 %v4698, %v4866
  %4868 = vmatmul.bf16.gmra.mxu0 %v668
  %v4869 = vpop.f32.mrf.mxu0
  %v4870 = vadd.f32 %v4701, %v4869
  %v4871 = vpop.f32.mrf.mxu0
  %v4872 = vadd.f32 %v4703, %v4871
  %4873 = vmatmul.bf16.gmra.mxu0 %v671
  %v4874 = vpop.f32.mrf.mxu0
  %v4875 = vadd.f32 %v4706, %v4874
  %v4876 = vpop.f32.mrf.mxu0
  %v4877 = vadd.f32 %v4708, %v4876
  %4878 = vmatmul.bf16.gmra.mxu0 %v674
  %v4879 = vpop.f32.mrf.mxu0
  %v4880 = vadd.f32 %v4711, %v4879
  %v4881 = vpop.f32.mrf.mxu0
  %v4882 = vadd.f32 %v4713, %v4881
  %4883 = vmatmul.bf16.gmra.mxu0 %v677
  %v4884 = vpop.f32.mrf.mxu0
  %v4885 = vadd.f32 %v4716, %v4884
  %v4886 = vpop.f32.mrf.mxu0
  %v4887 = vadd.f32 %v4718, %v4886
  %4888 = vmatmul.bf16.gmra.mxu0 %v680
  %v4889 = vpop.f32.mrf.mxu0
  %v4890 = vadd.f32 %v4721, %v4889
  %v4891 = vpop.f32.mrf.mxu0
  %v4892 = vadd.f32 %v4723, %v4891
  %4893 = vmatmul.bf16.gmra.mxu0 %v683
  %v4894 = vpop.f32.mrf.mxu0
  %v4895 = vadd.f32 %v4726, %v4894
  %v4896 = vpop.f32.mrf.mxu0
  %v4897 = vadd.f32 %v4728, %v4896
  %4898 = vmatmul.bf16.gmra.mxu0 %v686
  %v4899 = vpop.f32.mrf.mxu0
  %v4900 = vadd.f32 %v4731, %v4899
  %v4901 = vpop.f32.mrf.mxu0
  %v4902 = vadd.f32 %v4733, %v4901
  %4903 = vmatmul.bf16.gmra.mxu0 %v689
  %v4904 = vpop.f32.mrf.mxu0
  %v4905 = vadd.f32 %v4736, %v4904
  %v4906 = vpop.f32.mrf.mxu0
  %v4907 = vadd.f32 %v4738, %v4906
  %4908 = vmatmul.bf16.gmra.mxu0 %v692
  %v4909 = vpop.f32.mrf.mxu0
  %v4910 = vadd.f32 %v4741, %v4909
  %v4911 = vpop.f32.mrf.mxu0
  %v4912 = vadd.f32 %v4743, %v4911
  %4913 = vmatmul.bf16.gmra.mxu0 %v695
  %v4914 = vpop.f32.mrf.mxu0
  %v4915 = vadd.f32 %v4746, %v4914
  %v4916 = vpop.f32.mrf.mxu0
  %v4917 = vadd.f32 %v4748, %v4916
  %4918 = vmatmul.bf16.gmra.mxu0 %v698
  %v4919 = vpop.f32.mrf.mxu0
  %v4920 = vadd.f32 %v4751, %v4919
  %v4921 = vpop.f32.mrf.mxu0
  %v4922 = vadd.f32 %v4753, %v4921
  %4923 = vmatmul.bf16.gmra.mxu0 %v701
  %v4924 = vpop.f32.mrf.mxu0
  %v4925 = vadd.f32 %v4756, %v4924
  %v4926 = vpop.f32.mrf.mxu0
  %v4927 = vadd.f32 %v4758, %v4926
  %4928 = vmatmul.bf16.gmra.mxu0 %v704
  %v4929 = vpop.f32.mrf.mxu0
  %v4930 = vadd.f32 %v4761, %v4929
  %v4931 = vpop.f32.mrf.mxu0
  %v4932 = vadd.f32 %v4763, %v4931
  %4933 = vmatmul.bf16.gmra.mxu0 %v707
  %v4934 = vpop.f32.mrf.mxu0
  %v4935 = vadd.f32 %v4766, %v4934
  %v4936 = vpop.f32.mrf.mxu0
  %v4937 = vadd.f32 %v4768, %v4936
  %4938 = vmatmul.bf16.gmra.mxu0 %v710
  %v4939 = vpop.f32.mrf.mxu0
  %v4940 = vadd.f32 %v4771, %v4939
  %v4941 = vpop.f32.mrf.mxu0
  %v4942 = vadd.f32 %v4773, %v4941
  %4943 = vmatmul.bf16.gmra.mxu0 %v713
  %v4944 = vpop.f32.mrf.mxu0
  %v4945 = vadd.f32 %v4776, %v4944
  %v4946 = vpop.f32.mrf.mxu0
  %v4947 = vadd.f32 %v4778, %v4946
  %4948 = vmatmul.bf16.gmra.mxu0 %v716
  %v4949 = vpop.f32.mrf.mxu0
  %v4950 = vadd.f32 %v4781, %v4949
  %v4951 = vpop.f32.mrf.mxu0
  %v4952 = vadd.f32 %v4783, %v4951
  %4953 = vmatmul.bf16.gmra.mxu0 %v719
  %v4954 = vpop.f32.mrf.mxu0
  %v4955 = vadd.f32 %v4786, %v4954
  %v4956 = vpop.f32.mrf.mxu0
  %v4957 = vadd.f32 %v4788, %v4956
  %4958 = vmatmul.bf16.gmra.mxu0 %v722
  %v4959 = vpop.f32.mrf.mxu0
  %v4960 = vadd.f32 %v4791, %v4959
  %v4961 = vpop.f32.mrf.mxu0
  %v4962 = vadd.f32 %v4793, %v4961
  %4963 = vdwg.mxu0
  %v4964 = vmax.f32 %v4805, %v4885
  %v4965 = vmax.f32 %v4807, %v4887
  %v4966 = vmax.f32 %v4810, %v4890
  %v4967 = vmax.f32 %v4812, %v4892
  %v4968 = vmax.f32 %v4815, %v4895
  %v4969 = vmax.f32 %v4817, %v4897
  %v4970 = vmax.f32 %v4820, %v4900
  %v4971 = vmax.f32 %v4822, %v4902
  %v4972 = vmax.f32 %v4825, %v4905
  %v4973 = vmax.f32 %v4827, %v4907
  %v4974 = vmax.f32 %v4830, %v4910
  %v4975 = vmax.f32 %v4832, %v4912
  %v4976 = vmax.f32 %v4835, %v4915
  %v4977 = vmax.f32 %v4837, %v4917
  %v4978 = vmax.f32 %v4840, %v4920
  %v4979 = vmax.f32 %v4842, %v4922
  %v4980 = vmax.f32 %v4845, %v4925
  %v4981 = vmax.f32 %v4847, %v4927
  %v4982 = vmax.f32 %v4850, %v4930
  %v4983 = vmax.f32 %v4852, %v4932
  %v4984 = vmax.f32 %v4855, %v4935
  %v4985 = vmax.f32 %v4857, %v4937
  %v4986 = vmax.f32 %v4860, %v4940
  %v4987 = vmax.f32 %v4862, %v4942
  %v4988 = vmax.f32 %v4865, %v4945
  %v4989 = vmax.f32 %v4867, %v4947
  %v4990 = vmax.f32 %v4870, %v4950
  %v4991 = vmax.f32 %v4872, %v4952
  %v4992 = vmax.f32 %v4875, %v4955
  %v4993 = vmax.f32 %v4877, %v4957
  %v4994 = vmax.f32 %v4880, %v4960
  %v4995 = vmax.f32 %v4882, %v4962
  %v4996 = vmax.f32 %v4964, %v4980
  %v4997 = vmax.f32 %v4965, %v4981
  %v4998 = vmax.f32 %v4966, %v4982
  %v4999 = vmax.f32 %v4967, %v4983
  %v5000 = vmax.f32 %v4968, %v4984
  %v5001 = vmax.f32 %v4969, %v4985
  %v5002 = vmax.f32 %v4970, %v4986
  %v5003 = vmax.f32 %v4971, %v4987
  %v5004 = vmax.f32 %v4972, %v4988
  %v5005 = vmax.f32 %v4973, %v4989
  %v5006 = vmax.f32 %v4974, %v4990
  %v5007 = vmax.f32 %v4975, %v4991
  %v5008 = vmax.f32 %v4976, %v4992
  %v5009 = vmax.f32 %v4977, %v4993
  %v5010 = vmax.f32 %v4978, %v4994
  %v5011 = vmax.f32 %v4979, %v4995
  %v5012 = vadd.f32 %v4996, %v1113
  %v5013 = vadd.f32 %v4997, %v1118
  %v5014 = vadd.f32 %v4998, %v1123
  %v5015 = vadd.f32 %v4999, %v1128
  %v5016 = vadd.f32 %v5000, %v1133
  %v5017 = vadd.f32 %v5001, %v1138
  %v5018 = vadd.f32 %v5002, %v1143
  %v5019 = vadd.f32 %v5003, %v1148
  %v5020 = vadd.f32 %v5004, %v1153
  %v5021 = vadd.f32 %v5005, %v1158
  %v5022 = vadd.f32 %v5006, %v1163
  %v5023 = vadd.f32 %v5007, %v1168
  %v5024 = vadd.f32 %v5008, %v1173
  %v5025 = vadd.f32 %v5009, %v1178
  %v5026 = vadd.f32 %v5010, %v1183
  %v5027 = vadd.f32 %v5011, %v1188
  %v5028 = vmax.f32 %v5012, 0.0
  %v5029 = vmax.f32 %v5013, 0.0
  %v5030 = vmax.f32 %v5014, 0.0
  %v5031 = vmax.f32 %v5015, 0.0
  %v5032 = vmax.f32 %v5016, 0.0
  %v5033 = vmax.f32 %v5017, 0.0
  %v5034 = vmax.f32 %v5018, 0.0
  %v5035 = vmax.f32 %v5019, 0.0
  %v5036 = vmax.f32 %v5020, 0.0
  %v5037 = vmax.f32 %v5021, 0.0
  %v5038 = vmax.f32 %v5022, 0.0
  %v5039 = vmax.f32 %v5023, 0.0
  %v5040 = vmax.f32 %v5024, 0.0
  %v5041 = vmax.f32 %v5025, 0.0
  %v5042 = vmax.f32 %v5026, 0.0
  %v5043 = vmax.f32 %v5027, 0.0
  %v5044 = vpack.c.bf16 %v5028, %v5028
  %v5045 = vpack.c.bf16 %v5029, %v5029
  %v5046 = vpack.c.bf16 %v5030, %v5030
  %v5047 = vpack.c.bf16 %v5031, %v5031
  %v5048 = vpack.c.bf16 %v5032, %v5032
  %v5049 = vpack.c.bf16 %v5033, %v5033
  %v5050 = vpack.c.bf16 %v5034, %v5034
  %v5051 = vpack.c.bf16 %v5035, %v5035
  %v5052 = vpack.c.bf16 %v5036, %v5036
  %v5053 = vpack.c.bf16 %v5037, %v5037
  %v5054 = vpack.c.bf16 %v5038, %v5038
  %v5055 = vpack.c.bf16 %v5039, %v5039
  %v5056 = vpack.c.bf16 %v5040, %v5040
  %v5057 = vpack.c.bf16 %v5041, %v5041
  %v5058 = vpack.c.bf16 %v5042, %v5042
  %v5059 = vpack.c.bf16 %v5043, %v5043
  %5060 = vst [vmem:[#allocation2 + $0x1c0] sm:$0xf] %v5044
  %5061 = vst [vmem:[#allocation2 + $0x1c4] sm:$0xf] %v5045
  %5062 = vst [vmem:[#allocation2 + $0x1c8] sm:$0xf] %v5046
  %5063 = vst [vmem:[#allocation2 + $0x1cc] sm:$0xf] %v5047
  %5064 = vst [vmem:[#allocation2 + $0x1d0] sm:$0xf] %v5048
  %5065 = vst [vmem:[#allocation2 + $0x1d4] sm:$0xf] %v5049
  %5066 = vst [vmem:[#allocation2 + $0x1d8] sm:$0xf] %v5050
  %5067 = vst [vmem:[#allocation2 + $0x1dc] sm:$0xf] %v5051
  %5068 = vst [vmem:[#allocation2 + $0x1e0] sm:$0xf] %v5052
  %5069 = vst [vmem:[#allocation2 + $0x1e4] sm:$0xf] %v5053
  %5070 = vst [vmem:[#allocation2 + $0x1e8] sm:$0xf] %v5054
  %5071 = vst [vmem:[#allocation2 + $0x1ec] sm:$0xf] %v5055
  %5072 = vst [vmem:[#allocation2 + $0x1f0] sm:$0xf] %v5056
  %5073 = vst [vmem:[#allocation2 + $0x1f4] sm:$0xf] %v5057
  %5074 = vst [vmem:[#allocation2 + $0x1f8] sm:$0xf] %v5058
  %5075 = vst [vmem:[#allocation2 + $0x1fc] sm:$0xf] %v5059
  %v5076 = vld [vmem:[%s0 + $0x100] sm:$0xf]
  %v5077 = vld [vmem:[%s0 + $0x104] sm:$0xf]
  %v5078 = vld [vmem:[%s0 + $0x108] sm:$0xf]
  %v5079 = vld [vmem:[%s0 + $0x10c] sm:$0xf]
  %v5080 = vld [vmem:[%s0 + $0x110] sm:$0xf]
  %v5081 = vld [vmem:[%s0 + $0x114] sm:$0xf]
  %v5082 = vld [vmem:[%s0 + $0x118] sm:$0xf]
  %v5083 = vld [vmem:[%s0 + $0x11c] sm:$0xf]
  %v5084 = vld [vmem:[%s0 + $0x120] sm:$0xf]
  %v5085 = vld [vmem:[%s0 + $0x124] sm:$0xf]
  %v5086 = vld [vmem:[%s0 + $0x128] sm:$0xf]
  %v5087 = vld [vmem:[%s0 + $0x12c] sm:$0xf]
  %v5088 = vld [vmem:[%s0 + $0x130] sm:$0xf]
  %v5089 = vld [vmem:[%s0 + $0x134] sm:$0xf]
  %v5090 = vld [vmem:[%s0 + $0x138] sm:$0xf]
  %v5091 = vld [vmem:[%s0 + $0x13c] sm:$0xf]
  %v5092 = vld [vmem:[%s0 + $0x140] sm:$0xf]
  %v5093 = vld [vmem:[%s0 + $0x144] sm:$0xf]
  %v5094 = vld [vmem:[%s0 + $0x148] sm:$0xf]
  %v5095 = vld [vmem:[%s0 + $0x14c] sm:$0xf]
  %v5096 = vld [vmem:[%s0 + $0x150] sm:$0xf]
  %v5097 = vld [vmem:[%s0 + $0x154] sm:$0xf]
  %v5098 = vld [vmem:[%s0 + $0x158] sm:$0xf]
  %v5099 = vld [vmem:[%s0 + $0x15c] sm:$0xf]
  %v5124 = vunpack.c.l.b16 %v5076
  %v5125 = vunpack.c.l.b16 %v5077
  %v5126 = vunpack.c.l.b16 %v5078
  %v5127 = vunpack.c.l.b16 %v5079
  %v5128 = vunpack.c.l.b16 %v5080
  %v5129 = vunpack.c.l.b16 %v5081
  %v5130 = vunpack.c.l.b16 %v5082
  %v5131 = vunpack.c.l.b16 %v5083
  %v5132 = vunpack.c.l.b16 %v5084
  %v5133 = vunpack.c.l.b16 %v5085
  %v5134 = vunpack.c.l.b16 %v5086
  %v5135 = vunpack.c.l.b16 %v5087
  %v5136 = vunpack.c.l.b16 %v5088
  %v5137 = vunpack.c.l.b16 %v5089
  %v5138 = vunpack.c.l.b16 %v5090
  %v5139 = vunpack.c.l.b16 %v5091
  %v5140 = vunpack.c.l.b16 %v5092
  %v5141 = vunpack.c.l.b16 %v5093
  %v5142 = vunpack.c.l.b16 %v5094
  %v5143 = vunpack.c.l.b16 %v5095
  %v5144 = vunpack.c.l.b16 %v5096
  %v5145 = vunpack.c.l.b16 %v5097
  %v5146 = vunpack.c.l.b16 %v5098
  %v5147 = vunpack.c.l.b16 %v5099
  %v5148 = vpack.c.b16 %v5125, %v5124
  %v5149 = vpack.c.b16 %v5127, %v5126
  %v5150 = vpack.c.b16 %v5129, %v5128
  %v5151 = vpack.c.b16 %v5131, %v5130
  %v5152 = vpack.c.b16 %v5133, %v5132
  %v5153 = vpack.c.b16 %v5135, %v5134
  %v5154 = vpack.c.b16 %v5137, %v5136
  %v5155 = vpack.c.b16 %v5139, %v5138
  %v5156 = vpack.c.b16 %v5141, %v5140
  %v5157 = vpack.c.b16 %v5143, %v5142
  %v5158 = vpack.c.b16 %v5145, %v5144
  %v5159 = vpack.c.b16 %v5147, %v5146
  %5172 = vmatpush.bf16.msra.mxu0 %v5155
  %5173 = vmatpush.bf16.msra.mxu0 %v5154
  %5174 = vmatpush.bf16.msra.mxu0 %v5153
  %5175 = vmatpush.bf16.msra.mxu0 %v5152
  %5176 = vmatpush.bf16.msra.mxu0 %v5151
  %5177 = vmatpush.bf16.msra.mxu0 %v5150
  %5178 = vmatpush.bf16.msra.mxu0 %v5149
  %5179 = vmatpush.bf16.msra.mxu0 %v5148
  %5180 = vmatmul.bf16.gmra.mxu0 %v459
  %v5181 = vpop.f32.mrf.mxu0
  %v5182 = vadd.f32 0.0, %v5181
  %v5183 = vpop.f32.mrf.mxu0
  %v5184 = vadd.f32 0.0, %v5183
  %5185 = vmatmul.bf16.gmra.mxu0 %v461
  %v5186 = vpop.f32.mrf.mxu0
  %v5187 = vadd.f32 0.0, %v5186
  %v5188 = vpop.f32.mrf.mxu0
  %v5189 = vadd.f32 0.0, %v5188
  %5190 = vmatmul.bf16.gmra.mxu0 %v463
  %v5191 = vpop.f32.mrf.mxu0
  %v5192 = vadd.f32 0.0, %v5191
  %v5193 = vpop.f32.mrf.mxu0
  %v5194 = vadd.f32 0.0, %v5193
  %5195 = vmatmul.bf16.gmra.mxu0 %v465
  %v5196 = vpop.f32.mrf.mxu0
  %v5197 = vadd.f32 0.0, %v5196
  %v5198 = vpop.f32.mrf.mxu0
  %v5199 = vadd.f32 0.0, %v5198
  %5200 = vmatmul.bf16.gmra.mxu0 %v467
  %v5201 = vpop.f32.mrf.mxu0
  %v5202 = vadd.f32 0.0, %v5201
  %v5203 = vpop.f32.mrf.mxu0
  %v5204 = vadd.f32 0.0, %v5203
  %5205 = vmatmul.bf16.gmra.mxu0 %v469
  %v5206 = vpop.f32.mrf.mxu0
  %v5207 = vadd.f32 0.0, %v5206
  %v5208 = vpop.f32.mrf.mxu0
  %v5209 = vadd.f32 0.0, %v5208
  %5210 = vmatmul.bf16.gmra.mxu0 %v471
  %v5211 = vpop.f32.mrf.mxu0
  %v5212 = vadd.f32 0.0, %v5211
  %v5213 = vpop.f32.mrf.mxu0
  %v5214 = vadd.f32 0.0, %v5213
  %5215 = vmatmul.bf16.gmra.mxu0 %v473
  %v5216 = vpop.f32.mrf.mxu0
  %v5217 = vadd.f32 0.0, %v5216
  %v5218 = vpop.f32.mrf.mxu0
  %v5219 = vadd.f32 0.0, %v5218
  %5220 = vmatmul.bf16.gmra.mxu0 %v475
  %v5221 = vpop.f32.mrf.mxu0
  %v5222 = vadd.f32 0.0, %v5221
  %v5223 = vpop.f32.mrf.mxu0
  %v5224 = vadd.f32 0.0, %v5223
  %5225 = vmatmul.bf16.gmra.mxu0 %v477
  %v5226 = vpop.f32.mrf.mxu0
  %v5227 = vadd.f32 0.0, %v5226
  %v5228 = vpop.f32.mrf.mxu0
  %v5229 = vadd.f32 0.0, %v5228
  %5230 = vmatmul.bf16.gmra.mxu0 %v479
  %v5231 = vpop.f32.mrf.mxu0
  %v5232 = vadd.f32 0.0, %v5231
  %v5233 = vpop.f32.mrf.mxu0
  %v5234 = vadd.f32 0.0, %v5233
  %5235 = vmatmul.bf16.gmra.mxu0 %v481
  %v5236 = vpop.f32.mrf.mxu0
  %v5237 = vadd.f32 0.0, %v5236
  %v5238 = vpop.f32.mrf.mxu0
  %v5239 = vadd.f32 0.0, %v5238
  %5240 = vmatmul.bf16.gmra.mxu0 %v483
  %v5241 = vpop.f32.mrf.mxu0
  %v5242 = vadd.f32 0.0, %v5241
  %v5243 = vpop.f32.mrf.mxu0
  %v5244 = vadd.f32 0.0, %v5243
  %5245 = vmatmul.bf16.gmra.mxu0 %v485
  %v5246 = vpop.f32.mrf.mxu0
  %v5247 = vadd.f32 0.0, %v5246
  %v5248 = vpop.f32.mrf.mxu0
  %v5249 = vadd.f32 0.0, %v5248
  %5250 = vmatmul.bf16.gmra.mxu0 %v487
  %v5251 = vpop.f32.mrf.mxu0
  %v5252 = vadd.f32 0.0, %v5251
  %v5253 = vpop.f32.mrf.mxu0
  %v5254 = vadd.f32 0.0, %v5253
  %5255 = vmatmul.bf16.gmra.mxu0 %v489
  %v5256 = vpop.f32.mrf.mxu0
  %v5257 = vadd.f32 0.0, %v5256
  %v5258 = vpop.f32.mrf.mxu0
  %v5259 = vadd.f32 0.0, %v5258
  %5260 = vmatmul.bf16.gmra.mxu0 %v491
  %v5261 = vpop.f32.mrf.mxu0
  %v5262 = vadd.f32 0.0, %v5261
  %v5263 = vpop.f32.mrf.mxu0
  %v5264 = vadd.f32 0.0, %v5263
  %5265 = vmatmul.bf16.gmra.mxu0 %v493
  %v5266 = vpop.f32.mrf.mxu0
  %v5267 = vadd.f32 0.0, %v5266
  %v5268 = vpop.f32.mrf.mxu0
  %v5269 = vadd.f32 0.0, %v5268
  %5270 = vmatmul.bf16.gmra.mxu0 %v495
  %v5271 = vpop.f32.mrf.mxu0
  %v5272 = vadd.f32 0.0, %v5271
  %v5273 = vpop.f32.mrf.mxu0
  %v5274 = vadd.f32 0.0, %v5273
  %5275 = vmatmul.bf16.gmra.mxu0 %v497
  %v5276 = vpop.f32.mrf.mxu0
  %v5277 = vadd.f32 0.0, %v5276
  %v5278 = vpop.f32.mrf.mxu0
  %v5279 = vadd.f32 0.0, %v5278
  %5280 = vmatmul.bf16.gmra.mxu0 %v499
  %v5281 = vpop.f32.mrf.mxu0
  %v5282 = vadd.f32 0.0, %v5281
  %v5283 = vpop.f32.mrf.mxu0
  %v5284 = vadd.f32 0.0, %v5283
  %5285 = vmatmul.bf16.gmra.mxu0 %v501
  %v5286 = vpop.f32.mrf.mxu0
  %v5287 = vadd.f32 0.0, %v5286
  %v5288 = vpop.f32.mrf.mxu0
  %v5289 = vadd.f32 0.0, %v5288
  %5290 = vmatmul.bf16.gmra.mxu0 %v503
  %v5291 = vpop.f32.mrf.mxu0
  %v5292 = vadd.f32 0.0, %v5291
  %v5293 = vpop.f32.mrf.mxu0
  %v5294 = vadd.f32 0.0, %v5293
  %5295 = vmatmul.bf16.gmra.mxu0 %v505
  %v5296 = vpop.f32.mrf.mxu0
  %v5297 = vadd.f32 0.0, %v5296
  %v5298 = vpop.f32.mrf.mxu0
  %v5299 = vadd.f32 0.0, %v5298
  %5300 = vmatmul.bf16.gmra.mxu0 %v507
  %v5301 = vpop.f32.mrf.mxu0
  %v5302 = vadd.f32 0.0, %v5301
  %v5303 = vpop.f32.mrf.mxu0
  %v5304 = vadd.f32 0.0, %v5303
  %5305 = vmatmul.bf16.gmra.mxu0 %v509
  %v5306 = vpop.f32.mrf.mxu0
  %v5307 = vadd.f32 0.0, %v5306
  %v5308 = vpop.f32.mrf.mxu0
  %v5309 = vadd.f32 0.0, %v5308
  %5310 = vmatmul.bf16.gmra.mxu0 %v511
  %v5311 = vpop.f32.mrf.mxu0
  %v5312 = vadd.f32 0.0, %v5311
  %v5313 = vpop.f32.mrf.mxu0
  %v5314 = vadd.f32 0.0, %v5313
  %5315 = vmatmul.bf16.gmra.mxu0 %v513
  %v5316 = vpop.f32.mrf.mxu0
  %v5317 = vadd.f32 0.0, %v5316
  %v5318 = vpop.f32.mrf.mxu0
  %v5319 = vadd.f32 0.0, %v5318
  %5320 = vmatmul.bf16.gmra.mxu0 %v515
  %v5321 = vpop.f32.mrf.mxu0
  %v5322 = vadd.f32 0.0, %v5321
  %v5323 = vpop.f32.mrf.mxu0
  %v5324 = vadd.f32 0.0, %v5323
  %5325 = vmatmul.bf16.gmra.mxu0 %v517
  %v5326 = vpop.f32.mrf.mxu0
  %v5327 = vadd.f32 0.0, %v5326
  %v5328 = vpop.f32.mrf.mxu0
  %v5329 = vadd.f32 0.0, %v5328
  %5330 = vmatmul.bf16.gmra.mxu0 %v519
  %v5331 = vpop.f32.mrf.mxu0
  %v5332 = vadd.f32 0.0, %v5331
  %v5333 = vpop.f32.mrf.mxu0
  %v5334 = vadd.f32 0.0, %v5333
  %5335 = vmatmul.bf16.gmra.mxu0 %v521
  %v5336 = vpop.f32.mrf.mxu0
  %v5337 = vadd.f32 0.0, %v5336
  %v5338 = vpop.f32.mrf.mxu0
  %v5339 = vadd.f32 0.0, %v5338
  %5340 = vdwg.mxu0
  %5341 = vmatpush.bf16.msra.mxu0 0
  %5342 = vmatpush.bf16.msra.mxu0 0
  %5343 = vmatpush.bf16.msra.mxu0 0
  %5344 = vmatpush.bf16.msra.mxu0 0
  %5345 = vmatpush.bf16.msra.mxu0 %v5159
  %5346 = vmatpush.bf16.msra.mxu0 %v5158
  %5347 = vmatpush.bf16.msra.mxu0 %v5157
  %5348 = vmatpush.bf16.msra.mxu0 %v5156
  %5349 = vmatmul.bf16.gmra.mxu0 %v629
  %v5350 = vpop.f32.mrf.mxu0
  %v5351 = vadd.f32 %v5182, %v5350
  %v5352 = vpop.f32.mrf.mxu0
  %v5353 = vadd.f32 %v5184, %v5352
  %5354 = vmatmul.bf16.gmra.mxu0 %v632
  %v5355 = vpop.f32.mrf.mxu0
  %v5356 = vadd.f32 %v5187, %v5355
  %v5357 = vpop.f32.mrf.mxu0
  %v5358 = vadd.f32 %v5189, %v5357
  %5359 = vmatmul.bf16.gmra.mxu0 %v635
  %v5360 = vpop.f32.mrf.mxu0
  %v5361 = vadd.f32 %v5192, %v5360
  %v5362 = vpop.f32.mrf.mxu0
  %v5363 = vadd.f32 %v5194, %v5362
  %5364 = vmatmul.bf16.gmra.mxu0 %v638
  %v5365 = vpop.f32.mrf.mxu0
  %v5366 = vadd.f32 %v5197, %v5365
  %v5367 = vpop.f32.mrf.mxu0
  %v5368 = vadd.f32 %v5199, %v5367
  %5369 = vmatmul.bf16.gmra.mxu0 %v641
  %v5370 = vpop.f32.mrf.mxu0
  %v5371 = vadd.f32 %v5202, %v5370
  %v5372 = vpop.f32.mrf.mxu0
  %v5373 = vadd.f32 %v5204, %v5372
  %5374 = vmatmul.bf16.gmra.mxu0 %v644
  %v5375 = vpop.f32.mrf.mxu0
  %v5376 = vadd.f32 %v5207, %v5375
  %v5377 = vpop.f32.mrf.mxu0
  %v5378 = vadd.f32 %v5209, %v5377
  %5379 = vmatmul.bf16.gmra.mxu0 %v647
  %v5380 = vpop.f32.mrf.mxu0
  %v5381 = vadd.f32 %v5212, %v5380
  %v5382 = vpop.f32.mrf.mxu0
  %v5383 = vadd.f32 %v5214, %v5382
  %5384 = vmatmul.bf16.gmra.mxu0 %v650
  %v5385 = vpop.f32.mrf.mxu0
  %v5386 = vadd.f32 %v5217, %v5385
  %v5387 = vpop.f32.mrf.mxu0
  %v5388 = vadd.f32 %v5219, %v5387
  %5389 = vmatmul.bf16.gmra.mxu0 %v653
  %v5390 = vpop.f32.mrf.mxu0
  %v5391 = vadd.f32 %v5222, %v5390
  %v5392 = vpop.f32.mrf.mxu0
  %v5393 = vadd.f32 %v5224, %v5392
  %5394 = vmatmul.bf16.gmra.mxu0 %v656
  %v5395 = vpop.f32.mrf.mxu0
  %v5396 = vadd.f32 %v5227, %v5395
  %v5397 = vpop.f32.mrf.mxu0
  %v5398 = vadd.f32 %v5229, %v5397
  %5399 = vmatmul.bf16.gmra.mxu0 %v659
  %v5400 = vpop.f32.mrf.mxu0
  %v5401 = vadd.f32 %v5232, %v5400
  %v5402 = vpop.f32.mrf.mxu0
  %v5403 = vadd.f32 %v5234, %v5402
  %5404 = vmatmul.bf16.gmra.mxu0 %v662
  %v5405 = vpop.f32.mrf.mxu0
  %v5406 = vadd.f32 %v5237, %v5405
  %v5407 = vpop.f32.mrf.mxu0
  %v5408 = vadd.f32 %v5239, %v5407
  %5409 = vmatmul.bf16.gmra.mxu0 %v665
  %v5410 = vpop.f32.mrf.mxu0
  %v5411 = vadd.f32 %v5242, %v5410
  %v5412 = vpop.f32.mrf.mxu0
  %v5413 = vadd.f32 %v5244, %v5412
  %5414 = vmatmul.bf16.gmra.mxu0 %v668
  %v5415 = vpop.f32.mrf.mxu0
  %v5416 = vadd.f32 %v5247, %v5415
  %v5417 = vpop.f32.mrf.mxu0
  %v5418 = vadd.f32 %v5249, %v5417
  %5419 = vmatmul.bf16.gmra.mxu0 %v671
  %v5420 = vpop.f32.mrf.mxu0
  %v5421 = vadd.f32 %v5252, %v5420
  %v5422 = vpop.f32.mrf.mxu0
  %v5423 = vadd.f32 %v5254, %v5422
  %5424 = vmatmul.bf16.gmra.mxu0 %v674
  %v5425 = vpop.f32.mrf.mxu0
  %v5426 = vadd.f32 %v5257, %v5425
  %v5427 = vpop.f32.mrf.mxu0
  %v5428 = vadd.f32 %v5259, %v5427
  %5429 = vmatmul.bf16.gmra.mxu0 %v677
  %v5430 = vpop.f32.mrf.mxu0
  %v5431 = vadd.f32 %v5262, %v5430
  %v5432 = vpop.f32.mrf.mxu0
  %v5433 = vadd.f32 %v5264, %v5432
  %5434 = vmatmul.bf16.gmra.mxu0 %v680
  %v5435 = vpop.f32.mrf.mxu0
  %v5436 = vadd.f32 %v5267, %v5435
  %v5437 = vpop.f32.mrf.mxu0
  %v5438 = vadd.f32 %v5269, %v5437
  %5439 = vmatmul.bf16.gmra.mxu0 %v683
  %v5440 = vpop.f32.mrf.mxu0
  %v5441 = vadd.f32 %v5272, %v5440
  %v5442 = vpop.f32.mrf.mxu0
  %v5443 = vadd.f32 %v5274, %v5442
  %5444 = vmatmul.bf16.gmra.mxu0 %v686
  %v5445 = vpop.f32.mrf.mxu0
  %v5446 = vadd.f32 %v5277, %v5445
  %v5447 = vpop.f32.mrf.mxu0
  %v5448 = vadd.f32 %v5279, %v5447
  %5449 = vmatmul.bf16.gmra.mxu0 %v689
  %v5450 = vpop.f32.mrf.mxu0
  %v5451 = vadd.f32 %v5282, %v5450
  %v5452 = vpop.f32.mrf.mxu0
  %v5453 = vadd.f32 %v5284, %v5452
  %5454 = vmatmul.bf16.gmra.mxu0 %v692
  %v5455 = vpop.f32.mrf.mxu0
  %v5456 = vadd.f32 %v5287, %v5455
  %v5457 = vpop.f32.mrf.mxu0
  %v5458 = vadd.f32 %v5289, %v5457
  %5459 = vmatmul.bf16.gmra.mxu0 %v695
  %v5460 = vpop.f32.mrf.mxu0
  %v5461 = vadd.f32 %v5292, %v5460
  %v5462 = vpop.f32.mrf.mxu0
  %v5463 = vadd.f32 %v5294, %v5462
  %5464 = vmatmul.bf16.gmra.mxu0 %v698
  %v5465 = vpop.f32.mrf.mxu0
  %v5466 = vadd.f32 %v5297, %v5465
  %v5467 = vpop.f32.mrf.mxu0
  %v5468 = vadd.f32 %v5299, %v5467
  %5469 = vmatmul.bf16.gmra.mxu0 %v701
  %v5470 = vpop.f32.mrf.mxu0
  %v5471 = vadd.f32 %v5302, %v5470
  %v5472 = vpop.f32.mrf.mxu0
  %v5473 = vadd.f32 %v5304, %v5472
  %5474 = vmatmul.bf16.gmra.mxu0 %v704
  %v5475 = vpop.f32.mrf.mxu0
  %v5476 = vadd.f32 %v5307, %v5475
  %v5477 = vpop.f32.mrf.mxu0
  %v5478 = vadd.f32 %v5309, %v5477
  %5479 = vmatmul.bf16.gmra.mxu0 %v707
  %v5480 = vpop.f32.mrf.mxu0
  %v5481 = vadd.f32 %v5312, %v5480
  %v5482 = vpop.f32.mrf.mxu0
  %v5483 = vadd.f32 %v5314, %v5482
  %5484 = vmatmul.bf16.gmra.mxu0 %v710
  %v5485 = vpop.f32.mrf.mxu0
  %v5486 = vadd.f32 %v5317, %v5485
  %v5487 = vpop.f32.mrf.mxu0
  %v5488 = vadd.f32 %v5319, %v5487
  %5489 = vmatmul.bf16.gmra.mxu0 %v713
  %v5490 = vpop.f32.mrf.mxu0
  %v5491 = vadd.f32 %v5322, %v5490
  %v5492 = vpop.f32.mrf.mxu0
  %v5493 = vadd.f32 %v5324, %v5492
  %5494 = vmatmul.bf16.gmra.mxu0 %v716
  %v5495 = vpop.f32.mrf.mxu0
  %v5496 = vadd.f32 %v5327, %v5495
  %v5497 = vpop.f32.mrf.mxu0
  %v5498 = vadd.f32 %v5329, %v5497
  %5499 = vmatmul.bf16.gmra.mxu0 %v719
  %v5500 = vpop.f32.mrf.mxu0
  %v5501 = vadd.f32 %v5332, %v5500
  %v5502 = vpop.f32.mrf.mxu0
  %v5503 = vadd.f32 %v5334, %v5502
  %5504 = vmatmul.bf16.gmra.mxu0 %v722
  %v5505 = vpop.f32.mrf.mxu0
  %v5506 = vadd.f32 %v5337, %v5505
  %v5507 = vpop.f32.mrf.mxu0
  %v5508 = vadd.f32 %v5339, %v5507
  %5509 = vdwg.mxu0
  %v5510 = vmax.f32 %v5351, %v5431
  %v5511 = vmax.f32 %v5353, %v5433
  %v5512 = vmax.f32 %v5356, %v5436
  %v5513 = vmax.f32 %v5358, %v5438
  %v5514 = vmax.f32 %v5361, %v5441
  %v5515 = vmax.f32 %v5363, %v5443
  %v5516 = vmax.f32 %v5366, %v5446
  %v5517 = vmax.f32 %v5368, %v5448
  %v5518 = vmax.f32 %v5371, %v5451
  %v5519 = vmax.f32 %v5373, %v5453
  %v5520 = vmax.f32 %v5376, %v5456
  %v5521 = vmax.f32 %v5378, %v5458
  %v5522 = vmax.f32 %v5381, %v5461
  %v5523 = vmax.f32 %v5383, %v5463
  %v5524 = vmax.f32 %v5386, %v5466
  %v5525 = vmax.f32 %v5388, %v5468
  %v5526 = vmax.f32 %v5391, %v5471
  %v5527 = vmax.f32 %v5393, %v5473
  %v5528 = vmax.f32 %v5396, %v5476
  %v5529 = vmax.f32 %v5398, %v5478
  %v5530 = vmax.f32 %v5401, %v5481
  %v5531 = vmax.f32 %v5403, %v5483
  %v5532 = vmax.f32 %v5406, %v5486
  %v5533 = vmax.f32 %v5408, %v5488
  %v5534 = vmax.f32 %v5411, %v5491
  %v5535 = vmax.f32 %v5413, %v5493
  %v5536 = vmax.f32 %v5416, %v5496
  %v5537 = vmax.f32 %v5418, %v5498
  %v5538 = vmax.f32 %v5421, %v5501
  %v5539 = vmax.f32 %v5423, %v5503
  %v5540 = vmax.f32 %v5426, %v5506
  %v5541 = vmax.f32 %v5428, %v5508
  %v5542 = vmax.f32 %v5510, %v5526
  %v5543 = vmax.f32 %v5511, %v5527
  %v5544 = vmax.f32 %v5512, %v5528
  %v5545 = vmax.f32 %v5513, %v5529
  %v5546 = vmax.f32 %v5514, %v5530
  %v5547 = vmax.f32 %v5515, %v5531
  %v5548 = vmax.f32 %v5516, %v5532
  %v5549 = vmax.f32 %v5517, %v5533
  %v5550 = vmax.f32 %v5518, %v5534
  %v5551 = vmax.f32 %v5519, %v5535
  %v5552 = vmax.f32 %v5520, %v5536
  %v5553 = vmax.f32 %v5521, %v5537
  %v5554 = vmax.f32 %v5522, %v5538
  %v5555 = vmax.f32 %v5523, %v5539
  %v5556 = vmax.f32 %v5524, %v5540
  %v5557 = vmax.f32 %v5525, %v5541
  %v5558 = vadd.f32 %v5542, %v1113
  %v5559 = vadd.f32 %v5543, %v1118
  %v5560 = vadd.f32 %v5544, %v1123
  %v5561 = vadd.f32 %v5545, %v1128
  %v5562 = vadd.f32 %v5546, %v1133
  %v5563 = vadd.f32 %v5547, %v1138
  %v5564 = vadd.f32 %v5548, %v1143
  %v5565 = vadd.f32 %v5549, %v1148
  %v5566 = vadd.f32 %v5550, %v1153
  %v5567 = vadd.f32 %v5551, %v1158
  %v5568 = vadd.f32 %v5552, %v1163
  %v5569 = vadd.f32 %v5553, %v1168
  %v5570 = vadd.f32 %v5554, %v1173
  %v5571 = vadd.f32 %v5555, %v1178
  %v5572 = vadd.f32 %v5556, %v1183
  %v5573 = vadd.f32 %v5557, %v1188
  %v5574 = vmax.f32 %v5558, 0.0
  %v5575 = vmax.f32 %v5559, 0.0
  %v5576 = vmax.f32 %v5560, 0.0
  %v5577 = vmax.f32 %v5561, 0.0
  %v5578 = vmax.f32 %v5562, 0.0
  %v5579 = vmax.f32 %v5563, 0.0
  %v5580 = vmax.f32 %v5564, 0.0
  %v5581 = vmax.f32 %v5565, 0.0
  %v5582 = vmax.f32 %v5566, 0.0
  %v5583 = vmax.f32 %v5567, 0.0
  %v5584 = vmax.f32 %v5568, 0.0
  %v5585 = vmax.f32 %v5569, 0.0
  %v5586 = vmax.f32 %v5570, 0.0
  %v5587 = vmax.f32 %v5571, 0.0
  %v5588 = vmax.f32 %v5572, 0.0
  %v5589 = vmax.f32 %v5573, 0.0
  %v5590 = vpack.c.bf16 %v5574, %v5574
  %v5591 = vpack.c.bf16 %v5575, %v5575
  %v5592 = vpack.c.bf16 %v5576, %v5576
  %v5593 = vpack.c.bf16 %v5577, %v5577
  %v5594 = vpack.c.bf16 %v5578, %v5578
  %v5595 = vpack.c.bf16 %v5579, %v5579
  %v5596 = vpack.c.bf16 %v5580, %v5580
  %v5597 = vpack.c.bf16 %v5581, %v5581
  %v5598 = vpack.c.bf16 %v5582, %v5582
  %v5599 = vpack.c.bf16 %v5583, %v5583
  %v5600 = vpack.c.bf16 %v5584, %v5584
  %v5601 = vpack.c.bf16 %v5585, %v5585
  %v5602 = vpack.c.bf16 %v5586, %v5586
  %v5603 = vpack.c.bf16 %v5587, %v5587
  %v5604 = vpack.c.bf16 %v5588, %v5588
  %v5605 = vpack.c.bf16 %v5589, %v5589
  %5606 = vst [vmem:[#allocation2 + $0x200] sm:$0xf] %v5590
  %5607 = vst [vmem:[#allocation2 + $0x204] sm:$0xf] %v5591
  %5608 = vst [vmem:[#allocation2 + $0x208] sm:$0xf] %v5592
  %5609 = vst [vmem:[#allocation2 + $0x20c] sm:$0xf] %v5593
  %5610 = vst [vmem:[#allocation2 + $0x210] sm:$0xf] %v5594
  %5611 = vst [vmem:[#allocation2 + $0x214] sm:$0xf] %v5595
  %5612 = vst [vmem:[#allocation2 + $0x218] sm:$0xf] %v5596
  %5613 = vst [vmem:[#allocation2 + $0x21c] sm:$0xf] %v5597
  %5614 = vst [vmem:[#allocation2 + $0x220] sm:$0xf] %v5598
  %5615 = vst [vmem:[#allocation2 + $0x224] sm:$0xf] %v5599
  %5616 = vst [vmem:[#allocation2 + $0x228] sm:$0xf] %v5600
  %5617 = vst [vmem:[#allocation2 + $0x22c] sm:$0xf] %v5601
  %5618 = vst [vmem:[#allocation2 + $0x230] sm:$0xf] %v5602
  %5619 = vst [vmem:[#allocation2 + $0x234] sm:$0xf] %v5603
  %5620 = vst [vmem:[#allocation2 + $0x238] sm:$0xf] %v5604
  %5621 = vst [vmem:[#allocation2 + $0x23c] sm:$0xf] %v5605
  %v5622 = vld [vmem:[%s0 + $0x120] sm:$0xf]
  %v5623 = vld [vmem:[%s0 + $0x124] sm:$0xf]
  %v5624 = vld [vmem:[%s0 + $0x128] sm:$0xf]
  %v5625 = vld [vmem:[%s0 + $0x12c] sm:$0xf]
  %v5626 = vld [vmem:[%s0 + $0x130] sm:$0xf]
  %v5627 = vld [vmem:[%s0 + $0x134] sm:$0xf]
  %v5628 = vld [vmem:[%s0 + $0x138] sm:$0xf]
  %v5629 = vld [vmem:[%s0 + $0x13c] sm:$0xf]
  %v5630 = vld [vmem:[%s0 + $0x140] sm:$0xf]
  %v5631 = vld [vmem:[%s0 + $0x144] sm:$0xf]
  %v5632 = vld [vmem:[%s0 + $0x148] sm:$0xf]
  %v5633 = vld [vmem:[%s0 + $0x14c] sm:$0xf]
  %v5634 = vld [vmem:[%s0 + $0x150] sm:$0xf]
  %v5635 = vld [vmem:[%s0 + $0x154] sm:$0xf]
  %v5636 = vld [vmem:[%s0 + $0x158] sm:$0xf]
  %v5637 = vld [vmem:[%s0 + $0x15c] sm:$0xf]
  %v5638 = vld [vmem:[%s0 + $0x160] sm:$0xf]
  %v5639 = vld [vmem:[%s0 + $0x164] sm:$0xf]
  %v5640 = vld [vmem:[%s0 + $0x168] sm:$0xf]
  %v5641 = vld [vmem:[%s0 + $0x16c] sm:$0xf]
  %v5642 = vld [vmem:[%s0 + $0x170] sm:$0xf]
  %v5643 = vld [vmem:[%s0 + $0x174] sm:$0xf]
  %v5644 = vld [vmem:[%s0 + $0x178] sm:$0xf]
  %v5645 = vld [vmem:[%s0 + $0x17c] sm:$0xf]
  %v5670 = vunpack.c.l.b16 %v5622
  %v5671 = vunpack.c.l.b16 %v5623
  %v5672 = vunpack.c.l.b16 %v5624
  %v5673 = vunpack.c.l.b16 %v5625
  %v5674 = vunpack.c.l.b16 %v5626
  %v5675 = vunpack.c.l.b16 %v5627
  %v5676 = vunpack.c.l.b16 %v5628
  %v5677 = vunpack.c.l.b16 %v5629
  %v5678 = vunpack.c.l.b16 %v5630
  %v5679 = vunpack.c.l.b16 %v5631
  %v5680 = vunpack.c.l.b16 %v5632
  %v5681 = vunpack.c.l.b16 %v5633
  %v5682 = vunpack.c.l.b16 %v5634
  %v5683 = vunpack.c.l.b16 %v5635
  %v5684 = vunpack.c.l.b16 %v5636
  %v5685 = vunpack.c.l.b16 %v5637
  %v5686 = vunpack.c.l.b16 %v5638
  %v5687 = vunpack.c.l.b16 %v5639
  %v5688 = vunpack.c.l.b16 %v5640
  %v5689 = vunpack.c.l.b16 %v5641
  %v5690 = vunpack.c.l.b16 %v5642
  %v5691 = vunpack.c.l.b16 %v5643
  %v5692 = vunpack.c.l.b16 %v5644
  %v5693 = vunpack.c.l.b16 %v5645
  %v5694 = vpack.c.b16 %v5671, %v5670
  %v5695 = vpack.c.b16 %v5673, %v5672
  %v5696 = vpack.c.b16 %v5675, %v5674
  %v5697 = vpack.c.b16 %v5677, %v5676
  %v5698 = vpack.c.b16 %v5679, %v5678
  %v5699 = vpack.c.b16 %v5681, %v5680
  %v5700 = vpack.c.b16 %v5683, %v5682
  %v5701 = vpack.c.b16 %v5685, %v5684
  %v5702 = vpack.c.b16 %v5687, %v5686
  %v5703 = vpack.c.b16 %v5689, %v5688
  %v5704 = vpack.c.b16 %v5691, %v5690
  %v5705 = vpack.c.b16 %v5693, %v5692
  %5718 = vmatpush.bf16.msra.mxu0 %v5701
  %5719 = vmatpush.bf16.msra.mxu0 %v5700
  %5720 = vmatpush.bf16.msra.mxu0 %v5699
  %5721 = vmatpush.bf16.msra.mxu0 %v5698
  %5722 = vmatpush.bf16.msra.mxu0 %v5697
  %5723 = vmatpush.bf16.msra.mxu0 %v5696
  %5724 = vmatpush.bf16.msra.mxu0 %v5695
  %5725 = vmatpush.bf16.msra.mxu0 %v5694
  %5726 = vmatmul.bf16.gmra.mxu0 %v459
  %v5727 = vpop.f32.mrf.mxu0
  %v5728 = vadd.f32 0.0, %v5727
  %v5729 = vpop.f32.mrf.mxu0
  %v5730 = vadd.f32 0.0, %v5729
  %5731 = vmatmul.bf16.gmra.mxu0 %v461
  %v5732 = vpop.f32.mrf.mxu0
  %v5733 = vadd.f32 0.0, %v5732
  %v5734 = vpop.f32.mrf.mxu0
  %v5735 = vadd.f32 0.0, %v5734
  %5736 = vmatmul.bf16.gmra.mxu0 %v463
  %v5737 = vpop.f32.mrf.mxu0
  %v5738 = vadd.f32 0.0, %v5737
  %v5739 = vpop.f32.mrf.mxu0
  %v5740 = vadd.f32 0.0, %v5739
  %5741 = vmatmul.bf16.gmra.mxu0 %v465
  %v5742 = vpop.f32.mrf.mxu0
  %v5743 = vadd.f32 0.0, %v5742
  %v5744 = vpop.f32.mrf.mxu0
  %v5745 = vadd.f32 0.0, %v5744
  %5746 = vmatmul.bf16.gmra.mxu0 %v467
  %v5747 = vpop.f32.mrf.mxu0
  %v5748 = vadd.f32 0.0, %v5747
  %v5749 = vpop.f32.mrf.mxu0
  %v5750 = vadd.f32 0.0, %v5749
  %5751 = vmatmul.bf16.gmra.mxu0 %v469
  %v5752 = vpop.f32.mrf.mxu0
  %v5753 = vadd.f32 0.0, %v5752
  %v5754 = vpop.f32.mrf.mxu0
  %v5755 = vadd.f32 0.0, %v5754
  %5756 = vmatmul.bf16.gmra.mxu0 %v471
  %v5757 = vpop.f32.mrf.mxu0
  %v5758 = vadd.f32 0.0, %v5757
  %v5759 = vpop.f32.mrf.mxu0
  %v5760 = vadd.f32 0.0, %v5759
  %5761 = vmatmul.bf16.gmra.mxu0 %v473
  %v5762 = vpop.f32.mrf.mxu0
  %v5763 = vadd.f32 0.0, %v5762
  %v5764 = vpop.f32.mrf.mxu0
  %v5765 = vadd.f32 0.0, %v5764
  %5766 = vmatmul.bf16.gmra.mxu0 %v475
  %v5767 = vpop.f32.mrf.mxu0
  %v5768 = vadd.f32 0.0, %v5767
  %v5769 = vpop.f32.mrf.mxu0
  %v5770 = vadd.f32 0.0, %v5769
  %5771 = vmatmul.bf16.gmra.mxu0 %v477
  %v5772 = vpop.f32.mrf.mxu0
  %v5773 = vadd.f32 0.0, %v5772
  %v5774 = vpop.f32.mrf.mxu0
  %v5775 = vadd.f32 0.0, %v5774
  %5776 = vmatmul.bf16.gmra.mxu0 %v479
  %v5777 = vpop.f32.mrf.mxu0
  %v5778 = vadd.f32 0.0, %v5777
  %v5779 = vpop.f32.mrf.mxu0
  %v5780 = vadd.f32 0.0, %v5779
  %5781 = vmatmul.bf16.gmra.mxu0 %v481
  %v5782 = vpop.f32.mrf.mxu0
  %v5783 = vadd.f32 0.0, %v5782
  %v5784 = vpop.f32.mrf.mxu0
  %v5785 = vadd.f32 0.0, %v5784
  %5786 = vmatmul.bf16.gmra.mxu0 %v483
  %v5787 = vpop.f32.mrf.mxu0
  %v5788 = vadd.f32 0.0, %v5787
  %v5789 = vpop.f32.mrf.mxu0
  %v5790 = vadd.f32 0.0, %v5789
  %5791 = vmatmul.bf16.gmra.mxu0 %v485
  %v5792 = vpop.f32.mrf.mxu0
  %v5793 = vadd.f32 0.0, %v5792
  %v5794 = vpop.f32.mrf.mxu0
  %v5795 = vadd.f32 0.0, %v5794
  %5796 = vmatmul.bf16.gmra.mxu0 %v487
  %v5797 = vpop.f32.mrf.mxu0
  %v5798 = vadd.f32 0.0, %v5797
  %v5799 = vpop.f32.mrf.mxu0
  %v5800 = vadd.f32 0.0, %v5799
  %5801 = vmatmul.bf16.gmra.mxu0 %v489
  %v5802 = vpop.f32.mrf.mxu0
  %v5803 = vadd.f32 0.0, %v5802
  %v5804 = vpop.f32.mrf.mxu0
  %v5805 = vadd.f32 0.0, %v5804
  %5806 = vmatmul.bf16.gmra.mxu0 %v491
  %v5807 = vpop.f32.mrf.mxu0
  %v5808 = vadd.f32 0.0, %v5807
  %v5809 = vpop.f32.mrf.mxu0
  %v5810 = vadd.f32 0.0, %v5809
  %5811 = vmatmul.bf16.gmra.mxu0 %v493
  %v5812 = vpop.f32.mrf.mxu0
  %v5813 = vadd.f32 0.0, %v5812
  %v5814 = vpop.f32.mrf.mxu0
  %v5815 = vadd.f32 0.0, %v5814
  %5816 = vmatmul.bf16.gmra.mxu0 %v495
  %v5817 = vpop.f32.mrf.mxu0
  %v5818 = vadd.f32 0.0, %v5817
  %v5819 = vpop.f32.mrf.mxu0
  %v5820 = vadd.f32 0.0, %v5819
  %5821 = vmatmul.bf16.gmra.mxu0 %v497
  %v5822 = vpop.f32.mrf.mxu0
  %v5823 = vadd.f32 0.0, %v5822
  %v5824 = vpop.f32.mrf.mxu0
  %v5825 = vadd.f32 0.0, %v5824
  %5826 = vmatmul.bf16.gmra.mxu0 %v499
  %v5827 = vpop.f32.mrf.mxu0
  %v5828 = vadd.f32 0.0, %v5827
  %v5829 = vpop.f32.mrf.mxu0
  %v5830 = vadd.f32 0.0, %v5829
  %5831 = vmatmul.bf16.gmra.mxu0 %v501
  %v5832 = vpop.f32.mrf.mxu0
  %v5833 = vadd.f32 0.0, %v5832
  %v5834 = vpop.f32.mrf.mxu0
  %v5835 = vadd.f32 0.0, %v5834
  %5836 = vmatmul.bf16.gmra.mxu0 %v503
  %v5837 = vpop.f32.mrf.mxu0
  %v5838 = vadd.f32 0.0, %v5837
  %v5839 = vpop.f32.mrf.mxu0
  %v5840 = vadd.f32 0.0, %v5839
  %5841 = vmatmul.bf16.gmra.mxu0 %v505
  %v5842 = vpop.f32.mrf.mxu0
  %v5843 = vadd.f32 0.0, %v5842
  %v5844 = vpop.f32.mrf.mxu0
  %v5845 = vadd.f32 0.0, %v5844
  %5846 = vmatmul.bf16.gmra.mxu0 %v507
  %v5847 = vpop.f32.mrf.mxu0
  %v5848 = vadd.f32 0.0, %v5847
  %v5849 = vpop.f32.mrf.mxu0
  %v5850 = vadd.f32 0.0, %v5849
  %5851 = vmatmul.bf16.gmra.mxu0 %v509
  %v5852 = vpop.f32.mrf.mxu0
  %v5853 = vadd.f32 0.0, %v5852
  %v5854 = vpop.f32.mrf.mxu0
  %v5855 = vadd.f32 0.0, %v5854
  %5856 = vmatmul.bf16.gmra.mxu0 %v511
  %v5857 = vpop.f32.mrf.mxu0
  %v5858 = vadd.f32 0.0, %v5857
  %v5859 = vpop.f32.mrf.mxu0
  %v5860 = vadd.f32 0.0, %v5859
  %5861 = vmatmul.bf16.gmra.mxu0 %v513
  %v5862 = vpop.f32.mrf.mxu0
  %v5863 = vadd.f32 0.0, %v5862
  %v5864 = vpop.f32.mrf.mxu0
  %v5865 = vadd.f32 0.0, %v5864
  %5866 = vmatmul.bf16.gmra.mxu0 %v515
  %v5867 = vpop.f32.mrf.mxu0
  %v5868 = vadd.f32 0.0, %v5867
  %v5869 = vpop.f32.mrf.mxu0
  %v5870 = vadd.f32 0.0, %v5869
  %5871 = vmatmul.bf16.gmra.mxu0 %v517
  %v5872 = vpop.f32.mrf.mxu0
  %v5873 = vadd.f32 0.0, %v5872
  %v5874 = vpop.f32.mrf.mxu0
  %v5875 = vadd.f32 0.0, %v5874
  %5876 = vmatmul.bf16.gmra.mxu0 %v519
  %v5877 = vpop.f32.mrf.mxu0
  %v5878 = vadd.f32 0.0, %v5877
  %v5879 = vpop.f32.mrf.mxu0
  %v5880 = vadd.f32 0.0, %v5879
  %5881 = vmatmul.bf16.gmra.mxu0 %v521
  %v5882 = vpop.f32.mrf.mxu0
  %v5883 = vadd.f32 0.0, %v5882
  %v5884 = vpop.f32.mrf.mxu0
  %v5885 = vadd.f32 0.0, %v5884
  %5886 = vdwg.mxu0
  %5887 = vmatpush.bf16.msra.mxu0 0
  %5888 = vmatpush.bf16.msra.mxu0 0
  %5889 = vmatpush.bf16.msra.mxu0 0
  %5890 = vmatpush.bf16.msra.mxu0 0
  %5891 = vmatpush.bf16.msra.mxu0 %v5705
  %5892 = vmatpush.bf16.msra.mxu0 %v5704
  %5893 = vmatpush.bf16.msra.mxu0 %v5703
  %5894 = vmatpush.bf16.msra.mxu0 %v5702
  %5895 = vmatmul.bf16.gmra.mxu0 %v629
  %v5896 = vpop.f32.mrf.mxu0
  %v5897 = vadd.f32 %v5728, %v5896
  %v5898 = vpop.f32.mrf.mxu0
  %v5899 = vadd.f32 %v5730, %v5898
  %5900 = vmatmul.bf16.gmra.mxu0 %v632
  %v5901 = vpop.f32.mrf.mxu0
  %v5902 = vadd.f32 %v5733, %v5901
  %v5903 = vpop.f32.mrf.mxu0
  %v5904 = vadd.f32 %v5735, %v5903
  %5905 = vmatmul.bf16.gmra.mxu0 %v635
  %v5906 = vpop.f32.mrf.mxu0
  %v5907 = vadd.f32 %v5738, %v5906
  %v5908 = vpop.f32.mrf.mxu0
  %v5909 = vadd.f32 %v5740, %v5908
  %5910 = vmatmul.bf16.gmra.mxu0 %v638
  %v5911 = vpop.f32.mrf.mxu0
  %v5912 = vadd.f32 %v5743, %v5911
  %v5913 = vpop.f32.mrf.mxu0
  %v5914 = vadd.f32 %v5745, %v5913
  %5915 = vmatmul.bf16.gmra.mxu0 %v641
  %v5916 = vpop.f32.mrf.mxu0
  %v5917 = vadd.f32 %v5748, %v5916
  %v5918 = vpop.f32.mrf.mxu0
  %v5919 = vadd.f32 %v5750, %v5918
  %5920 = vmatmul.bf16.gmra.mxu0 %v644
  %v5921 = vpop.f32.mrf.mxu0
  %v5922 = vadd.f32 %v5753, %v5921
  %v5923 = vpop.f32.mrf.mxu0
  %v5924 = vadd.f32 %v5755, %v5923
  %5925 = vmatmul.bf16.gmra.mxu0 %v647
  %v5926 = vpop.f32.mrf.mxu0
  %v5927 = vadd.f32 %v5758, %v5926
  %v5928 = vpop.f32.mrf.mxu0
  %v5929 = vadd.f32 %v5760, %v5928
  %5930 = vmatmul.bf16.gmra.mxu0 %v650
  %v5931 = vpop.f32.mrf.mxu0
  %v5932 = vadd.f32 %v5763, %v5931
  %v5933 = vpop.f32.mrf.mxu0
  %v5934 = vadd.f32 %v5765, %v5933
  %5935 = vmatmul.bf16.gmra.mxu0 %v653
  %v5936 = vpop.f32.mrf.mxu0
  %v5937 = vadd.f32 %v5768, %v5936
  %v5938 = vpop.f32.mrf.mxu0
  %v5939 = vadd.f32 %v5770, %v5938
  %5940 = vmatmul.bf16.gmra.mxu0 %v656
  %v5941 = vpop.f32.mrf.mxu0
  %v5942 = vadd.f32 %v5773, %v5941
  %v5943 = vpop.f32.mrf.mxu0
  %v5944 = vadd.f32 %v5775, %v5943
  %5945 = vmatmul.bf16.gmra.mxu0 %v659
  %v5946 = vpop.f32.mrf.mxu0
  %v5947 = vadd.f32 %v5778, %v5946
  %v5948 = vpop.f32.mrf.mxu0
  %v5949 = vadd.f32 %v5780, %v5948
  %5950 = vmatmul.bf16.gmra.mxu0 %v662
  %v5951 = vpop.f32.mrf.mxu0
  %v5952 = vadd.f32 %v5783, %v5951
  %v5953 = vpop.f32.mrf.mxu0
  %v5954 = vadd.f32 %v5785, %v5953
  %5955 = vmatmul.bf16.gmra.mxu0 %v665
  %v5956 = vpop.f32.mrf.mxu0
  %v5957 = vadd.f32 %v5788, %v5956
  %v5958 = vpop.f32.mrf.mxu0
  %v5959 = vadd.f32 %v5790, %v5958
  %5960 = vmatmul.bf16.gmra.mxu0 %v668
  %v5961 = vpop.f32.mrf.mxu0
  %v5962 = vadd.f32 %v5793, %v5961
  %v5963 = vpop.f32.mrf.mxu0
  %v5964 = vadd.f32 %v5795, %v5963
  %5965 = vmatmul.bf16.gmra.mxu0 %v671
  %v5966 = vpop.f32.mrf.mxu0
  %v5967 = vadd.f32 %v5798, %v5966
  %v5968 = vpop.f32.mrf.mxu0
  %v5969 = vadd.f32 %v5800, %v5968
  %5970 = vmatmul.bf16.gmra.mxu0 %v674
  %v5971 = vpop.f32.mrf.mxu0
  %v5972 = vadd.f32 %v5803, %v5971
  %v5973 = vpop.f32.mrf.mxu0
  %v5974 = vadd.f32 %v5805, %v5973
  %5975 = vmatmul.bf16.gmra.mxu0 %v677
  %v5976 = vpop.f32.mrf.mxu0
  %v5977 = vadd.f32 %v5808, %v5976
  %v5978 = vpop.f32.mrf.mxu0
  %v5979 = vadd.f32 %v5810, %v5978
  %5980 = vmatmul.bf16.gmra.mxu0 %v680
  %v5981 = vpop.f32.mrf.mxu0
  %v5982 = vadd.f32 %v5813, %v5981
  %v5983 = vpop.f32.mrf.mxu0
  %v5984 = vadd.f32 %v5815, %v5983
  %5985 = vmatmul.bf16.gmra.mxu0 %v683
  %v5986 = vpop.f32.mrf.mxu0
  %v5987 = vadd.f32 %v5818, %v5986
  %v5988 = vpop.f32.mrf.mxu0
  %v5989 = vadd.f32 %v5820, %v5988
  %5990 = vmatmul.bf16.gmra.mxu0 %v686
  %v5991 = vpop.f32.mrf.mxu0
  %v5992 = vadd.f32 %v5823, %v5991
  %v5993 = vpop.f32.mrf.mxu0
  %v5994 = vadd.f32 %v5825, %v5993
  %5995 = vmatmul.bf16.gmra.mxu0 %v689
  %v5996 = vpop.f32.mrf.mxu0
  %v5997 = vadd.f32 %v5828, %v5996
  %v5998 = vpop.f32.mrf.mxu0
  %v5999 = vadd.f32 %v5830, %v5998
  %6000 = vmatmul.bf16.gmra.mxu0 %v692
  %v6001 = vpop.f32.mrf.mxu0
  %v6002 = vadd.f32 %v5833, %v6001
  %v6003 = vpop.f32.mrf.mxu0
  %v6004 = vadd.f32 %v5835, %v6003
  %6005 = vmatmul.bf16.gmra.mxu0 %v695
  %v6006 = vpop.f32.mrf.mxu0
  %v6007 = vadd.f32 %v5838, %v6006
  %v6008 = vpop.f32.mrf.mxu0
  %v6009 = vadd.f32 %v5840, %v6008
  %6010 = vmatmul.bf16.gmra.mxu0 %v698
  %v6011 = vpop.f32.mrf.mxu0
  %v6012 = vadd.f32 %v5843, %v6011
  %v6013 = vpop.f32.mrf.mxu0
  %v6014 = vadd.f32 %v5845, %v6013
  %6015 = vmatmul.bf16.gmra.mxu0 %v701
  %v6016 = vpop.f32.mrf.mxu0
  %v6017 = vadd.f32 %v5848, %v6016
  %v6018 = vpop.f32.mrf.mxu0
  %v6019 = vadd.f32 %v5850, %v6018
  %6020 = vmatmul.bf16.gmra.mxu0 %v704
  %v6021 = vpop.f32.mrf.mxu0
  %v6022 = vadd.f32 %v5853, %v6021
  %v6023 = vpop.f32.mrf.mxu0
  %v6024 = vadd.f32 %v5855, %v6023
  %6025 = vmatmul.bf16.gmra.mxu0 %v707
  %v6026 = vpop.f32.mrf.mxu0
  %v6027 = vadd.f32 %v5858, %v6026
  %v6028 = vpop.f32.mrf.mxu0
  %v6029 = vadd.f32 %v5860, %v6028
  %6030 = vmatmul.bf16.gmra.mxu0 %v710
  %v6031 = vpop.f32.mrf.mxu0
  %v6032 = vadd.f32 %v5863, %v6031
  %v6033 = vpop.f32.mrf.mxu0
  %v6034 = vadd.f32 %v5865, %v6033
  %6035 = vmatmul.bf16.gmra.mxu0 %v713
  %v6036 = vpop.f32.mrf.mxu0
  %v6037 = vadd.f32 %v5868, %v6036
  %v6038 = vpop.f32.mrf.mxu0
  %v6039 = vadd.f32 %v5870, %v6038
  %6040 = vmatmul.bf16.gmra.mxu0 %v716
  %v6041 = vpop.f32.mrf.mxu0
  %v6042 = vadd.f32 %v5873, %v6041
  %v6043 = vpop.f32.mrf.mxu0
  %v6044 = vadd.f32 %v5875, %v6043
  %6045 = vmatmul.bf16.gmra.mxu0 %v719
  %v6046 = vpop.f32.mrf.mxu0
  %v6047 = vadd.f32 %v5878, %v6046
  %v6048 = vpop.f32.mrf.mxu0
  %v6049 = vadd.f32 %v5880, %v6048
  %6050 = vmatmul.bf16.gmra.mxu0 %v722
  %v6051 = vpop.f32.mrf.mxu0
  %v6052 = vadd.f32 %v5883, %v6051
  %v6053 = vpop.f32.mrf.mxu0
  %v6054 = vadd.f32 %v5885, %v6053
  %6055 = vdwg.mxu0
  %v6056 = vmax.f32 %v5897, %v5977
  %v6057 = vmax.f32 %v5899, %v5979
  %v6058 = vmax.f32 %v5902, %v5982
  %v6059 = vmax.f32 %v5904, %v5984
  %v6060 = vmax.f32 %v5907, %v5987
  %v6061 = vmax.f32 %v5909, %v5989
  %v6062 = vmax.f32 %v5912, %v5992
  %v6063 = vmax.f32 %v5914, %v5994
  %v6064 = vmax.f32 %v5917, %v5997
  %v6065 = vmax.f32 %v5919, %v5999
  %v6066 = vmax.f32 %v5922, %v6002
  %v6067 = vmax.f32 %v5924, %v6004
  %v6068 = vmax.f32 %v5927, %v6007
  %v6069 = vmax.f32 %v5929, %v6009
  %v6070 = vmax.f32 %v5932, %v6012
  %v6071 = vmax.f32 %v5934, %v6014
  %v6072 = vmax.f32 %v5937, %v6017
  %v6073 = vmax.f32 %v5939, %v6019
  %v6074 = vmax.f32 %v5942, %v6022
  %v6075 = vmax.f32 %v5944, %v6024
  %v6076 = vmax.f32 %v5947, %v6027
  %v6077 = vmax.f32 %v5949, %v6029
  %v6078 = vmax.f32 %v5952, %v6032
  %v6079 = vmax.f32 %v5954, %v6034
  %v6080 = vmax.f32 %v5957, %v6037
  %v6081 = vmax.f32 %v5959, %v6039
  %v6082 = vmax.f32 %v5962, %v6042
  %v6083 = vmax.f32 %v5964, %v6044
  %v6084 = vmax.f32 %v5967, %v6047
  %v6085 = vmax.f32 %v5969, %v6049
  %v6086 = vmax.f32 %v5972, %v6052
  %v6087 = vmax.f32 %v5974, %v6054
  %v6088 = vmax.f32 %v6056, %v6072
  %v6089 = vmax.f32 %v6057, %v6073
  %v6090 = vmax.f32 %v6058, %v6074
  %v6091 = vmax.f32 %v6059, %v6075
  %v6092 = vmax.f32 %v6060, %v6076
  %v6093 = vmax.f32 %v6061, %v6077
  %v6094 = vmax.f32 %v6062, %v6078
  %v6095 = vmax.f32 %v6063, %v6079
  %v6096 = vmax.f32 %v6064, %v6080
  %v6097 = vmax.f32 %v6065, %v6081
  %v6098 = vmax.f32 %v6066, %v6082
  %v6099 = vmax.f32 %v6067, %v6083
  %v6100 = vmax.f32 %v6068, %v6084
  %v6101 = vmax.f32 %v6069, %v6085
  %v6102 = vmax.f32 %v6070, %v6086
  %v6103 = vmax.f32 %v6071, %v6087
  %v6104 = vadd.f32 %v6088, %v1113
  %v6105 = vadd.f32 %v6089, %v1118
  %v6106 = vadd.f32 %v6090, %v1123
  %v6107 = vadd.f32 %v6091, %v1128
  %v6108 = vadd.f32 %v6092, %v1133
  %v6109 = vadd.f32 %v6093, %v1138
  %v6110 = vadd.f32 %v6094, %v1143
  %v6111 = vadd.f32 %v6095, %v1148
  %v6112 = vadd.f32 %v6096, %v1153
  %v6113 = vadd.f32 %v6097, %v1158
  %v6114 = vadd.f32 %v6098, %v1163
  %v6115 = vadd.f32 %v6099, %v1168
  %v6116 = vadd.f32 %v6100, %v1173
  %v6117 = vadd.f32 %v6101, %v1178
  %v6118 = vadd.f32 %v6102, %v1183
  %v6119 = vadd.f32 %v6103, %v1188
  %v6120 = vmax.f32 %v6104, 0.0
  %v6121 = vmax.f32 %v6105, 0.0
  %v6122 = vmax.f32 %v6106, 0.0
  %v6123 = vmax.f32 %v6107, 0.0
  %v6124 = vmax.f32 %v6108, 0.0
  %v6125 = vmax.f32 %v6109, 0.0
  %v6126 = vmax.f32 %v6110, 0.0
  %v6127 = vmax.f32 %v6111, 0.0
  %v6128 = vmax.f32 %v6112, 0.0
  %v6129 = vmax.f32 %v6113, 0.0
  %v6130 = vmax.f32 %v6114, 0.0
  %v6131 = vmax.f32 %v6115, 0.0
  %v6132 = vmax.f32 %v6116, 0.0
  %v6133 = vmax.f32 %v6117, 0.0
  %v6134 = vmax.f32 %v6118, 0.0
  %v6135 = vmax.f32 %v6119, 0.0
  %v6136 = vpack.c.bf16 %v6120, %v6120
  %v6137 = vpack.c.bf16 %v6121, %v6121
  %v6138 = vpack.c.bf16 %v6122, %v6122
  %v6139 = vpack.c.bf16 %v6123, %v6123
  %v6140 = vpack.c.bf16 %v6124, %v6124
  %v6141 = vpack.c.bf16 %v6125, %v6125
  %v6142 = vpack.c.bf16 %v6126, %v6126
  %v6143 = vpack.c.bf16 %v6127, %v6127
  %v6144 = vpack.c.bf16 %v6128, %v6128
  %v6145 = vpack.c.bf16 %v6129, %v6129
  %v6146 = vpack.c.bf16 %v6130, %v6130
  %v6147 = vpack.c.bf16 %v6131, %v6131
  %v6148 = vpack.c.bf16 %v6132, %v6132
  %v6149 = vpack.c.bf16 %v6133, %v6133
  %v6150 = vpack.c.bf16 %v6134, %v6134
  %v6151 = vpack.c.bf16 %v6135, %v6135
  %6152 = vst [vmem:[#allocation2 + $0x240] sm:$0xf] %v6136
  %6153 = vst [vmem:[#allocation2 + $0x244] sm:$0xf] %v6137
  %6154 = vst [vmem:[#allocation2 + $0x248] sm:$0xf] %v6138
  %6155 = vst [vmem:[#allocation2 + $0x24c] sm:$0xf] %v6139
  %6156 = vst [vmem:[#allocation2 + $0x250] sm:$0xf] %v6140
  %6157 = vst [vmem:[#allocation2 + $0x254] sm:$0xf] %v6141
  %6158 = vst [vmem:[#allocation2 + $0x258] sm:$0xf] %v6142
  %6159 = vst [vmem:[#allocation2 + $0x25c] sm:$0xf] %v6143
  %6160 = vst [vmem:[#allocation2 + $0x260] sm:$0xf] %v6144
  %6161 = vst [vmem:[#allocation2 + $0x264] sm:$0xf] %v6145
  %6162 = vst [vmem:[#allocation2 + $0x268] sm:$0xf] %v6146
  %6163 = vst [vmem:[#allocation2 + $0x26c] sm:$0xf] %v6147
  %6164 = vst [vmem:[#allocation2 + $0x270] sm:$0xf] %v6148
  %6165 = vst [vmem:[#allocation2 + $0x274] sm:$0xf] %v6149
  %6166 = vst [vmem:[#allocation2 + $0x278] sm:$0xf] %v6150
  %6167 = vst [vmem:[#allocation2 + $0x27c] sm:$0xf] %v6151
  %v6168 = vld [vmem:[%s0 + $0x140] sm:$0xf]
  %v6169 = vld [vmem:[%s0 + $0x144] sm:$0xf]
  %v6170 = vld [vmem:[%s0 + $0x148] sm:$0xf]
  %v6171 = vld [vmem:[%s0 + $0x14c] sm:$0xf]
  %v6172 = vld [vmem:[%s0 + $0x150] sm:$0xf]
  %v6173 = vld [vmem:[%s0 + $0x154] sm:$0xf]
  %v6174 = vld [vmem:[%s0 + $0x158] sm:$0xf]
  %v6175 = vld [vmem:[%s0 + $0x15c] sm:$0xf]
  %v6176 = vld [vmem:[%s0 + $0x160] sm:$0xf]
  %v6177 = vld [vmem:[%s0 + $0x164] sm:$0xf]
  %v6178 = vld [vmem:[%s0 + $0x168] sm:$0xf]
  %v6179 = vld [vmem:[%s0 + $0x16c] sm:$0xf]
  %v6180 = vld [vmem:[%s0 + $0x170] sm:$0xf]
  %v6181 = vld [vmem:[%s0 + $0x174] sm:$0xf]
  %v6182 = vld [vmem:[%s0 + $0x178] sm:$0xf]
  %v6183 = vld [vmem:[%s0 + $0x17c] sm:$0xf]
  %v6184 = vld [vmem:[%s0 + $0x180] sm:$0xf]
  %v6185 = vld [vmem:[%s0 + $0x184] sm:$0xf]
  %v6186 = vld [vmem:[%s0 + $0x188] sm:$0xf]
  %v6187 = vld [vmem:[%s0 + $0x18c] sm:$0xf]
  %v6188 = vld [vmem:[%s0 + $0x190] sm:$0xf]
  %v6189 = vld [vmem:[%s0 + $0x194] sm:$0xf]
  %v6190 = vld [vmem:[%s0 + $0x198] sm:$0xf]
  %v6191 = vld [vmem:[%s0 + $0x19c] sm:$0xf]
  %v6216 = vunpack.c.l.b16 %v6168
  %v6217 = vunpack.c.l.b16 %v6169
  %v6218 = vunpack.c.l.b16 %v6170
  %v6219 = vunpack.c.l.b16 %v6171
  %v6220 = vunpack.c.l.b16 %v6172
  %v6221 = vunpack.c.l.b16 %v6173
  %v6222 = vunpack.c.l.b16 %v6174
  %v6223 = vunpack.c.l.b16 %v6175
  %v6224 = vunpack.c.l.b16 %v6176
  %v6225 = vunpack.c.l.b16 %v6177
  %v6226 = vunpack.c.l.b16 %v6178
  %v6227 = vunpack.c.l.b16 %v6179
  %v6228 = vunpack.c.l.b16 %v6180
  %v6229 = vunpack.c.l.b16 %v6181
  %v6230 = vunpack.c.l.b16 %v6182
  %v6231 = vunpack.c.l.b16 %v6183
  %v6232 = vunpack.c.l.b16 %v6184
  %v6233 = vunpack.c.l.b16 %v6185
  %v6234 = vunpack.c.l.b16 %v6186
  %v6235 = vunpack.c.l.b16 %v6187
  %v6236 = vunpack.c.l.b16 %v6188
  %v6237 = vunpack.c.l.b16 %v6189
  %v6238 = vunpack.c.l.b16 %v6190
  %v6239 = vunpack.c.l.b16 %v6191
  %v6240 = vpack.c.b16 %v6217, %v6216
  %v6241 = vpack.c.b16 %v6219, %v6218
  %v6242 = vpack.c.b16 %v6221, %v6220
  %v6243 = vpack.c.b16 %v6223, %v6222
  %v6244 = vpack.c.b16 %v6225, %v6224
  %v6245 = vpack.c.b16 %v6227, %v6226
  %v6246 = vpack.c.b16 %v6229, %v6228
  %v6247 = vpack.c.b16 %v6231, %v6230
  %v6248 = vpack.c.b16 %v6233, %v6232
  %v6249 = vpack.c.b16 %v6235, %v6234
  %v6250 = vpack.c.b16 %v6237, %v6236
  %v6251 = vpack.c.b16 %v6239, %v6238
  %6264 = vmatpush.bf16.msra.mxu0 %v6247
  %6265 = vmatpush.bf16.msra.mxu0 %v6246
  %6266 = vmatpush.bf16.msra.mxu0 %v6245
  %6267 = vmatpush.bf16.msra.mxu0 %v6244
  %6268 = vmatpush.bf16.msra.mxu0 %v6243
  %6269 = vmatpush.bf16.msra.mxu0 %v6242
  %6270 = vmatpush.bf16.msra.mxu0 %v6241
  %6271 = vmatpush.bf16.msra.mxu0 %v6240
  %6272 = vmatmul.bf16.gmra.mxu0 %v459
  %v6273 = vpop.f32.mrf.mxu0
  %v6274 = vadd.f32 0.0, %v6273
  %v6275 = vpop.f32.mrf.mxu0
  %v6276 = vadd.f32 0.0, %v6275
  %6277 = vmatmul.bf16.gmra.mxu0 %v461
  %v6278 = vpop.f32.mrf.mxu0
  %v6279 = vadd.f32 0.0, %v6278
  %v6280 = vpop.f32.mrf.mxu0
  %v6281 = vadd.f32 0.0, %v6280
  %6282 = vmatmul.bf16.gmra.mxu0 %v463
  %v6283 = vpop.f32.mrf.mxu0
  %v6284 = vadd.f32 0.0, %v6283
  %v6285 = vpop.f32.mrf.mxu0
  %v6286 = vadd.f32 0.0, %v6285
  %6287 = vmatmul.bf16.gmra.mxu0 %v465
  %v6288 = vpop.f32.mrf.mxu0
  %v6289 = vadd.f32 0.0, %v6288
  %v6290 = vpop.f32.mrf.mxu0
  %v6291 = vadd.f32 0.0, %v6290
  %6292 = vmatmul.bf16.gmra.mxu0 %v467
  %v6293 = vpop.f32.mrf.mxu0
  %v6294 = vadd.f32 0.0, %v6293
  %v6295 = vpop.f32.mrf.mxu0
  %v6296 = vadd.f32 0.0, %v6295
  %6297 = vmatmul.bf16.gmra.mxu0 %v469
  %v6298 = vpop.f32.mrf.mxu0
  %v6299 = vadd.f32 0.0, %v6298
  %v6300 = vpop.f32.mrf.mxu0
  %v6301 = vadd.f32 0.0, %v6300
  %6302 = vmatmul.bf16.gmra.mxu0 %v471
  %v6303 = vpop.f32.mrf.mxu0
  %v6304 = vadd.f32 0.0, %v6303
  %v6305 = vpop.f32.mrf.mxu0
  %v6306 = vadd.f32 0.0, %v6305
  %6307 = vmatmul.bf16.gmra.mxu0 %v473
  %v6308 = vpop.f32.mrf.mxu0
  %v6309 = vadd.f32 0.0, %v6308
  %v6310 = vpop.f32.mrf.mxu0
  %v6311 = vadd.f32 0.0, %v6310
  %6312 = vmatmul.bf16.gmra.mxu0 %v475
  %v6313 = vpop.f32.mrf.mxu0
  %v6314 = vadd.f32 0.0, %v6313
  %v6315 = vpop.f32.mrf.mxu0
  %v6316 = vadd.f32 0.0, %v6315
  %6317 = vmatmul.bf16.gmra.mxu0 %v477
  %v6318 = vpop.f32.mrf.mxu0
  %v6319 = vadd.f32 0.0, %v6318
  %v6320 = vpop.f32.mrf.mxu0
  %v6321 = vadd.f32 0.0, %v6320
  %6322 = vmatmul.bf16.gmra.mxu0 %v479
  %v6323 = vpop.f32.mrf.mxu0
  %v6324 = vadd.f32 0.0, %v6323
  %v6325 = vpop.f32.mrf.mxu0
  %v6326 = vadd.f32 0.0, %v6325
  %6327 = vmatmul.bf16.gmra.mxu0 %v481
  %v6328 = vpop.f32.mrf.mxu0
  %v6329 = vadd.f32 0.0, %v6328
  %v6330 = vpop.f32.mrf.mxu0
  %v6331 = vadd.f32 0.0, %v6330
  %6332 = vmatmul.bf16.gmra.mxu0 %v483
  %v6333 = vpop.f32.mrf.mxu0
  %v6334 = vadd.f32 0.0, %v6333
  %v6335 = vpop.f32.mrf.mxu0
  %v6336 = vadd.f32 0.0, %v6335
  %6337 = vmatmul.bf16.gmra.mxu0 %v485
  %v6338 = vpop.f32.mrf.mxu0
  %v6339 = vadd.f32 0.0, %v6338
  %v6340 = vpop.f32.mrf.mxu0
  %v6341 = vadd.f32 0.0, %v6340
  %6342 = vmatmul.bf16.gmra.mxu0 %v487
  %v6343 = vpop.f32.mrf.mxu0
  %v6344 = vadd.f32 0.0, %v6343
  %v6345 = vpop.f32.mrf.mxu0
  %v6346 = vadd.f32 0.0, %v6345
  %6347 = vmatmul.bf16.gmra.mxu0 %v489
  %v6348 = vpop.f32.mrf.mxu0
  %v6349 = vadd.f32 0.0, %v6348
  %v6350 = vpop.f32.mrf.mxu0
  %v6351 = vadd.f32 0.0, %v6350
  %6352 = vmatmul.bf16.gmra.mxu0 %v491
  %v6353 = vpop.f32.mrf.mxu0
  %v6354 = vadd.f32 0.0, %v6353
  %v6355 = vpop.f32.mrf.mxu0
  %v6356 = vadd.f32 0.0, %v6355
  %6357 = vmatmul.bf16.gmra.mxu0 %v493
  %v6358 = vpop.f32.mrf.mxu0
  %v6359 = vadd.f32 0.0, %v6358
  %v6360 = vpop.f32.mrf.mxu0
  %v6361 = vadd.f32 0.0, %v6360
  %6362 = vmatmul.bf16.gmra.mxu0 %v495
  %v6363 = vpop.f32.mrf.mxu0
  %v6364 = vadd.f32 0.0, %v6363
  %v6365 = vpop.f32.mrf.mxu0
  %v6366 = vadd.f32 0.0, %v6365
  %6367 = vmatmul.bf16.gmra.mxu0 %v497
  %v6368 = vpop.f32.mrf.mxu0
  %v6369 = vadd.f32 0.0, %v6368
  %v6370 = vpop.f32.mrf.mxu0
  %v6371 = vadd.f32 0.0, %v6370
  %6372 = vmatmul.bf16.gmra.mxu0 %v499
  %v6373 = vpop.f32.mrf.mxu0
  %v6374 = vadd.f32 0.0, %v6373
  %v6375 = vpop.f32.mrf.mxu0
  %v6376 = vadd.f32 0.0, %v6375
  %6377 = vmatmul.bf16.gmra.mxu0 %v501
  %v6378 = vpop.f32.mrf.mxu0
  %v6379 = vadd.f32 0.0, %v6378
  %v6380 = vpop.f32.mrf.mxu0
  %v6381 = vadd.f32 0.0, %v6380
  %6382 = vmatmul.bf16.gmra.mxu0 %v503
  %v6383 = vpop.f32.mrf.mxu0
  %v6384 = vadd.f32 0.0, %v6383
  %v6385 = vpop.f32.mrf.mxu0
  %v6386 = vadd.f32 0.0, %v6385
  %6387 = vmatmul.bf16.gmra.mxu0 %v505
  %v6388 = vpop.f32.mrf.mxu0
  %v6389 = vadd.f32 0.0, %v6388
  %v6390 = vpop.f32.mrf.mxu0
  %v6391 = vadd.f32 0.0, %v6390
  %6392 = vmatmul.bf16.gmra.mxu0 %v507
  %v6393 = vpop.f32.mrf.mxu0
  %v6394 = vadd.f32 0.0, %v6393
  %v6395 = vpop.f32.mrf.mxu0
  %v6396 = vadd.f32 0.0, %v6395
  %6397 = vmatmul.bf16.gmra.mxu0 %v509
  %v6398 = vpop.f32.mrf.mxu0
  %v6399 = vadd.f32 0.0, %v6398
  %v6400 = vpop.f32.mrf.mxu0
  %v6401 = vadd.f32 0.0, %v6400
  %6402 = vmatmul.bf16.gmra.mxu0 %v511
  %v6403 = vpop.f32.mrf.mxu0
  %v6404 = vadd.f32 0.0, %v6403
  %v6405 = vpop.f32.mrf.mxu0
  %v6406 = vadd.f32 0.0, %v6405
  %6407 = vmatmul.bf16.gmra.mxu0 %v513
  %v6408 = vpop.f32.mrf.mxu0
  %v6409 = vadd.f32 0.0, %v6408
  %v6410 = vpop.f32.mrf.mxu0
  %v6411 = vadd.f32 0.0, %v6410
  %6412 = vmatmul.bf16.gmra.mxu0 %v515
  %v6413 = vpop.f32.mrf.mxu0
  %v6414 = vadd.f32 0.0, %v6413
  %v6415 = vpop.f32.mrf.mxu0
  %v6416 = vadd.f32 0.0, %v6415
  %6417 = vmatmul.bf16.gmra.mxu0 %v517
  %v6418 = vpop.f32.mrf.mxu0
  %v6419 = vadd.f32 0.0, %v6418
  %v6420 = vpop.f32.mrf.mxu0
  %v6421 = vadd.f32 0.0, %v6420
  %6422 = vmatmul.bf16.gmra.mxu0 %v519
  %v6423 = vpop.f32.mrf.mxu0
  %v6424 = vadd.f32 0.0, %v6423
  %v6425 = vpop.f32.mrf.mxu0
  %v6426 = vadd.f32 0.0, %v6425
  %6427 = vmatmul.bf16.gmra.mxu0 %v521
  %v6428 = vpop.f32.mrf.mxu0
  %v6429 = vadd.f32 0.0, %v6428
  %v6430 = vpop.f32.mrf.mxu0
  %v6431 = vadd.f32 0.0, %v6430
  %6432 = vdwg.mxu0
  %6433 = vmatpush.bf16.msra.mxu0 0
  %6434 = vmatpush.bf16.msra.mxu0 0
  %6435 = vmatpush.bf16.msra.mxu0 0
  %6436 = vmatpush.bf16.msra.mxu0 0
  %6437 = vmatpush.bf16.msra.mxu0 %v6251
  %6438 = vmatpush.bf16.msra.mxu0 %v6250
  %6439 = vmatpush.bf16.msra.mxu0 %v6249
  %6440 = vmatpush.bf16.msra.mxu0 %v6248
  %6441 = vmatmul.bf16.gmra.mxu0 %v629
  %v6442 = vpop.f32.mrf.mxu0
  %v6443 = vadd.f32 %v6274, %v6442
  %v6444 = vpop.f32.mrf.mxu0
  %v6445 = vadd.f32 %v6276, %v6444
  %6446 = vmatmul.bf16.gmra.mxu0 %v632
  %v6447 = vpop.f32.mrf.mxu0
  %v6448 = vadd.f32 %v6279, %v6447
  %v6449 = vpop.f32.mrf.mxu0
  %v6450 = vadd.f32 %v6281, %v6449
  %6451 = vmatmul.bf16.gmra.mxu0 %v635
  %v6452 = vpop.f32.mrf.mxu0
  %v6453 = vadd.f32 %v6284, %v6452
  %v6454 = vpop.f32.mrf.mxu0
  %v6455 = vadd.f32 %v6286, %v6454
  %6456 = vmatmul.bf16.gmra.mxu0 %v638
  %v6457 = vpop.f32.mrf.mxu0
  %v6458 = vadd.f32 %v6289, %v6457
  %v6459 = vpop.f32.mrf.mxu0
  %v6460 = vadd.f32 %v6291, %v6459
  %6461 = vmatmul.bf16.gmra.mxu0 %v641
  %v6462 = vpop.f32.mrf.mxu0
  %v6463 = vadd.f32 %v6294, %v6462
  %v6464 = vpop.f32.mrf.mxu0
  %v6465 = vadd.f32 %v6296, %v6464
  %6466 = vmatmul.bf16.gmra.mxu0 %v644
  %v6467 = vpop.f32.mrf.mxu0
  %v6468 = vadd.f32 %v6299, %v6467
  %v6469 = vpop.f32.mrf.mxu0
  %v6470 = vadd.f32 %v6301, %v6469
  %6471 = vmatmul.bf16.gmra.mxu0 %v647
  %v6472 = vpop.f32.mrf.mxu0
  %v6473 = vadd.f32 %v6304, %v6472
  %v6474 = vpop.f32.mrf.mxu0
  %v6475 = vadd.f32 %v6306, %v6474
  %6476 = vmatmul.bf16.gmra.mxu0 %v650
  %v6477 = vpop.f32.mrf.mxu0
  %v6478 = vadd.f32 %v6309, %v6477
  %v6479 = vpop.f32.mrf.mxu0
  %v6480 = vadd.f32 %v6311, %v6479
  %6481 = vmatmul.bf16.gmra.mxu0 %v653
  %v6482 = vpop.f32.mrf.mxu0
  %v6483 = vadd.f32 %v6314, %v6482
  %v6484 = vpop.f32.mrf.mxu0
  %v6485 = vadd.f32 %v6316, %v6484
  %6486 = vmatmul.bf16.gmra.mxu0 %v656
  %v6487 = vpop.f32.mrf.mxu0
  %v6488 = vadd.f32 %v6319, %v6487
  %v6489 = vpop.f32.mrf.mxu0
  %v6490 = vadd.f32 %v6321, %v6489
  %6491 = vmatmul.bf16.gmra.mxu0 %v659
  %v6492 = vpop.f32.mrf.mxu0
  %v6493 = vadd.f32 %v6324, %v6492
  %v6494 = vpop.f32.mrf.mxu0
  %v6495 = vadd.f32 %v6326, %v6494
  %6496 = vmatmul.bf16.gmra.mxu0 %v662
  %v6497 = vpop.f32.mrf.mxu0
  %v6498 = vadd.f32 %v6329, %v6497
  %v6499 = vpop.f32.mrf.mxu0
  %v6500 = vadd.f32 %v6331, %v6499
  %6501 = vmatmul.bf16.gmra.mxu0 %v665
  %v6502 = vpop.f32.mrf.mxu0
  %v6503 = vadd.f32 %v6334, %v6502
  %v6504 = vpop.f32.mrf.mxu0
  %v6505 = vadd.f32 %v6336, %v6504
  %6506 = vmatmul.bf16.gmra.mxu0 %v668
  %v6507 = vpop.f32.mrf.mxu0
  %v6508 = vadd.f32 %v6339, %v6507
  %v6509 = vpop.f32.mrf.mxu0
  %v6510 = vadd.f32 %v6341, %v6509
  %6511 = vmatmul.bf16.gmra.mxu0 %v671
  %v6512 = vpop.f32.mrf.mxu0
  %v6513 = vadd.f32 %v6344, %v6512
  %v6514 = vpop.f32.mrf.mxu0
  %v6515 = vadd.f32 %v6346, %v6514
  %6516 = vmatmul.bf16.gmra.mxu0 %v674
  %v6517 = vpop.f32.mrf.mxu0
  %v6518 = vadd.f32 %v6349, %v6517
  %v6519 = vpop.f32.mrf.mxu0
  %v6520 = vadd.f32 %v6351, %v6519
  %6521 = vmatmul.bf16.gmra.mxu0 %v677
  %v6522 = vpop.f32.mrf.mxu0
  %v6523 = vadd.f32 %v6354, %v6522
  %v6524 = vpop.f32.mrf.mxu0
  %v6525 = vadd.f32 %v6356, %v6524
  %6526 = vmatmul.bf16.gmra.mxu0 %v680
  %v6527 = vpop.f32.mrf.mxu0
  %v6528 = vadd.f32 %v6359, %v6527
  %v6529 = vpop.f32.mrf.mxu0
  %v6530 = vadd.f32 %v6361, %v6529
  %6531 = vmatmul.bf16.gmra.mxu0 %v683
  %v6532 = vpop.f32.mrf.mxu0
  %v6533 = vadd.f32 %v6364, %v6532
  %v6534 = vpop.f32.mrf.mxu0
  %v6535 = vadd.f32 %v6366, %v6534
  %6536 = vmatmul.bf16.gmra.mxu0 %v686
  %v6537 = vpop.f32.mrf.mxu0
  %v6538 = vadd.f32 %v6369, %v6537
  %v6539 = vpop.f32.mrf.mxu0
  %v6540 = vadd.f32 %v6371, %v6539
  %6541 = vmatmul.bf16.gmra.mxu0 %v689
  %v6542 = vpop.f32.mrf.mxu0
  %v6543 = vadd.f32 %v6374, %v6542
  %v6544 = vpop.f32.mrf.mxu0
  %v6545 = vadd.f32 %v6376, %v6544
  %6546 = vmatmul.bf16.gmra.mxu0 %v692
  %v6547 = vpop.f32.mrf.mxu0
  %v6548 = vadd.f32 %v6379, %v6547
  %v6549 = vpop.f32.mrf.mxu0
  %v6550 = vadd.f32 %v6381, %v6549
  %6551 = vmatmul.bf16.gmra.mxu0 %v695
  %v6552 = vpop.f32.mrf.mxu0
  %v6553 = vadd.f32 %v6384, %v6552
  %v6554 = vpop.f32.mrf.mxu0
  %v6555 = vadd.f32 %v6386, %v6554
  %6556 = vmatmul.bf16.gmra.mxu0 %v698
  %v6557 = vpop.f32.mrf.mxu0
  %v6558 = vadd.f32 %v6389, %v6557
  %v6559 = vpop.f32.mrf.mxu0
  %v6560 = vadd.f32 %v6391, %v6559
  %6561 = vmatmul.bf16.gmra.mxu0 %v701
  %v6562 = vpop.f32.mrf.mxu0
  %v6563 = vadd.f32 %v6394, %v6562
  %v6564 = vpop.f32.mrf.mxu0
  %v6565 = vadd.f32 %v6396, %v6564
  %6566 = vmatmul.bf16.gmra.mxu0 %v704
  %v6567 = vpop.f32.mrf.mxu0
  %v6568 = vadd.f32 %v6399, %v6567
  %v6569 = vpop.f32.mrf.mxu0
  %v6570 = vadd.f32 %v6401, %v6569
  %6571 = vmatmul.bf16.gmra.mxu0 %v707
  %v6572 = vpop.f32.mrf.mxu0
  %v6573 = vadd.f32 %v6404, %v6572
  %v6574 = vpop.f32.mrf.mxu0
  %v6575 = vadd.f32 %v6406, %v6574
  %6576 = vmatmul.bf16.gmra.mxu0 %v710
  %v6577 = vpop.f32.mrf.mxu0
  %v6578 = vadd.f32 %v6409, %v6577
  %v6579 = vpop.f32.mrf.mxu0
  %v6580 = vadd.f32 %v6411, %v6579
  %6581 = vmatmul.bf16.gmra.mxu0 %v713
  %v6582 = vpop.f32.mrf.mxu0
  %v6583 = vadd.f32 %v6414, %v6582
  %v6584 = vpop.f32.mrf.mxu0
  %v6585 = vadd.f32 %v6416, %v6584
  %6586 = vmatmul.bf16.gmra.mxu0 %v716
  %v6587 = vpop.f32.mrf.mxu0
  %v6588 = vadd.f32 %v6419, %v6587
  %v6589 = vpop.f32.mrf.mxu0
  %v6590 = vadd.f32 %v6421, %v6589
  %6591 = vmatmul.bf16.gmra.mxu0 %v719
  %v6592 = vpop.f32.mrf.mxu0
  %v6593 = vadd.f32 %v6424, %v6592
  %v6594 = vpop.f32.mrf.mxu0
  %v6595 = vadd.f32 %v6426, %v6594
  %6596 = vmatmul.bf16.gmra.mxu0 %v722
  %v6597 = vpop.f32.mrf.mxu0
  %v6598 = vadd.f32 %v6429, %v6597
  %v6599 = vpop.f32.mrf.mxu0
  %v6600 = vadd.f32 %v6431, %v6599
  %6601 = vdwg.mxu0
  %v6602 = vmax.f32 %v6443, %v6523
  %v6603 = vmax.f32 %v6445, %v6525
  %v6604 = vmax.f32 %v6448, %v6528
  %v6605 = vmax.f32 %v6450, %v6530
  %v6606 = vmax.f32 %v6453, %v6533
  %v6607 = vmax.f32 %v6455, %v6535
  %v6608 = vmax.f32 %v6458, %v6538
  %v6609 = vmax.f32 %v6460, %v6540
  %v6610 = vmax.f32 %v6463, %v6543
  %v6611 = vmax.f32 %v6465, %v6545
  %v6612 = vmax.f32 %v6468, %v6548
  %v6613 = vmax.f32 %v6470, %v6550
  %v6614 = vmax.f32 %v6473, %v6553
  %v6615 = vmax.f32 %v6475, %v6555
  %v6616 = vmax.f32 %v6478, %v6558
  %v6617 = vmax.f32 %v6480, %v6560
  %v6618 = vmax.f32 %v6483, %v6563
  %v6619 = vmax.f32 %v6485, %v6565
  %v6620 = vmax.f32 %v6488, %v6568
  %v6621 = vmax.f32 %v6490, %v6570
  %v6622 = vmax.f32 %v6493, %v6573
  %v6623 = vmax.f32 %v6495, %v6575
  %v6624 = vmax.f32 %v6498, %v6578
  %v6625 = vmax.f32 %v6500, %v6580
  %v6626 = vmax.f32 %v6503, %v6583
  %v6627 = vmax.f32 %v6505, %v6585
  %v6628 = vmax.f32 %v6508, %v6588
  %v6629 = vmax.f32 %v6510, %v6590
  %v6630 = vmax.f32 %v6513, %v6593
  %v6631 = vmax.f32 %v6515, %v6595
  %v6632 = vmax.f32 %v6518, %v6598
  %v6633 = vmax.f32 %v6520, %v6600
  %v6634 = vmax.f32 %v6602, %v6618
  %v6635 = vmax.f32 %v6603, %v6619
  %v6636 = vmax.f32 %v6604, %v6620
  %v6637 = vmax.f32 %v6605, %v6621
  %v6638 = vmax.f32 %v6606, %v6622
  %v6639 = vmax.f32 %v6607, %v6623
  %v6640 = vmax.f32 %v6608, %v6624
  %v6641 = vmax.f32 %v6609, %v6625
  %v6642 = vmax.f32 %v6610, %v6626
  %v6643 = vmax.f32 %v6611, %v6627
  %v6644 = vmax.f32 %v6612, %v6628
  %v6645 = vmax.f32 %v6613, %v6629
  %v6646 = vmax.f32 %v6614, %v6630
  %v6647 = vmax.f32 %v6615, %v6631
  %v6648 = vmax.f32 %v6616, %v6632
  %v6649 = vmax.f32 %v6617, %v6633
  %v6650 = vadd.f32 %v6634, %v1113
  %v6651 = vadd.f32 %v6635, %v1118
  %v6652 = vadd.f32 %v6636, %v1123
  %v6653 = vadd.f32 %v6637, %v1128
  %v6654 = vadd.f32 %v6638, %v1133
  %v6655 = vadd.f32 %v6639, %v1138
  %v6656 = vadd.f32 %v6640, %v1143
  %v6657 = vadd.f32 %v6641, %v1148
  %v6658 = vadd.f32 %v6642, %v1153
  %v6659 = vadd.f32 %v6643, %v1158
  %v6660 = vadd.f32 %v6644, %v1163
  %v6661 = vadd.f32 %v6645, %v1168
  %v6662 = vadd.f32 %v6646, %v1173
  %v6663 = vadd.f32 %v6647, %v1178
  %v6664 = vadd.f32 %v6648, %v1183
  %v6665 = vadd.f32 %v6649, %v1188
  %v6666 = vmax.f32 %v6650, 0.0
  %v6667 = vmax.f32 %v6651, 0.0
  %v6668 = vmax.f32 %v6652, 0.0
  %v6669 = vmax.f32 %v6653, 0.0
  %v6670 = vmax.f32 %v6654, 0.0
  %v6671 = vmax.f32 %v6655, 0.0
  %v6672 = vmax.f32 %v6656, 0.0
  %v6673 = vmax.f32 %v6657, 0.0
  %v6674 = vmax.f32 %v6658, 0.0
  %v6675 = vmax.f32 %v6659, 0.0
  %v6676 = vmax.f32 %v6660, 0.0
  %v6677 = vmax.f32 %v6661, 0.0
  %v6678 = vmax.f32 %v6662, 0.0
  %v6679 = vmax.f32 %v6663, 0.0
  %v6680 = vmax.f32 %v6664, 0.0
  %v6681 = vmax.f32 %v6665, 0.0
  %v6682 = vpack.c.bf16 %v6666, %v6666
  %v6683 = vpack.c.bf16 %v6667, %v6667
  %v6684 = vpack.c.bf16 %v6668, %v6668
  %v6685 = vpack.c.bf16 %v6669, %v6669
  %v6686 = vpack.c.bf16 %v6670, %v6670
  %v6687 = vpack.c.bf16 %v6671, %v6671
  %v6688 = vpack.c.bf16 %v6672, %v6672
  %v6689 = vpack.c.bf16 %v6673, %v6673
  %v6690 = vpack.c.bf16 %v6674, %v6674
  %v6691 = vpack.c.bf16 %v6675, %v6675
  %v6692 = vpack.c.bf16 %v6676, %v6676
  %v6693 = vpack.c.bf16 %v6677, %v6677
  %v6694 = vpack.c.bf16 %v6678, %v6678
  %v6695 = vpack.c.bf16 %v6679, %v6679
  %v6696 = vpack.c.bf16 %v6680, %v6680
  %v6697 = vpack.c.bf16 %v6681, %v6681
  %6698 = vst [vmem:[#allocation2 + $0x280] sm:$0xf] %v6682
  %6699 = vst [vmem:[#allocation2 + $0x284] sm:$0xf] %v6683
  %6700 = vst [vmem:[#allocation2 + $0x288] sm:$0xf] %v6684
  %6701 = vst [vmem:[#allocation2 + $0x28c] sm:$0xf] %v6685
  %6702 = vst [vmem:[#allocation2 + $0x290] sm:$0xf] %v6686
  %6703 = vst [vmem:[#allocation2 + $0x294] sm:$0xf] %v6687
  %6704 = vst [vmem:[#allocation2 + $0x298] sm:$0xf] %v6688
  %6705 = vst [vmem:[#allocation2 + $0x29c] sm:$0xf] %v6689
  %6706 = vst [vmem:[#allocation2 + $0x2a0] sm:$0xf] %v6690
  %6707 = vst [vmem:[#allocation2 + $0x2a4] sm:$0xf] %v6691
  %6708 = vst [vmem:[#allocation2 + $0x2a8] sm:$0xf] %v6692
  %6709 = vst [vmem:[#allocation2 + $0x2ac] sm:$0xf] %v6693
  %6710 = vst [vmem:[#allocation2 + $0x2b0] sm:$0xf] %v6694
  %6711 = vst [vmem:[#allocation2 + $0x2b4] sm:$0xf] %v6695
  %6712 = vst [vmem:[#allocation2 + $0x2b8] sm:$0xf] %v6696
  %6713 = vst [vmem:[#allocation2 + $0x2bc] sm:$0xf] %v6697
  %v6714 = vld [vmem:[%s0 + $0x160] sm:$0xf]
  %v6715 = vld [vmem:[%s0 + $0x164] sm:$0xf]
  %v6716 = vld [vmem:[%s0 + $0x168] sm:$0xf]
  %v6717 = vld [vmem:[%s0 + $0x16c] sm:$0xf]
  %v6718 = vld [vmem:[%s0 + $0x170] sm:$0xf]
  %v6719 = vld [vmem:[%s0 + $0x174] sm:$0xf]
  %v6720 = vld [vmem:[%s0 + $0x178] sm:$0xf]
  %v6721 = vld [vmem:[%s0 + $0x17c] sm:$0xf]
  %v6722 = vld [vmem:[%s0 + $0x180] sm:$0xf]
  %v6723 = vld [vmem:[%s0 + $0x184] sm:$0xf]
  %v6724 = vld [vmem:[%s0 + $0x188] sm:$0xf]
  %v6725 = vld [vmem:[%s0 + $0x18c] sm:$0xf]
  %v6726 = vld [vmem:[%s0 + $0x190] sm:$0xf]
  %v6727 = vld [vmem:[%s0 + $0x194] sm:$0xf]
  %v6728 = vld [vmem:[%s0 + $0x198] sm:$0xf]
  %v6729 = vld [vmem:[%s0 + $0x19c] sm:$0xf]
  %v6730 = vld [vmem:[%s0 + $0x1a0] sm:$0xf]
  %v6731 = vld [vmem:[%s0 + $0x1a4] sm:$0xf]
  %v6732 = vld [vmem:[%s0 + $0x1a8] sm:$0xf]
  %v6733 = vld [vmem:[%s0 + $0x1ac] sm:$0xf]
  %v6734 = vld [vmem:[%s0 + $0x1b0] sm:$0xf]
  %v6735 = vld [vmem:[%s0 + $0x1b4] sm:$0xf]
  %v6736 = vld [vmem:[%s0 + $0x1b8] sm:$0xf]
  %v6737 = vld [vmem:[%s0 + $0x1bc] sm:$0xf]
  %v6762 = vunpack.c.l.b16 %v6714
  %v6763 = vunpack.c.l.b16 %v6715
  %v6764 = vunpack.c.l.b16 %v6716
  %v6765 = vunpack.c.l.b16 %v6717
  %v6766 = vunpack.c.l.b16 %v6718
  %v6767 = vunpack.c.l.b16 %v6719
  %v6768 = vunpack.c.l.b16 %v6720
  %v6769 = vunpack.c.l.b16 %v6721
  %v6770 = vunpack.c.l.b16 %v6722
  %v6771 = vunpack.c.l.b16 %v6723
  %v6772 = vunpack.c.l.b16 %v6724
  %v6773 = vunpack.c.l.b16 %v6725
  %v6774 = vunpack.c.l.b16 %v6726
  %v6775 = vunpack.c.l.b16 %v6727
  %v6776 = vunpack.c.l.b16 %v6728
  %v6777 = vunpack.c.l.b16 %v6729
  %v6778 = vunpack.c.l.b16 %v6730
  %v6779 = vunpack.c.l.b16 %v6731
  %v6780 = vunpack.c.l.b16 %v6732
  %v6781 = vunpack.c.l.b16 %v6733
  %v6782 = vunpack.c.l.b16 %v6734
  %v6783 = vunpack.c.l.b16 %v6735
  %v6784 = vunpack.c.l.b16 %v6736
  %v6785 = vunpack.c.l.b16 %v6737
  %v6786 = vpack.c.b16 %v6763, %v6762
  %v6787 = vpack.c.b16 %v6765, %v6764
  %v6788 = vpack.c.b16 %v6767, %v6766
  %v6789 = vpack.c.b16 %v6769, %v6768
  %v6790 = vpack.c.b16 %v6771, %v6770
  %v6791 = vpack.c.b16 %v6773, %v6772
  %v6792 = vpack.c.b16 %v6775, %v6774
  %v6793 = vpack.c.b16 %v6777, %v6776
  %v6794 = vpack.c.b16 %v6779, %v6778
  %v6795 = vpack.c.b16 %v6781, %v6780
  %v6796 = vpack.c.b16 %v6783, %v6782
  %v6797 = vpack.c.b16 %v6785, %v6784
  %6810 = vmatpush.bf16.msra.mxu0 %v6793
  %6811 = vmatpush.bf16.msra.mxu0 %v6792
  %6812 = vmatpush.bf16.msra.mxu0 %v6791
  %6813 = vmatpush.bf16.msra.mxu0 %v6790
  %6814 = vmatpush.bf16.msra.mxu0 %v6789
  %6815 = vmatpush.bf16.msra.mxu0 %v6788
  %6816 = vmatpush.bf16.msra.mxu0 %v6787
  %6817 = vmatpush.bf16.msra.mxu0 %v6786
  %6818 = vmatmul.bf16.gmra.mxu0 %v459
  %v6819 = vpop.f32.mrf.mxu0
  %v6820 = vadd.f32 0.0, %v6819
  %v6821 = vpop.f32.mrf.mxu0
  %v6822 = vadd.f32 0.0, %v6821
  %6823 = vmatmul.bf16.gmra.mxu0 %v461
  %v6824 = vpop.f32.mrf.mxu0
  %v6825 = vadd.f32 0.0, %v6824
  %v6826 = vpop.f32.mrf.mxu0
  %v6827 = vadd.f32 0.0, %v6826
  %6828 = vmatmul.bf16.gmra.mxu0 %v463
  %v6829 = vpop.f32.mrf.mxu0
  %v6830 = vadd.f32 0.0, %v6829
  %v6831 = vpop.f32.mrf.mxu0
  %v6832 = vadd.f32 0.0, %v6831
  %6833 = vmatmul.bf16.gmra.mxu0 %v465
  %v6834 = vpop.f32.mrf.mxu0
  %v6835 = vadd.f32 0.0, %v6834
  %v6836 = vpop.f32.mrf.mxu0
  %v6837 = vadd.f32 0.0, %v6836
  %6838 = vmatmul.bf16.gmra.mxu0 %v467
  %v6839 = vpop.f32.mrf.mxu0
  %v6840 = vadd.f32 0.0, %v6839
  %v6841 = vpop.f32.mrf.mxu0
  %v6842 = vadd.f32 0.0, %v6841
  %6843 = vmatmul.bf16.gmra.mxu0 %v469
  %v6844 = vpop.f32.mrf.mxu0
  %v6845 = vadd.f32 0.0, %v6844
  %v6846 = vpop.f32.mrf.mxu0
  %v6847 = vadd.f32 0.0, %v6846
  %6848 = vmatmul.bf16.gmra.mxu0 %v471
  %v6849 = vpop.f32.mrf.mxu0
  %v6850 = vadd.f32 0.0, %v6849
  %v6851 = vpop.f32.mrf.mxu0
  %v6852 = vadd.f32 0.0, %v6851
  %6853 = vmatmul.bf16.gmra.mxu0 %v473
  %v6854 = vpop.f32.mrf.mxu0
  %v6855 = vadd.f32 0.0, %v6854
  %v6856 = vpop.f32.mrf.mxu0
  %v6857 = vadd.f32 0.0, %v6856
  %6858 = vmatmul.bf16.gmra.mxu0 %v475
  %v6859 = vpop.f32.mrf.mxu0
  %v6860 = vadd.f32 0.0, %v6859
  %v6861 = vpop.f32.mrf.mxu0
  %v6862 = vadd.f32 0.0, %v6861
  %6863 = vmatmul.bf16.gmra.mxu0 %v477
  %v6864 = vpop.f32.mrf.mxu0
  %v6865 = vadd.f32 0.0, %v6864
  %v6866 = vpop.f32.mrf.mxu0
  %v6867 = vadd.f32 0.0, %v6866
  %6868 = vmatmul.bf16.gmra.mxu0 %v479
  %v6869 = vpop.f32.mrf.mxu0
  %v6870 = vadd.f32 0.0, %v6869
  %v6871 = vpop.f32.mrf.mxu0
  %v6872 = vadd.f32 0.0, %v6871
  %6873 = vmatmul.bf16.gmra.mxu0 %v481
  %v6874 = vpop.f32.mrf.mxu0
  %v6875 = vadd.f32 0.0, %v6874
  %v6876 = vpop.f32.mrf.mxu0
  %v6877 = vadd.f32 0.0, %v6876
  %6878 = vmatmul.bf16.gmra.mxu0 %v483
  %v6879 = vpop.f32.mrf.mxu0
  %v6880 = vadd.f32 0.0, %v6879
  %v6881 = vpop.f32.mrf.mxu0
  %v6882 = vadd.f32 0.0, %v6881
  %6883 = vmatmul.bf16.gmra.mxu0 %v485
  %v6884 = vpop.f32.mrf.mxu0
  %v6885 = vadd.f32 0.0, %v6884
  %v6886 = vpop.f32.mrf.mxu0
  %v6887 = vadd.f32 0.0, %v6886
  %6888 = vmatmul.bf16.gmra.mxu0 %v487
  %v6889 = vpop.f32.mrf.mxu0
  %v6890 = vadd.f32 0.0, %v6889
  %v6891 = vpop.f32.mrf.mxu0
  %v6892 = vadd.f32 0.0, %v6891
  %6893 = vmatmul.bf16.gmra.mxu0 %v489
  %v6894 = vpop.f32.mrf.mxu0
  %v6895 = vadd.f32 0.0, %v6894
  %v6896 = vpop.f32.mrf.mxu0
  %v6897 = vadd.f32 0.0, %v6896
  %6898 = vmatmul.bf16.gmra.mxu0 %v491
  %v6899 = vpop.f32.mrf.mxu0
  %v6900 = vadd.f32 0.0, %v6899
  %v6901 = vpop.f32.mrf.mxu0
  %v6902 = vadd.f32 0.0, %v6901
  %6903 = vmatmul.bf16.gmra.mxu0 %v493
  %v6904 = vpop.f32.mrf.mxu0
  %v6905 = vadd.f32 0.0, %v6904
  %v6906 = vpop.f32.mrf.mxu0
  %v6907 = vadd.f32 0.0, %v6906
  %6908 = vmatmul.bf16.gmra.mxu0 %v495
  %v6909 = vpop.f32.mrf.mxu0
  %v6910 = vadd.f32 0.0, %v6909
  %v6911 = vpop.f32.mrf.mxu0
  %v6912 = vadd.f32 0.0, %v6911
  %6913 = vmatmul.bf16.gmra.mxu0 %v497
  %v6914 = vpop.f32.mrf.mxu0
  %v6915 = vadd.f32 0.0, %v6914
  %v6916 = vpop.f32.mrf.mxu0
  %v6917 = vadd.f32 0.0, %v6916
  %6918 = vmatmul.bf16.gmra.mxu0 %v499
  %v6919 = vpop.f32.mrf.mxu0
  %v6920 = vadd.f32 0.0, %v6919
  %v6921 = vpop.f32.mrf.mxu0
  %v6922 = vadd.f32 0.0, %v6921
  %6923 = vmatmul.bf16.gmra.mxu0 %v501
  %v6924 = vpop.f32.mrf.mxu0
  %v6925 = vadd.f32 0.0, %v6924
  %v6926 = vpop.f32.mrf.mxu0
  %v6927 = vadd.f32 0.0, %v6926
  %6928 = vmatmul.bf16.gmra.mxu0 %v503
  %v6929 = vpop.f32.mrf.mxu0
  %v6930 = vadd.f32 0.0, %v6929
  %v6931 = vpop.f32.mrf.mxu0
  %v6932 = vadd.f32 0.0, %v6931
  %6933 = vmatmul.bf16.gmra.mxu0 %v505
  %v6934 = vpop.f32.mrf.mxu0
  %v6935 = vadd.f32 0.0, %v6934
  %v6936 = vpop.f32.mrf.mxu0
  %v6937 = vadd.f32 0.0, %v6936
  %6938 = vmatmul.bf16.gmra.mxu0 %v507
  %v6939 = vpop.f32.mrf.mxu0
  %v6940 = vadd.f32 0.0, %v6939
  %v6941 = vpop.f32.mrf.mxu0
  %v6942 = vadd.f32 0.0, %v6941
  %6943 = vmatmul.bf16.gmra.mxu0 %v509
  %v6944 = vpop.f32.mrf.mxu0
  %v6945 = vadd.f32 0.0, %v6944
  %v6946 = vpop.f32.mrf.mxu0
  %v6947 = vadd.f32 0.0, %v6946
  %6948 = vmatmul.bf16.gmra.mxu0 %v511
  %v6949 = vpop.f32.mrf.mxu0
  %v6950 = vadd.f32 0.0, %v6949
  %v6951 = vpop.f32.mrf.mxu0
  %v6952 = vadd.f32 0.0, %v6951
  %6953 = vmatmul.bf16.gmra.mxu0 %v513
  %v6954 = vpop.f32.mrf.mxu0
  %v6955 = vadd.f32 0.0, %v6954
  %v6956 = vpop.f32.mrf.mxu0
  %v6957 = vadd.f32 0.0, %v6956
  %6958 = vmatmul.bf16.gmra.mxu0 %v515
  %v6959 = vpop.f32.mrf.mxu0
  %v6960 = vadd.f32 0.0, %v6959
  %v6961 = vpop.f32.mrf.mxu0
  %v6962 = vadd.f32 0.0, %v6961
  %6963 = vmatmul.bf16.gmra.mxu0 %v517
  %v6964 = vpop.f32.mrf.mxu0
  %v6965 = vadd.f32 0.0, %v6964
  %v6966 = vpop.f32.mrf.mxu0
  %v6967 = vadd.f32 0.0, %v6966
  %6968 = vmatmul.bf16.gmra.mxu0 %v519
  %v6969 = vpop.f32.mrf.mxu0
  %v6970 = vadd.f32 0.0, %v6969
  %v6971 = vpop.f32.mrf.mxu0
  %v6972 = vadd.f32 0.0, %v6971
  %6973 = vmatmul.bf16.gmra.mxu0 %v521
  %v6974 = vpop.f32.mrf.mxu0
  %v6975 = vadd.f32 0.0, %v6974
  %v6976 = vpop.f32.mrf.mxu0
  %v6977 = vadd.f32 0.0, %v6976
  %6978 = vdwg.mxu0
  %6979 = vmatpush.bf16.msra.mxu0 0
  %6980 = vmatpush.bf16.msra.mxu0 0
  %6981 = vmatpush.bf16.msra.mxu0 0
  %6982 = vmatpush.bf16.msra.mxu0 0
  %6983 = vmatpush.bf16.msra.mxu0 %v6797
  %6984 = vmatpush.bf16.msra.mxu0 %v6796
  %6985 = vmatpush.bf16.msra.mxu0 %v6795
  %6986 = vmatpush.bf16.msra.mxu0 %v6794
  %6987 = vmatmul.bf16.gmra.mxu0 %v629
  %v6988 = vpop.f32.mrf.mxu0
  %v6989 = vadd.f32 %v6820, %v6988
  %v6990 = vpop.f32.mrf.mxu0
  %v6991 = vadd.f32 %v6822, %v6990
  %6992 = vmatmul.bf16.gmra.mxu0 %v632
  %v6993 = vpop.f32.mrf.mxu0
  %v6994 = vadd.f32 %v6825, %v6993
  %v6995 = vpop.f32.mrf.mxu0
  %v6996 = vadd.f32 %v6827, %v6995
  %6997 = vmatmul.bf16.gmra.mxu0 %v635
  %v6998 = vpop.f32.mrf.mxu0
  %v6999 = vadd.f32 %v6830, %v6998
  %v7000 = vpop.f32.mrf.mxu0
  %v7001 = vadd.f32 %v6832, %v7000
  %7002 = vmatmul.bf16.gmra.mxu0 %v638
  %v7003 = vpop.f32.mrf.mxu0
  %v7004 = vadd.f32 %v6835, %v7003
  %v7005 = vpop.f32.mrf.mxu0
  %v7006 = vadd.f32 %v6837, %v7005
  %7007 = vmatmul.bf16.gmra.mxu0 %v641
  %v7008 = vpop.f32.mrf.mxu0
  %v7009 = vadd.f32 %v6840, %v7008
  %v7010 = vpop.f32.mrf.mxu0
  %v7011 = vadd.f32 %v6842, %v7010
  %7012 = vmatmul.bf16.gmra.mxu0 %v644
  %v7013 = vpop.f32.mrf.mxu0
  %v7014 = vadd.f32 %v6845, %v7013
  %v7015 = vpop.f32.mrf.mxu0
  %v7016 = vadd.f32 %v6847, %v7015
  %7017 = vmatmul.bf16.gmra.mxu0 %v647
  %v7018 = vpop.f32.mrf.mxu0
  %v7019 = vadd.f32 %v6850, %v7018
  %v7020 = vpop.f32.mrf.mxu0
  %v7021 = vadd.f32 %v6852, %v7020
  %7022 = vmatmul.bf16.gmra.mxu0 %v650
  %v7023 = vpop.f32.mrf.mxu0
  %v7024 = vadd.f32 %v6855, %v7023
  %v7025 = vpop.f32.mrf.mxu0
  %v7026 = vadd.f32 %v6857, %v7025
  %7027 = vmatmul.bf16.gmra.mxu0 %v653
  %v7028 = vpop.f32.mrf.mxu0
  %v7029 = vadd.f32 %v6860, %v7028
  %v7030 = vpop.f32.mrf.mxu0
  %v7031 = vadd.f32 %v6862, %v7030
  %7032 = vmatmul.bf16.gmra.mxu0 %v656
  %v7033 = vpop.f32.mrf.mxu0
  %v7034 = vadd.f32 %v6865, %v7033
  %v7035 = vpop.f32.mrf.mxu0
  %v7036 = vadd.f32 %v6867, %v7035
  %7037 = vmatmul.bf16.gmra.mxu0 %v659
  %v7038 = vpop.f32.mrf.mxu0
  %v7039 = vadd.f32 %v6870, %v7038
  %v7040 = vpop.f32.mrf.mxu0
  %v7041 = vadd.f32 %v6872, %v7040
  %7042 = vmatmul.bf16.gmra.mxu0 %v662
  %v7043 = vpop.f32.mrf.mxu0
  %v7044 = vadd.f32 %v6875, %v7043
  %v7045 = vpop.f32.mrf.mxu0
  %v7046 = vadd.f32 %v6877, %v7045
  %7047 = vmatmul.bf16.gmra.mxu0 %v665
  %v7048 = vpop.f32.mrf.mxu0
  %v7049 = vadd.f32 %v6880, %v7048
  %v7050 = vpop.f32.mrf.mxu0
  %v7051 = vadd.f32 %v6882, %v7050
  %7052 = vmatmul.bf16.gmra.mxu0 %v668
  %v7053 = vpop.f32.mrf.mxu0
  %v7054 = vadd.f32 %v6885, %v7053
  %v7055 = vpop.f32.mrf.mxu0
  %v7056 = vadd.f32 %v6887, %v7055
  %7057 = vmatmul.bf16.gmra.mxu0 %v671
  %v7058 = vpop.f32.mrf.mxu0
  %v7059 = vadd.f32 %v6890, %v7058
  %v7060 = vpop.f32.mrf.mxu0
  %v7061 = vadd.f32 %v6892, %v7060
  %7062 = vmatmul.bf16.gmra.mxu0 %v674
  %v7063 = vpop.f32.mrf.mxu0
  %v7064 = vadd.f32 %v6895, %v7063
  %v7065 = vpop.f32.mrf.mxu0
  %v7066 = vadd.f32 %v6897, %v7065
  %7067 = vmatmul.bf16.gmra.mxu0 %v677
  %v7068 = vpop.f32.mrf.mxu0
  %v7069 = vadd.f32 %v6900, %v7068
  %v7070 = vpop.f32.mrf.mxu0
  %v7071 = vadd.f32 %v6902, %v7070
  %7072 = vmatmul.bf16.gmra.mxu0 %v680
  %v7073 = vpop.f32.mrf.mxu0
  %v7074 = vadd.f32 %v6905, %v7073
  %v7075 = vpop.f32.mrf.mxu0
  %v7076 = vadd.f32 %v6907, %v7075
  %7077 = vmatmul.bf16.gmra.mxu0 %v683
  %v7078 = vpop.f32.mrf.mxu0
  %v7079 = vadd.f32 %v6910, %v7078
  %v7080 = vpop.f32.mrf.mxu0
  %v7081 = vadd.f32 %v6912, %v7080
  %7082 = vmatmul.bf16.gmra.mxu0 %v686
  %v7083 = vpop.f32.mrf.mxu0
  %v7084 = vadd.f32 %v6915, %v7083
  %v7085 = vpop.f32.mrf.mxu0
  %v7086 = vadd.f32 %v6917, %v7085
  %7087 = vmatmul.bf16.gmra.mxu0 %v689
  %v7088 = vpop.f32.mrf.mxu0
  %v7089 = vadd.f32 %v6920, %v7088
  %v7090 = vpop.f32.mrf.mxu0
  %v7091 = vadd.f32 %v6922, %v7090
  %7092 = vmatmul.bf16.gmra.mxu0 %v692
  %v7093 = vpop.f32.mrf.mxu0
  %v7094 = vadd.f32 %v6925, %v7093
  %v7095 = vpop.f32.mrf.mxu0
  %v7096 = vadd.f32 %v6927, %v7095
  %7097 = vmatmul.bf16.gmra.mxu0 %v695
  %v7098 = vpop.f32.mrf.mxu0
  %v7099 = vadd.f32 %v6930, %v7098
  %v7100 = vpop.f32.mrf.mxu0
  %v7101 = vadd.f32 %v6932, %v7100
  %7102 = vmatmul.bf16.gmra.mxu0 %v698
  %v7103 = vpop.f32.mrf.mxu0
  %v7104 = vadd.f32 %v6935, %v7103
  %v7105 = vpop.f32.mrf.mxu0
  %v7106 = vadd.f32 %v6937, %v7105
  %7107 = vmatmul.bf16.gmra.mxu0 %v701
  %v7108 = vpop.f32.mrf.mxu0
  %v7109 = vadd.f32 %v6940, %v7108
  %v7110 = vpop.f32.mrf.mxu0
  %v7111 = vadd.f32 %v6942, %v7110
  %7112 = vmatmul.bf16.gmra.mxu0 %v704
  %v7113 = vpop.f32.mrf.mxu0
  %v7114 = vadd.f32 %v6945, %v7113
  %v7115 = vpop.f32.mrf.mxu0
  %v7116 = vadd.f32 %v6947, %v7115
  %7117 = vmatmul.bf16.gmra.mxu0 %v707
  %v7118 = vpop.f32.mrf.mxu0
  %v7119 = vadd.f32 %v6950, %v7118
  %v7120 = vpop.f32.mrf.mxu0
  %v7121 = vadd.f32 %v6952, %v7120
  %7122 = vmatmul.bf16.gmra.mxu0 %v710
  %v7123 = vpop.f32.mrf.mxu0
  %v7124 = vadd.f32 %v6955, %v7123
  %v7125 = vpop.f32.mrf.mxu0
  %v7126 = vadd.f32 %v6957, %v7125
  %7127 = vmatmul.bf16.gmra.mxu0 %v713
  %v7128 = vpop.f32.mrf.mxu0
  %v7129 = vadd.f32 %v6960, %v7128
  %v7130 = vpop.f32.mrf.mxu0
  %v7131 = vadd.f32 %v6962, %v7130
  %7132 = vmatmul.bf16.gmra.mxu0 %v716
  %v7133 = vpop.f32.mrf.mxu0
  %v7134 = vadd.f32 %v6965, %v7133
  %v7135 = vpop.f32.mrf.mxu0
  %v7136 = vadd.f32 %v6967, %v7135
  %7137 = vmatmul.bf16.gmra.mxu0 %v719
  %v7138 = vpop.f32.mrf.mxu0
  %v7139 = vadd.f32 %v6970, %v7138
  %v7140 = vpop.f32.mrf.mxu0
  %v7141 = vadd.f32 %v6972, %v7140
  %7142 = vmatmul.bf16.gmra.mxu0 %v722
  %v7143 = vpop.f32.mrf.mxu0
  %v7144 = vadd.f32 %v6975, %v7143
  %v7145 = vpop.f32.mrf.mxu0
  %v7146 = vadd.f32 %v6977, %v7145
  %7147 = vdwg.mxu0
  %v7148 = vmax.f32 %v6989, %v7069
  %v7149 = vmax.f32 %v6991, %v7071
  %v7150 = vmax.f32 %v6994, %v7074
  %v7151 = vmax.f32 %v6996, %v7076
  %v7152 = vmax.f32 %v6999, %v7079
  %v7153 = vmax.f32 %v7001, %v7081
  %v7154 = vmax.f32 %v7004, %v7084
  %v7155 = vmax.f32 %v7006, %v7086
  %v7156 = vmax.f32 %v7009, %v7089
  %v7157 = vmax.f32 %v7011, %v7091
  %v7158 = vmax.f32 %v7014, %v7094
  %v7159 = vmax.f32 %v7016, %v7096
  %v7160 = vmax.f32 %v7019, %v7099
  %v7161 = vmax.f32 %v7021, %v7101
  %v7162 = vmax.f32 %v7024, %v7104
  %v7163 = vmax.f32 %v7026, %v7106
  %v7164 = vmax.f32 %v7029, %v7109
  %v7165 = vmax.f32 %v7031, %v7111
  %v7166 = vmax.f32 %v7034, %v7114
  %v7167 = vmax.f32 %v7036, %v7116
  %v7168 = vmax.f32 %v7039, %v7119
  %v7169 = vmax.f32 %v7041, %v7121
  %v7170 = vmax.f32 %v7044, %v7124
  %v7171 = vmax.f32 %v7046, %v7126
  %v7172 = vmax.f32 %v7049, %v7129
  %v7173 = vmax.f32 %v7051, %v7131
  %v7174 = vmax.f32 %v7054, %v7134
  %v7175 = vmax.f32 %v7056, %v7136
  %v7176 = vmax.f32 %v7059, %v7139
  %v7177 = vmax.f32 %v7061, %v7141
  %v7178 = vmax.f32 %v7064, %v7144
  %v7179 = vmax.f32 %v7066, %v7146
  %v7180 = vmax.f32 %v7148, %v7164
  %v7181 = vmax.f32 %v7149, %v7165
  %v7182 = vmax.f32 %v7150, %v7166
  %v7183 = vmax.f32 %v7151, %v7167
  %v7184 = vmax.f32 %v7152, %v7168
  %v7185 = vmax.f32 %v7153, %v7169
  %v7186 = vmax.f32 %v7154, %v7170
  %v7187 = vmax.f32 %v7155, %v7171
  %v7188 = vmax.f32 %v7156, %v7172
  %v7189 = vmax.f32 %v7157, %v7173
  %v7190 = vmax.f32 %v7158, %v7174
  %v7191 = vmax.f32 %v7159, %v7175
  %v7192 = vmax.f32 %v7160, %v7176
  %v7193 = vmax.f32 %v7161, %v7177
  %v7194 = vmax.f32 %v7162, %v7178
  %v7195 = vmax.f32 %v7163, %v7179
  %v7196 = vadd.f32 %v7180, %v1113
  %v7197 = vadd.f32 %v7181, %v1118
  %v7198 = vadd.f32 %v7182, %v1123
  %v7199 = vadd.f32 %v7183, %v1128
  %v7200 = vadd.f32 %v7184, %v1133
  %v7201 = vadd.f32 %v7185, %v1138
  %v7202 = vadd.f32 %v7186, %v1143
  %v7203 = vadd.f32 %v7187, %v1148
  %v7204 = vadd.f32 %v7188, %v1153
  %v7205 = vadd.f32 %v7189, %v1158
  %v7206 = vadd.f32 %v7190, %v1163
  %v7207 = vadd.f32 %v7191, %v1168
  %v7208 = vadd.f32 %v7192, %v1173
  %v7209 = vadd.f32 %v7193, %v1178
  %v7210 = vadd.f32 %v7194, %v1183
  %v7211 = vadd.f32 %v7195, %v1188
  %v7212 = vmax.f32 %v7196, 0.0
  %v7213 = vmax.f32 %v7197, 0.0
  %v7214 = vmax.f32 %v7198, 0.0
  %v7215 = vmax.f32 %v7199, 0.0
  %v7216 = vmax.f32 %v7200, 0.0
  %v7217 = vmax.f32 %v7201, 0.0
  %v7218 = vmax.f32 %v7202, 0.0
  %v7219 = vmax.f32 %v7203, 0.0
  %v7220 = vmax.f32 %v7204, 0.0
  %v7221 = vmax.f32 %v7205, 0.0
  %v7222 = vmax.f32 %v7206, 0.0
  %v7223 = vmax.f32 %v7207, 0.0
  %v7224 = vmax.f32 %v7208, 0.0
  %v7225 = vmax.f32 %v7209, 0.0
  %v7226 = vmax.f32 %v7210, 0.0
  %v7227 = vmax.f32 %v7211, 0.0
  %v7228 = vpack.c.bf16 %v7212, %v7212
  %v7229 = vpack.c.bf16 %v7213, %v7213
  %v7230 = vpack.c.bf16 %v7214, %v7214
  %v7231 = vpack.c.bf16 %v7215, %v7215
  %v7232 = vpack.c.bf16 %v7216, %v7216
  %v7233 = vpack.c.bf16 %v7217, %v7217
  %v7234 = vpack.c.bf16 %v7218, %v7218
  %v7235 = vpack.c.bf16 %v7219, %v7219
  %v7236 = vpack.c.bf16 %v7220, %v7220
  %v7237 = vpack.c.bf16 %v7221, %v7221
  %v7238 = vpack.c.bf16 %v7222, %v7222
  %v7239 = vpack.c.bf16 %v7223, %v7223
  %v7240 = vpack.c.bf16 %v7224, %v7224
  %v7241 = vpack.c.bf16 %v7225, %v7225
  %v7242 = vpack.c.bf16 %v7226, %v7226
  %v7243 = vpack.c.bf16 %v7227, %v7227
  %7244 = vst [vmem:[#allocation2 + $0x2c0] sm:$0xf] %v7228
  %7245 = vst [vmem:[#allocation2 + $0x2c4] sm:$0xf] %v7229
  %7246 = vst [vmem:[#allocation2 + $0x2c8] sm:$0xf] %v7230
  %7247 = vst [vmem:[#allocation2 + $0x2cc] sm:$0xf] %v7231
  %7248 = vst [vmem:[#allocation2 + $0x2d0] sm:$0xf] %v7232
  %7249 = vst [vmem:[#allocation2 + $0x2d4] sm:$0xf] %v7233
  %7250 = vst [vmem:[#allocation2 + $0x2d8] sm:$0xf] %v7234
  %7251 = vst [vmem:[#allocation2 + $0x2dc] sm:$0xf] %v7235
  %7252 = vst [vmem:[#allocation2 + $0x2e0] sm:$0xf] %v7236
  %7253 = vst [vmem:[#allocation2 + $0x2e4] sm:$0xf] %v7237
  %7254 = vst [vmem:[#allocation2 + $0x2e8] sm:$0xf] %v7238
  %7255 = vst [vmem:[#allocation2 + $0x2ec] sm:$0xf] %v7239
  %7256 = vst [vmem:[#allocation2 + $0x2f0] sm:$0xf] %v7240
  %7257 = vst [vmem:[#allocation2 + $0x2f4] sm:$0xf] %v7241
  %7258 = vst [vmem:[#allocation2 + $0x2f8] sm:$0xf] %v7242
  %7259 = vst [vmem:[#allocation2 + $0x2fc] sm:$0xf] %v7243
  %v7260 = vld [vmem:[#allocation2] sm:$0xf]
  %v7261 = vld [vmem:[#allocation2 + $0x4] sm:$0xf]
  %v7262 = vld [vmem:[#allocation2 + $0x8] sm:$0xf]
  %v7263 = vld [vmem:[#allocation2 + $0xc] sm:$0xf]
  %v7264 = vld [vmem:[#allocation2 + $0x10] sm:$0xf]
  %v7265 = vld [vmem:[#allocation2 + $0x14] sm:$0xf]
  %v7266 = vld [vmem:[#allocation2 + $0x18] sm:$0xf]
  %v7267 = vld [vmem:[#allocation2 + $0x1c] sm:$0xf]
  %v7268 = vld [vmem:[#allocation2 + $0x20] sm:$0xf]
  %v7269 = vld [vmem:[#allocation2 + $0x24] sm:$0xf]
  %v7270 = vld [vmem:[#allocation2 + $0x28] sm:$0xf]
  %v7271 = vld [vmem:[#allocation2 + $0x2c] sm:$0xf]
  %v7272 = vld [vmem:[#allocation2 + $0x30] sm:$0xf]
  %v7273 = vld [vmem:[#allocation2 + $0x34] sm:$0xf]
  %v7274 = vld [vmem:[#allocation2 + $0x38] sm:$0xf]
  %v7275 = vld [vmem:[#allocation2 + $0x3c] sm:$0xf]
  %v7276 = vld [vmem:[#allocation2 + $0x40] sm:$0xf]
  %v7277 = vld [vmem:[#allocation2 + $0x44] sm:$0xf]
  %v7278 = vld [vmem:[#allocation2 + $0x48] sm:$0xf]
  %v7279 = vld [vmem:[#allocation2 + $0x4c] sm:$0xf]
  %v7280 = vld [vmem:[#allocation2 + $0x50] sm:$0xf]
  %v7281 = vld [vmem:[#allocation2 + $0x54] sm:$0xf]
  %v7282 = vld [vmem:[#allocation2 + $0x58] sm:$0xf]
  %v7283 = vld [vmem:[#allocation2 + $0x5c] sm:$0xf]
  %v7284 = vld [vmem:[#allocation2 + $0x60] sm:$0xf]
  %v7285 = vld [vmem:[#allocation2 + $0x64] sm:$0xf]
  %v7286 = vld [vmem:[#allocation2 + $0x68] sm:$0xf]
  %v7287 = vld [vmem:[#allocation2 + $0x6c] sm:$0xf]
  %v7288 = vld [vmem:[#allocation2 + $0x70] sm:$0xf]
  %v7289 = vld [vmem:[#allocation2 + $0x74] sm:$0xf]
  %v7290 = vld [vmem:[#allocation2 + $0x78] sm:$0xf]
  %v7291 = vld [vmem:[#allocation2 + $0x7c] sm:$0xf]
  %v7292 = vld [vmem:[#allocation2 + $0x80] sm:$0xf]
  %v7293 = vld [vmem:[#allocation2 + $0x84] sm:$0xf]
  %v7294 = vld [vmem:[#allocation2 + $0x88] sm:$0xf]
  %v7295 = vld [vmem:[#allocation2 + $0x8c] sm:$0xf]
  %v7296 = vld [vmem:[#allocation2 + $0x90] sm:$0xf]
  %v7297 = vld [vmem:[#allocation2 + $0x94] sm:$0xf]
  %v7298 = vld [vmem:[#allocation2 + $0x98] sm:$0xf]
  %v7299 = vld [vmem:[#allocation2 + $0x9c] sm:$0xf]
  %v7300 = vld [vmem:[#allocation2 + $0xa0] sm:$0xf]
  %v7301 = vld [vmem:[#allocation2 + $0xa4] sm:$0xf]
  %v7302 = vld [vmem:[#allocation2 + $0xa8] sm:$0xf]
  %v7303 = vld [vmem:[#allocation2 + $0xac] sm:$0xf]
  %v7304 = vld [vmem:[#allocation2 + $0xb0] sm:$0xf]
  %v7305 = vld [vmem:[#allocation2 + $0xb4] sm:$0xf]
  %v7306 = vld [vmem:[#allocation2 + $0xb8] sm:$0xf]
  %v7307 = vld [vmem:[#allocation2 + $0xbc] sm:$0xf]
  %v7308 = vld [vmem:[#allocation2 + $0xc0] sm:$0xf]
  %v7309 = vld [vmem:[#allocation2 + $0xc4] sm:$0xf]
  %v7310 = vld [vmem:[#allocation2 + $0xc8] sm:$0xf]
  %v7311 = vld [vmem:[#allocation2 + $0xcc] sm:$0xf]
  %v7312 = vld [vmem:[#allocation2 + $0xd0] sm:$0xf]
  %v7313 = vld [vmem:[#allocation2 + $0xd4] sm:$0xf]
  %v7314 = vld [vmem:[#allocation2 + $0xd8] sm:$0xf]
  %v7315 = vld [vmem:[#allocation2 + $0xdc] sm:$0xf]
  %v7316 = vld [vmem:[#allocation2 + $0xe0] sm:$0xf]
  %v7317 = vld [vmem:[#allocation2 + $0xe4] sm:$0xf]
  %v7318 = vld [vmem:[#allocation2 + $0xe8] sm:$0xf]
  %v7319 = vld [vmem:[#allocation2 + $0xec] sm:$0xf]
  %v7320 = vld [vmem:[#allocation2 + $0xf0] sm:$0xf]
  %v7321 = vld [vmem:[#allocation2 + $0xf4] sm:$0xf]
  %v7322 = vld [vmem:[#allocation2 + $0xf8] sm:$0xf]
  %v7323 = vld [vmem:[#allocation2 + $0xfc] sm:$0xf]
  %v7324 = vld [vmem:[#allocation2 + $0x100] sm:$0xf]
  %v7325 = vld [vmem:[#allocation2 + $0x104] sm:$0xf]
  %v7326 = vld [vmem:[#allocation2 + $0x108] sm:$0xf]
  %v7327 = vld [vmem:[#allocation2 + $0x10c] sm:$0xf]
  %v7328 = vld [vmem:[#allocation2 + $0x110] sm:$0xf]
  %v7329 = vld [vmem:[#allocation2 + $0x114] sm:$0xf]
  %v7330 = vld [vmem:[#allocation2 + $0x118] sm:$0xf]
  %v7331 = vld [vmem:[#allocation2 + $0x11c] sm:$0xf]
  %v7332 = vld [vmem:[#allocation2 + $0x120] sm:$0xf]
  %v7333 = vld [vmem:[#allocation2 + $0x124] sm:$0xf]
  %v7334 = vld [vmem:[#allocation2 + $0x128] sm:$0xf]
  %v7335 = vld [vmem:[#allocation2 + $0x12c] sm:$0xf]
  %v7336 = vld [vmem:[#allocation2 + $0x130] sm:$0xf]
  %v7337 = vld [vmem:[#allocation2 + $0x134] sm:$0xf]
  %v7338 = vld [vmem:[#allocation2 + $0x138] sm:$0xf]
  %v7339 = vld [vmem:[#allocation2 + $0x13c] sm:$0xf]
  %v7340 = vld [vmem:[#allocation2 + $0x140] sm:$0xf]
  %v7341 = vld [vmem:[#allocation2 + $0x144] sm:$0xf]
  %v7342 = vld [vmem:[#allocation2 + $0x148] sm:$0xf]
  %v7343 = vld [vmem:[#allocation2 + $0x14c] sm:$0xf]
  %v7344 = vld [vmem:[#allocation2 + $0x150] sm:$0xf]
  %v7345 = vld [vmem:[#allocation2 + $0x154] sm:$0xf]
  %v7346 = vld [vmem:[#allocation2 + $0x158] sm:$0xf]
  %v7347 = vld [vmem:[#allocation2 + $0x15c] sm:$0xf]
  %v7348 = vld [vmem:[#allocation2 + $0x160] sm:$0xf]
  %v7349 = vld [vmem:[#allocation2 + $0x164] sm:$0xf]
  %v7350 = vld [vmem:[#allocation2 + $0x168] sm:$0xf]
  %v7351 = vld [vmem:[#allocation2 + $0x16c] sm:$0xf]
  %v7352 = vld [vmem:[#allocation2 + $0x170] sm:$0xf]
  %v7353 = vld [vmem:[#allocation2 + $0x174] sm:$0xf]
  %v7354 = vld [vmem:[#allocation2 + $0x178] sm:$0xf]
  %v7355 = vld [vmem:[#allocation2 + $0x17c] sm:$0xf]
  %v7476 = vunpack.c.l.b16 %v113
  %v7477 = vunpack.c.h.b16 %v113
  %v7478 = vunpack.c.l.b16 %v114
  %v7479 = vunpack.c.h.b16 %v114
  %v7480 = vunpack.c.l.b16 %v115
  %v7481 = vunpack.c.h.b16 %v115
  %v7482 = vunpack.c.l.b16 %v116
  %v7483 = vunpack.c.h.b16 %v116
  %v7484 = vunpack.c.l.b16 %v117
  %v7485 = vunpack.c.h.b16 %v117
  %v7486 = vunpack.c.l.b16 %v118
  %v7487 = vunpack.c.h.b16 %v118
  %v7488 = vunpack.c.l.b16 %v119
  %v7489 = vunpack.c.h.b16 %v119
  %v7490 = vunpack.c.l.b16 %v120
  %v7491 = vunpack.c.h.b16 %v120
  %v7492 = vunpack.c.l.b16 %v121
  %v7493 = vunpack.c.h.b16 %v121
  %v7494 = vunpack.c.l.b16 %v122
  %v7495 = vunpack.c.h.b16 %v122
  %v7496 = vunpack.c.l.b16 %v123
  %v7497 = vunpack.c.h.b16 %v123
  %v7498 = vunpack.c.l.b16 %v124
  %v7499 = vunpack.c.h.b16 %v124
  %v7500 = vunpack.c.l.b16 %v125
  %v7501 = vunpack.c.h.b16 %v125
  %v7502 = vunpack.c.l.b16 %v126
  %v7503 = vunpack.c.h.b16 %v126
  %v7504 = vunpack.c.l.b16 %v127
  %v7505 = vunpack.c.h.b16 %v127
  %v7506 = vunpack.c.l.b16 %v128
  %v7507 = vunpack.c.h.b16 %v128
  %v7508 = vunpack.c.l.b16 %v129
  %v7509 = vunpack.c.h.b16 %v129
  %v7510 = vunpack.c.l.b16 %v130
  %v7511 = vunpack.c.h.b16 %v130
  %v7512 = vunpack.c.l.b16 %v131
  %v7513 = vunpack.c.h.b16 %v131
  %v7514 = vunpack.c.l.b16 %v132
  %v7515 = vunpack.c.h.b16 %v132
  %v7516 = vunpack.c.l.b16 %v133
  %v7517 = vunpack.c.h.b16 %v133
  %v7518 = vunpack.c.l.b16 %v134
  %v7519 = vunpack.c.h.b16 %v134
  %v7520 = vunpack.c.l.b16 %v135
  %v7521 = vunpack.c.h.b16 %v135
  %v7522 = vunpack.c.l.b16 %v136
  %v7523 = vunpack.c.h.b16 %v136
  %v7524 = vunpack.c.l.b16 %v137
  %v7525 = vunpack.c.h.b16 %v137
  %v7526 = vunpack.c.l.b16 %v138
  %v7527 = vunpack.c.h.b16 %v138
  %v7528 = vunpack.c.l.b16 %v139
  %v7529 = vunpack.c.h.b16 %v139
  %v7530 = vunpack.c.l.b16 %v140
  %v7531 = vunpack.c.h.b16 %v140
  %v7532 = vunpack.c.l.b16 %v141
  %v7533 = vunpack.c.h.b16 %v141
  %v7534 = vunpack.c.l.b16 %v142
  %v7535 = vunpack.c.h.b16 %v142
  %v7536 = vunpack.c.l.b16 %v143
  %v7537 = vunpack.c.h.b16 %v143
  %v7538 = vunpack.c.l.b16 %v144
  %v7539 = vunpack.c.h.b16 %v144
  %v7540 = vunpack.c.l.b16 %v145
  %v7541 = vunpack.c.h.b16 %v145
  %v7542 = vunpack.c.l.b16 %v146
  %v7543 = vunpack.c.h.b16 %v146
  %v7544 = vunpack.c.l.b16 %v147
  %v7545 = vunpack.c.h.b16 %v147
  %v7546 = vunpack.c.l.b16 %v148
  %v7547 = vunpack.c.h.b16 %v148
  %v7548 = vunpack.c.l.b16 %v149
  %v7549 = vunpack.c.h.b16 %v149
  %v7550 = vunpack.c.l.b16 %v150
  %v7551 = vunpack.c.h.b16 %v150
  %v7552 = vunpack.c.l.b16 %v151
  %v7553 = vunpack.c.h.b16 %v151
  %v7554 = vunpack.c.l.b16 %v152
  %v7555 = vunpack.c.h.b16 %v152
  %v7556 = vunpack.c.l.b16 %v153
  %v7557 = vunpack.c.h.b16 %v153
  %v7558 = vunpack.c.l.b16 %v154
  %v7559 = vunpack.c.h.b16 %v154
  %v7560 = vunpack.c.l.b16 %v155
  %v7561 = vunpack.c.h.b16 %v155
  %v7562 = vunpack.c.l.b16 %v156
  %v7563 = vunpack.c.h.b16 %v156
  %v7564 = vunpack.c.l.b16 %v157
  %v7565 = vunpack.c.h.b16 %v157
  %v7566 = vunpack.c.l.b16 %v158
  %v7567 = vunpack.c.h.b16 %v158
  %v7568 = vunpack.c.l.b16 %v159
  %v7569 = vunpack.c.h.b16 %v159
  %v7570 = vunpack.c.l.b16 %v160
  %v7571 = vunpack.c.h.b16 %v160
  %v7572 = vunpack.c.l.b16 %v161
  %v7573 = vunpack.c.h.b16 %v161
  %v7574 = vunpack.c.l.b16 %v162
  %v7575 = vunpack.c.h.b16 %v162
  %v7576 = vunpack.c.l.b16 %v163
  %v7577 = vunpack.c.h.b16 %v163
  %v7578 = vunpack.c.l.b16 %v164
  %v7579 = vunpack.c.h.b16 %v164
  %v7580 = vunpack.c.l.b16 %v165
  %v7581 = vunpack.c.h.b16 %v165
  %v7582 = vunpack.c.l.b16 %v166
  %v7583 = vunpack.c.h.b16 %v166
  %v7584 = vunpack.c.l.b16 %v167
  %v7585 = vunpack.c.h.b16 %v167
  %v7586 = vunpack.c.l.b16 %v168
  %v7587 = vunpack.c.h.b16 %v168
  %v7588 = vunpack.c.l.b16 %v169
  %v7589 = vunpack.c.h.b16 %v169
  %v7590 = vunpack.c.l.b16 %v170
  %v7591 = vunpack.c.h.b16 %v170
  %v7592 = vunpack.c.l.b16 %v171
  %v7593 = vunpack.c.h.b16 %v171
  %v7594 = vunpack.c.l.b16 %v172
  %v7595 = vunpack.c.h.b16 %v172
  %v7596 = vunpack.c.l.b16 %v173
  %v7597 = vunpack.c.h.b16 %v173
  %v7598 = vunpack.c.l.b16 %v174
  %v7599 = vunpack.c.h.b16 %v174
  %v7600 = vunpack.c.l.b16 %v175
  %v7601 = vunpack.c.h.b16 %v175
  %v7602 = vunpack.c.l.b16 %v176
  %v7603 = vunpack.c.h.b16 %v176
  %v7604 = vunpack.c.l.b16 %v177
  %v7605 = vunpack.c.h.b16 %v177
  %v7606 = vunpack.c.l.b16 %v178
  %v7607 = vunpack.c.h.b16 %v178
  %v7608 = vunpack.c.l.b16 %v179
  %v7609 = vunpack.c.h.b16 %v179
  %v7610 = vunpack.c.l.b16 %v180
  %v7611 = vunpack.c.h.b16 %v180
  %v7612 = vunpack.c.l.b16 %v181
  %v7613 = vunpack.c.h.b16 %v181
  %v7614 = vunpack.c.l.b16 %v182
  %v7615 = vunpack.c.h.b16 %v182
  %v7616 = vunpack.c.l.b16 %v183
  %v7617 = vunpack.c.h.b16 %v183
  %v7618 = vunpack.c.l.b16 %v184
  %v7619 = vunpack.c.h.b16 %v184
  %v7620 = vunpack.c.l.b16 %v185
  %v7621 = vunpack.c.h.b16 %v185
  %v7622 = vunpack.c.l.b16 %v186
  %v7623 = vunpack.c.h.b16 %v186
  %v7624 = vunpack.c.l.b16 %v187
  %v7625 = vunpack.c.h.b16 %v187
  %v7626 = vunpack.c.l.b16 %v188
  %v7627 = vunpack.c.h.b16 %v188
  %v7628 = vunpack.c.l.b16 %v189
  %v7629 = vunpack.c.h.b16 %v189
  %v7630 = vunpack.c.l.b16 %v190
  %v7631 = vunpack.c.h.b16 %v190
  %v7632 = vunpack.c.l.b16 %v191
  %v7633 = vunpack.c.h.b16 %v191
  %v7634 = vunpack.c.l.b16 %v192
  %v7635 = vunpack.c.h.b16 %v192
  %v7636 = vunpack.c.l.b16 %v193
  %v7637 = vunpack.c.h.b16 %v193
  %v7638 = vunpack.c.l.b16 %v194
  %v7639 = vunpack.c.h.b16 %v194
  %v7640 = vunpack.c.l.b16 %v195
  %v7641 = vunpack.c.h.b16 %v195
  %v7642 = vunpack.c.l.b16 %v196
  %v7643 = vunpack.c.h.b16 %v196
  %v7644 = vunpack.c.l.b16 %v197
  %v7645 = vunpack.c.h.b16 %v197
  %v7646 = vunpack.c.l.b16 %v198
  %v7647 = vunpack.c.h.b16 %v198
  %v7648 = vunpack.c.l.b16 %v199
  %v7649 = vunpack.c.h.b16 %v199
  %v7650 = vunpack.c.l.b16 %v200
  %v7651 = vunpack.c.h.b16 %v200
  %v7652 = vunpack.c.l.b16 %v201
  %v7653 = vunpack.c.h.b16 %v201
  %v7654 = vunpack.c.l.b16 %v202
  %v7655 = vunpack.c.h.b16 %v202
  %v7656 = vunpack.c.l.b16 %v203
  %v7657 = vunpack.c.h.b16 %v203
  %v7658 = vunpack.c.l.b16 %v204
  %v7659 = vunpack.c.h.b16 %v204
  %v7660 = vunpack.c.l.b16 %v205
  %v7661 = vunpack.c.h.b16 %v205
  %v7662 = vunpack.c.l.b16 %v206
  %v7663 = vunpack.c.h.b16 %v206
  %v7664 = vunpack.c.l.b16 %v207
  %v7665 = vunpack.c.h.b16 %v207
  %v7666 = vunpack.c.l.b16 %v208
  %v7667 = vunpack.c.h.b16 %v208
  %v7668 = vunpack.c.l.b16 %v209
  %v7669 = vunpack.c.h.b16 %v209
  %v7670 = vunpack.c.l.b16 %v210
  %v7671 = vunpack.c.h.b16 %v210
  %v7672 = vunpack.c.l.b16 %v211
  %v7673 = vunpack.c.h.b16 %v211
  %v7674 = vunpack.c.l.b16 %v212
  %v7675 = vunpack.c.h.b16 %v212
  %v7676 = vunpack.c.l.b16 %v213
  %v7677 = vunpack.c.h.b16 %v213
  %v7678 = vunpack.c.l.b16 %v214
  %v7679 = vunpack.c.h.b16 %v214
  %v7680 = vunpack.c.l.b16 %v215
  %v7681 = vunpack.c.h.b16 %v215
  %v7682 = vunpack.c.l.b16 %v216
  %v7683 = vunpack.c.h.b16 %v216
  %v7684 = vunpack.c.l.b16 %v217
  %v7685 = vunpack.c.h.b16 %v217
  %v7686 = vunpack.c.l.b16 %v218
  %v7687 = vunpack.c.h.b16 %v218
  %v7688 = vunpack.c.l.b16 %v219
  %v7689 = vunpack.c.h.b16 %v219
  %v7690 = vunpack.c.l.b16 %v220
  %v7691 = vunpack.c.h.b16 %v220
  %v7692 = vunpack.c.l.b16 %v221
  %v7693 = vunpack.c.h.b16 %v221
  %v7694 = vunpack.c.l.b16 %v222
  %v7695 = vunpack.c.h.b16 %v222
  %v7696 = vunpack.c.l.b16 %v223
  %v7697 = vunpack.c.h.b16 %v223
  %v7698 = vunpack.c.l.b16 %v224
  %v7699 = vunpack.c.h.b16 %v224
  %v7700 = vunpack.c.l.b16 %v225
  %v7701 = vunpack.c.h.b16 %v225
  %v7702 = vunpack.c.l.b16 %v226
  %v7703 = vunpack.c.h.b16 %v226
  %v7704 = vunpack.c.l.b16 %v227
  %v7705 = vunpack.c.h.b16 %v227
  %v7706 = vunpack.c.l.b16 %v228
  %v7707 = vunpack.c.h.b16 %v228
  %v7708 = vunpack.c.l.b16 %v229
  %v7709 = vunpack.c.h.b16 %v229
  %v7710 = vunpack.c.l.b16 %v230
  %v7711 = vunpack.c.h.b16 %v230
  %v7712 = vunpack.c.l.b16 %v231
  %v7713 = vunpack.c.h.b16 %v231
  %v7714 = vunpack.c.l.b16 %v232
  %v7715 = vunpack.c.h.b16 %v232
  %v7716 = vpack.c.b16 %v7482, %v7476
  %v7717 = vpack.c.b16 %v7483, %v7477
  %v7718 = vpack.c.b16 %v7484, %v7478
  %v7719 = vpack.c.b16 %v7485, %v7479
  %v7720 = vpack.c.b16 %v7486, %v7480
  %v7721 = vpack.c.b16 %v7487, %v7481
  %v7722 = vpack.c.b16 %v7494, %v7488
  %v7723 = vpack.c.b16 %v7495, %v7489
  %v7724 = vpack.c.b16 %v7496, %v7490
  %v7725 = vpack.c.b16 %v7497, %v7491
  %v7726 = vpack.c.b16 %v7498, %v7492
  %v7727 = vpack.c.b16 %v7499, %v7493
  %v7728 = vpack.c.b16 %v7506, %v7500
  %v7729 = vpack.c.b16 %v7507, %v7501
  %v7730 = vpack.c.b16 %v7508, %v7502
  %v7731 = vpack.c.b16 %v7509, %v7503
  %v7732 = vpack.c.b16 %v7510, %v7504
  %v7733 = vpack.c.b16 %v7511, %v7505
  %v7734 = vpack.c.b16 %v7518, %v7512
  %v7735 = vpack.c.b16 %v7519, %v7513
  %v7736 = vpack.c.b16 %v7520, %v7514
  %v7737 = vpack.c.b16 %v7521, %v7515
  %v7738 = vpack.c.b16 %v7522, %v7516
  %v7739 = vpack.c.b16 %v7523, %v7517
  %v7740 = vpack.c.b16 %v7530, %v7524
  %v7741 = vpack.c.b16 %v7531, %v7525
  %v7742 = vpack.c.b16 %v7532, %v7526
  %v7743 = vpack.c.b16 %v7533, %v7527
  %v7744 = vpack.c.b16 %v7534, %v7528
  %v7745 = vpack.c.b16 %v7535, %v7529
  %v7746 = vpack.c.b16 %v7542, %v7536
  %v7747 = vpack.c.b16 %v7543, %v7537
  %v7748 = vpack.c.b16 %v7544, %v7538
  %v7749 = vpack.c.b16 %v7545, %v7539
  %v7750 = vpack.c.b16 %v7546, %v7540
  %v7751 = vpack.c.b16 %v7547, %v7541
  %v7752 = vpack.c.b16 %v7554, %v7548
  %v7753 = vpack.c.b16 %v7555, %v7549
  %v7754 = vpack.c.b16 %v7556, %v7550
  %v7755 = vpack.c.b16 %v7557, %v7551
  %v7756 = vpack.c.b16 %v7558, %v7552
  %v7757 = vpack.c.b16 %v7559, %v7553
  %v7758 = vpack.c.b16 %v7566, %v7560
  %v7759 = vpack.c.b16 %v7567, %v7561
  %v7760 = vpack.c.b16 %v7568, %v7562
  %v7761 = vpack.c.b16 %v7569, %v7563
  %v7762 = vpack.c.b16 %v7570, %v7564
  %v7763 = vpack.c.b16 %v7571, %v7565
  %v7764 = vpack.c.b16 %v7578, %v7572
  %v7765 = vpack.c.b16 %v7579, %v7573
  %v7766 = vpack.c.b16 %v7580, %v7574
  %v7767 = vpack.c.b16 %v7581, %v7575
  %v7768 = vpack.c.b16 %v7582, %v7576
  %v7769 = vpack.c.b16 %v7583, %v7577
  %v7770 = vpack.c.b16 %v7590, %v7584
  %v7771 = vpack.c.b16 %v7591, %v7585
  %v7772 = vpack.c.b16 %v7592, %v7586
  %v7773 = vpack.c.b16 %v7593, %v7587
  %v7774 = vpack.c.b16 %v7594, %v7588
  %v7775 = vpack.c.b16 %v7595, %v7589
  %v7776 = vpack.c.b16 %v7602, %v7596
  %v7777 = vpack.c.b16 %v7603, %v7597
  %v7778 = vpack.c.b16 %v7604, %v7598
  %v7779 = vpack.c.b16 %v7605, %v7599
  %v7780 = vpack.c.b16 %v7606, %v7600
  %v7781 = vpack.c.b16 %v7607, %v7601
  %v7782 = vpack.c.b16 %v7614, %v7608
  %v7783 = vpack.c.b16 %v7615, %v7609
  %v7784 = vpack.c.b16 %v7616, %v7610
  %v7785 = vpack.c.b16 %v7617, %v7611
  %v7786 = vpack.c.b16 %v7618, %v7612
  %v7787 = vpack.c.b16 %v7619, %v7613
  %v7788 = vpack.c.b16 %v7626, %v7620
  %v7789 = vpack.c.b16 %v7627, %v7621
  %v7790 = vpack.c.b16 %v7628, %v7622
  %v7791 = vpack.c.b16 %v7629, %v7623
  %v7792 = vpack.c.b16 %v7630, %v7624
  %v7793 = vpack.c.b16 %v7631, %v7625
  %v7794 = vpack.c.b16 %v7638, %v7632
  %v7795 = vpack.c.b16 %v7639, %v7633
  %v7796 = vpack.c.b16 %v7640, %v7634
  %v7797 = vpack.c.b16 %v7641, %v7635
  %v7798 = vpack.c.b16 %v7642, %v7636
  %v7799 = vpack.c.b16 %v7643, %v7637
  %v7800 = vpack.c.b16 %v7650, %v7644
  %v7801 = vpack.c.b16 %v7651, %v7645
  %v7802 = vpack.c.b16 %v7652, %v7646
  %v7803 = vpack.c.b16 %v7653, %v7647
  %v7804 = vpack.c.b16 %v7654, %v7648
  %v7805 = vpack.c.b16 %v7655, %v7649
  %v7806 = vpack.c.b16 %v7662, %v7656
  %v7807 = vpack.c.b16 %v7663, %v7657
  %v7808 = vpack.c.b16 %v7664, %v7658
  %v7809 = vpack.c.b16 %v7665, %v7659
  %v7810 = vpack.c.b16 %v7666, %v7660
  %v7811 = vpack.c.b16 %v7667, %v7661
  %v7812 = vpack.c.b16 %v7674, %v7668
  %v7813 = vpack.c.b16 %v7675, %v7669
  %v7814 = vpack.c.b16 %v7676, %v7670
  %v7815 = vpack.c.b16 %v7677, %v7671
  %v7816 = vpack.c.b16 %v7678, %v7672
  %v7817 = vpack.c.b16 %v7679, %v7673
  %v7818 = vpack.c.b16 %v7686, %v7680
  %v7819 = vpack.c.b16 %v7687, %v7681
  %v7820 = vpack.c.b16 %v7688, %v7682
  %v7821 = vpack.c.b16 %v7689, %v7683
  %v7822 = vpack.c.b16 %v7690, %v7684
  %v7823 = vpack.c.b16 %v7691, %v7685
  %v7824 = vpack.c.b16 %v7698, %v7692
  %v7825 = vpack.c.b16 %v7699, %v7693
  %v7826 = vpack.c.b16 %v7700, %v7694
  %v7827 = vpack.c.b16 %v7701, %v7695
  %v7828 = vpack.c.b16 %v7702, %v7696
  %v7829 = vpack.c.b16 %v7703, %v7697
  %v7830 = vpack.c.b16 %v7710, %v7704
  %v7831 = vpack.c.b16 %v7711, %v7705
  %v7832 = vpack.c.b16 %v7712, %v7706
  %v7833 = vpack.c.b16 %v7713, %v7707
  %v7834 = vpack.c.b16 %v7714, %v7708
  %v7835 = vpack.c.b16 %v7715, %v7709
  %v8052 = vunpack.c.l.b16 %v7260
  %v8053 = vunpack.c.l.b16 %v7261
  %v8054 = vunpack.c.l.b16 %v7262
  %v8055 = vunpack.c.l.b16 %v7263
  %v8056 = vunpack.c.l.b16 %v7264
  %v8057 = vunpack.c.l.b16 %v7265
  %v8058 = vunpack.c.l.b16 %v7266
  %v8059 = vunpack.c.l.b16 %v7267
  %v8060 = vunpack.c.l.b16 %v7268
  %v8061 = vunpack.c.l.b16 %v7269
  %v8062 = vunpack.c.l.b16 %v7270
  %v8063 = vunpack.c.l.b16 %v7271
  %v8064 = vunpack.c.l.b16 %v7272
  %v8065 = vunpack.c.l.b16 %v7273
  %v8066 = vunpack.c.l.b16 %v7274
  %v8067 = vunpack.c.l.b16 %v7275
  %v8068 = vunpack.c.l.b16 %v7276
  %v8069 = vunpack.c.l.b16 %v7277
  %v8070 = vunpack.c.l.b16 %v7278
  %v8071 = vunpack.c.l.b16 %v7279
  %v8072 = vunpack.c.l.b16 %v7280
  %v8073 = vunpack.c.l.b16 %v7281
  %v8074 = vunpack.c.l.b16 %v7282
  %v8075 = vunpack.c.l.b16 %v7283
  %v8076 = vunpack.c.l.b16 %v7284
  %v8077 = vunpack.c.l.b16 %v7285
  %v8078 = vunpack.c.l.b16 %v7286
  %v8079 = vunpack.c.l.b16 %v7287
  %v8080 = vunpack.c.l.b16 %v7288
  %v8081 = vunpack.c.l.b16 %v7289
  %v8082 = vunpack.c.l.b16 %v7290
  %v8083 = vunpack.c.l.b16 %v7291
  %v8084 = vunpack.c.l.b16 %v7292
  %v8085 = vunpack.c.l.b16 %v7293
  %v8086 = vunpack.c.l.b16 %v7294
  %v8087 = vunpack.c.l.b16 %v7295
  %v8088 = vunpack.c.l.b16 %v7296
  %v8089 = vunpack.c.l.b16 %v7297
  %v8090 = vunpack.c.l.b16 %v7298
  %v8091 = vunpack.c.l.b16 %v7299
  %v8092 = vunpack.c.l.b16 %v7300
  %v8093 = vunpack.c.l.b16 %v7301
  %v8094 = vunpack.c.l.b16 %v7302
  %v8095 = vunpack.c.l.b16 %v7303
  %v8096 = vunpack.c.l.b16 %v7304
  %v8097 = vunpack.c.l.b16 %v7305
  %v8098 = vunpack.c.l.b16 %v7306
  %v8099 = vunpack.c.l.b16 %v7307
  %v8100 = vunpack.c.l.b16 %v7308
  %v8101 = vunpack.c.l.b16 %v7309
  %v8102 = vunpack.c.l.b16 %v7310
  %v8103 = vunpack.c.l.b16 %v7311
  %v8104 = vunpack.c.l.b16 %v7312
  %v8105 = vunpack.c.l.b16 %v7313
  %v8106 = vunpack.c.l.b16 %v7314
  %v8107 = vunpack.c.l.b16 %v7315
  %v8108 = vunpack.c.l.b16 %v7316
  %v8109 = vunpack.c.l.b16 %v7317
  %v8110 = vunpack.c.l.b16 %v7318
  %v8111 = vunpack.c.l.b16 %v7319
  %v8112 = vunpack.c.l.b16 %v7320
  %v8113 = vunpack.c.l.b16 %v7321
  %v8114 = vunpack.c.l.b16 %v7322
  %v8115 = vunpack.c.l.b16 %v7323
  %v8116 = vunpack.c.l.b16 %v7324
  %v8117 = vunpack.c.l.b16 %v7325
  %v8118 = vunpack.c.l.b16 %v7326
  %v8119 = vunpack.c.l.b16 %v7327
  %v8120 = vunpack.c.l.b16 %v7328
  %v8121 = vunpack.c.l.b16 %v7329
  %v8122 = vunpack.c.l.b16 %v7330
  %v8123 = vunpack.c.l.b16 %v7331
  %v8124 = vunpack.c.l.b16 %v7332
  %v8125 = vunpack.c.l.b16 %v7333
  %v8126 = vunpack.c.l.b16 %v7334
  %v8127 = vunpack.c.l.b16 %v7335
  %v8128 = vunpack.c.l.b16 %v7336
  %v8129 = vunpack.c.l.b16 %v7337
  %v8130 = vunpack.c.l.b16 %v7338
  %v8131 = vunpack.c.l.b16 %v7339
  %v8132 = vunpack.c.l.b16 %v7340
  %v8133 = vunpack.c.l.b16 %v7341
  %v8134 = vunpack.c.l.b16 %v7342
  %v8135 = vunpack.c.l.b16 %v7343
  %v8136 = vunpack.c.l.b16 %v7344
  %v8137 = vunpack.c.l.b16 %v7345
  %v8138 = vunpack.c.l.b16 %v7346
  %v8139 = vunpack.c.l.b16 %v7347
  %v8140 = vunpack.c.l.b16 %v7348
  %v8141 = vunpack.c.l.b16 %v7349
  %v8142 = vunpack.c.l.b16 %v7350
  %v8143 = vunpack.c.l.b16 %v7351
  %v8144 = vunpack.c.l.b16 %v7352
  %v8145 = vunpack.c.l.b16 %v7353
  %v8146 = vunpack.c.l.b16 %v7354
  %v8147 = vunpack.c.l.b16 %v7355
  %v8148 = vpack.c.b16 %v8053, %v8052
  %v8149 = vpack.c.b16 %v8055, %v8054
  %v8150 = vpack.c.b16 %v8057, %v8056
  %v8151 = vpack.c.b16 %v8059, %v8058
  %v8152 = vpack.c.b16 %v8061, %v8060
  %v8153 = vpack.c.b16 %v8063, %v8062
  %v8154 = vpack.c.b16 %v8065, %v8064
  %v8155 = vpack.c.b16 %v8067, %v8066
  %v8156 = vpack.c.b16 %v8069, %v8068
  %v8157 = vpack.c.b16 %v8071, %v8070
  %v8158 = vpack.c.b16 %v8073, %v8072
  %v8159 = vpack.c.b16 %v8075, %v8074
  %v8160 = vpack.c.b16 %v8077, %v8076
  %v8161 = vpack.c.b16 %v8079, %v8078
  %v8162 = vpack.c.b16 %v8081, %v8080
  %v8163 = vpack.c.b16 %v8083, %v8082
  %v8164 = vpack.c.b16 %v8085, %v8084
  %v8165 = vpack.c.b16 %v8087, %v8086
  %v8166 = vpack.c.b16 %v8089, %v8088
  %v8167 = vpack.c.b16 %v8091, %v8090
  %v8168 = vpack.c.b16 %v8093, %v8092
  %v8169 = vpack.c.b16 %v8095, %v8094
  %v8170 = vpack.c.b16 %v8097, %v8096
  %v8171 = vpack.c.b16 %v8099, %v8098
  %v8172 = vpack.c.b16 %v8101, %v8100
  %v8173 = vpack.c.b16 %v8103, %v8102
  %v8174 = vpack.c.b16 %v8105, %v8104
  %v8175 = vpack.c.b16 %v8107, %v8106
  %v8176 = vpack.c.b16 %v8109, %v8108
  %v8177 = vpack.c.b16 %v8111, %v8110
  %v8178 = vpack.c.b16 %v8113, %v8112
  %v8179 = vpack.c.b16 %v8115, %v8114
  %v8180 = vpack.c.b16 %v8117, %v8116
  %v8181 = vpack.c.b16 %v8119, %v8118
  %v8182 = vpack.c.b16 %v8121, %v8120
  %v8183 = vpack.c.b16 %v8123, %v8122
  %v8184 = vpack.c.b16 %v8125, %v8124
  %v8185 = vpack.c.b16 %v8127, %v8126
  %v8186 = vpack.c.b16 %v8129, %v8128
  %v8187 = vpack.c.b16 %v8131, %v8130
  %v8188 = vpack.c.b16 %v8133, %v8132
  %v8189 = vpack.c.b16 %v8135, %v8134
  %v8190 = vpack.c.b16 %v8137, %v8136
  %v8191 = vpack.c.b16 %v8139, %v8138
  %v8192 = vpack.c.b16 %v8141, %v8140
  %v8193 = vpack.c.b16 %v8143, %v8142
  %v8194 = vpack.c.b16 %v8145, %v8144
  %v8195 = vpack.c.b16 %v8147, %v8146
  %8244 = vmatpush.bf16.msra.mxu0 %v8155
  %8245 = vmatpush.bf16.msra.mxu0 %v8154
  %8246 = vmatpush.bf16.msra.mxu0 %v8153
  %8247 = vmatpush.bf16.msra.mxu0 %v8152
  %8248 = vmatpush.bf16.msra.mxu0 %v8151
  %8249 = vmatpush.bf16.msra.mxu0 %v8150
  %8250 = vmatpush.bf16.msra.mxu0 %v8149
  %8251 = vmatpush.bf16.msra.mxu0 %v8148
  %8252 = vmatmul.bf16.gmra.mxu0 %v7716
  %v8253 = vpop.f32.mrf.mxu0
  %v8254 = vadd.f32 0.0, %v8253
  %v8255 = vpop.f32.mrf.mxu0
  %v8256 = vadd.f32 0.0, %v8255
  %8257 = vmatmul.bf16.gmra.mxu0 %v7722
  %v8258 = vpop.f32.mrf.mxu0
  %v8259 = vadd.f32 0.0, %v8258
  %v8260 = vpop.f32.mrf.mxu0
  %v8261 = vadd.f32 0.0, %v8260
  %8262 = vmatmul.bf16.gmra.mxu0 %v7728
  %v8263 = vpop.f32.mrf.mxu0
  %v8264 = vadd.f32 0.0, %v8263
  %v8265 = vpop.f32.mrf.mxu0
  %v8266 = vadd.f32 0.0, %v8265
  %8267 = vmatmul.bf16.gmra.mxu0 %v7734
  %v8268 = vpop.f32.mrf.mxu0
  %v8269 = vadd.f32 0.0, %v8268
  %v8270 = vpop.f32.mrf.mxu0
  %v8271 = vadd.f32 0.0, %v8270
  %8272 = vmatmul.bf16.gmra.mxu0 %v7740
  %v8273 = vpop.f32.mrf.mxu0
  %v8274 = vadd.f32 0.0, %v8273
  %v8275 = vpop.f32.mrf.mxu0
  %v8276 = vadd.f32 0.0, %v8275
  %8277 = vmatmul.bf16.gmra.mxu0 %v7746
  %v8278 = vpop.f32.mrf.mxu0
  %v8279 = vadd.f32 0.0, %v8278
  %v8280 = vpop.f32.mrf.mxu0
  %v8281 = vadd.f32 0.0, %v8280
  %8282 = vmatmul.bf16.gmra.mxu0 %v7752
  %v8283 = vpop.f32.mrf.mxu0
  %v8284 = vadd.f32 0.0, %v8283
  %v8285 = vpop.f32.mrf.mxu0
  %v8286 = vadd.f32 0.0, %v8285
  %8287 = vmatmul.bf16.gmra.mxu0 %v7758
  %v8288 = vpop.f32.mrf.mxu0
  %v8289 = vadd.f32 0.0, %v8288
  %v8290 = vpop.f32.mrf.mxu0
  %v8291 = vadd.f32 0.0, %v8290
  %8292 = vmatmul.bf16.gmra.mxu0 %v7764
  %v8293 = vpop.f32.mrf.mxu0
  %v8294 = vadd.f32 0.0, %v8293
  %v8295 = vpop.f32.mrf.mxu0
  %v8296 = vadd.f32 0.0, %v8295
  %8297 = vmatmul.bf16.gmra.mxu0 %v7770
  %v8298 = vpop.f32.mrf.mxu0
  %v8299 = vadd.f32 0.0, %v8298
  %v8300 = vpop.f32.mrf.mxu0
  %v8301 = vadd.f32 0.0, %v8300
  %8302 = vmatmul.bf16.gmra.mxu0 %v7776
  %v8303 = vpop.f32.mrf.mxu0
  %v8304 = vadd.f32 0.0, %v8303
  %v8305 = vpop.f32.mrf.mxu0
  %v8306 = vadd.f32 0.0, %v8305
  %8307 = vmatmul.bf16.gmra.mxu0 %v7782
  %v8308 = vpop.f32.mrf.mxu0
  %v8309 = vadd.f32 0.0, %v8308
  %v8310 = vpop.f32.mrf.mxu0
  %v8311 = vadd.f32 0.0, %v8310
  %8312 = vmatmul.bf16.gmra.mxu0 %v7788
  %v8313 = vpop.f32.mrf.mxu0
  %v8314 = vadd.f32 0.0, %v8313
  %v8315 = vpop.f32.mrf.mxu0
  %v8316 = vadd.f32 0.0, %v8315
  %8317 = vmatmul.bf16.gmra.mxu0 %v7794
  %v8318 = vpop.f32.mrf.mxu0
  %v8319 = vadd.f32 0.0, %v8318
  %v8320 = vpop.f32.mrf.mxu0
  %v8321 = vadd.f32 0.0, %v8320
  %8322 = vmatmul.bf16.gmra.mxu0 %v7800
  %v8323 = vpop.f32.mrf.mxu0
  %v8324 = vadd.f32 0.0, %v8323
  %v8325 = vpop.f32.mrf.mxu0
  %v8326 = vadd.f32 0.0, %v8325
  %8327 = vmatmul.bf16.gmra.mxu0 %v7806
  %v8328 = vpop.f32.mrf.mxu0
  %v8329 = vadd.f32 0.0, %v8328
  %v8330 = vpop.f32.mrf.mxu0
  %v8331 = vadd.f32 0.0, %v8330
  %8332 = vmatmul.bf16.gmra.mxu0 %v7812
  %v8333 = vpop.f32.mrf.mxu0
  %v8334 = vadd.f32 0.0, %v8333
  %v8335 = vpop.f32.mrf.mxu0
  %v8336 = vadd.f32 0.0, %v8335
  %8337 = vmatmul.bf16.gmra.mxu0 %v7818
  %v8338 = vpop.f32.mrf.mxu0
  %v8339 = vadd.f32 0.0, %v8338
  %v8340 = vpop.f32.mrf.mxu0
  %v8341 = vadd.f32 0.0, %v8340
  %8342 = vmatmul.bf16.gmra.mxu0 %v7824
  %v8343 = vpop.f32.mrf.mxu0
  %v8344 = vadd.f32 0.0, %v8343
  %v8345 = vpop.f32.mrf.mxu0
  %v8346 = vadd.f32 0.0, %v8345
  %8347 = vmatmul.bf16.gmra.mxu0 %v7830
  %v8348 = vpop.f32.mrf.mxu0
  %v8349 = vadd.f32 0.0, %v8348
  %v8350 = vpop.f32.mrf.mxu0
  %v8351 = vadd.f32 0.0, %v8350
  %8352 = vdwg.mxu0
  %8353 = vmatpush.bf16.msra.mxu0 %v8163
  %8354 = vmatpush.bf16.msra.mxu0 %v8162
  %8355 = vmatpush.bf16.msra.mxu0 %v8161
  %8356 = vmatpush.bf16.msra.mxu0 %v8160
  %8357 = vmatpush.bf16.msra.mxu0 %v8159
  %8358 = vmatpush.bf16.msra.mxu0 %v8158
  %8359 = vmatpush.bf16.msra.mxu0 %v8157
  %8360 = vmatpush.bf16.msra.mxu0 %v8156
  %8361 = vmatmul.bf16.gmra.mxu0 %v7717
  %v8362 = vpop.f32.mrf.mxu0
  %v8363 = vadd.f32 %v8254, %v8362
  %v8364 = vpop.f32.mrf.mxu0
  %v8365 = vadd.f32 %v8256, %v8364
  %8366 = vmatmul.bf16.gmra.mxu0 %v7723
  %v8367 = vpop.f32.mrf.mxu0
  %v8368 = vadd.f32 %v8259, %v8367
  %v8369 = vpop.f32.mrf.mxu0
  %v8370 = vadd.f32 %v8261, %v8369
  %8371 = vmatmul.bf16.gmra.mxu0 %v7729
  %v8372 = vpop.f32.mrf.mxu0
  %v8373 = vadd.f32 %v8264, %v8372
  %v8374 = vpop.f32.mrf.mxu0
  %v8375 = vadd.f32 %v8266, %v8374
  %8376 = vmatmul.bf16.gmra.mxu0 %v7735
  %v8377 = vpop.f32.mrf.mxu0
  %v8378 = vadd.f32 %v8269, %v8377
  %v8379 = vpop.f32.mrf.mxu0
  %v8380 = vadd.f32 %v8271, %v8379
  %8381 = vmatmul.bf16.gmra.mxu0 %v7741
  %v8382 = vpop.f32.mrf.mxu0
  %v8383 = vadd.f32 %v8274, %v8382
  %v8384 = vpop.f32.mrf.mxu0
  %v8385 = vadd.f32 %v8276, %v8384
  %8386 = vmatmul.bf16.gmra.mxu0 %v7747
  %v8387 = vpop.f32.mrf.mxu0
  %v8388 = vadd.f32 %v8279, %v8387
  %v8389 = vpop.f32.mrf.mxu0
  %v8390 = vadd.f32 %v8281, %v8389
  %8391 = vmatmul.bf16.gmra.mxu0 %v7753
  %v8392 = vpop.f32.mrf.mxu0
  %v8393 = vadd.f32 %v8284, %v8392
  %v8394 = vpop.f32.mrf.mxu0
  %v8395 = vadd.f32 %v8286, %v8394
  %8396 = vmatmul.bf16.gmra.mxu0 %v7759
  %v8397 = vpop.f32.mrf.mxu0
  %v8398 = vadd.f32 %v8289, %v8397
  %v8399 = vpop.f32.mrf.mxu0
  %v8400 = vadd.f32 %v8291, %v8399
  %8401 = vmatmul.bf16.gmra.mxu0 %v7765
  %v8402 = vpop.f32.mrf.mxu0
  %v8403 = vadd.f32 %v8294, %v8402
  %v8404 = vpop.f32.mrf.mxu0
  %v8405 = vadd.f32 %v8296, %v8404
  %8406 = vmatmul.bf16.gmra.mxu0 %v7771
  %v8407 = vpop.f32.mrf.mxu0
  %v8408 = vadd.f32 %v8299, %v8407
  %v8409 = vpop.f32.mrf.mxu0
  %v8410 = vadd.f32 %v8301, %v8409
  %8411 = vmatmul.bf16.gmra.mxu0 %v7777
  %v8412 = vpop.f32.mrf.mxu0
  %v8413 = vadd.f32 %v8304, %v8412
  %v8414 = vpop.f32.mrf.mxu0
  %v8415 = vadd.f32 %v8306, %v8414
  %8416 = vmatmul.bf16.gmra.mxu0 %v7783
  %v8417 = vpop.f32.mrf.mxu0
  %v8418 = vadd.f32 %v8309, %v8417
  %v8419 = vpop.f32.mrf.mxu0
  %v8420 = vadd.f32 %v8311, %v8419
  %8421 = vmatmul.bf16.gmra.mxu0 %v7789
  %v8422 = vpop.f32.mrf.mxu0
  %v8423 = vadd.f32 %v8314, %v8422
  %v8424 = vpop.f32.mrf.mxu0
  %v8425 = vadd.f32 %v8316, %v8424
  %8426 = vmatmul.bf16.gmra.mxu0 %v7795
  %v8427 = vpop.f32.mrf.mxu0
  %v8428 = vadd.f32 %v8319, %v8427
  %v8429 = vpop.f32.mrf.mxu0
  %v8430 = vadd.f32 %v8321, %v8429
  %8431 = vmatmul.bf16.gmra.mxu0 %v7801
  %v8432 = vpop.f32.mrf.mxu0
  %v8433 = vadd.f32 %v8324, %v8432
  %v8434 = vpop.f32.mrf.mxu0
  %v8435 = vadd.f32 %v8326, %v8434
  %8436 = vmatmul.bf16.gmra.mxu0 %v7807
  %v8437 = vpop.f32.mrf.mxu0
  %v8438 = vadd.f32 %v8329, %v8437
  %v8439 = vpop.f32.mrf.mxu0
  %v8440 = vadd.f32 %v8331, %v8439
  %8441 = vmatmul.bf16.gmra.mxu0 %v7813
  %v8442 = vpop.f32.mrf.mxu0
  %v8443 = vadd.f32 %v8334, %v8442
  %v8444 = vpop.f32.mrf.mxu0
  %v8445 = vadd.f32 %v8336, %v8444
  %8446 = vmatmul.bf16.gmra.mxu0 %v7819
  %v8447 = vpop.f32.mrf.mxu0
  %v8448 = vadd.f32 %v8339, %v8447
  %v8449 = vpop.f32.mrf.mxu0
  %v8450 = vadd.f32 %v8341, %v8449
  %8451 = vmatmul.bf16.gmra.mxu0 %v7825
  %v8452 = vpop.f32.mrf.mxu0
  %v8453 = vadd.f32 %v8344, %v8452
  %v8454 = vpop.f32.mrf.mxu0
  %v8455 = vadd.f32 %v8346, %v8454
  %8456 = vmatmul.bf16.gmra.mxu0 %v7831
  %v8457 = vpop.f32.mrf.mxu0
  %v8458 = vadd.f32 %v8349, %v8457
  %v8459 = vpop.f32.mrf.mxu0
  %v8460 = vadd.f32 %v8351, %v8459
  %8461 = vdwg.mxu0
  %8462 = vmatpush.bf16.msra.mxu0 %v8171
  %8463 = vmatpush.bf16.msra.mxu0 %v8170
  %8464 = vmatpush.bf16.msra.mxu0 %v8169
  %8465 = vmatpush.bf16.msra.mxu0 %v8168
  %8466 = vmatpush.bf16.msra.mxu0 %v8167
  %8467 = vmatpush.bf16.msra.mxu0 %v8166
  %8468 = vmatpush.bf16.msra.mxu0 %v8165
  %8469 = vmatpush.bf16.msra.mxu0 %v8164
  %8470 = vmatmul.bf16.gmra.mxu0 %v7718
  %v8471 = vpop.f32.mrf.mxu0
  %v8472 = vadd.f32 %v8363, %v8471
  %v8473 = vpop.f32.mrf.mxu0
  %v8474 = vadd.f32 %v8365, %v8473
  %8475 = vmatmul.bf16.gmra.mxu0 %v7724
  %v8476 = vpop.f32.mrf.mxu0
  %v8477 = vadd.f32 %v8368, %v8476
  %v8478 = vpop.f32.mrf.mxu0
  %v8479 = vadd.f32 %v8370, %v8478
  %8480 = vmatmul.bf16.gmra.mxu0 %v7730
  %v8481 = vpop.f32.mrf.mxu0
  %v8482 = vadd.f32 %v8373, %v8481
  %v8483 = vpop.f32.mrf.mxu0
  %v8484 = vadd.f32 %v8375, %v8483
  %8485 = vmatmul.bf16.gmra.mxu0 %v7736
  %v8486 = vpop.f32.mrf.mxu0
  %v8487 = vadd.f32 %v8378, %v8486
  %v8488 = vpop.f32.mrf.mxu0
  %v8489 = vadd.f32 %v8380, %v8488
  %8490 = vmatmul.bf16.gmra.mxu0 %v7742
  %v8491 = vpop.f32.mrf.mxu0
  %v8492 = vadd.f32 %v8383, %v8491
  %v8493 = vpop.f32.mrf.mxu0
  %v8494 = vadd.f32 %v8385, %v8493
  %8495 = vmatmul.bf16.gmra.mxu0 %v7748
  %v8496 = vpop.f32.mrf.mxu0
  %v8497 = vadd.f32 %v8388, %v8496
  %v8498 = vpop.f32.mrf.mxu0
  %v8499 = vadd.f32 %v8390, %v8498
  %8500 = vmatmul.bf16.gmra.mxu0 %v7754
  %v8501 = vpop.f32.mrf.mxu0
  %v8502 = vadd.f32 %v8393, %v8501
  %v8503 = vpop.f32.mrf.mxu0
  %v8504 = vadd.f32 %v8395, %v8503
  %8505 = vmatmul.bf16.gmra.mxu0 %v7760
  %v8506 = vpop.f32.mrf.mxu0
  %v8507 = vadd.f32 %v8398, %v8506
  %v8508 = vpop.f32.mrf.mxu0
  %v8509 = vadd.f32 %v8400, %v8508
  %8510 = vmatmul.bf16.gmra.mxu0 %v7766
  %v8511 = vpop.f32.mrf.mxu0
  %v8512 = vadd.f32 %v8403, %v8511
  %v8513 = vpop.f32.mrf.mxu0
  %v8514 = vadd.f32 %v8405, %v8513
  %8515 = vmatmul.bf16.gmra.mxu0 %v7772
  %v8516 = vpop.f32.mrf.mxu0
  %v8517 = vadd.f32 %v8408, %v8516
  %v8518 = vpop.f32.mrf.mxu0
  %v8519 = vadd.f32 %v8410, %v8518
  %8520 = vmatmul.bf16.gmra.mxu0 %v7778
  %v8521 = vpop.f32.mrf.mxu0
  %v8522 = vadd.f32 %v8413, %v8521
  %v8523 = vpop.f32.mrf.mxu0
  %v8524 = vadd.f32 %v8415, %v8523
  %8525 = vmatmul.bf16.gmra.mxu0 %v7784
  %v8526 = vpop.f32.mrf.mxu0
  %v8527 = vadd.f32 %v8418, %v8526
  %v8528 = vpop.f32.mrf.mxu0
  %v8529 = vadd.f32 %v8420, %v8528
  %8530 = vmatmul.bf16.gmra.mxu0 %v7790
  %v8531 = vpop.f32.mrf.mxu0
  %v8532 = vadd.f32 %v8423, %v8531
  %v8533 = vpop.f32.mrf.mxu0
  %v8534 = vadd.f32 %v8425, %v8533
  %8535 = vmatmul.bf16.gmra.mxu0 %v7796
  %v8536 = vpop.f32.mrf.mxu0
  %v8537 = vadd.f32 %v8428, %v8536
  %v8538 = vpop.f32.mrf.mxu0
  %v8539 = vadd.f32 %v8430, %v8538
  %8540 = vmatmul.bf16.gmra.mxu0 %v7802
  %v8541 = vpop.f32.mrf.mxu0
  %v8542 = vadd.f32 %v8433, %v8541
  %v8543 = vpop.f32.mrf.mxu0
  %v8544 = vadd.f32 %v8435, %v8543
  %8545 = vmatmul.bf16.gmra.mxu0 %v7808
  %v8546 = vpop.f32.mrf.mxu0
  %v8547 = vadd.f32 %v8438, %v8546
  %v8548 = vpop.f32.mrf.mxu0
  %v8549 = vadd.f32 %v8440, %v8548
  %8550 = vmatmul.bf16.gmra.mxu0 %v7814
  %v8551 = vpop.f32.mrf.mxu0
  %v8552 = vadd.f32 %v8443, %v8551
  %v8553 = vpop.f32.mrf.mxu0
  %v8554 = vadd.f32 %v8445, %v8553
  %8555 = vmatmul.bf16.gmra.mxu0 %v7820
  %v8556 = vpop.f32.mrf.mxu0
  %v8557 = vadd.f32 %v8448, %v8556
  %v8558 = vpop.f32.mrf.mxu0
  %v8559 = vadd.f32 %v8450, %v8558
  %8560 = vmatmul.bf16.gmra.mxu0 %v7826
  %v8561 = vpop.f32.mrf.mxu0
  %v8562 = vadd.f32 %v8453, %v8561
  %v8563 = vpop.f32.mrf.mxu0
  %v8564 = vadd.f32 %v8455, %v8563
  %8565 = vmatmul.bf16.gmra.mxu0 %v7832
  %v8566 = vpop.f32.mrf.mxu0
  %v8567 = vadd.f32 %v8458, %v8566
  %v8568 = vpop.f32.mrf.mxu0
  %v8569 = vadd.f32 %v8460, %v8568
  %8570 = vdwg.mxu0
  %8571 = vmatpush.bf16.msra.mxu0 %v8179
  %8572 = vmatpush.bf16.msra.mxu0 %v8178
  %8573 = vmatpush.bf16.msra.mxu0 %v8177
  %8574 = vmatpush.bf16.msra.mxu0 %v8176
  %8575 = vmatpush.bf16.msra.mxu0 %v8175
  %8576 = vmatpush.bf16.msra.mxu0 %v8174
  %8577 = vmatpush.bf16.msra.mxu0 %v8173
  %8578 = vmatpush.bf16.msra.mxu0 %v8172
  %8579 = vmatmul.bf16.gmra.mxu0 %v7719
  %v8580 = vpop.f32.mrf.mxu0
  %v8581 = vadd.f32 %v8472, %v8580
  %v8582 = vpop.f32.mrf.mxu0
  %v8583 = vadd.f32 %v8474, %v8582
  %8584 = vmatmul.bf16.gmra.mxu0 %v7725
  %v8585 = vpop.f32.mrf.mxu0
  %v8586 = vadd.f32 %v8477, %v8585
  %v8587 = vpop.f32.mrf.mxu0
  %v8588 = vadd.f32 %v8479, %v8587
  %8589 = vmatmul.bf16.gmra.mxu0 %v7731
  %v8590 = vpop.f32.mrf.mxu0
  %v8591 = vadd.f32 %v8482, %v8590
  %v8592 = vpop.f32.mrf.mxu0
  %v8593 = vadd.f32 %v8484, %v8592
  %8594 = vmatmul.bf16.gmra.mxu0 %v7737
  %v8595 = vpop.f32.mrf.mxu0
  %v8596 = vadd.f32 %v8487, %v8595
  %v8597 = vpop.f32.mrf.mxu0
  %v8598 = vadd.f32 %v8489, %v8597
  %8599 = vmatmul.bf16.gmra.mxu0 %v7743
  %v8600 = vpop.f32.mrf.mxu0
  %v8601 = vadd.f32 %v8492, %v8600
  %v8602 = vpop.f32.mrf.mxu0
  %v8603 = vadd.f32 %v8494, %v8602
  %8604 = vmatmul.bf16.gmra.mxu0 %v7749
  %v8605 = vpop.f32.mrf.mxu0
  %v8606 = vadd.f32 %v8497, %v8605
  %v8607 = vpop.f32.mrf.mxu0
  %v8608 = vadd.f32 %v8499, %v8607
  %8609 = vmatmul.bf16.gmra.mxu0 %v7755
  %v8610 = vpop.f32.mrf.mxu0
  %v8611 = vadd.f32 %v8502, %v8610
  %v8612 = vpop.f32.mrf.mxu0
  %v8613 = vadd.f32 %v8504, %v8612
  %8614 = vmatmul.bf16.gmra.mxu0 %v7761
  %v8615 = vpop.f32.mrf.mxu0
  %v8616 = vadd.f32 %v8507, %v8615
  %v8617 = vpop.f32.mrf.mxu0
  %v8618 = vadd.f32 %v8509, %v8617
  %8619 = vmatmul.bf16.gmra.mxu0 %v7767
  %v8620 = vpop.f32.mrf.mxu0
  %v8621 = vadd.f32 %v8512, %v8620
  %v8622 = vpop.f32.mrf.mxu0
  %v8623 = vadd.f32 %v8514, %v8622
  %8624 = vmatmul.bf16.gmra.mxu0 %v7773
  %v8625 = vpop.f32.mrf.mxu0
  %v8626 = vadd.f32 %v8517, %v8625
  %v8627 = vpop.f32.mrf.mxu0
  %v8628 = vadd.f32 %v8519, %v8627
  %8629 = vmatmul.bf16.gmra.mxu0 %v7779
  %v8630 = vpop.f32.mrf.mxu0
  %v8631 = vadd.f32 %v8522, %v8630
  %v8632 = vpop.f32.mrf.mxu0
  %v8633 = vadd.f32 %v8524, %v8632
  %8634 = vmatmul.bf16.gmra.mxu0 %v7785
  %v8635 = vpop.f32.mrf.mxu0
  %v8636 = vadd.f32 %v8527, %v8635
  %v8637 = vpop.f32.mrf.mxu0
  %v8638 = vadd.f32 %v8529, %v8637
  %8639 = vmatmul.bf16.gmra.mxu0 %v7791
  %v8640 = vpop.f32.mrf.mxu0
  %v8641 = vadd.f32 %v8532, %v8640
  %v8642 = vpop.f32.mrf.mxu0
  %v8643 = vadd.f32 %v8534, %v8642
  %8644 = vmatmul.bf16.gmra.mxu0 %v7797
  %v8645 = vpop.f32.mrf.mxu0
  %v8646 = vadd.f32 %v8537, %v8645
  %v8647 = vpop.f32.mrf.mxu0
  %v8648 = vadd.f32 %v8539, %v8647
  %8649 = vmatmul.bf16.gmra.mxu0 %v7803
  %v8650 = vpop.f32.mrf.mxu0
  %v8651 = vadd.f32 %v8542, %v8650
  %v8652 = vpop.f32.mrf.mxu0
  %v8653 = vadd.f32 %v8544, %v8652
  %8654 = vmatmul.bf16.gmra.mxu0 %v7809
  %v8655 = vpop.f32.mrf.mxu0
  %v8656 = vadd.f32 %v8547, %v8655
  %v8657 = vpop.f32.mrf.mxu0
  %v8658 = vadd.f32 %v8549, %v8657
  %8659 = vmatmul.bf16.gmra.mxu0 %v7815
  %v8660 = vpop.f32.mrf.mxu0
  %v8661 = vadd.f32 %v8552, %v8660
  %v8662 = vpop.f32.mrf.mxu0
  %v8663 = vadd.f32 %v8554, %v8662
  %8664 = vmatmul.bf16.gmra.mxu0 %v7821
  %v8665 = vpop.f32.mrf.mxu0
  %v8666 = vadd.f32 %v8557, %v8665
  %v8667 = vpop.f32.mrf.mxu0
  %v8668 = vadd.f32 %v8559, %v8667
  %8669 = vmatmul.bf16.gmra.mxu0 %v7827
  %v8670 = vpop.f32.mrf.mxu0
  %v8671 = vadd.f32 %v8562, %v8670
  %v8672 = vpop.f32.mrf.mxu0
  %v8673 = vadd.f32 %v8564, %v8672
  %8674 = vmatmul.bf16.gmra.mxu0 %v7833
  %v8675 = vpop.f32.mrf.mxu0
  %v8676 = vadd.f32 %v8567, %v8675
  %v8677 = vpop.f32.mrf.mxu0
  %v8678 = vadd.f32 %v8569, %v8677
  %8679 = vdwg.mxu0
  %8680 = vmatpush.bf16.msra.mxu0 %v8187
  %8681 = vmatpush.bf16.msra.mxu0 %v8186
  %8682 = vmatpush.bf16.msra.mxu0 %v8185
  %8683 = vmatpush.bf16.msra.mxu0 %v8184
  %8684 = vmatpush.bf16.msra.mxu0 %v8183
  %8685 = vmatpush.bf16.msra.mxu0 %v8182
  %8686 = vmatpush.bf16.msra.mxu0 %v8181
  %8687 = vmatpush.bf16.msra.mxu0 %v8180
  %8688 = vmatmul.bf16.gmra.mxu0 %v7720
  %v8689 = vpop.f32.mrf.mxu0
  %v8690 = vadd.f32 %v8581, %v8689
  %v8691 = vpop.f32.mrf.mxu0
  %v8692 = vadd.f32 %v8583, %v8691
  %8693 = vmatmul.bf16.gmra.mxu0 %v7726
  %v8694 = vpop.f32.mrf.mxu0
  %v8695 = vadd.f32 %v8586, %v8694
  %v8696 = vpop.f32.mrf.mxu0
  %v8697 = vadd.f32 %v8588, %v8696
  %8698 = vmatmul.bf16.gmra.mxu0 %v7732
  %v8699 = vpop.f32.mrf.mxu0
  %v8700 = vadd.f32 %v8591, %v8699
  %v8701 = vpop.f32.mrf.mxu0
  %v8702 = vadd.f32 %v8593, %v8701
  %8703 = vmatmul.bf16.gmra.mxu0 %v7738
  %v8704 = vpop.f32.mrf.mxu0
  %v8705 = vadd.f32 %v8596, %v8704
  %v8706 = vpop.f32.mrf.mxu0
  %v8707 = vadd.f32 %v8598, %v8706
  %8708 = vmatmul.bf16.gmra.mxu0 %v7744
  %v8709 = vpop.f32.mrf.mxu0
  %v8710 = vadd.f32 %v8601, %v8709
  %v8711 = vpop.f32.mrf.mxu0
  %v8712 = vadd.f32 %v8603, %v8711
  %8713 = vmatmul.bf16.gmra.mxu0 %v7750
  %v8714 = vpop.f32.mrf.mxu0
  %v8715 = vadd.f32 %v8606, %v8714
  %v8716 = vpop.f32.mrf.mxu0
  %v8717 = vadd.f32 %v8608, %v8716
  %8718 = vmatmul.bf16.gmra.mxu0 %v7756
  %v8719 = vpop.f32.mrf.mxu0
  %v8720 = vadd.f32 %v8611, %v8719
  %v8721 = vpop.f32.mrf.mxu0
  %v8722 = vadd.f32 %v8613, %v8721
  %8723 = vmatmul.bf16.gmra.mxu0 %v7762
  %v8724 = vpop.f32.mrf.mxu0
  %v8725 = vadd.f32 %v8616, %v8724
  %v8726 = vpop.f32.mrf.mxu0
  %v8727 = vadd.f32 %v8618, %v8726
  %8728 = vmatmul.bf16.gmra.mxu0 %v7768
  %v8729 = vpop.f32.mrf.mxu0
  %v8730 = vadd.f32 %v8621, %v8729
  %v8731 = vpop.f32.mrf.mxu0
  %v8732 = vadd.f32 %v8623, %v8731
  %8733 = vmatmul.bf16.gmra.mxu0 %v7774
  %v8734 = vpop.f32.mrf.mxu0
  %v8735 = vadd.f32 %v8626, %v8734
  %v8736 = vpop.f32.mrf.mxu0
  %v8737 = vadd.f32 %v8628, %v8736
  %8738 = vmatmul.bf16.gmra.mxu0 %v7780
  %v8739 = vpop.f32.mrf.mxu0
  %v8740 = vadd.f32 %v8631, %v8739
  %v8741 = vpop.f32.mrf.mxu0
  %v8742 = vadd.f32 %v8633, %v8741
  %8743 = vmatmul.bf16.gmra.mxu0 %v7786
  %v8744 = vpop.f32.mrf.mxu0
  %v8745 = vadd.f32 %v8636, %v8744
  %v8746 = vpop.f32.mrf.mxu0
  %v8747 = vadd.f32 %v8638, %v8746
  %8748 = vmatmul.bf16.gmra.mxu0 %v7792
  %v8749 = vpop.f32.mrf.mxu0
  %v8750 = vadd.f32 %v8641, %v8749
  %v8751 = vpop.f32.mrf.mxu0
  %v8752 = vadd.f32 %v8643, %v8751
  %8753 = vmatmul.bf16.gmra.mxu0 %v7798
  %v8754 = vpop.f32.mrf.mxu0
  %v8755 = vadd.f32 %v8646, %v8754
  %v8756 = vpop.f32.mrf.mxu0
  %v8757 = vadd.f32 %v8648, %v8756
  %8758 = vmatmul.bf16.gmra.mxu0 %v7804
  %v8759 = vpop.f32.mrf.mxu0
  %v8760 = vadd.f32 %v8651, %v8759
  %v8761 = vpop.f32.mrf.mxu0
  %v8762 = vadd.f32 %v8653, %v8761
  %8763 = vmatmul.bf16.gmra.mxu0 %v7810
  %v8764 = vpop.f32.mrf.mxu0
  %v8765 = vadd.f32 %v8656, %v8764
  %v8766 = vpop.f32.mrf.mxu0
  %v8767 = vadd.f32 %v8658, %v8766
  %8768 = vmatmul.bf16.gmra.mxu0 %v7816
  %v8769 = vpop.f32.mrf.mxu0
  %v8770 = vadd.f32 %v8661, %v8769
  %v8771 = vpop.f32.mrf.mxu0
  %v8772 = vadd.f32 %v8663, %v8771
  %8773 = vmatmul.bf16.gmra.mxu0 %v7822
  %v8774 = vpop.f32.mrf.mxu0
  %v8775 = vadd.f32 %v8666, %v8774
  %v8776 = vpop.f32.mrf.mxu0
  %v8777 = vadd.f32 %v8668, %v8776
  %8778 = vmatmul.bf16.gmra.mxu0 %v7828
  %v8779 = vpop.f32.mrf.mxu0
  %v8780 = vadd.f32 %v8671, %v8779
  %v8781 = vpop.f32.mrf.mxu0
  %v8782 = vadd.f32 %v8673, %v8781
  %8783 = vmatmul.bf16.gmra.mxu0 %v7834
  %v8784 = vpop.f32.mrf.mxu0
  %v8785 = vadd.f32 %v8676, %v8784
  %v8786 = vpop.f32.mrf.mxu0
  %v8787 = vadd.f32 %v8678, %v8786
  %8788 = vdwg.mxu0
  %8789 = vmatpush.bf16.msra.mxu0 %v8195
  %8790 = vmatpush.bf16.msra.mxu0 %v8194
  %8791 = vmatpush.bf16.msra.mxu0 %v8193
  %8792 = vmatpush.bf16.msra.mxu0 %v8192
  %8793 = vmatpush.bf16.msra.mxu0 %v8191
  %8794 = vmatpush.bf16.msra.mxu0 %v8190
  %8795 = vmatpush.bf16.msra.mxu0 %v8189
  %8796 = vmatpush.bf16.msra.mxu0 %v8188
  %8797 = vmatmul.bf16.gmra.mxu0 %v7721
  %v8798 = vpop.f32.mrf.mxu0
  %v8799 = vadd.f32 %v8690, %v8798
  %v8800 = vpop.f32.mrf.mxu0
  %v8801 = vadd.f32 %v8692, %v8800
  %8802 = vmatmul.bf16.gmra.mxu0 %v7727
  %v8803 = vpop.f32.mrf.mxu0
  %v8804 = vadd.f32 %v8695, %v8803
  %v8805 = vpop.f32.mrf.mxu0
  %v8806 = vadd.f32 %v8697, %v8805
  %8807 = vmatmul.bf16.gmra.mxu0 %v7733
  %v8808 = vpop.f32.mrf.mxu0
  %v8809 = vadd.f32 %v8700, %v8808
  %v8810 = vpop.f32.mrf.mxu0
  %v8811 = vadd.f32 %v8702, %v8810
  %8812 = vmatmul.bf16.gmra.mxu0 %v7739
  %v8813 = vpop.f32.mrf.mxu0
  %v8814 = vadd.f32 %v8705, %v8813
  %v8815 = vpop.f32.mrf.mxu0
  %v8816 = vadd.f32 %v8707, %v8815
  %8817 = vmatmul.bf16.gmra.mxu0 %v7745
  %v8818 = vpop.f32.mrf.mxu0
  %v8819 = vadd.f32 %v8710, %v8818
  %v8820 = vpop.f32.mrf.mxu0
  %v8821 = vadd.f32 %v8712, %v8820
  %8822 = vmatmul.bf16.gmra.mxu0 %v7751
  %v8823 = vpop.f32.mrf.mxu0
  %v8824 = vadd.f32 %v8715, %v8823
  %v8825 = vpop.f32.mrf.mxu0
  %v8826 = vadd.f32 %v8717, %v8825
  %8827 = vmatmul.bf16.gmra.mxu0 %v7757
  %v8828 = vpop.f32.mrf.mxu0
  %v8829 = vadd.f32 %v8720, %v8828
  %v8830 = vpop.f32.mrf.mxu0
  %v8831 = vadd.f32 %v8722, %v8830
  %8832 = vmatmul.bf16.gmra.mxu0 %v7763
  %v8833 = vpop.f32.mrf.mxu0
  %v8834 = vadd.f32 %v8725, %v8833
  %v8835 = vpop.f32.mrf.mxu0
  %v8836 = vadd.f32 %v8727, %v8835
  %8837 = vmatmul.bf16.gmra.mxu0 %v7769
  %v8838 = vpop.f32.mrf.mxu0
  %v8839 = vadd.f32 %v8730, %v8838
  %v8840 = vpop.f32.mrf.mxu0
  %v8841 = vadd.f32 %v8732, %v8840
  %8842 = vmatmul.bf16.gmra.mxu0 %v7775
  %v8843 = vpop.f32.mrf.mxu0
  %v8844 = vadd.f32 %v8735, %v8843
  %v8845 = vpop.f32.mrf.mxu0
  %v8846 = vadd.f32 %v8737, %v8845
  %8847 = vmatmul.bf16.gmra.mxu0 %v7781
  %v8848 = vpop.f32.mrf.mxu0
  %v8849 = vadd.f32 %v8740, %v8848
  %v8850 = vpop.f32.mrf.mxu0
  %v8851 = vadd.f32 %v8742, %v8850
  %8852 = vmatmul.bf16.gmra.mxu0 %v7787
  %v8853 = vpop.f32.mrf.mxu0
  %v8854 = vadd.f32 %v8745, %v8853
  %v8855 = vpop.f32.mrf.mxu0
  %v8856 = vadd.f32 %v8747, %v8855
  %8857 = vmatmul.bf16.gmra.mxu0 %v7793
  %v8858 = vpop.f32.mrf.mxu0
  %v8859 = vadd.f32 %v8750, %v8858
  %v8860 = vpop.f32.mrf.mxu0
  %v8861 = vadd.f32 %v8752, %v8860
  %8862 = vmatmul.bf16.gmra.mxu0 %v7799
  %v8863 = vpop.f32.mrf.mxu0
  %v8864 = vadd.f32 %v8755, %v8863
  %v8865 = vpop.f32.mrf.mxu0
  %v8866 = vadd.f32 %v8757, %v8865
  %8867 = vmatmul.bf16.gmra.mxu0 %v7805
  %v8868 = vpop.f32.mrf.mxu0
  %v8869 = vadd.f32 %v8760, %v8868
  %v8870 = vpop.f32.mrf.mxu0
  %v8871 = vadd.f32 %v8762, %v8870
  %8872 = vmatmul.bf16.gmra.mxu0 %v7811
  %v8873 = vpop.f32.mrf.mxu0
  %v8874 = vadd.f32 %v8765, %v8873
  %v8875 = vpop.f32.mrf.mxu0
  %v8876 = vadd.f32 %v8767, %v8875
  %8877 = vmatmul.bf16.gmra.mxu0 %v7817
  %v8878 = vpop.f32.mrf.mxu0
  %v8879 = vadd.f32 %v8770, %v8878
  %v8880 = vpop.f32.mrf.mxu0
  %v8881 = vadd.f32 %v8772, %v8880
  %8882 = vmatmul.bf16.gmra.mxu0 %v7823
  %v8883 = vpop.f32.mrf.mxu0
  %v8884 = vadd.f32 %v8775, %v8883
  %v8885 = vpop.f32.mrf.mxu0
  %v8886 = vadd.f32 %v8777, %v8885
  %8887 = vmatmul.bf16.gmra.mxu0 %v7829
  %v8888 = vpop.f32.mrf.mxu0
  %v8889 = vadd.f32 %v8780, %v8888
  %v8890 = vpop.f32.mrf.mxu0
  %v8891 = vadd.f32 %v8782, %v8890
  %8892 = vmatmul.bf16.gmra.mxu0 %v7835
  %v8893 = vpop.f32.mrf.mxu0
  %v8894 = vadd.f32 %v8785, %v8893
  %v8895 = vpop.f32.mrf.mxu0
  %v8896 = vadd.f32 %v8787, %v8895
  %8897 = vdwg.mxu0
  %v8898 = vmax.f32 %v8799, %v8849
  %v8899 = vmax.f32 %v8801, %v8851
  %v8900 = vmax.f32 %v8804, %v8854
  %v8901 = vmax.f32 %v8806, %v8856
  %v8902 = vmax.f32 %v8809, %v8859
  %v8903 = vmax.f32 %v8811, %v8861
  %v8904 = vmax.f32 %v8814, %v8864
  %v8905 = vmax.f32 %v8816, %v8866
  %v8906 = vmax.f32 %v8819, %v8869
  %v8907 = vmax.f32 %v8821, %v8871
  %v8908 = vmax.f32 %v8824, %v8874
  %v8909 = vmax.f32 %v8826, %v8876
  %v8910 = vmax.f32 %v8829, %v8879
  %v8911 = vmax.f32 %v8831, %v8881
  %v8912 = vmax.f32 %v8834, %v8884
  %v8913 = vmax.f32 %v8836, %v8886
  %v8914 = vmax.f32 %v8839, %v8889
  %v8915 = vmax.f32 %v8841, %v8891
  %v8916 = vmax.f32 %v8844, %v8894
  %v8917 = vmax.f32 %v8846, %v8896
  %v8918 = vmax.f32 %v8898, %v8908
  %v8919 = vmax.f32 %v8899, %v8909
  %v8920 = vmax.f32 %v8900, %v8910
  %v8921 = vmax.f32 %v8901, %v8911
  %v8922 = vmax.f32 %v8902, %v8912
  %v8923 = vmax.f32 %v8903, %v8913
  %v8924 = vmax.f32 %v8904, %v8914
  %v8925 = vmax.f32 %v8905, %v8915
  %v8926 = vmax.f32 %v8906, %v8916
  %v8927 = vmax.f32 %v8907, %v8917
  %8929 = vset.pattern.permute.xlu0 0
  %8930 = vperm.xlu0 %8929, %v233
  %v8931 = vpop.permute.xlu0 %8930
  %8934 = vset.pattern.permute.xlu0 0
  %8935 = vperm.xlu0 %8934, %v234
  %v8936 = vpop.permute.xlu0 %8935
  %8939 = vset.pattern.permute.xlu0 0
  %8940 = vperm.xlu0 %8939, %v235
  %v8941 = vpop.permute.xlu0 %8940
  %8944 = vset.pattern.permute.xlu0 0
  %8945 = vperm.xlu0 %8944, %v236
  %v8946 = vpop.permute.xlu0 %8945
  %8949 = vset.pattern.permute.xlu0 0
  %8950 = vperm.xlu0 %8949, %v237
  %v8951 = vpop.permute.xlu0 %8950
  %8954 = vset.pattern.permute.xlu0 0
  %8955 = vperm.xlu0 %8954, %v238
  %v8956 = vpop.permute.xlu0 %8955
  %8959 = vset.pattern.permute.xlu0 0
  %8960 = vperm.xlu0 %8959, %v239
  %v8961 = vpop.permute.xlu0 %8960
  %8964 = vset.pattern.permute.xlu0 0
  %8965 = vperm.xlu0 %8964, %v240
  %v8966 = vpop.permute.xlu0 %8965
  %8969 = vset.pattern.permute.xlu0 0
  %8970 = vperm.xlu0 %8969, %v241
  %v8971 = vpop.permute.xlu0 %8970
  %8974 = vset.pattern.permute.xlu0 0
  %8975 = vperm.xlu0 %8974, %v242
  %v8976 = vpop.permute.xlu0 %8975
  %v8978 = vadd.f32 %v8918, %v8931
  %v8979 = vadd.f32 %v8919, %v8936
  %v8980 = vadd.f32 %v8920, %v8941
  %v8981 = vadd.f32 %v8921, %v8946
  %v8982 = vadd.f32 %v8922, %v8951
  %v8983 = vadd.f32 %v8923, %v8956
  %v8984 = vadd.f32 %v8924, %v8961
  %v8985 = vadd.f32 %v8925, %v8966
  %v8986 = vadd.f32 %v8926, %v8971
  %v8987 = vadd.f32 %v8927, %v8976
  %v8988 = vmax.f32 %v8978, 0.0
  %v8989 = vmax.f32 %v8979, 0.0
  %v8990 = vmax.f32 %v8980, 0.0
  %v8991 = vmax.f32 %v8981, 0.0
  %v8992 = vmax.f32 %v8982, 0.0
  %v8993 = vmax.f32 %v8983, 0.0
  %v8994 = vmax.f32 %v8984, 0.0
  %v8995 = vmax.f32 %v8985, 0.0
  %v8996 = vmax.f32 %v8986, 0.0
  %v8997 = vmax.f32 %v8987, 0.0
  %v8998 = vpack.c.bf16 %v8988, %v8988
  %v8999 = vpack.c.bf16 %v8989, %v8989
  %v9000 = vpack.c.bf16 %v8990, %v8990
  %v9001 = vpack.c.bf16 %v8991, %v8991
  %v9002 = vpack.c.bf16 %v8992, %v8992
  %v9003 = vpack.c.bf16 %v8993, %v8993
  %v9004 = vpack.c.bf16 %v8994, %v8994
  %v9005 = vpack.c.bf16 %v8995, %v8995
  %v9006 = vpack.c.bf16 %v8996, %v8996
  %v9007 = vpack.c.bf16 %v8997, %v8997
  %9008 = vst [vmem:[#allocation3] sm:$0xf] %v8998
  %9009 = vst [vmem:[#allocation3 + $0x4] sm:$0xf] %v8999
  %9010 = vst [vmem:[#allocation3 + $0x8] sm:$0xf] %v9000
  %9011 = vst [vmem:[#allocation3 + $0xc] sm:$0xf] %v9001
  %9012 = vst [vmem:[#allocation3 + $0x10] sm:$0xf] %v9002
  %9013 = vst [vmem:[#allocation3 + $0x14] sm:$0xf] %v9003
  %9014 = vst [vmem:[#allocation3 + $0x18] sm:$0xf] %v9004
  %9015 = vst [vmem:[#allocation3 + $0x1c] sm:$0xf] %v9005
  %9016 = vst [vmem:[#allocation3 + $0x20] sm:$0xf] %v9006
  %9017 = vst [vmem:[#allocation3 + $0x24] sm:$0xf] %v9007
  %v9018 = vld [vmem:[#allocation2 + $0x80] sm:$0xf]
  %v9019 = vld [vmem:[#allocation2 + $0x84] sm:$0xf]
  %v9020 = vld [vmem:[#allocation2 + $0x88] sm:$0xf]
  %v9021 = vld [vmem:[#allocation2 + $0x8c] sm:$0xf]
  %v9022 = vld [vmem:[#allocation2 + $0x90] sm:$0xf]
  %v9023 = vld [vmem:[#allocation2 + $0x94] sm:$0xf]
  %v9024 = vld [vmem:[#allocation2 + $0x98] sm:$0xf]
  %v9025 = vld [vmem:[#allocation2 + $0x9c] sm:$0xf]
  %v9026 = vld [vmem:[#allocation2 + $0xa0] sm:$0xf]
  %v9027 = vld [vmem:[#allocation2 + $0xa4] sm:$0xf]
  %v9028 = vld [vmem:[#allocation2 + $0xa8] sm:$0xf]
  %v9029 = vld [vmem:[#allocation2 + $0xac] sm:$0xf]
  %v9030 = vld [vmem:[#allocation2 + $0xb0] sm:$0xf]
  %v9031 = vld [vmem:[#allocation2 + $0xb4] sm:$0xf]
  %v9032 = vld [vmem:[#allocation2 + $0xb8] sm:$0xf]
  %v9033 = vld [vmem:[#allocation2 + $0xbc] sm:$0xf]
  %v9034 = vld [vmem:[#allocation2 + $0xc0] sm:$0xf]
  %v9035 = vld [vmem:[#allocation2 + $0xc4] sm:$0xf]
  %v9036 = vld [vmem:[#allocation2 + $0xc8] sm:$0xf]
  %v9037 = vld [vmem:[#allocation2 + $0xcc] sm:$0xf]
  %v9038 = vld [vmem:[#allocation2 + $0xd0] sm:$0xf]
  %v9039 = vld [vmem:[#allocation2 + $0xd4] sm:$0xf]
  %v9040 = vld [vmem:[#allocation2 + $0xd8] sm:$0xf]
  %v9041 = vld [vmem:[#allocation2 + $0xdc] sm:$0xf]
  %v9042 = vld [vmem:[#allocation2 + $0xe0] sm:$0xf]
  %v9043 = vld [vmem:[#allocation2 + $0xe4] sm:$0xf]
  %v9044 = vld [vmem:[#allocation2 + $0xe8] sm:$0xf]
  %v9045 = vld [vmem:[#allocation2 + $0xec] sm:$0xf]
  %v9046 = vld [vmem:[#allocation2 + $0xf0] sm:$0xf]
  %v9047 = vld [vmem:[#allocation2 + $0xf4] sm:$0xf]
  %v9048 = vld [vmem:[#allocation2 + $0xf8] sm:$0xf]
  %v9049 = vld [vmem:[#allocation2 + $0xfc] sm:$0xf]
  %v9050 = vld [vmem:[#allocation2 + $0x100] sm:$0xf]
  %v9051 = vld [vmem:[#allocation2 + $0x104] sm:$0xf]
  %v9052 = vld [vmem:[#allocation2 + $0x108] sm:$0xf]
  %v9053 = vld [vmem:[#allocation2 + $0x10c] sm:$0xf]
  %v9054 = vld [vmem:[#allocation2 + $0x110] sm:$0xf]
  %v9055 = vld [vmem:[#allocation2 + $0x114] sm:$0xf]
  %v9056 = vld [vmem:[#allocation2 + $0x118] sm:$0xf]
  %v9057 = vld [vmem:[#allocation2 + $0x11c] sm:$0xf]
  %v9058 = vld [vmem:[#allocation2 + $0x120] sm:$0xf]
  %v9059 = vld [vmem:[#allocation2 + $0x124] sm:$0xf]
  %v9060 = vld [vmem:[#allocation2 + $0x128] sm:$0xf]
  %v9061 = vld [vmem:[#allocation2 + $0x12c] sm:$0xf]
  %v9062 = vld [vmem:[#allocation2 + $0x130] sm:$0xf]
  %v9063 = vld [vmem:[#allocation2 + $0x134] sm:$0xf]
  %v9064 = vld [vmem:[#allocation2 + $0x138] sm:$0xf]
  %v9065 = vld [vmem:[#allocation2 + $0x13c] sm:$0xf]
  %v9066 = vld [vmem:[#allocation2 + $0x140] sm:$0xf]
  %v9067 = vld [vmem:[#allocation2 + $0x144] sm:$0xf]
  %v9068 = vld [vmem:[#allocation2 + $0x148] sm:$0xf]
  %v9069 = vld [vmem:[#allocation2 + $0x14c] sm:$0xf]
  %v9070 = vld [vmem:[#allocation2 + $0x150] sm:$0xf]
  %v9071 = vld [vmem:[#allocation2 + $0x154] sm:$0xf]
  %v9072 = vld [vmem:[#allocation2 + $0x158] sm:$0xf]
  %v9073 = vld [vmem:[#allocation2 + $0x15c] sm:$0xf]
  %v9074 = vld [vmem:[#allocation2 + $0x160] sm:$0xf]
  %v9075 = vld [vmem:[#allocation2 + $0x164] sm:$0xf]
  %v9076 = vld [vmem:[#allocation2 + $0x168] sm:$0xf]
  %v9077 = vld [vmem:[#allocation2 + $0x16c] sm:$0xf]
  %v9078 = vld [vmem:[#allocation2 + $0x170] sm:$0xf]
  %v9079 = vld [vmem:[#allocation2 + $0x174] sm:$0xf]
  %v9080 = vld [vmem:[#allocation2 + $0x178] sm:$0xf]
  %v9081 = vld [vmem:[#allocation2 + $0x17c] sm:$0xf]
  %v9082 = vld [vmem:[#allocation2 + $0x180] sm:$0xf]
  %v9083 = vld [vmem:[#allocation2 + $0x184] sm:$0xf]
  %v9084 = vld [vmem:[#allocation2 + $0x188] sm:$0xf]
  %v9085 = vld [vmem:[#allocation2 + $0x18c] sm:$0xf]
  %v9086 = vld [vmem:[#allocation2 + $0x190] sm:$0xf]
  %v9087 = vld [vmem:[#allocation2 + $0x194] sm:$0xf]
  %v9088 = vld [vmem:[#allocation2 + $0x198] sm:$0xf]
  %v9089 = vld [vmem:[#allocation2 + $0x19c] sm:$0xf]
  %v9090 = vld [vmem:[#allocation2 + $0x1a0] sm:$0xf]
  %v9091 = vld [vmem:[#allocation2 + $0x1a4] sm:$0xf]
  %v9092 = vld [vmem:[#allocation2 + $0x1a8] sm:$0xf]
  %v9093 = vld [vmem:[#allocation2 + $0x1ac] sm:$0xf]
  %v9094 = vld [vmem:[#allocation2 + $0x1b0] sm:$0xf]
  %v9095 = vld [vmem:[#allocation2 + $0x1b4] sm:$0xf]
  %v9096 = vld [vmem:[#allocation2 + $0x1b8] sm:$0xf]
  %v9097 = vld [vmem:[#allocation2 + $0x1bc] sm:$0xf]
  %v9098 = vld [vmem:[#allocation2 + $0x1c0] sm:$0xf]
  %v9099 = vld [vmem:[#allocation2 + $0x1c4] sm:$0xf]
  %v9100 = vld [vmem:[#allocation2 + $0x1c8] sm:$0xf]
  %v9101 = vld [vmem:[#allocation2 + $0x1cc] sm:$0xf]
  %v9102 = vld [vmem:[#allocation2 + $0x1d0] sm:$0xf]
  %v9103 = vld [vmem:[#allocation2 + $0x1d4] sm:$0xf]
  %v9104 = vld [vmem:[#allocation2 + $0x1d8] sm:$0xf]
  %v9105 = vld [vmem:[#allocation2 + $0x1dc] sm:$0xf]
  %v9106 = vld [vmem:[#allocation2 + $0x1e0] sm:$0xf]
  %v9107 = vld [vmem:[#allocation2 + $0x1e4] sm:$0xf]
  %v9108 = vld [vmem:[#allocation2 + $0x1e8] sm:$0xf]
  %v9109 = vld [vmem:[#allocation2 + $0x1ec] sm:$0xf]
  %v9110 = vld [vmem:[#allocation2 + $0x1f0] sm:$0xf]
  %v9111 = vld [vmem:[#allocation2 + $0x1f4] sm:$0xf]
  %v9112 = vld [vmem:[#allocation2 + $0x1f8] sm:$0xf]
  %v9113 = vld [vmem:[#allocation2 + $0x1fc] sm:$0xf]
  %v9210 = vunpack.c.l.b16 %v9018
  %v9211 = vunpack.c.l.b16 %v9019
  %v9212 = vunpack.c.l.b16 %v9020
  %v9213 = vunpack.c.l.b16 %v9021
  %v9214 = vunpack.c.l.b16 %v9022
  %v9215 = vunpack.c.l.b16 %v9023
  %v9216 = vunpack.c.l.b16 %v9024
  %v9217 = vunpack.c.l.b16 %v9025
  %v9218 = vunpack.c.l.b16 %v9026
  %v9219 = vunpack.c.l.b16 %v9027
  %v9220 = vunpack.c.l.b16 %v9028
  %v9221 = vunpack.c.l.b16 %v9029
  %v9222 = vunpack.c.l.b16 %v9030
  %v9223 = vunpack.c.l.b16 %v9031
  %v9224 = vunpack.c.l.b16 %v9032
  %v9225 = vunpack.c.l.b16 %v9033
  %v9226 = vunpack.c.l.b16 %v9034
  %v9227 = vunpack.c.l.b16 %v9035
  %v9228 = vunpack.c.l.b16 %v9036
  %v9229 = vunpack.c.l.b16 %v9037
  %v9230 = vunpack.c.l.b16 %v9038
  %v9231 = vunpack.c.l.b16 %v9039
  %v9232 = vunpack.c.l.b16 %v9040
  %v9233 = vunpack.c.l.b16 %v9041
  %v9234 = vunpack.c.l.b16 %v9042
  %v9235 = vunpack.c.l.b16 %v9043
  %v9236 = vunpack.c.l.b16 %v9044
  %v9237 = vunpack.c.l.b16 %v9045
  %v9238 = vunpack.c.l.b16 %v9046
  %v9239 = vunpack.c.l.b16 %v9047
  %v9240 = vunpack.c.l.b16 %v9048
  %v9241 = vunpack.c.l.b16 %v9049
  %v9242 = vunpack.c.l.b16 %v9050
  %v9243 = vunpack.c.l.b16 %v9051
  %v9244 = vunpack.c.l.b16 %v9052
  %v9245 = vunpack.c.l.b16 %v9053
  %v9246 = vunpack.c.l.b16 %v9054
  %v9247 = vunpack.c.l.b16 %v9055
  %v9248 = vunpack.c.l.b16 %v9056
  %v9249 = vunpack.c.l.b16 %v9057
  %v9250 = vunpack.c.l.b16 %v9058
  %v9251 = vunpack.c.l.b16 %v9059
  %v9252 = vunpack.c.l.b16 %v9060
  %v9253 = vunpack.c.l.b16 %v9061
  %v9254 = vunpack.c.l.b16 %v9062
  %v9255 = vunpack.c.l.b16 %v9063
  %v9256 = vunpack.c.l.b16 %v9064
  %v9257 = vunpack.c.l.b16 %v9065
  %v9258 = vunpack.c.l.b16 %v9066
  %v9259 = vunpack.c.l.b16 %v9067
  %v9260 = vunpack.c.l.b16 %v9068
  %v9261 = vunpack.c.l.b16 %v9069
  %v9262 = vunpack.c.l.b16 %v9070
  %v9263 = vunpack.c.l.b16 %v9071
  %v9264 = vunpack.c.l.b16 %v9072
  %v9265 = vunpack.c.l.b16 %v9073
  %v9266 = vunpack.c.l.b16 %v9074
  %v9267 = vunpack.c.l.b16 %v9075
  %v9268 = vunpack.c.l.b16 %v9076
  %v9269 = vunpack.c.l.b16 %v9077
  %v9270 = vunpack.c.l.b16 %v9078
  %v9271 = vunpack.c.l.b16 %v9079
  %v9272 = vunpack.c.l.b16 %v9080
  %v9273 = vunpack.c.l.b16 %v9081
  %v9274 = vunpack.c.l.b16 %v9082
  %v9275 = vunpack.c.l.b16 %v9083
  %v9276 = vunpack.c.l.b16 %v9084
  %v9277 = vunpack.c.l.b16 %v9085
  %v9278 = vunpack.c.l.b16 %v9086
  %v9279 = vunpack.c.l.b16 %v9087
  %v9280 = vunpack.c.l.b16 %v9088
  %v9281 = vunpack.c.l.b16 %v9089
  %v9282 = vunpack.c.l.b16 %v9090
  %v9283 = vunpack.c.l.b16 %v9091
  %v9284 = vunpack.c.l.b16 %v9092
  %v9285 = vunpack.c.l.b16 %v9093
  %v9286 = vunpack.c.l.b16 %v9094
  %v9287 = vunpack.c.l.b16 %v9095
  %v9288 = vunpack.c.l.b16 %v9096
  %v9289 = vunpack.c.l.b16 %v9097
  %v9290 = vunpack.c.l.b16 %v9098
  %v9291 = vunpack.c.l.b16 %v9099
  %v9292 = vunpack.c.l.b16 %v9100
  %v9293 = vunpack.c.l.b16 %v9101
  %v9294 = vunpack.c.l.b16 %v9102
  %v9295 = vunpack.c.l.b16 %v9103
  %v9296 = vunpack.c.l.b16 %v9104
  %v9297 = vunpack.c.l.b16 %v9105
  %v9298 = vunpack.c.l.b16 %v9106
  %v9299 = vunpack.c.l.b16 %v9107
  %v9300 = vunpack.c.l.b16 %v9108
  %v9301 = vunpack.c.l.b16 %v9109
  %v9302 = vunpack.c.l.b16 %v9110
  %v9303 = vunpack.c.l.b16 %v9111
  %v9304 = vunpack.c.l.b16 %v9112
  %v9305 = vunpack.c.l.b16 %v9113
  %v9306 = vpack.c.b16 %v9211, %v9210
  %v9307 = vpack.c.b16 %v9213, %v9212
  %v9308 = vpack.c.b16 %v9215, %v9214
  %v9309 = vpack.c.b16 %v9217, %v9216
  %v9310 = vpack.c.b16 %v9219, %v9218
  %v9311 = vpack.c.b16 %v9221, %v9220
  %v9312 = vpack.c.b16 %v9223, %v9222
  %v9313 = vpack.c.b16 %v9225, %v9224
  %v9314 = vpack.c.b16 %v9227, %v9226
  %v9315 = vpack.c.b16 %v9229, %v9228
  %v9316 = vpack.c.b16 %v9231, %v9230
  %v9317 = vpack.c.b16 %v9233, %v9232
  %v9318 = vpack.c.b16 %v9235, %v9234
  %v9319 = vpack.c.b16 %v9237, %v9236
  %v9320 = vpack.c.b16 %v9239, %v9238
  %v9321 = vpack.c.b16 %v9241, %v9240
  %v9322 = vpack.c.b16 %v9243, %v9242
  %v9323 = vpack.c.b16 %v9245, %v9244
  %v9324 = vpack.c.b16 %v9247, %v9246
  %v9325 = vpack.c.b16 %v9249, %v9248
  %v9326 = vpack.c.b16 %v9251, %v9250
  %v9327 = vpack.c.b16 %v9253, %v9252
  %v9328 = vpack.c.b16 %v9255, %v9254
  %v9329 = vpack.c.b16 %v9257, %v9256
  %v9330 = vpack.c.b16 %v9259, %v9258
  %v9331 = vpack.c.b16 %v9261, %v9260
  %v9332 = vpack.c.b16 %v9263, %v9262
  %v9333 = vpack.c.b16 %v9265, %v9264
  %v9334 = vpack.c.b16 %v9267, %v9266
  %v9335 = vpack.c.b16 %v9269, %v9268
  %v9336 = vpack.c.b16 %v9271, %v9270
  %v9337 = vpack.c.b16 %v9273, %v9272
  %v9338 = vpack.c.b16 %v9275, %v9274
  %v9339 = vpack.c.b16 %v9277, %v9276
  %v9340 = vpack.c.b16 %v9279, %v9278
  %v9341 = vpack.c.b16 %v9281, %v9280
  %v9342 = vpack.c.b16 %v9283, %v9282
  %v9343 = vpack.c.b16 %v9285, %v9284
  %v9344 = vpack.c.b16 %v9287, %v9286
  %v9345 = vpack.c.b16 %v9289, %v9288
  %v9346 = vpack.c.b16 %v9291, %v9290
  %v9347 = vpack.c.b16 %v9293, %v9292
  %v9348 = vpack.c.b16 %v9295, %v9294
  %v9349 = vpack.c.b16 %v9297, %v9296
  %v9350 = vpack.c.b16 %v9299, %v9298
  %v9351 = vpack.c.b16 %v9301, %v9300
  %v9352 = vpack.c.b16 %v9303, %v9302
  %v9353 = vpack.c.b16 %v9305, %v9304
  %9402 = vmatpush.bf16.msra.mxu0 %v9313
  %9403 = vmatpush.bf16.msra.mxu0 %v9312
  %9404 = vmatpush.bf16.msra.mxu0 %v9311
  %9405 = vmatpush.bf16.msra.mxu0 %v9310
  %9406 = vmatpush.bf16.msra.mxu0 %v9309
  %9407 = vmatpush.bf16.msra.mxu0 %v9308
  %9408 = vmatpush.bf16.msra.mxu0 %v9307
  %9409 = vmatpush.bf16.msra.mxu0 %v9306
  %9410 = vmatmul.bf16.gmra.mxu0 %v7716
  %v9411 = vpop.f32.mrf.mxu0
  %v9412 = vadd.f32 0.0, %v9411
  %v9413 = vpop.f32.mrf.mxu0
  %v9414 = vadd.f32 0.0, %v9413
  %9415 = vmatmul.bf16.gmra.mxu0 %v7722
  %v9416 = vpop.f32.mrf.mxu0
  %v9417 = vadd.f32 0.0, %v9416
  %v9418 = vpop.f32.mrf.mxu0
  %v9419 = vadd.f32 0.0, %v9418
  %9420 = vmatmul.bf16.gmra.mxu0 %v7728
  %v9421 = vpop.f32.mrf.mxu0
  %v9422 = vadd.f32 0.0, %v9421
  %v9423 = vpop.f32.mrf.mxu0
  %v9424 = vadd.f32 0.0, %v9423
  %9425 = vmatmul.bf16.gmra.mxu0 %v7734
  %v9426 = vpop.f32.mrf.mxu0
  %v9427 = vadd.f32 0.0, %v9426
  %v9428 = vpop.f32.mrf.mxu0
  %v9429 = vadd.f32 0.0, %v9428
  %9430 = vmatmul.bf16.gmra.mxu0 %v7740
  %v9431 = vpop.f32.mrf.mxu0
  %v9432 = vadd.f32 0.0, %v9431
  %v9433 = vpop.f32.mrf.mxu0
  %v9434 = vadd.f32 0.0, %v9433
  %9435 = vmatmul.bf16.gmra.mxu0 %v7746
  %v9436 = vpop.f32.mrf.mxu0
  %v9437 = vadd.f32 0.0, %v9436
  %v9438 = vpop.f32.mrf.mxu0
  %v9439 = vadd.f32 0.0, %v9438
  %9440 = vmatmul.bf16.gmra.mxu0 %v7752
  %v9441 = vpop.f32.mrf.mxu0
  %v9442 = vadd.f32 0.0, %v9441
  %v9443 = vpop.f32.mrf.mxu0
  %v9444 = vadd.f32 0.0, %v9443
  %9445 = vmatmul.bf16.gmra.mxu0 %v7758
  %v9446 = vpop.f32.mrf.mxu0
  %v9447 = vadd.f32 0.0, %v9446
  %v9448 = vpop.f32.mrf.mxu0
  %v9449 = vadd.f32 0.0, %v9448
  %9450 = vmatmul.bf16.gmra.mxu0 %v7764
  %v9451 = vpop.f32.mrf.mxu0
  %v9452 = vadd.f32 0.0, %v9451
  %v9453 = vpop.f32.mrf.mxu0
  %v9454 = vadd.f32 0.0, %v9453
  %9455 = vmatmul.bf16.gmra.mxu0 %v7770
  %v9456 = vpop.f32.mrf.mxu0
  %v9457 = vadd.f32 0.0, %v9456
  %v9458 = vpop.f32.mrf.mxu0
  %v9459 = vadd.f32 0.0, %v9458
  %9460 = vmatmul.bf16.gmra.mxu0 %v7776
  %v9461 = vpop.f32.mrf.mxu0
  %v9462 = vadd.f32 0.0, %v9461
  %v9463 = vpop.f32.mrf.mxu0
  %v9464 = vadd.f32 0.0, %v9463
  %9465 = vmatmul.bf16.gmra.mxu0 %v7782
  %v9466 = vpop.f32.mrf.mxu0
  %v9467 = vadd.f32 0.0, %v9466
  %v9468 = vpop.f32.mrf.mxu0
  %v9469 = vadd.f32 0.0, %v9468
  %9470 = vmatmul.bf16.gmra.mxu0 %v7788
  %v9471 = vpop.f32.mrf.mxu0
  %v9472 = vadd.f32 0.0, %v9471
  %v9473 = vpop.f32.mrf.mxu0
  %v9474 = vadd.f32 0.0, %v9473
  %9475 = vmatmul.bf16.gmra.mxu0 %v7794
  %v9476 = vpop.f32.mrf.mxu0
  %v9477 = vadd.f32 0.0, %v9476
  %v9478 = vpop.f32.mrf.mxu0
  %v9479 = vadd.f32 0.0, %v9478
  %9480 = vmatmul.bf16.gmra.mxu0 %v7800
  %v9481 = vpop.f32.mrf.mxu0
  %v9482 = vadd.f32 0.0, %v9481
  %v9483 = vpop.f32.mrf.mxu0
  %v9484 = vadd.f32 0.0, %v9483
  %9485 = vmatmul.bf16.gmra.mxu0 %v7806
  %v9486 = vpop.f32.mrf.mxu0
  %v9487 = vadd.f32 0.0, %v9486
  %v9488 = vpop.f32.mrf.mxu0
  %v9489 = vadd.f32 0.0, %v9488
  %9490 = vmatmul.bf16.gmra.mxu0 %v7812
  %v9491 = vpop.f32.mrf.mxu0
  %v9492 = vadd.f32 0.0, %v9491
  %v9493 = vpop.f32.mrf.mxu0
  %v9494 = vadd.f32 0.0, %v9493
  %9495 = vmatmul.bf16.gmra.mxu0 %v7818
  %v9496 = vpop.f32.mrf.mxu0
  %v9497 = vadd.f32 0.0, %v9496
  %v9498 = vpop.f32.mrf.mxu0
  %v9499 = vadd.f32 0.0, %v9498
  %9500 = vmatmul.bf16.gmra.mxu0 %v7824
  %v9501 = vpop.f32.mrf.mxu0
  %v9502 = vadd.f32 0.0, %v9501
  %v9503 = vpop.f32.mrf.mxu0
  %v9504 = vadd.f32 0.0, %v9503
  %9505 = vmatmul.bf16.gmra.mxu0 %v7830
  %v9506 = vpop.f32.mrf.mxu0
  %v9507 = vadd.f32 0.0, %v9506
  %v9508 = vpop.f32.mrf.mxu0
  %v9509 = vadd.f32 0.0, %v9508
  %9510 = vdwg.mxu0
  %9511 = vmatpush.bf16.msra.mxu0 %v9321
  %9512 = vmatpush.bf16.msra.mxu0 %v9320
  %9513 = vmatpush.bf16.msra.mxu0 %v9319
  %9514 = vmatpush.bf16.msra.mxu0 %v9318
  %9515 = vmatpush.bf16.msra.mxu0 %v9317
  %9516 = vmatpush.bf16.msra.mxu0 %v9316
  %9517 = vmatpush.bf16.msra.mxu0 %v9315
  %9518 = vmatpush.bf16.msra.mxu0 %v9314
  %9519 = vmatmul.bf16.gmra.mxu0 %v7717
  %v9520 = vpop.f32.mrf.mxu0
  %v9521 = vadd.f32 %v9412, %v9520
  %v9522 = vpop.f32.mrf.mxu0
  %v9523 = vadd.f32 %v9414, %v9522
  %9524 = vmatmul.bf16.gmra.mxu0 %v7723
  %v9525 = vpop.f32.mrf.mxu0
  %v9526 = vadd.f32 %v9417, %v9525
  %v9527 = vpop.f32.mrf.mxu0
  %v9528 = vadd.f32 %v9419, %v9527
  %9529 = vmatmul.bf16.gmra.mxu0 %v7729
  %v9530 = vpop.f32.mrf.mxu0
  %v9531 = vadd.f32 %v9422, %v9530
  %v9532 = vpop.f32.mrf.mxu0
  %v9533 = vadd.f32 %v9424, %v9532
  %9534 = vmatmul.bf16.gmra.mxu0 %v7735
  %v9535 = vpop.f32.mrf.mxu0
  %v9536 = vadd.f32 %v9427, %v9535
  %v9537 = vpop.f32.mrf.mxu0
  %v9538 = vadd.f32 %v9429, %v9537
  %9539 = vmatmul.bf16.gmra.mxu0 %v7741
  %v9540 = vpop.f32.mrf.mxu0
  %v9541 = vadd.f32 %v9432, %v9540
  %v9542 = vpop.f32.mrf.mxu0
  %v9543 = vadd.f32 %v9434, %v9542
  %9544 = vmatmul.bf16.gmra.mxu0 %v7747
  %v9545 = vpop.f32.mrf.mxu0
  %v9546 = vadd.f32 %v9437, %v9545
  %v9547 = vpop.f32.mrf.mxu0
  %v9548 = vadd.f32 %v9439, %v9547
  %9549 = vmatmul.bf16.gmra.mxu0 %v7753
  %v9550 = vpop.f32.mrf.mxu0
  %v9551 = vadd.f32 %v9442, %v9550
  %v9552 = vpop.f32.mrf.mxu0
  %v9553 = vadd.f32 %v9444, %v9552
  %9554 = vmatmul.bf16.gmra.mxu0 %v7759
  %v9555 = vpop.f32.mrf.mxu0
  %v9556 = vadd.f32 %v9447, %v9555
  %v9557 = vpop.f32.mrf.mxu0
  %v9558 = vadd.f32 %v9449, %v9557
  %9559 = vmatmul.bf16.gmra.mxu0 %v7765
  %v9560 = vpop.f32.mrf.mxu0
  %v9561 = vadd.f32 %v9452, %v9560
  %v9562 = vpop.f32.mrf.mxu0
  %v9563 = vadd.f32 %v9454, %v9562
  %9564 = vmatmul.bf16.gmra.mxu0 %v7771
  %v9565 = vpop.f32.mrf.mxu0
  %v9566 = vadd.f32 %v9457, %v9565
  %v9567 = vpop.f32.mrf.mxu0
  %v9568 = vadd.f32 %v9459, %v9567
  %9569 = vmatmul.bf16.gmra.mxu0 %v7777
  %v9570 = vpop.f32.mrf.mxu0
  %v9571 = vadd.f32 %v9462, %v9570
  %v9572 = vpop.f32.mrf.mxu0
  %v9573 = vadd.f32 %v9464, %v9572
  %9574 = vmatmul.bf16.gmra.mxu0 %v7783
  %v9575 = vpop.f32.mrf.mxu0
  %v9576 = vadd.f32 %v9467, %v9575
  %v9577 = vpop.f32.mrf.mxu0
  %v9578 = vadd.f32 %v9469, %v9577
  %9579 = vmatmul.bf16.gmra.mxu0 %v7789
  %v9580 = vpop.f32.mrf.mxu0
  %v9581 = vadd.f32 %v9472, %v9580
  %v9582 = vpop.f32.mrf.mxu0
  %v9583 = vadd.f32 %v9474, %v9582
  %9584 = vmatmul.bf16.gmra.mxu0 %v7795
  %v9585 = vpop.f32.mrf.mxu0
  %v9586 = vadd.f32 %v9477, %v9585
  %v9587 = vpop.f32.mrf.mxu0
  %v9588 = vadd.f32 %v9479, %v9587
  %9589 = vmatmul.bf16.gmra.mxu0 %v7801
  %v9590 = vpop.f32.mrf.mxu0
  %v9591 = vadd.f32 %v9482, %v9590
  %v9592 = vpop.f32.mrf.mxu0
  %v9593 = vadd.f32 %v9484, %v9592
  %9594 = vmatmul.bf16.gmra.mxu0 %v7807
  %v9595 = vpop.f32.mrf.mxu0
  %v9596 = vadd.f32 %v9487, %v9595
  %v9597 = vpop.f32.mrf.mxu0
  %v9598 = vadd.f32 %v9489, %v9597
  %9599 = vmatmul.bf16.gmra.mxu0 %v7813
  %v9600 = vpop.f32.mrf.mxu0
  %v9601 = vadd.f32 %v9492, %v9600
  %v9602 = vpop.f32.mrf.mxu0
  %v9603 = vadd.f32 %v9494, %v9602
  %9604 = vmatmul.bf16.gmra.mxu0 %v7819
  %v9605 = vpop.f32.mrf.mxu0
  %v9606 = vadd.f32 %v9497, %v9605
  %v9607 = vpop.f32.mrf.mxu0
  %v9608 = vadd.f32 %v9499, %v9607
  %9609 = vmatmul.bf16.gmra.mxu0 %v7825
  %v9610 = vpop.f32.mrf.mxu0
  %v9611 = vadd.f32 %v9502, %v9610
  %v9612 = vpop.f32.mrf.mxu0
  %v9613 = vadd.f32 %v9504, %v9612
  %9614 = vmatmul.bf16.gmra.mxu0 %v7831
  %v9615 = vpop.f32.mrf.mxu0
  %v9616 = vadd.f32 %v9507, %v9615
  %v9617 = vpop.f32.mrf.mxu0
  %v9618 = vadd.f32 %v9509, %v9617
  %9619 = vdwg.mxu0
  %9620 = vmatpush.bf16.msra.mxu0 %v9329
  %9621 = vmatpush.bf16.msra.mxu0 %v9328
  %9622 = vmatpush.bf16.msra.mxu0 %v9327
  %9623 = vmatpush.bf16.msra.mxu0 %v9326
  %9624 = vmatpush.bf16.msra.mxu0 %v9325
  %9625 = vmatpush.bf16.msra.mxu0 %v9324
  %9626 = vmatpush.bf16.msra.mxu0 %v9323
  %9627 = vmatpush.bf16.msra.mxu0 %v9322
  %9628 = vmatmul.bf16.gmra.mxu0 %v7718
  %v9629 = vpop.f32.mrf.mxu0
  %v9630 = vadd.f32 %v9521, %v9629
  %v9631 = vpop.f32.mrf.mxu0
  %v9632 = vadd.f32 %v9523, %v9631
  %9633 = vmatmul.bf16.gmra.mxu0 %v7724
  %v9634 = vpop.f32.mrf.mxu0
  %v9635 = vadd.f32 %v9526, %v9634
  %v9636 = vpop.f32.mrf.mxu0
  %v9637 = vadd.f32 %v9528, %v9636
  %9638 = vmatmul.bf16.gmra.mxu0 %v7730
  %v9639 = vpop.f32.mrf.mxu0
  %v9640 = vadd.f32 %v9531, %v9639
  %v9641 = vpop.f32.mrf.mxu0
  %v9642 = vadd.f32 %v9533, %v9641
  %9643 = vmatmul.bf16.gmra.mxu0 %v7736
  %v9644 = vpop.f32.mrf.mxu0
  %v9645 = vadd.f32 %v9536, %v9644
  %v9646 = vpop.f32.mrf.mxu0
  %v9647 = vadd.f32 %v9538, %v9646
  %9648 = vmatmul.bf16.gmra.mxu0 %v7742
  %v9649 = vpop.f32.mrf.mxu0
  %v9650 = vadd.f32 %v9541, %v9649
  %v9651 = vpop.f32.mrf.mxu0
  %v9652 = vadd.f32 %v9543, %v9651
  %9653 = vmatmul.bf16.gmra.mxu0 %v7748
  %v9654 = vpop.f32.mrf.mxu0
  %v9655 = vadd.f32 %v9546, %v9654
  %v9656 = vpop.f32.mrf.mxu0
  %v9657 = vadd.f32 %v9548, %v9656
  %9658 = vmatmul.bf16.gmra.mxu0 %v7754
  %v9659 = vpop.f32.mrf.mxu0
  %v9660 = vadd.f32 %v9551, %v9659
  %v9661 = vpop.f32.mrf.mxu0
  %v9662 = vadd.f32 %v9553, %v9661
  %9663 = vmatmul.bf16.gmra.mxu0 %v7760
  %v9664 = vpop.f32.mrf.mxu0
  %v9665 = vadd.f32 %v9556, %v9664
  %v9666 = vpop.f32.mrf.mxu0
  %v9667 = vadd.f32 %v9558, %v9666
  %9668 = vmatmul.bf16.gmra.mxu0 %v7766
  %v9669 = vpop.f32.mrf.mxu0
  %v9670 = vadd.f32 %v9561, %v9669
  %v9671 = vpop.f32.mrf.mxu0
  %v9672 = vadd.f32 %v9563, %v9671
  %9673 = vmatmul.bf16.gmra.mxu0 %v7772
  %v9674 = vpop.f32.mrf.mxu0
  %v9675 = vadd.f32 %v9566, %v9674
  %v9676 = vpop.f32.mrf.mxu0
  %v9677 = vadd.f32 %v9568, %v9676
  %9678 = vmatmul.bf16.gmra.mxu0 %v7778
  %v9679 = vpop.f32.mrf.mxu0
  %v9680 = vadd.f32 %v9571, %v9679
  %v9681 = vpop.f32.mrf.mxu0
  %v9682 = vadd.f32 %v9573, %v9681
  %9683 = vmatmul.bf16.gmra.mxu0 %v7784
  %v9684 = vpop.f32.mrf.mxu0
  %v9685 = vadd.f32 %v9576, %v9684
  %v9686 = vpop.f32.mrf.mxu0
  %v9687 = vadd.f32 %v9578, %v9686
  %9688 = vmatmul.bf16.gmra.mxu0 %v7790
  %v9689 = vpop.f32.mrf.mxu0
  %v9690 = vadd.f32 %v9581, %v9689
  %v9691 = vpop.f32.mrf.mxu0
  %v9692 = vadd.f32 %v9583, %v9691
  %9693 = vmatmul.bf16.gmra.mxu0 %v7796
  %v9694 = vpop.f32.mrf.mxu0
  %v9695 = vadd.f32 %v9586, %v9694
  %v9696 = vpop.f32.mrf.mxu0
  %v9697 = vadd.f32 %v9588, %v9696
  %9698 = vmatmul.bf16.gmra.mxu0 %v7802
  %v9699 = vpop.f32.mrf.mxu0
  %v9700 = vadd.f32 %v9591, %v9699
  %v9701 = vpop.f32.mrf.mxu0
  %v9702 = vadd.f32 %v9593, %v9701
  %9703 = vmatmul.bf16.gmra.mxu0 %v7808
  %v9704 = vpop.f32.mrf.mxu0
  %v9705 = vadd.f32 %v9596, %v9704
  %v9706 = vpop.f32.mrf.mxu0
  %v9707 = vadd.f32 %v9598, %v9706
  %9708 = vmatmul.bf16.gmra.mxu0 %v7814
  %v9709 = vpop.f32.mrf.mxu0
  %v9710 = vadd.f32 %v9601, %v9709
  %v9711 = vpop.f32.mrf.mxu0
  %v9712 = vadd.f32 %v9603, %v9711
  %9713 = vmatmul.bf16.gmra.mxu0 %v7820
  %v9714 = vpop.f32.mrf.mxu0
  %v9715 = vadd.f32 %v9606, %v9714
  %v9716 = vpop.f32.mrf.mxu0
  %v9717 = vadd.f32 %v9608, %v9716
  %9718 = vmatmul.bf16.gmra.mxu0 %v7826
  %v9719 = vpop.f32.mrf.mxu0
  %v9720 = vadd.f32 %v9611, %v9719
  %v9721 = vpop.f32.mrf.mxu0
  %v9722 = vadd.f32 %v9613, %v9721
  %9723 = vmatmul.bf16.gmra.mxu0 %v7832
  %v9724 = vpop.f32.mrf.mxu0
  %v9725 = vadd.f32 %v9616, %v9724
  %v9726 = vpop.f32.mrf.mxu0
  %v9727 = vadd.f32 %v9618, %v9726
  %9728 = vdwg.mxu0
  %9729 = vmatpush.bf16.msra.mxu0 %v9337
  %9730 = vmatpush.bf16.msra.mxu0 %v9336
  %9731 = vmatpush.bf16.msra.mxu0 %v9335
  %9732 = vmatpush.bf16.msra.mxu0 %v9334
  %9733 = vmatpush.bf16.msra.mxu0 %v9333
  %9734 = vmatpush.bf16.msra.mxu0 %v9332
  %9735 = vmatpush.bf16.msra.mxu0 %v9331
  %9736 = vmatpush.bf16.msra.mxu0 %v9330
  %9737 = vmatmul.bf16.gmra.mxu0 %v7719
  %v9738 = vpop.f32.mrf.mxu0
  %v9739 = vadd.f32 %v9630, %v9738
  %v9740 = vpop.f32.mrf.mxu0
  %v9741 = vadd.f32 %v9632, %v9740
  %9742 = vmatmul.bf16.gmra.mxu0 %v7725
  %v9743 = vpop.f32.mrf.mxu0
  %v9744 = vadd.f32 %v9635, %v9743
  %v9745 = vpop.f32.mrf.mxu0
  %v9746 = vadd.f32 %v9637, %v9745
  %9747 = vmatmul.bf16.gmra.mxu0 %v7731
  %v9748 = vpop.f32.mrf.mxu0
  %v9749 = vadd.f32 %v9640, %v9748
  %v9750 = vpop.f32.mrf.mxu0
  %v9751 = vadd.f32 %v9642, %v9750
  %9752 = vmatmul.bf16.gmra.mxu0 %v7737
  %v9753 = vpop.f32.mrf.mxu0
  %v9754 = vadd.f32 %v9645, %v9753
  %v9755 = vpop.f32.mrf.mxu0
  %v9756 = vadd.f32 %v9647, %v9755
  %9757 = vmatmul.bf16.gmra.mxu0 %v7743
  %v9758 = vpop.f32.mrf.mxu0
  %v9759 = vadd.f32 %v9650, %v9758
  %v9760 = vpop.f32.mrf.mxu0
  %v9761 = vadd.f32 %v9652, %v9760
  %9762 = vmatmul.bf16.gmra.mxu0 %v7749
  %v9763 = vpop.f32.mrf.mxu0
  %v9764 = vadd.f32 %v9655, %v9763
  %v9765 = vpop.f32.mrf.mxu0
  %v9766 = vadd.f32 %v9657, %v9765
  %9767 = vmatmul.bf16.gmra.mxu0 %v7755
  %v9768 = vpop.f32.mrf.mxu0
  %v9769 = vadd.f32 %v9660, %v9768
  %v9770 = vpop.f32.mrf.mxu0
  %v9771 = vadd.f32 %v9662, %v9770
  %9772 = vmatmul.bf16.gmra.mxu0 %v7761
  %v9773 = vpop.f32.mrf.mxu0
  %v9774 = vadd.f32 %v9665, %v9773
  %v9775 = vpop.f32.mrf.mxu0
  %v9776 = vadd.f32 %v9667, %v9775
  %9777 = vmatmul.bf16.gmra.mxu0 %v7767
  %v9778 = vpop.f32.mrf.mxu0
  %v9779 = vadd.f32 %v9670, %v9778
  %v9780 = vpop.f32.mrf.mxu0
  %v9781 = vadd.f32 %v9672, %v9780
  %9782 = vmatmul.bf16.gmra.mxu0 %v7773
  %v9783 = vpop.f32.mrf.mxu0
  %v9784 = vadd.f32 %v9675, %v9783
  %v9785 = vpop.f32.mrf.mxu0
  %v9786 = vadd.f32 %v9677, %v9785
  %9787 = vmatmul.bf16.gmra.mxu0 %v7779
  %v9788 = vpop.f32.mrf.mxu0
  %v9789 = vadd.f32 %v9680, %v9788
  %v9790 = vpop.f32.mrf.mxu0
  %v9791 = vadd.f32 %v9682, %v9790
  %9792 = vmatmul.bf16.gmra.mxu0 %v7785
  %v9793 = vpop.f32.mrf.mxu0
  %v9794 = vadd.f32 %v9685, %v9793
  %v9795 = vpop.f32.mrf.mxu0
  %v9796 = vadd.f32 %v9687, %v9795
  %9797 = vmatmul.bf16.gmra.mxu0 %v7791
  %v9798 = vpop.f32.mrf.mxu0
  %v9799 = vadd.f32 %v9690, %v9798
  %v9800 = vpop.f32.mrf.mxu0
  %v9801 = vadd.f32 %v9692, %v9800
  %9802 = vmatmul.bf16.gmra.mxu0 %v7797
  %v9803 = vpop.f32.mrf.mxu0
  %v9804 = vadd.f32 %v9695, %v9803
  %v9805 = vpop.f32.mrf.mxu0
  %v9806 = vadd.f32 %v9697, %v9805
  %9807 = vmatmul.bf16.gmra.mxu0 %v7803
  %v9808 = vpop.f32.mrf.mxu0
  %v9809 = vadd.f32 %v9700, %v9808
  %v9810 = vpop.f32.mrf.mxu0
  %v9811 = vadd.f32 %v9702, %v9810
  %9812 = vmatmul.bf16.gmra.mxu0 %v7809
  %v9813 = vpop.f32.mrf.mxu0
  %v9814 = vadd.f32 %v9705, %v9813
  %v9815 = vpop.f32.mrf.mxu0
  %v9816 = vadd.f32 %v9707, %v9815
  %9817 = vmatmul.bf16.gmra.mxu0 %v7815
  %v9818 = vpop.f32.mrf.mxu0
  %v9819 = vadd.f32 %v9710, %v9818
  %v9820 = vpop.f32.mrf.mxu0
  %v9821 = vadd.f32 %v9712, %v9820
  %9822 = vmatmul.bf16.gmra.mxu0 %v7821
  %v9823 = vpop.f32.mrf.mxu0
  %v9824 = vadd.f32 %v9715, %v9823
  %v9825 = vpop.f32.mrf.mxu0
  %v9826 = vadd.f32 %v9717, %v9825
  %9827 = vmatmul.bf16.gmra.mxu0 %v7827
  %v9828 = vpop.f32.mrf.mxu0
  %v9829 = vadd.f32 %v9720, %v9828
  %v9830 = vpop.f32.mrf.mxu0
  %v9831 = vadd.f32 %v9722, %v9830
  %9832 = vmatmul.bf16.gmra.mxu0 %v7833
  %v9833 = vpop.f32.mrf.mxu0
  %v9834 = vadd.f32 %v9725, %v9833
  %v9835 = vpop.f32.mrf.mxu0
  %v9836 = vadd.f32 %v9727, %v9835
  %9837 = vdwg.mxu0
  %9838 = vmatpush.bf16.msra.mxu0 %v9345
  %9839 = vmatpush.bf16.msra.mxu0 %v9344
  %9840 = vmatpush.bf16.msra.mxu0 %v9343
  %9841 = vmatpush.bf16.msra.mxu0 %v9342
  %9842 = vmatpush.bf16.msra.mxu0 %v9341
  %9843 = vmatpush.bf16.msra.mxu0 %v9340
  %9844 = vmatpush.bf16.msra.mxu0 %v9339
  %9845 = vmatpush.bf16.msra.mxu0 %v9338
  %9846 = vmatmul.bf16.gmra.mxu0 %v7720
  %v9847 = vpop.f32.mrf.mxu0
  %v9848 = vadd.f32 %v9739, %v9847
  %v9849 = vpop.f32.mrf.mxu0
  %v9850 = vadd.f32 %v9741, %v9849
  %9851 = vmatmul.bf16.gmra.mxu0 %v7726
  %v9852 = vpop.f32.mrf.mxu0
  %v9853 = vadd.f32 %v9744, %v9852
  %v9854 = vpop.f32.mrf.mxu0
  %v9855 = vadd.f32 %v9746, %v9854
  %9856 = vmatmul.bf16.gmra.mxu0 %v7732
  %v9857 = vpop.f32.mrf.mxu0
  %v9858 = vadd.f32 %v9749, %v9857
  %v9859 = vpop.f32.mrf.mxu0
  %v9860 = vadd.f32 %v9751, %v9859
  %9861 = vmatmul.bf16.gmra.mxu0 %v7738
  %v9862 = vpop.f32.mrf.mxu0
  %v9863 = vadd.f32 %v9754, %v9862
  %v9864 = vpop.f32.mrf.mxu0
  %v9865 = vadd.f32 %v9756, %v9864
  %9866 = vmatmul.bf16.gmra.mxu0 %v7744
  %v9867 = vpop.f32.mrf.mxu0
  %v9868 = vadd.f32 %v9759, %v9867
  %v9869 = vpop.f32.mrf.mxu0
  %v9870 = vadd.f32 %v9761, %v9869
  %9871 = vmatmul.bf16.gmra.mxu0 %v7750
  %v9872 = vpop.f32.mrf.mxu0
  %v9873 = vadd.f32 %v9764, %v9872
  %v9874 = vpop.f32.mrf.mxu0
  %v9875 = vadd.f32 %v9766, %v9874
  %9876 = vmatmul.bf16.gmra.mxu0 %v7756
  %v9877 = vpop.f32.mrf.mxu0
  %v9878 = vadd.f32 %v9769, %v9877
  %v9879 = vpop.f32.mrf.mxu0
  %v9880 = vadd.f32 %v9771, %v9879
  %9881 = vmatmul.bf16.gmra.mxu0 %v7762
  %v9882 = vpop.f32.mrf.mxu0
  %v9883 = vadd.f32 %v9774, %v9882
  %v9884 = vpop.f32.mrf.mxu0
  %v9885 = vadd.f32 %v9776, %v9884
  %9886 = vmatmul.bf16.gmra.mxu0 %v7768
  %v9887 = vpop.f32.mrf.mxu0
  %v9888 = vadd.f32 %v9779, %v9887
  %v9889 = vpop.f32.mrf.mxu0
  %v9890 = vadd.f32 %v9781, %v9889
  %9891 = vmatmul.bf16.gmra.mxu0 %v7774
  %v9892 = vpop.f32.mrf.mxu0
  %v9893 = vadd.f32 %v9784, %v9892
  %v9894 = vpop.f32.mrf.mxu0
  %v9895 = vadd.f32 %v9786, %v9894
  %9896 = vmatmul.bf16.gmra.mxu0 %v7780
  %v9897 = vpop.f32.mrf.mxu0
  %v9898 = vadd.f32 %v9789, %v9897
  %v9899 = vpop.f32.mrf.mxu0
  %v9900 = vadd.f32 %v9791, %v9899
  %9901 = vmatmul.bf16.gmra.mxu0 %v7786
  %v9902 = vpop.f32.mrf.mxu0
  %v9903 = vadd.f32 %v9794, %v9902
  %v9904 = vpop.f32.mrf.mxu0
  %v9905 = vadd.f32 %v9796, %v9904
  %9906 = vmatmul.bf16.gmra.mxu0 %v7792
  %v9907 = vpop.f32.mrf.mxu0
  %v9908 = vadd.f32 %v9799, %v9907
  %v9909 = vpop.f32.mrf.mxu0
  %v9910 = vadd.f32 %v9801, %v9909
  %9911 = vmatmul.bf16.gmra.mxu0 %v7798
  %v9912 = vpop.f32.mrf.mxu0
  %v9913 = vadd.f32 %v9804, %v9912
  %v9914 = vpop.f32.mrf.mxu0
  %v9915 = vadd.f32 %v9806, %v9914
  %9916 = vmatmul.bf16.gmra.mxu0 %v7804
  %v9917 = vpop.f32.mrf.mxu0
  %v9918 = vadd.f32 %v9809, %v9917
  %v9919 = vpop.f32.mrf.mxu0
  %v9920 = vadd.f32 %v9811, %v9919
  %9921 = vmatmul.bf16.gmra.mxu0 %v7810
  %v9922 = vpop.f32.mrf.mxu0
  %v9923 = vadd.f32 %v9814, %v9922
  %v9924 = vpop.f32.mrf.mxu0
  %v9925 = vadd.f32 %v9816, %v9924
  %9926 = vmatmul.bf16.gmra.mxu0 %v7816
  %v9927 = vpop.f32.mrf.mxu0
  %v9928 = vadd.f32 %v9819, %v9927
  %v9929 = vpop.f32.mrf.mxu0
  %v9930 = vadd.f32 %v9821, %v9929
  %9931 = vmatmul.bf16.gmra.mxu0 %v7822
  %v9932 = vpop.f32.mrf.mxu0
  %v9933 = vadd.f32 %v9824, %v9932
  %v9934 = vpop.f32.mrf.mxu0
  %v9935 = vadd.f32 %v9826, %v9934
  %9936 = vmatmul.bf16.gmra.mxu0 %v7828
  %v9937 = vpop.f32.mrf.mxu0
  %v9938 = vadd.f32 %v9829, %v9937
  %v9939 = vpop.f32.mrf.mxu0
  %v9940 = vadd.f32 %v9831, %v9939
  %9941 = vmatmul.bf16.gmra.mxu0 %v7834
  %v9942 = vpop.f32.mrf.mxu0
  %v9943 = vadd.f32 %v9834, %v9942
  %v9944 = vpop.f32.mrf.mxu0
  %v9945 = vadd.f32 %v9836, %v9944
  %9946 = vdwg.mxu0
  %9947 = vmatpush.bf16.msra.mxu0 %v9353
  %9948 = vmatpush.bf16.msra.mxu0 %v9352
  %9949 = vmatpush.bf16.msra.mxu0 %v9351
  %9950 = vmatpush.bf16.msra.mxu0 %v9350
  %9951 = vmatpush.bf16.msra.mxu0 %v9349
  %9952 = vmatpush.bf16.msra.mxu0 %v9348
  %9953 = vmatpush.bf16.msra.mxu0 %v9347
  %9954 = vmatpush.bf16.msra.mxu0 %v9346
  %9955 = vmatmul.bf16.gmra.mxu0 %v7721
  %v9956 = vpop.f32.mrf.mxu0
  %v9957 = vadd.f32 %v9848, %v9956
  %v9958 = vpop.f32.mrf.mxu0
  %v9959 = vadd.f32 %v9850, %v9958
  %9960 = vmatmul.bf16.gmra.mxu0 %v7727
  %v9961 = vpop.f32.mrf.mxu0
  %v9962 = vadd.f32 %v9853, %v9961
  %v9963 = vpop.f32.mrf.mxu0
  %v9964 = vadd.f32 %v9855, %v9963
  %9965 = vmatmul.bf16.gmra.mxu0 %v7733
  %v9966 = vpop.f32.mrf.mxu0
  %v9967 = vadd.f32 %v9858, %v9966
  %v9968 = vpop.f32.mrf.mxu0
  %v9969 = vadd.f32 %v9860, %v9968
  %9970 = vmatmul.bf16.gmra.mxu0 %v7739
  %v9971 = vpop.f32.mrf.mxu0
  %v9972 = vadd.f32 %v9863, %v9971
  %v9973 = vpop.f32.mrf.mxu0
  %v9974 = vadd.f32 %v9865, %v9973
  %9975 = vmatmul.bf16.gmra.mxu0 %v7745
  %v9976 = vpop.f32.mrf.mxu0
  %v9977 = vadd.f32 %v9868, %v9976
  %v9978 = vpop.f32.mrf.mxu0
  %v9979 = vadd.f32 %v9870, %v9978
  %9980 = vmatmul.bf16.gmra.mxu0 %v7751
  %v9981 = vpop.f32.mrf.mxu0
  %v9982 = vadd.f32 %v9873, %v9981
  %v9983 = vpop.f32.mrf.mxu0
  %v9984 = vadd.f32 %v9875, %v9983
  %9985 = vmatmul.bf16.gmra.mxu0 %v7757
  %v9986 = vpop.f32.mrf.mxu0
  %v9987 = vadd.f32 %v9878, %v9986
  %v9988 = vpop.f32.mrf.mxu0
  %v9989 = vadd.f32 %v9880, %v9988
  %9990 = vmatmul.bf16.gmra.mxu0 %v7763
  %v9991 = vpop.f32.mrf.mxu0
  %v9992 = vadd.f32 %v9883, %v9991
  %v9993 = vpop.f32.mrf.mxu0
  %v9994 = vadd.f32 %v9885, %v9993
  %9995 = vmatmul.bf16.gmra.mxu0 %v7769
  %v9996 = vpop.f32.mrf.mxu0
  %v9997 = vadd.f32 %v9888, %v9996
  %v9998 = vpop.f32.mrf.mxu0
  %v9999 = vadd.f32 %v9890, %v9998
  %10000 = vmatmul.bf16.gmra.mxu0 %v7775
  %v10001 = vpop.f32.mrf.mxu0
  %v10002 = vadd.f32 %v9893, %v10001
  %v10003 = vpop.f32.mrf.mxu0
  %v10004 = vadd.f32 %v9895, %v10003
  %10005 = vmatmul.bf16.gmra.mxu0 %v7781
  %v10006 = vpop.f32.mrf.mxu0
  %v10007 = vadd.f32 %v9898, %v10006
  %v10008 = vpop.f32.mrf.mxu0
  %v10009 = vadd.f32 %v9900, %v10008
  %10010 = vmatmul.bf16.gmra.mxu0 %v7787
  %v10011 = vpop.f32.mrf.mxu0
  %v10012 = vadd.f32 %v9903, %v10011
  %v10013 = vpop.f32.mrf.mxu0
  %v10014 = vadd.f32 %v9905, %v10013
  %10015 = vmatmul.bf16.gmra.mxu0 %v7793
  %v10016 = vpop.f32.mrf.mxu0
  %v10017 = vadd.f32 %v9908, %v10016
  %v10018 = vpop.f32.mrf.mxu0
  %v10019 = vadd.f32 %v9910, %v10018
  %10020 = vmatmul.bf16.gmra.mxu0 %v7799
  %v10021 = vpop.f32.mrf.mxu0
  %v10022 = vadd.f32 %v9913, %v10021
  %v10023 = vpop.f32.mrf.mxu0
  %v10024 = vadd.f32 %v9915, %v10023
  %10025 = vmatmul.bf16.gmra.mxu0 %v7805
  %v10026 = vpop.f32.mrf.mxu0
  %v10027 = vadd.f32 %v9918, %v10026
  %v10028 = vpop.f32.mrf.mxu0
  %v10029 = vadd.f32 %v9920, %v10028
  %10030 = vmatmul.bf16.gmra.mxu0 %v7811
  %v10031 = vpop.f32.mrf.mxu0
  %v10032 = vadd.f32 %v9923, %v10031
  %v10033 = vpop.f32.mrf.mxu0
  %v10034 = vadd.f32 %v9925, %v10033
  %10035 = vmatmul.bf16.gmra.mxu0 %v7817
  %v10036 = vpop.f32.mrf.mxu0
  %v10037 = vadd.f32 %v9928, %v10036
  %v10038 = vpop.f32.mrf.mxu0
  %v10039 = vadd.f32 %v9930, %v10038
  %10040 = vmatmul.bf16.gmra.mxu0 %v7823
  %v10041 = vpop.f32.mrf.mxu0
  %v10042 = vadd.f32 %v9933, %v10041
  %v10043 = vpop.f32.mrf.mxu0
  %v10044 = vadd.f32 %v9935, %v10043
  %10045 = vmatmul.bf16.gmra.mxu0 %v7829
  %v10046 = vpop.f32.mrf.mxu0
  %v10047 = vadd.f32 %v9938, %v10046
  %v10048 = vpop.f32.mrf.mxu0
  %v10049 = vadd.f32 %v9940, %v10048
  %10050 = vmatmul.bf16.gmra.mxu0 %v7835
  %v10051 = vpop.f32.mrf.mxu0
  %v10052 = vadd.f32 %v9943, %v10051
  %v10053 = vpop.f32.mrf.mxu0
  %v10054 = vadd.f32 %v9945, %v10053
  %10055 = vdwg.mxu0
  %v10056 = vmax.f32 %v9957, %v10007
  %v10057 = vmax.f32 %v9959, %v10009
  %v10058 = vmax.f32 %v9962, %v10012
  %v10059 = vmax.f32 %v9964, %v10014
  %v10060 = vmax.f32 %v9967, %v10017
  %v10061 = vmax.f32 %v9969, %v10019
  %v10062 = vmax.f32 %v9972, %v10022
  %v10063 = vmax.f32 %v9974, %v10024
  %v10064 = vmax.f32 %v9977, %v10027
  %v10065 = vmax.f32 %v9979, %v10029
  %v10066 = vmax.f32 %v9982, %v10032
  %v10067 = vmax.f32 %v9984, %v10034
  %v10068 = vmax.f32 %v9987, %v10037
  %v10069 = vmax.f32 %v9989, %v10039
  %v10070 = vmax.f32 %v9992, %v10042
  %v10071 = vmax.f32 %v9994, %v10044
  %v10072 = vmax.f32 %v9997, %v10047
  %v10073 = vmax.f32 %v9999, %v10049
  %v10074 = vmax.f32 %v10002, %v10052
  %v10075 = vmax.f32 %v10004, %v10054
  %v10076 = vmax.f32 %v10056, %v10066
  %v10077 = vmax.f32 %v10057, %v10067
  %v10078 = vmax.f32 %v10058, %v10068
  %v10079 = vmax.f32 %v10059, %v10069
  %v10080 = vmax.f32 %v10060, %v10070
  %v10081 = vmax.f32 %v10061, %v10071
  %v10082 = vmax.f32 %v10062, %v10072
  %v10083 = vmax.f32 %v10063, %v10073
  %v10084 = vmax.f32 %v10064, %v10074
  %v10085 = vmax.f32 %v10065, %v10075
  %v10086 = vadd.f32 %v10076, %v8931
  %v10087 = vadd.f32 %v10077, %v8936
  %v10088 = vadd.f32 %v10078, %v8941
  %v10089 = vadd.f32 %v10079, %v8946
  %v10090 = vadd.f32 %v10080, %v8951
  %v10091 = vadd.f32 %v10081, %v8956
  %v10092 = vadd.f32 %v10082, %v8961
  %v10093 = vadd.f32 %v10083, %v8966
  %v10094 = vadd.f32 %v10084, %v8971
  %v10095 = vadd.f32 %v10085, %v8976
  %v10096 = vmax.f32 %v10086, 0.0
  %v10097 = vmax.f32 %v10087, 0.0
  %v10098 = vmax.f32 %v10088, 0.0
  %v10099 = vmax.f32 %v10089, 0.0
  %v10100 = vmax.f32 %v10090, 0.0
  %v10101 = vmax.f32 %v10091, 0.0
  %v10102 = vmax.f32 %v10092, 0.0
  %v10103 = vmax.f32 %v10093, 0.0
  %v10104 = vmax.f32 %v10094, 0.0
  %v10105 = vmax.f32 %v10095, 0.0
  %v10106 = vpack.c.bf16 %v10096, %v10096
  %v10107 = vpack.c.bf16 %v10097, %v10097
  %v10108 = vpack.c.bf16 %v10098, %v10098
  %v10109 = vpack.c.bf16 %v10099, %v10099
  %v10110 = vpack.c.bf16 %v10100, %v10100
  %v10111 = vpack.c.bf16 %v10101, %v10101
  %v10112 = vpack.c.bf16 %v10102, %v10102
  %v10113 = vpack.c.bf16 %v10103, %v10103
  %v10114 = vpack.c.bf16 %v10104, %v10104
  %v10115 = vpack.c.bf16 %v10105, %v10105
  %10116 = vst [vmem:[#allocation3 + $0x28] sm:$0xf] %v10106
  %10117 = vst [vmem:[#allocation3 + $0x2c] sm:$0xf] %v10107
  %10118 = vst [vmem:[#allocation3 + $0x30] sm:$0xf] %v10108
  %10119 = vst [vmem:[#allocation3 + $0x34] sm:$0xf] %v10109
  %10120 = vst [vmem:[#allocation3 + $0x38] sm:$0xf] %v10110
  %10121 = vst [vmem:[#allocation3 + $0x3c] sm:$0xf] %v10111
  %10122 = vst [vmem:[#allocation3 + $0x40] sm:$0xf] %v10112
  %10123 = vst [vmem:[#allocation3 + $0x44] sm:$0xf] %v10113
  %10124 = vst [vmem:[#allocation3 + $0x48] sm:$0xf] %v10114
  %10125 = vst [vmem:[#allocation3 + $0x4c] sm:$0xf] %v10115
  %v10126 = vld [vmem:[#allocation2 + $0x100] sm:$0xf]
  %v10127 = vld [vmem:[#allocation2 + $0x104] sm:$0xf]
  %v10128 = vld [vmem:[#allocation2 + $0x108] sm:$0xf]
  %v10129 = vld [vmem:[#allocation2 + $0x10c] sm:$0xf]
  %v10130 = vld [vmem:[#allocation2 + $0x110] sm:$0xf]
  %v10131 = vld [vmem:[#allocation2 + $0x114] sm:$0xf]
  %v10132 = vld [vmem:[#allocation2 + $0x118] sm:$0xf]
  %v10133 = vld [vmem:[#allocation2 + $0x11c] sm:$0xf]
  %v10134 = vld [vmem:[#allocation2 + $0x120] sm:$0xf]
  %v10135 = vld [vmem:[#allocation2 + $0x124] sm:$0xf]
  %v10136 = vld [vmem:[#allocation2 + $0x128] sm:$0xf]
  %v10137 = vld [vmem:[#allocation2 + $0x12c] sm:$0xf]
  %v10138 = vld [vmem:[#allocation2 + $0x130] sm:$0xf]
  %v10139 = vld [vmem:[#allocation2 + $0x134] sm:$0xf]
  %v10140 = vld [vmem:[#allocation2 + $0x138] sm:$0xf]
  %v10141 = vld [vmem:[#allocation2 + $0x13c] sm:$0xf]
  %v10142 = vld [vmem:[#allocation2 + $0x140] sm:$0xf]
  %v10143 = vld [vmem:[#allocation2 + $0x144] sm:$0xf]
  %v10144 = vld [vmem:[#allocation2 + $0x148] sm:$0xf]
  %v10145 = vld [vmem:[#allocation2 + $0x14c] sm:$0xf]
  %v10146 = vld [vmem:[#allocation2 + $0x150] sm:$0xf]
  %v10147 = vld [vmem:[#allocation2 + $0x154] sm:$0xf]
  %v10148 = vld [vmem:[#allocation2 + $0x158] sm:$0xf]
  %v10149 = vld [vmem:[#allocation2 + $0x15c] sm:$0xf]
  %v10150 = vld [vmem:[#allocation2 + $0x160] sm:$0xf]
  %v10151 = vld [vmem:[#allocation2 + $0x164] sm:$0xf]
  %v10152 = vld [vmem:[#allocation2 + $0x168] sm:$0xf]
  %v10153 = vld [vmem:[#allocation2 + $0x16c] sm:$0xf]
  %v10154 = vld [vmem:[#allocation2 + $0x170] sm:$0xf]
  %v10155 = vld [vmem:[#allocation2 + $0x174] sm:$0xf]
  %v10156 = vld [vmem:[#allocation2 + $0x178] sm:$0xf]
  %v10157 = vld [vmem:[#allocation2 + $0x17c] sm:$0xf]
  %v10158 = vld [vmem:[#allocation2 + $0x180] sm:$0xf]
  %v10159 = vld [vmem:[#allocation2 + $0x184] sm:$0xf]
  %v10160 = vld [vmem:[#allocation2 + $0x188] sm:$0xf]
  %v10161 = vld [vmem:[#allocation2 + $0x18c] sm:$0xf]
  %v10162 = vld [vmem:[#allocation2 + $0x190] sm:$0xf]
  %v10163 = vld [vmem:[#allocation2 + $0x194] sm:$0xf]
  %v10164 = vld [vmem:[#allocation2 + $0x198] sm:$0xf]
  %v10165 = vld [vmem:[#allocation2 + $0x19c] sm:$0xf]
  %v10166 = vld [vmem:[#allocation2 + $0x1a0] sm:$0xf]
  %v10167 = vld [vmem:[#allocation2 + $0x1a4] sm:$0xf]
  %v10168 = vld [vmem:[#allocation2 + $0x1a8] sm:$0xf]
  %v10169 = vld [vmem:[#allocation2 + $0x1ac] sm:$0xf]
  %v10170 = vld [vmem:[#allocation2 + $0x1b0] sm:$0xf]
  %v10171 = vld [vmem:[#allocation2 + $0x1b4] sm:$0xf]
  %v10172 = vld [vmem:[#allocation2 + $0x1b8] sm:$0xf]
  %v10173 = vld [vmem:[#allocation2 + $0x1bc] sm:$0xf]
  %v10174 = vld [vmem:[#allocation2 + $0x1c0] sm:$0xf]
  %v10175 = vld [vmem:[#allocation2 + $0x1c4] sm:$0xf]
  %v10176 = vld [vmem:[#allocation2 + $0x1c8] sm:$0xf]
  %v10177 = vld [vmem:[#allocation2 + $0x1cc] sm:$0xf]
  %v10178 = vld [vmem:[#allocation2 + $0x1d0] sm:$0xf]
  %v10179 = vld [vmem:[#allocation2 + $0x1d4] sm:$0xf]
  %v10180 = vld [vmem:[#allocation2 + $0x1d8] sm:$0xf]
  %v10181 = vld [vmem:[#allocation2 + $0x1dc] sm:$0xf]
  %v10182 = vld [vmem:[#allocation2 + $0x1e0] sm:$0xf]
  %v10183 = vld [vmem:[#allocation2 + $0x1e4] sm:$0xf]
  %v10184 = vld [vmem:[#allocation2 + $0x1e8] sm:$0xf]
  %v10185 = vld [vmem:[#allocation2 + $0x1ec] sm:$0xf]
  %v10186 = vld [vmem:[#allocation2 + $0x1f0] sm:$0xf]
  %v10187 = vld [vmem:[#allocation2 + $0x1f4] sm:$0xf]
  %v10188 = vld [vmem:[#allocation2 + $0x1f8] sm:$0xf]
  %v10189 = vld [vmem:[#allocation2 + $0x1fc] sm:$0xf]
  %v10190 = vld [vmem:[#allocation2 + $0x200] sm:$0xf]
  %v10191 = vld [vmem:[#allocation2 + $0x204] sm:$0xf]
  %v10192 = vld [vmem:[#allocation2 + $0x208] sm:$0xf]
  %v10193 = vld [vmem:[#allocation2 + $0x20c] sm:$0xf]
  %v10194 = vld [vmem:[#allocation2 + $0x210] sm:$0xf]
  %v10195 = vld [vmem:[#allocation2 + $0x214] sm:$0xf]
  %v10196 = vld [vmem:[#allocation2 + $0x218] sm:$0xf]
  %v10197 = vld [vmem:[#allocation2 + $0x21c] sm:$0xf]
  %v10198 = vld [vmem:[#allocation2 + $0x220] sm:$0xf]
  %v10199 = vld [vmem:[#allocation2 + $0x224] sm:$0xf]
  %v10200 = vld [vmem:[#allocation2 + $0x228] sm:$0xf]
  %v10201 = vld [vmem:[#allocation2 + $0x22c] sm:$0xf]
  %v10202 = vld [vmem:[#allocation2 + $0x230] sm:$0xf]
  %v10203 = vld [vmem:[#allocation2 + $0x234] sm:$0xf]
  %v10204 = vld [vmem:[#allocation2 + $0x238] sm:$0xf]
  %v10205 = vld [vmem:[#allocation2 + $0x23c] sm:$0xf]
  %v10206 = vld [vmem:[#allocation2 + $0x240] sm:$0xf]
  %v10207 = vld [vmem:[#allocation2 + $0x244] sm:$0xf]
  %v10208 = vld [vmem:[#allocation2 + $0x248] sm:$0xf]
  %v10209 = vld [vmem:[#allocation2 + $0x24c] sm:$0xf]
  %v10210 = vld [vmem:[#allocation2 + $0x250] sm:$0xf]
  %v10211 = vld [vmem:[#allocation2 + $0x254] sm:$0xf]
  %v10212 = vld [vmem:[#allocation2 + $0x258] sm:$0xf]
  %v10213 = vld [vmem:[#allocation2 + $0x25c] sm:$0xf]
  %v10214 = vld [vmem:[#allocation2 + $0x260] sm:$0xf]
  %v10215 = vld [vmem:[#allocation2 + $0x264] sm:$0xf]
  %v10216 = vld [vmem:[#allocation2 + $0x268] sm:$0xf]
  %v10217 = vld [vmem:[#allocation2 + $0x26c] sm:$0xf]
  %v10218 = vld [vmem:[#allocation2 + $0x270] sm:$0xf]
  %v10219 = vld [vmem:[#allocation2 + $0x274] sm:$0xf]
  %v10220 = vld [vmem:[#allocation2 + $0x278] sm:$0xf]
  %v10221 = vld [vmem:[#allocation2 + $0x27c] sm:$0xf]
  %v10318 = vunpack.c.l.b16 %v10126
  %v10319 = vunpack.c.l.b16 %v10127
  %v10320 = vunpack.c.l.b16 %v10128
  %v10321 = vunpack.c.l.b16 %v10129
  %v10322 = vunpack.c.l.b16 %v10130
  %v10323 = vunpack.c.l.b16 %v10131
  %v10324 = vunpack.c.l.b16 %v10132
  %v10325 = vunpack.c.l.b16 %v10133
  %v10326 = vunpack.c.l.b16 %v10134
  %v10327 = vunpack.c.l.b16 %v10135
  %v10328 = vunpack.c.l.b16 %v10136
  %v10329 = vunpack.c.l.b16 %v10137
  %v10330 = vunpack.c.l.b16 %v10138
  %v10331 = vunpack.c.l.b16 %v10139
  %v10332 = vunpack.c.l.b16 %v10140
  %v10333 = vunpack.c.l.b16 %v10141
  %v10334 = vunpack.c.l.b16 %v10142
  %v10335 = vunpack.c.l.b16 %v10143
  %v10336 = vunpack.c.l.b16 %v10144
  %v10337 = vunpack.c.l.b16 %v10145
  %v10338 = vunpack.c.l.b16 %v10146
  %v10339 = vunpack.c.l.b16 %v10147
  %v10340 = vunpack.c.l.b16 %v10148
  %v10341 = vunpack.c.l.b16 %v10149
  %v10342 = vunpack.c.l.b16 %v10150
  %v10343 = vunpack.c.l.b16 %v10151
  %v10344 = vunpack.c.l.b16 %v10152
  %v10345 = vunpack.c.l.b16 %v10153
  %v10346 = vunpack.c.l.b16 %v10154
  %v10347 = vunpack.c.l.b16 %v10155
  %v10348 = vunpack.c.l.b16 %v10156
  %v10349 = vunpack.c.l.b16 %v10157
  %v10350 = vunpack.c.l.b16 %v10158
  %v10351 = vunpack.c.l.b16 %v10159
  %v10352 = vunpack.c.l.b16 %v10160
  %v10353 = vunpack.c.l.b16 %v10161
  %v10354 = vunpack.c.l.b16 %v10162
  %v10355 = vunpack.c.l.b16 %v10163
  %v10356 = vunpack.c.l.b16 %v10164
  %v10357 = vunpack.c.l.b16 %v10165
  %v10358 = vunpack.c.l.b16 %v10166
  %v10359 = vunpack.c.l.b16 %v10167
  %v10360 = vunpack.c.l.b16 %v10168
  %v10361 = vunpack.c.l.b16 %v10169
  %v10362 = vunpack.c.l.b16 %v10170
  %v10363 = vunpack.c.l.b16 %v10171
  %v10364 = vunpack.c.l.b16 %v10172
  %v10365 = vunpack.c.l.b16 %v10173
  %v10366 = vunpack.c.l.b16 %v10174
  %v10367 = vunpack.c.l.b16 %v10175
  %v10368 = vunpack.c.l.b16 %v10176
  %v10369 = vunpack.c.l.b16 %v10177
  %v10370 = vunpack.c.l.b16 %v10178
  %v10371 = vunpack.c.l.b16 %v10179
  %v10372 = vunpack.c.l.b16 %v10180
  %v10373 = vunpack.c.l.b16 %v10181
  %v10374 = vunpack.c.l.b16 %v10182
  %v10375 = vunpack.c.l.b16 %v10183
  %v10376 = vunpack.c.l.b16 %v10184
  %v10377 = vunpack.c.l.b16 %v10185
  %v10378 = vunpack.c.l.b16 %v10186
  %v10379 = vunpack.c.l.b16 %v10187
  %v10380 = vunpack.c.l.b16 %v10188
  %v10381 = vunpack.c.l.b16 %v10189
  %v10382 = vunpack.c.l.b16 %v10190
  %v10383 = vunpack.c.l.b16 %v10191
  %v10384 = vunpack.c.l.b16 %v10192
  %v10385 = vunpack.c.l.b16 %v10193
  %v10386 = vunpack.c.l.b16 %v10194
  %v10387 = vunpack.c.l.b16 %v10195
  %v10388 = vunpack.c.l.b16 %v10196
  %v10389 = vunpack.c.l.b16 %v10197
  %v10390 = vunpack.c.l.b16 %v10198
  %v10391 = vunpack.c.l.b16 %v10199
  %v10392 = vunpack.c.l.b16 %v10200
  %v10393 = vunpack.c.l.b16 %v10201
  %v10394 = vunpack.c.l.b16 %v10202
  %v10395 = vunpack.c.l.b16 %v10203
  %v10396 = vunpack.c.l.b16 %v10204
  %v10397 = vunpack.c.l.b16 %v10205
  %v10398 = vunpack.c.l.b16 %v10206
  %v10399 = vunpack.c.l.b16 %v10207
  %v10400 = vunpack.c.l.b16 %v10208
  %v10401 = vunpack.c.l.b16 %v10209
  %v10402 = vunpack.c.l.b16 %v10210
  %v10403 = vunpack.c.l.b16 %v10211
  %v10404 = vunpack.c.l.b16 %v10212
  %v10405 = vunpack.c.l.b16 %v10213
  %v10406 = vunpack.c.l.b16 %v10214
  %v10407 = vunpack.c.l.b16 %v10215
  %v10408 = vunpack.c.l.b16 %v10216
  %v10409 = vunpack.c.l.b16 %v10217
  %v10410 = vunpack.c.l.b16 %v10218
  %v10411 = vunpack.c.l.b16 %v10219
  %v10412 = vunpack.c.l.b16 %v10220
  %v10413 = vunpack.c.l.b16 %v10221
  %v10414 = vpack.c.b16 %v10319, %v10318
  %v10415 = vpack.c.b16 %v10321, %v10320
  %v10416 = vpack.c.b16 %v10323, %v10322
  %v10417 = vpack.c.b16 %v10325, %v10324
  %v10418 = vpack.c.b16 %v10327, %v10326
  %v10419 = vpack.c.b16 %v10329, %v10328
  %v10420 = vpack.c.b16 %v10331, %v10330
  %v10421 = vpack.c.b16 %v10333, %v10332
  %v10422 = vpack.c.b16 %v10335, %v10334
  %v10423 = vpack.c.b16 %v10337, %v10336
  %v10424 = vpack.c.b16 %v10339, %v10338
  %v10425 = vpack.c.b16 %v10341, %v10340
  %v10426 = vpack.c.b16 %v10343, %v10342
  %v10427 = vpack.c.b16 %v10345, %v10344
  %v10428 = vpack.c.b16 %v10347, %v10346
  %v10429 = vpack.c.b16 %v10349, %v10348
  %v10430 = vpack.c.b16 %v10351, %v10350
  %v10431 = vpack.c.b16 %v10353, %v10352
  %v10432 = vpack.c.b16 %v10355, %v10354
  %v10433 = vpack.c.b16 %v10357, %v10356
  %v10434 = vpack.c.b16 %v10359, %v10358
  %v10435 = vpack.c.b16 %v10361, %v10360
  %v10436 = vpack.c.b16 %v10363, %v10362
  %v10437 = vpack.c.b16 %v10365, %v10364
  %v10438 = vpack.c.b16 %v10367, %v10366
  %v10439 = vpack.c.b16 %v10369, %v10368
  %v10440 = vpack.c.b16 %v10371, %v10370
  %v10441 = vpack.c.b16 %v10373, %v10372
  %v10442 = vpack.c.b16 %v10375, %v10374
  %v10443 = vpack.c.b16 %v10377, %v10376
  %v10444 = vpack.c.b16 %v10379, %v10378
  %v10445 = vpack.c.b16 %v10381, %v10380
  %v10446 = vpack.c.b16 %v10383, %v10382
  %v10447 = vpack.c.b16 %v10385, %v10384
  %v10448 = vpack.c.b16 %v10387, %v10386
  %v10449 = vpack.c.b16 %v10389, %v10388
  %v10450 = vpack.c.b16 %v10391, %v10390
  %v10451 = vpack.c.b16 %v10393, %v10392
  %v10452 = vpack.c.b16 %v10395, %v10394
  %v10453 = vpack.c.b16 %v10397, %v10396
  %v10454 = vpack.c.b16 %v10399, %v10398
  %v10455 = vpack.c.b16 %v10401, %v10400
  %v10456 = vpack.c.b16 %v10403, %v10402
  %v10457 = vpack.c.b16 %v10405, %v10404
  %v10458 = vpack.c.b16 %v10407, %v10406
  %v10459 = vpack.c.b16 %v10409, %v10408
  %v10460 = vpack.c.b16 %v10411, %v10410
  %v10461 = vpack.c.b16 %v10413, %v10412
  %10510 = vmatpush.bf16.msra.mxu0 %v10421
  %10511 = vmatpush.bf16.msra.mxu0 %v10420
  %10512 = vmatpush.bf16.msra.mxu0 %v10419
  %10513 = vmatpush.bf16.msra.mxu0 %v10418
  %10514 = vmatpush.bf16.msra.mxu0 %v10417
  %10515 = vmatpush.bf16.msra.mxu0 %v10416
  %10516 = vmatpush.bf16.msra.mxu0 %v10415
  %10517 = vmatpush.bf16.msra.mxu0 %v10414
  %10518 = vmatmul.bf16.gmra.mxu0 %v7716
  %v10519 = vpop.f32.mrf.mxu0
  %v10520 = vadd.f32 0.0, %v10519
  %v10521 = vpop.f32.mrf.mxu0
  %v10522 = vadd.f32 0.0, %v10521
  %10523 = vmatmul.bf16.gmra.mxu0 %v7722
  %v10524 = vpop.f32.mrf.mxu0
  %v10525 = vadd.f32 0.0, %v10524
  %v10526 = vpop.f32.mrf.mxu0
  %v10527 = vadd.f32 0.0, %v10526
  %10528 = vmatmul.bf16.gmra.mxu0 %v7728
  %v10529 = vpop.f32.mrf.mxu0
  %v10530 = vadd.f32 0.0, %v10529
  %v10531 = vpop.f32.mrf.mxu0
  %v10532 = vadd.f32 0.0, %v10531
  %10533 = vmatmul.bf16.gmra.mxu0 %v7734
  %v10534 = vpop.f32.mrf.mxu0
  %v10535 = vadd.f32 0.0, %v10534
  %v10536 = vpop.f32.mrf.mxu0
  %v10537 = vadd.f32 0.0, %v10536
  %10538 = vmatmul.bf16.gmra.mxu0 %v7740
  %v10539 = vpop.f32.mrf.mxu0
  %v10540 = vadd.f32 0.0, %v10539
  %v10541 = vpop.f32.mrf.mxu0
  %v10542 = vadd.f32 0.0, %v10541
  %10543 = vmatmul.bf16.gmra.mxu0 %v7746
  %v10544 = vpop.f32.mrf.mxu0
  %v10545 = vadd.f32 0.0, %v10544
  %v10546 = vpop.f32.mrf.mxu0
  %v10547 = vadd.f32 0.0, %v10546
  %10548 = vmatmul.bf16.gmra.mxu0 %v7752
  %v10549 = vpop.f32.mrf.mxu0
  %v10550 = vadd.f32 0.0, %v10549
  %v10551 = vpop.f32.mrf.mxu0
  %v10552 = vadd.f32 0.0, %v10551
  %10553 = vmatmul.bf16.gmra.mxu0 %v7758
  %v10554 = vpop.f32.mrf.mxu0
  %v10555 = vadd.f32 0.0, %v10554
  %v10556 = vpop.f32.mrf.mxu0
  %v10557 = vadd.f32 0.0, %v10556
  %10558 = vmatmul.bf16.gmra.mxu0 %v7764
  %v10559 = vpop.f32.mrf.mxu0
  %v10560 = vadd.f32 0.0, %v10559
  %v10561 = vpop.f32.mrf.mxu0
  %v10562 = vadd.f32 0.0, %v10561
  %10563 = vmatmul.bf16.gmra.mxu0 %v7770
  %v10564 = vpop.f32.mrf.mxu0
  %v10565 = vadd.f32 0.0, %v10564
  %v10566 = vpop.f32.mrf.mxu0
  %v10567 = vadd.f32 0.0, %v10566
  %10568 = vmatmul.bf16.gmra.mxu0 %v7776
  %v10569 = vpop.f32.mrf.mxu0
  %v10570 = vadd.f32 0.0, %v10569
  %v10571 = vpop.f32.mrf.mxu0
  %v10572 = vadd.f32 0.0, %v10571
  %10573 = vmatmul.bf16.gmra.mxu0 %v7782
  %v10574 = vpop.f32.mrf.mxu0
  %v10575 = vadd.f32 0.0, %v10574
  %v10576 = vpop.f32.mrf.mxu0
  %v10577 = vadd.f32 0.0, %v10576
  %10578 = vmatmul.bf16.gmra.mxu0 %v7788
  %v10579 = vpop.f32.mrf.mxu0
  %v10580 = vadd.f32 0.0, %v10579
  %v10581 = vpop.f32.mrf.mxu0
  %v10582 = vadd.f32 0.0, %v10581
  %10583 = vmatmul.bf16.gmra.mxu0 %v7794
  %v10584 = vpop.f32.mrf.mxu0
  %v10585 = vadd.f32 0.0, %v10584
  %v10586 = vpop.f32.mrf.mxu0
  %v10587 = vadd.f32 0.0, %v10586
  %10588 = vmatmul.bf16.gmra.mxu0 %v7800
  %v10589 = vpop.f32.mrf.mxu0
  %v10590 = vadd.f32 0.0, %v10589
  %v10591 = vpop.f32.mrf.mxu0
  %v10592 = vadd.f32 0.0, %v10591
  %10593 = vmatmul.bf16.gmra.mxu0 %v7806
  %v10594 = vpop.f32.mrf.mxu0
  %v10595 = vadd.f32 0.0, %v10594
  %v10596 = vpop.f32.mrf.mxu0
  %v10597 = vadd.f32 0.0, %v10596
  %10598 = vmatmul.bf16.gmra.mxu0 %v7812
  %v10599 = vpop.f32.mrf.mxu0
  %v10600 = vadd.f32 0.0, %v10599
  %v10601 = vpop.f32.mrf.mxu0
  %v10602 = vadd.f32 0.0, %v10601
  %10603 = vmatmul.bf16.gmra.mxu0 %v7818
  %v10604 = vpop.f32.mrf.mxu0
  %v10605 = vadd.f32 0.0, %v10604
  %v10606 = vpop.f32.mrf.mxu0
  %v10607 = vadd.f32 0.0, %v10606
  %10608 = vmatmul.bf16.gmra.mxu0 %v7824
  %v10609 = vpop.f32.mrf.mxu0
  %v10610 = vadd.f32 0.0, %v10609
  %v10611 = vpop.f32.mrf.mxu0
  %v10612 = vadd.f32 0.0, %v10611
  %10613 = vmatmul.bf16.gmra.mxu0 %v7830
  %v10614 = vpop.f32.mrf.mxu0
  %v10615 = vadd.f32 0.0, %v10614
  %v10616 = vpop.f32.mrf.mxu0
  %v10617 = vadd.f32 0.0, %v10616
  %10618 = vdwg.mxu0
  %10619 = vmatpush.bf16.msra.mxu0 %v10429
  %10620 = vmatpush.bf16.msra.mxu0 %v10428
  %10621 = vmatpush.bf16.msra.mxu0 %v10427
  %10622 = vmatpush.bf16.msra.mxu0 %v10426
  %10623 = vmatpush.bf16.msra.mxu0 %v10425
  %10624 = vmatpush.bf16.msra.mxu0 %v10424
  %10625 = vmatpush.bf16.msra.mxu0 %v10423
  %10626 = vmatpush.bf16.msra.mxu0 %v10422
  %10627 = vmatmul.bf16.gmra.mxu0 %v7717
  %v10628 = vpop.f32.mrf.mxu0
  %v10629 = vadd.f32 %v10520, %v10628
  %v10630 = vpop.f32.mrf.mxu0
  %v10631 = vadd.f32 %v10522, %v10630
  %10632 = vmatmul.bf16.gmra.mxu0 %v7723
  %v10633 = vpop.f32.mrf.mxu0
  %v10634 = vadd.f32 %v10525, %v10633
  %v10635 = vpop.f32.mrf.mxu0
  %v10636 = vadd.f32 %v10527, %v10635
  %10637 = vmatmul.bf16.gmra.mxu0 %v7729
  %v10638 = vpop.f32.mrf.mxu0
  %v10639 = vadd.f32 %v10530, %v10638
  %v10640 = vpop.f32.mrf.mxu0
  %v10641 = vadd.f32 %v10532, %v10640
  %10642 = vmatmul.bf16.gmra.mxu0 %v7735
  %v10643 = vpop.f32.mrf.mxu0
  %v10644 = vadd.f32 %v10535, %v10643
  %v10645 = vpop.f32.mrf.mxu0
  %v10646 = vadd.f32 %v10537, %v10645
  %10647 = vmatmul.bf16.gmra.mxu0 %v7741
  %v10648 = vpop.f32.mrf.mxu0
  %v10649 = vadd.f32 %v10540, %v10648
  %v10650 = vpop.f32.mrf.mxu0
  %v10651 = vadd.f32 %v10542, %v10650
  %10652 = vmatmul.bf16.gmra.mxu0 %v7747
  %v10653 = vpop.f32.mrf.mxu0
  %v10654 = vadd.f32 %v10545, %v10653
  %v10655 = vpop.f32.mrf.mxu0
  %v10656 = vadd.f32 %v10547, %v10655
  %10657 = vmatmul.bf16.gmra.mxu0 %v7753
  %v10658 = vpop.f32.mrf.mxu0
  %v10659 = vadd.f32 %v10550, %v10658
  %v10660 = vpop.f32.mrf.mxu0
  %v10661 = vadd.f32 %v10552, %v10660
  %10662 = vmatmul.bf16.gmra.mxu0 %v7759
  %v10663 = vpop.f32.mrf.mxu0
  %v10664 = vadd.f32 %v10555, %v10663
  %v10665 = vpop.f32.mrf.mxu0
  %v10666 = vadd.f32 %v10557, %v10665
  %10667 = vmatmul.bf16.gmra.mxu0 %v7765
  %v10668 = vpop.f32.mrf.mxu0
  %v10669 = vadd.f32 %v10560, %v10668
  %v10670 = vpop.f32.mrf.mxu0
  %v10671 = vadd.f32 %v10562, %v10670
  %10672 = vmatmul.bf16.gmra.mxu0 %v7771
  %v10673 = vpop.f32.mrf.mxu0
  %v10674 = vadd.f32 %v10565, %v10673
  %v10675 = vpop.f32.mrf.mxu0
  %v10676 = vadd.f32 %v10567, %v10675
  %10677 = vmatmul.bf16.gmra.mxu0 %v7777
  %v10678 = vpop.f32.mrf.mxu0
  %v10679 = vadd.f32 %v10570, %v10678
  %v10680 = vpop.f32.mrf.mxu0
  %v10681 = vadd.f32 %v10572, %v10680
  %10682 = vmatmul.bf16.gmra.mxu0 %v7783
  %v10683 = vpop.f32.mrf.mxu0
  %v10684 = vadd.f32 %v10575, %v10683
  %v10685 = vpop.f32.mrf.mxu0
  %v10686 = vadd.f32 %v10577, %v10685
  %10687 = vmatmul.bf16.gmra.mxu0 %v7789
  %v10688 = vpop.f32.mrf.mxu0
  %v10689 = vadd.f32 %v10580, %v10688
  %v10690 = vpop.f32.mrf.mxu0
  %v10691 = vadd.f32 %v10582, %v10690
  %10692 = vmatmul.bf16.gmra.mxu0 %v7795
  %v10693 = vpop.f32.mrf.mxu0
  %v10694 = vadd.f32 %v10585, %v10693
  %v10695 = vpop.f32.mrf.mxu0
  %v10696 = vadd.f32 %v10587, %v10695
  %10697 = vmatmul.bf16.gmra.mxu0 %v7801
  %v10698 = vpop.f32.mrf.mxu0
  %v10699 = vadd.f32 %v10590, %v10698
  %v10700 = vpop.f32.mrf.mxu0
  %v10701 = vadd.f32 %v10592, %v10700
  %10702 = vmatmul.bf16.gmra.mxu0 %v7807
  %v10703 = vpop.f32.mrf.mxu0
  %v10704 = vadd.f32 %v10595, %v10703
  %v10705 = vpop.f32.mrf.mxu0
  %v10706 = vadd.f32 %v10597, %v10705
  %10707 = vmatmul.bf16.gmra.mxu0 %v7813
  %v10708 = vpop.f32.mrf.mxu0
  %v10709 = vadd.f32 %v10600, %v10708
  %v10710 = vpop.f32.mrf.mxu0
  %v10711 = vadd.f32 %v10602, %v10710
  %10712 = vmatmul.bf16.gmra.mxu0 %v7819
  %v10713 = vpop.f32.mrf.mxu0
  %v10714 = vadd.f32 %v10605, %v10713
  %v10715 = vpop.f32.mrf.mxu0
  %v10716 = vadd.f32 %v10607, %v10715
  %10717 = vmatmul.bf16.gmra.mxu0 %v7825
  %v10718 = vpop.f32.mrf.mxu0
  %v10719 = vadd.f32 %v10610, %v10718
  %v10720 = vpop.f32.mrf.mxu0
  %v10721 = vadd.f32 %v10612, %v10720
  %10722 = vmatmul.bf16.gmra.mxu0 %v7831
  %v10723 = vpop.f32.mrf.mxu0
  %v10724 = vadd.f32 %v10615, %v10723
  %v10725 = vpop.f32.mrf.mxu0
  %v10726 = vadd.f32 %v10617, %v10725
  %10727 = vdwg.mxu0
  %10728 = vmatpush.bf16.msra.mxu0 %v10437
  %10729 = vmatpush.bf16.msra.mxu0 %v10436
  %10730 = vmatpush.bf16.msra.mxu0 %v10435
  %10731 = vmatpush.bf16.msra.mxu0 %v10434
  %10732 = vmatpush.bf16.msra.mxu0 %v10433
  %10733 = vmatpush.bf16.msra.mxu0 %v10432
  %10734 = vmatpush.bf16.msra.mxu0 %v10431
  %10735 = vmatpush.bf16.msra.mxu0 %v10430
  %10736 = vmatmul.bf16.gmra.mxu0 %v7718
  %v10737 = vpop.f32.mrf.mxu0
  %v10738 = vadd.f32 %v10629, %v10737
  %v10739 = vpop.f32.mrf.mxu0
  %v10740 = vadd.f32 %v10631, %v10739
  %10741 = vmatmul.bf16.gmra.mxu0 %v7724
  %v10742 = vpop.f32.mrf.mxu0
  %v10743 = vadd.f32 %v10634, %v10742
  %v10744 = vpop.f32.mrf.mxu0
  %v10745 = vadd.f32 %v10636, %v10744
  %10746 = vmatmul.bf16.gmra.mxu0 %v7730
  %v10747 = vpop.f32.mrf.mxu0
  %v10748 = vadd.f32 %v10639, %v10747
  %v10749 = vpop.f32.mrf.mxu0
  %v10750 = vadd.f32 %v10641, %v10749
  %10751 = vmatmul.bf16.gmra.mxu0 %v7736
  %v10752 = vpop.f32.mrf.mxu0
  %v10753 = vadd.f32 %v10644, %v10752
  %v10754 = vpop.f32.mrf.mxu0
  %v10755 = vadd.f32 %v10646, %v10754
  %10756 = vmatmul.bf16.gmra.mxu0 %v7742
  %v10757 = vpop.f32.mrf.mxu0
  %v10758 = vadd.f32 %v10649, %v10757
  %v10759 = vpop.f32.mrf.mxu0
  %v10760 = vadd.f32 %v10651, %v10759
  %10761 = vmatmul.bf16.gmra.mxu0 %v7748
  %v10762 = vpop.f32.mrf.mxu0
  %v10763 = vadd.f32 %v10654, %v10762
  %v10764 = vpop.f32.mrf.mxu0
  %v10765 = vadd.f32 %v10656, %v10764
  %10766 = vmatmul.bf16.gmra.mxu0 %v7754
  %v10767 = vpop.f32.mrf.mxu0
  %v10768 = vadd.f32 %v10659, %v10767
  %v10769 = vpop.f32.mrf.mxu0
  %v10770 = vadd.f32 %v10661, %v10769
  %10771 = vmatmul.bf16.gmra.mxu0 %v7760
  %v10772 = vpop.f32.mrf.mxu0
  %v10773 = vadd.f32 %v10664, %v10772
  %v10774 = vpop.f32.mrf.mxu0
  %v10775 = vadd.f32 %v10666, %v10774
  %10776 = vmatmul.bf16.gmra.mxu0 %v7766
  %v10777 = vpop.f32.mrf.mxu0
  %v10778 = vadd.f32 %v10669, %v10777
  %v10779 = vpop.f32.mrf.mxu0
  %v10780 = vadd.f32 %v10671, %v10779
  %10781 = vmatmul.bf16.gmra.mxu0 %v7772
  %v10782 = vpop.f32.mrf.mxu0
  %v10783 = vadd.f32 %v10674, %v10782
  %v10784 = vpop.f32.mrf.mxu0
  %v10785 = vadd.f32 %v10676, %v10784
  %10786 = vmatmul.bf16.gmra.mxu0 %v7778
  %v10787 = vpop.f32.mrf.mxu0
  %v10788 = vadd.f32 %v10679, %v10787
  %v10789 = vpop.f32.mrf.mxu0
  %v10790 = vadd.f32 %v10681, %v10789
  %10791 = vmatmul.bf16.gmra.mxu0 %v7784
  %v10792 = vpop.f32.mrf.mxu0
  %v10793 = vadd.f32 %v10684, %v10792
  %v10794 = vpop.f32.mrf.mxu0
  %v10795 = vadd.f32 %v10686, %v10794
  %10796 = vmatmul.bf16.gmra.mxu0 %v7790
  %v10797 = vpop.f32.mrf.mxu0
  %v10798 = vadd.f32 %v10689, %v10797
  %v10799 = vpop.f32.mrf.mxu0
  %v10800 = vadd.f32 %v10691, %v10799
  %10801 = vmatmul.bf16.gmra.mxu0 %v7796
  %v10802 = vpop.f32.mrf.mxu0
  %v10803 = vadd.f32 %v10694, %v10802
  %v10804 = vpop.f32.mrf.mxu0
  %v10805 = vadd.f32 %v10696, %v10804
  %10806 = vmatmul.bf16.gmra.mxu0 %v7802
  %v10807 = vpop.f32.mrf.mxu0
  %v10808 = vadd.f32 %v10699, %v10807
  %v10809 = vpop.f32.mrf.mxu0
  %v10810 = vadd.f32 %v10701, %v10809
  %10811 = vmatmul.bf16.gmra.mxu0 %v7808
  %v10812 = vpop.f32.mrf.mxu0
  %v10813 = vadd.f32 %v10704, %v10812
  %v10814 = vpop.f32.mrf.mxu0
  %v10815 = vadd.f32 %v10706, %v10814
  %10816 = vmatmul.bf16.gmra.mxu0 %v7814
  %v10817 = vpop.f32.mrf.mxu0
  %v10818 = vadd.f32 %v10709, %v10817
  %v10819 = vpop.f32.mrf.mxu0
  %v10820 = vadd.f32 %v10711, %v10819
  %10821 = vmatmul.bf16.gmra.mxu0 %v7820
  %v10822 = vpop.f32.mrf.mxu0
  %v10823 = vadd.f32 %v10714, %v10822
  %v10824 = vpop.f32.mrf.mxu0
  %v10825 = vadd.f32 %v10716, %v10824
  %10826 = vmatmul.bf16.gmra.mxu0 %v7826
  %v10827 = vpop.f32.mrf.mxu0
  %v10828 = vadd.f32 %v10719, %v10827
  %v10829 = vpop.f32.mrf.mxu0
  %v10830 = vadd.f32 %v10721, %v10829
  %10831 = vmatmul.bf16.gmra.mxu0 %v7832
  %v10832 = vpop.f32.mrf.mxu0
  %v10833 = vadd.f32 %v10724, %v10832
  %v10834 = vpop.f32.mrf.mxu0
  %v10835 = vadd.f32 %v10726, %v10834
  %10836 = vdwg.mxu0
  %10837 = vmatpush.bf16.msra.mxu0 %v10445
  %10838 = vmatpush.bf16.msra.mxu0 %v10444
  %10839 = vmatpush.bf16.msra.mxu0 %v10443
  %10840 = vmatpush.bf16.msra.mxu0 %v10442
  %10841 = vmatpush.bf16.msra.mxu0 %v10441
  %10842 = vmatpush.bf16.msra.mxu0 %v10440
  %10843 = vmatpush.bf16.msra.mxu0 %v10439
  %10844 = vmatpush.bf16.msra.mxu0 %v10438
  %10845 = vmatmul.bf16.gmra.mxu0 %v7719
  %v10846 = vpop.f32.mrf.mxu0
  %v10847 = vadd.f32 %v10738, %v10846
  %v10848 = vpop.f32.mrf.mxu0
  %v10849 = vadd.f32 %v10740, %v10848
  %10850 = vmatmul.bf16.gmra.mxu0 %v7725
  %v10851 = vpop.f32.mrf.mxu0
  %v10852 = vadd.f32 %v10743, %v10851
  %v10853 = vpop.f32.mrf.mxu0
  %v10854 = vadd.f32 %v10745, %v10853
  %10855 = vmatmul.bf16.gmra.mxu0 %v7731
  %v10856 = vpop.f32.mrf.mxu0
  %v10857 = vadd.f32 %v10748, %v10856
  %v10858 = vpop.f32.mrf.mxu0
  %v10859 = vadd.f32 %v10750, %v10858
  %10860 = vmatmul.bf16.gmra.mxu0 %v7737
  %v10861 = vpop.f32.mrf.mxu0
  %v10862 = vadd.f32 %v10753, %v10861
  %v10863 = vpop.f32.mrf.mxu0
  %v10864 = vadd.f32 %v10755, %v10863
  %10865 = vmatmul.bf16.gmra.mxu0 %v7743
  %v10866 = vpop.f32.mrf.mxu0
  %v10867 = vadd.f32 %v10758, %v10866
  %v10868 = vpop.f32.mrf.mxu0
  %v10869 = vadd.f32 %v10760, %v10868
  %10870 = vmatmul.bf16.gmra.mxu0 %v7749
  %v10871 = vpop.f32.mrf.mxu0
  %v10872 = vadd.f32 %v10763, %v10871
  %v10873 = vpop.f32.mrf.mxu0
  %v10874 = vadd.f32 %v10765, %v10873
  %10875 = vmatmul.bf16.gmra.mxu0 %v7755
  %v10876 = vpop.f32.mrf.mxu0
  %v10877 = vadd.f32 %v10768, %v10876
  %v10878 = vpop.f32.mrf.mxu0
  %v10879 = vadd.f32 %v10770, %v10878
  %10880 = vmatmul.bf16.gmra.mxu0 %v7761
  %v10881 = vpop.f32.mrf.mxu0
  %v10882 = vadd.f32 %v10773, %v10881
  %v10883 = vpop.f32.mrf.mxu0
  %v10884 = vadd.f32 %v10775, %v10883
  %10885 = vmatmul.bf16.gmra.mxu0 %v7767
  %v10886 = vpop.f32.mrf.mxu0
  %v10887 = vadd.f32 %v10778, %v10886
  %v10888 = vpop.f32.mrf.mxu0
  %v10889 = vadd.f32 %v10780, %v10888
  %10890 = vmatmul.bf16.gmra.mxu0 %v7773
  %v10891 = vpop.f32.mrf.mxu0
  %v10892 = vadd.f32 %v10783, %v10891
  %v10893 = vpop.f32.mrf.mxu0
  %v10894 = vadd.f32 %v10785, %v10893
  %10895 = vmatmul.bf16.gmra.mxu0 %v7779
  %v10896 = vpop.f32.mrf.mxu0
  %v10897 = vadd.f32 %v10788, %v10896
  %v10898 = vpop.f32.mrf.mxu0
  %v10899 = vadd.f32 %v10790, %v10898
  %10900 = vmatmul.bf16.gmra.mxu0 %v7785
  %v10901 = vpop.f32.mrf.mxu0
  %v10902 = vadd.f32 %v10793, %v10901
  %v10903 = vpop.f32.mrf.mxu0
  %v10904 = vadd.f32 %v10795, %v10903
  %10905 = vmatmul.bf16.gmra.mxu0 %v7791
  %v10906 = vpop.f32.mrf.mxu0
  %v10907 = vadd.f32 %v10798, %v10906
  %v10908 = vpop.f32.mrf.mxu0
  %v10909 = vadd.f32 %v10800, %v10908
  %10910 = vmatmul.bf16.gmra.mxu0 %v7797
  %v10911 = vpop.f32.mrf.mxu0
  %v10912 = vadd.f32 %v10803, %v10911
  %v10913 = vpop.f32.mrf.mxu0
  %v10914 = vadd.f32 %v10805, %v10913
  %10915 = vmatmul.bf16.gmra.mxu0 %v7803
  %v10916 = vpop.f32.mrf.mxu0
  %v10917 = vadd.f32 %v10808, %v10916
  %v10918 = vpop.f32.mrf.mxu0
  %v10919 = vadd.f32 %v10810, %v10918
  %10920 = vmatmul.bf16.gmra.mxu0 %v7809
  %v10921 = vpop.f32.mrf.mxu0
  %v10922 = vadd.f32 %v10813, %v10921
  %v10923 = vpop.f32.mrf.mxu0
  %v10924 = vadd.f32 %v10815, %v10923
  %10925 = vmatmul.bf16.gmra.mxu0 %v7815
  %v10926 = vpop.f32.mrf.mxu0
  %v10927 = vadd.f32 %v10818, %v10926
  %v10928 = vpop.f32.mrf.mxu0
  %v10929 = vadd.f32 %v10820, %v10928
  %10930 = vmatmul.bf16.gmra.mxu0 %v7821
  %v10931 = vpop.f32.mrf.mxu0
  %v10932 = vadd.f32 %v10823, %v10931
  %v10933 = vpop.f32.mrf.mxu0
  %v10934 = vadd.f32 %v10825, %v10933
  %10935 = vmatmul.bf16.gmra.mxu0 %v7827
  %v10936 = vpop.f32.mrf.mxu0
  %v10937 = vadd.f32 %v10828, %v10936
  %v10938 = vpop.f32.mrf.mxu0
  %v10939 = vadd.f32 %v10830, %v10938
  %10940 = vmatmul.bf16.gmra.mxu0 %v7833
  %v10941 = vpop.f32.mrf.mxu0
  %v10942 = vadd.f32 %v10833, %v10941
  %v10943 = vpop.f32.mrf.mxu0
  %v10944 = vadd.f32 %v10835, %v10943
  %10945 = vdwg.mxu0
  %10946 = vmatpush.bf16.msra.mxu0 %v10453
  %10947 = vmatpush.bf16.msra.mxu0 %v10452
  %10948 = vmatpush.bf16.msra.mxu0 %v10451
  %10949 = vmatpush.bf16.msra.mxu0 %v10450
  %10950 = vmatpush.bf16.msra.mxu0 %v10449
  %10951 = vmatpush.bf16.msra.mxu0 %v10448
  %10952 = vmatpush.bf16.msra.mxu0 %v10447
  %10953 = vmatpush.bf16.msra.mxu0 %v10446
  %10954 = vmatmul.bf16.gmra.mxu0 %v7720
  %v10955 = vpop.f32.mrf.mxu0
  %v10956 = vadd.f32 %v10847, %v10955
  %v10957 = vpop.f32.mrf.mxu0
  %v10958 = vadd.f32 %v10849, %v10957
  %10959 = vmatmul.bf16.gmra.mxu0 %v7726
  %v10960 = vpop.f32.mrf.mxu0
  %v10961 = vadd.f32 %v10852, %v10960
  %v10962 = vpop.f32.mrf.mxu0
  %v10963 = vadd.f32 %v10854, %v10962
  %10964 = vmatmul.bf16.gmra.mxu0 %v7732
  %v10965 = vpop.f32.mrf.mxu0
  %v10966 = vadd.f32 %v10857, %v10965
  %v10967 = vpop.f32.mrf.mxu0
  %v10968 = vadd.f32 %v10859, %v10967
  %10969 = vmatmul.bf16.gmra.mxu0 %v7738
  %v10970 = vpop.f32.mrf.mxu0
  %v10971 = vadd.f32 %v10862, %v10970
  %v10972 = vpop.f32.mrf.mxu0
  %v10973 = vadd.f32 %v10864, %v10972
  %10974 = vmatmul.bf16.gmra.mxu0 %v7744
  %v10975 = vpop.f32.mrf.mxu0
  %v10976 = vadd.f32 %v10867, %v10975
  %v10977 = vpop.f32.mrf.mxu0
  %v10978 = vadd.f32 %v10869, %v10977
  %10979 = vmatmul.bf16.gmra.mxu0 %v7750
  %v10980 = vpop.f32.mrf.mxu0
  %v10981 = vadd.f32 %v10872, %v10980
  %v10982 = vpop.f32.mrf.mxu0
  %v10983 = vadd.f32 %v10874, %v10982
  %10984 = vmatmul.bf16.gmra.mxu0 %v7756
  %v10985 = vpop.f32.mrf.mxu0
  %v10986 = vadd.f32 %v10877, %v10985
  %v10987 = vpop.f32.mrf.mxu0
  %v10988 = vadd.f32 %v10879, %v10987
  %10989 = vmatmul.bf16.gmra.mxu0 %v7762
  %v10990 = vpop.f32.mrf.mxu0
  %v10991 = vadd.f32 %v10882, %v10990
  %v10992 = vpop.f32.mrf.mxu0
  %v10993 = vadd.f32 %v10884, %v10992
  %10994 = vmatmul.bf16.gmra.mxu0 %v7768
  %v10995 = vpop.f32.mrf.mxu0
  %v10996 = vadd.f32 %v10887, %v10995
  %v10997 = vpop.f32.mrf.mxu0
  %v10998 = vadd.f32 %v10889, %v10997
  %10999 = vmatmul.bf16.gmra.mxu0 %v7774
  %v11000 = vpop.f32.mrf.mxu0
  %v11001 = vadd.f32 %v10892, %v11000
  %v11002 = vpop.f32.mrf.mxu0
  %v11003 = vadd.f32 %v10894, %v11002
  %11004 = vmatmul.bf16.gmra.mxu0 %v7780
  %v11005 = vpop.f32.mrf.mxu0
  %v11006 = vadd.f32 %v10897, %v11005
  %v11007 = vpop.f32.mrf.mxu0
  %v11008 = vadd.f32 %v10899, %v11007
  %11009 = vmatmul.bf16.gmra.mxu0 %v7786
  %v11010 = vpop.f32.mrf.mxu0
  %v11011 = vadd.f32 %v10902, %v11010
  %v11012 = vpop.f32.mrf.mxu0
  %v11013 = vadd.f32 %v10904, %v11012
  %11014 = vmatmul.bf16.gmra.mxu0 %v7792
  %v11015 = vpop.f32.mrf.mxu0
  %v11016 = vadd.f32 %v10907, %v11015
  %v11017 = vpop.f32.mrf.mxu0
  %v11018 = vadd.f32 %v10909, %v11017
  %11019 = vmatmul.bf16.gmra.mxu0 %v7798
  %v11020 = vpop.f32.mrf.mxu0
  %v11021 = vadd.f32 %v10912, %v11020
  %v11022 = vpop.f32.mrf.mxu0
  %v11023 = vadd.f32 %v10914, %v11022
  %11024 = vmatmul.bf16.gmra.mxu0 %v7804
  %v11025 = vpop.f32.mrf.mxu0
  %v11026 = vadd.f32 %v10917, %v11025
  %v11027 = vpop.f32.mrf.mxu0
  %v11028 = vadd.f32 %v10919, %v11027
  %11029 = vmatmul.bf16.gmra.mxu0 %v7810
  %v11030 = vpop.f32.mrf.mxu0
  %v11031 = vadd.f32 %v10922, %v11030
  %v11032 = vpop.f32.mrf.mxu0
  %v11033 = vadd.f32 %v10924, %v11032
  %11034 = vmatmul.bf16.gmra.mxu0 %v7816
  %v11035 = vpop.f32.mrf.mxu0
  %v11036 = vadd.f32 %v10927, %v11035
  %v11037 = vpop.f32.mrf.mxu0
  %v11038 = vadd.f32 %v10929, %v11037
  %11039 = vmatmul.bf16.gmra.mxu0 %v7822
  %v11040 = vpop.f32.mrf.mxu0
  %v11041 = vadd.f32 %v10932, %v11040
  %v11042 = vpop.f32.mrf.mxu0
  %v11043 = vadd.f32 %v10934, %v11042
  %11044 = vmatmul.bf16.gmra.mxu0 %v7828
  %v11045 = vpop.f32.mrf.mxu0
  %v11046 = vadd.f32 %v10937, %v11045
  %v11047 = vpop.f32.mrf.mxu0
  %v11048 = vadd.f32 %v10939, %v11047
  %11049 = vmatmul.bf16.gmra.mxu0 %v7834
  %v11050 = vpop.f32.mrf.mxu0
  %v11051 = vadd.f32 %v10942, %v11050
  %v11052 = vpop.f32.mrf.mxu0
  %v11053 = vadd.f32 %v10944, %v11052
  %11054 = vdwg.mxu0
  %11055 = vmatpush.bf16.msra.mxu0 %v10461
  %11056 = vmatpush.bf16.msra.mxu0 %v10460
  %11057 = vmatpush.bf16.msra.mxu0 %v10459
  %11058 = vmatpush.bf16.msra.mxu0 %v10458
  %11059 = vmatpush.bf16.msra.mxu0 %v10457
  %11060 = vmatpush.bf16.msra.mxu0 %v10456
  %11061 = vmatpush.bf16.msra.mxu0 %v10455
  %11062 = vmatpush.bf16.msra.mxu0 %v10454
  %11063 = vmatmul.bf16.gmra.mxu0 %v7721
  %v11064 = vpop.f32.mrf.mxu0
  %v11065 = vadd.f32 %v10956, %v11064
  %v11066 = vpop.f32.mrf.mxu0
  %v11067 = vadd.f32 %v10958, %v11066
  %11068 = vmatmul.bf16.gmra.mxu0 %v7727
  %v11069 = vpop.f32.mrf.mxu0
  %v11070 = vadd.f32 %v10961, %v11069
  %v11071 = vpop.f32.mrf.mxu0
  %v11072 = vadd.f32 %v10963, %v11071
  %11073 = vmatmul.bf16.gmra.mxu0 %v7733
  %v11074 = vpop.f32.mrf.mxu0
  %v11075 = vadd.f32 %v10966, %v11074
  %v11076 = vpop.f32.mrf.mxu0
  %v11077 = vadd.f32 %v10968, %v11076
  %11078 = vmatmul.bf16.gmra.mxu0 %v7739
  %v11079 = vpop.f32.mrf.mxu0
  %v11080 = vadd.f32 %v10971, %v11079
  %v11081 = vpop.f32.mrf.mxu0
  %v11082 = vadd.f32 %v10973, %v11081
  %11083 = vmatmul.bf16.gmra.mxu0 %v7745
  %v11084 = vpop.f32.mrf.mxu0
  %v11085 = vadd.f32 %v10976, %v11084
  %v11086 = vpop.f32.mrf.mxu0
  %v11087 = vadd.f32 %v10978, %v11086
  %11088 = vmatmul.bf16.gmra.mxu0 %v7751
  %v11089 = vpop.f32.mrf.mxu0
  %v11090 = vadd.f32 %v10981, %v11089
  %v11091 = vpop.f32.mrf.mxu0
  %v11092 = vadd.f32 %v10983, %v11091
  %11093 = vmatmul.bf16.gmra.mxu0 %v7757
  %v11094 = vpop.f32.mrf.mxu0
  %v11095 = vadd.f32 %v10986, %v11094
  %v11096 = vpop.f32.mrf.mxu0
  %v11097 = vadd.f32 %v10988, %v11096
  %11098 = vmatmul.bf16.gmra.mxu0 %v7763
  %v11099 = vpop.f32.mrf.mxu0
  %v11100 = vadd.f32 %v10991, %v11099
  %v11101 = vpop.f32.mrf.mxu0
  %v11102 = vadd.f32 %v10993, %v11101
  %11103 = vmatmul.bf16.gmra.mxu0 %v7769
  %v11104 = vpop.f32.mrf.mxu0
  %v11105 = vadd.f32 %v10996, %v11104
  %v11106 = vpop.f32.mrf.mxu0
  %v11107 = vadd.f32 %v10998, %v11106
  %11108 = vmatmul.bf16.gmra.mxu0 %v7775
  %v11109 = vpop.f32.mrf.mxu0
  %v11110 = vadd.f32 %v11001, %v11109
  %v11111 = vpop.f32.mrf.mxu0
  %v11112 = vadd.f32 %v11003, %v11111
  %11113 = vmatmul.bf16.gmra.mxu0 %v7781
  %v11114 = vpop.f32.mrf.mxu0
  %v11115 = vadd.f32 %v11006, %v11114
  %v11116 = vpop.f32.mrf.mxu0
  %v11117 = vadd.f32 %v11008, %v11116
  %11118 = vmatmul.bf16.gmra.mxu0 %v7787
  %v11119 = vpop.f32.mrf.mxu0
  %v11120 = vadd.f32 %v11011, %v11119
  %v11121 = vpop.f32.mrf.mxu0
  %v11122 = vadd.f32 %v11013, %v11121
  %11123 = vmatmul.bf16.gmra.mxu0 %v7793
  %v11124 = vpop.f32.mrf.mxu0
  %v11125 = vadd.f32 %v11016, %v11124
  %v11126 = vpop.f32.mrf.mxu0
  %v11127 = vadd.f32 %v11018, %v11126
  %11128 = vmatmul.bf16.gmra.mxu0 %v7799
  %v11129 = vpop.f32.mrf.mxu0
  %v11130 = vadd.f32 %v11021, %v11129
  %v11131 = vpop.f32.mrf.mxu0
  %v11132 = vadd.f32 %v11023, %v11131
  %11133 = vmatmul.bf16.gmra.mxu0 %v7805
  %v11134 = vpop.f32.mrf.mxu0
  %v11135 = vadd.f32 %v11026, %v11134
  %v11136 = vpop.f32.mrf.mxu0
  %v11137 = vadd.f32 %v11028, %v11136
  %11138 = vmatmul.bf16.gmra.mxu0 %v7811
  %v11139 = vpop.f32.mrf.mxu0
  %v11140 = vadd.f32 %v11031, %v11139
  %v11141 = vpop.f32.mrf.mxu0
  %v11142 = vadd.f32 %v11033, %v11141
  %11143 = vmatmul.bf16.gmra.mxu0 %v7817
  %v11144 = vpop.f32.mrf.mxu0
  %v11145 = vadd.f32 %v11036, %v11144
  %v11146 = vpop.f32.mrf.mxu0
  %v11147 = vadd.f32 %v11038, %v11146
  %11148 = vmatmul.bf16.gmra.mxu0 %v7823
  %v11149 = vpop.f32.mrf.mxu0
  %v11150 = vadd.f32 %v11041, %v11149
  %v11151 = vpop.f32.mrf.mxu0
  %v11152 = vadd.f32 %v11043, %v11151
  %11153 = vmatmul.bf16.gmra.mxu0 %v7829
  %v11154 = vpop.f32.mrf.mxu0
  %v11155 = vadd.f32 %v11046, %v11154
  %v11156 = vpop.f32.mrf.mxu0
  %v11157 = vadd.f32 %v11048, %v11156
  %11158 = vmatmul.bf16.gmra.mxu0 %v7835
  %v11159 = vpop.f32.mrf.mxu0
  %v11160 = vadd.f32 %v11051, %v11159
  %v11161 = vpop.f32.mrf.mxu0
  %v11162 = vadd.f32 %v11053, %v11161
  %11163 = vdwg.mxu0
  %v11164 = vmax.f32 %v11065, %v11115
  %v11165 = vmax.f32 %v11067, %v11117
  %v11166 = vmax.f32 %v11070, %v11120
  %v11167 = vmax.f32 %v11072, %v11122
  %v11168 = vmax.f32 %v11075, %v11125
  %v11169 = vmax.f32 %v11077, %v11127
  %v11170 = vmax.f32 %v11080, %v11130
  %v11171 = vmax.f32 %v11082, %v11132
  %v11172 = vmax.f32 %v11085, %v11135
  %v11173 = vmax.f32 %v11087, %v11137
  %v11174 = vmax.f32 %v11090, %v11140
  %v11175 = vmax.f32 %v11092, %v11142
  %v11176 = vmax.f32 %v11095, %v11145
  %v11177 = vmax.f32 %v11097, %v11147
  %v11178 = vmax.f32 %v11100, %v11150
  %v11179 = vmax.f32 %v11102, %v11152
  %v11180 = vmax.f32 %v11105, %v11155
  %v11181 = vmax.f32 %v11107, %v11157
  %v11182 = vmax.f32 %v11110, %v11160
  %v11183 = vmax.f32 %v11112, %v11162
  %v11184 = vmax.f32 %v11164, %v11174
  %v11185 = vmax.f32 %v11165, %v11175
  %v11186 = vmax.f32 %v11166, %v11176
  %v11187 = vmax.f32 %v11167, %v11177
  %v11188 = vmax.f32 %v11168, %v11178
  %v11189 = vmax.f32 %v11169, %v11179
  %v11190 = vmax.f32 %v11170, %v11180
  %v11191 = vmax.f32 %v11171, %v11181
  %v11192 = vmax.f32 %v11172, %v11182
  %v11193 = vmax.f32 %v11173, %v11183
  %v11194 = vadd.f32 %v11184, %v8931
  %v11195 = vadd.f32 %v11185, %v8936
  %v11196 = vadd.f32 %v11186, %v8941
  %v11197 = vadd.f32 %v11187, %v8946
  %v11198 = vadd.f32 %v11188, %v8951
  %v11199 = vadd.f32 %v11189, %v8956
  %v11200 = vadd.f32 %v11190, %v8961
  %v11201 = vadd.f32 %v11191, %v8966
  %v11202 = vadd.f32 %v11192, %v8971
  %v11203 = vadd.f32 %v11193, %v8976
  %v11204 = vmax.f32 %v11194, 0.0
  %v11205 = vmax.f32 %v11195, 0.0
  %v11206 = vmax.f32 %v11196, 0.0
  %v11207 = vmax.f32 %v11197, 0.0
  %v11208 = vmax.f32 %v11198, 0.0
  %v11209 = vmax.f32 %v11199, 0.0
  %v11210 = vmax.f32 %v11200, 0.0
  %v11211 = vmax.f32 %v11201, 0.0
  %v11212 = vmax.f32 %v11202, 0.0
  %v11213 = vmax.f32 %v11203, 0.0
  %v11214 = vpack.c.bf16 %v11204, %v11204
  %v11215 = vpack.c.bf16 %v11205, %v11205
  %v11216 = vpack.c.bf16 %v11206, %v11206
  %v11217 = vpack.c.bf16 %v11207, %v11207
  %v11218 = vpack.c.bf16 %v11208, %v11208
  %v11219 = vpack.c.bf16 %v11209, %v11209
  %v11220 = vpack.c.bf16 %v11210, %v11210
  %v11221 = vpack.c.bf16 %v11211, %v11211
  %v11222 = vpack.c.bf16 %v11212, %v11212
  %v11223 = vpack.c.bf16 %v11213, %v11213
  %11224 = vst [vmem:[#allocation3 + $0x50] sm:$0xf] %v11214
  %11225 = vst [vmem:[#allocation3 + $0x54] sm:$0xf] %v11215
  %11226 = vst [vmem:[#allocation3 + $0x58] sm:$0xf] %v11216
  %11227 = vst [vmem:[#allocation3 + $0x5c] sm:$0xf] %v11217
  %11228 = vst [vmem:[#allocation3 + $0x60] sm:$0xf] %v11218
  %11229 = vst [vmem:[#allocation3 + $0x64] sm:$0xf] %v11219
  %11230 = vst [vmem:[#allocation3 + $0x68] sm:$0xf] %v11220
  %11231 = vst [vmem:[#allocation3 + $0x6c] sm:$0xf] %v11221
  %11232 = vst [vmem:[#allocation3 + $0x70] sm:$0xf] %v11222
  %11233 = vst [vmem:[#allocation3 + $0x74] sm:$0xf] %v11223
  %v11234 = vld [vmem:[#allocation2 + $0x180] sm:$0xf]
  %v11235 = vld [vmem:[#allocation2 + $0x184] sm:$0xf]
  %v11236 = vld [vmem:[#allocation2 + $0x188] sm:$0xf]
  %v11237 = vld [vmem:[#allocation2 + $0x18c] sm:$0xf]
  %v11238 = vld [vmem:[#allocation2 + $0x190] sm:$0xf]
  %v11239 = vld [vmem:[#allocation2 + $0x194] sm:$0xf]
  %v11240 = vld [vmem:[#allocation2 + $0x198] sm:$0xf]
  %v11241 = vld [vmem:[#allocation2 + $0x19c] sm:$0xf]
  %v11242 = vld [vmem:[#allocation2 + $0x1a0] sm:$0xf]
  %v11243 = vld [vmem:[#allocation2 + $0x1a4] sm:$0xf]
  %v11244 = vld [vmem:[#allocation2 + $0x1a8] sm:$0xf]
  %v11245 = vld [vmem:[#allocation2 + $0x1ac] sm:$0xf]
  %v11246 = vld [vmem:[#allocation2 + $0x1b0] sm:$0xf]
  %v11247 = vld [vmem:[#allocation2 + $0x1b4] sm:$0xf]
  %v11248 = vld [vmem:[#allocation2 + $0x1b8] sm:$0xf]
  %v11249 = vld [vmem:[#allocation2 + $0x1bc] sm:$0xf]
  %v11250 = vld [vmem:[#allocation2 + $0x1c0] sm:$0xf]
  %v11251 = vld [vmem:[#allocation2 + $0x1c4] sm:$0xf]
  %v11252 = vld [vmem:[#allocation2 + $0x1c8] sm:$0xf]
  %v11253 = vld [vmem:[#allocation2 + $0x1cc] sm:$0xf]
  %v11254 = vld [vmem:[#allocation2 + $0x1d0] sm:$0xf]
  %v11255 = vld [vmem:[#allocation2 + $0x1d4] sm:$0xf]
  %v11256 = vld [vmem:[#allocation2 + $0x1d8] sm:$0xf]
  %v11257 = vld [vmem:[#allocation2 + $0x1dc] sm:$0xf]
  %v11258 = vld [vmem:[#allocation2 + $0x1e0] sm:$0xf]
  %v11259 = vld [vmem:[#allocation2 + $0x1e4] sm:$0xf]
  %v11260 = vld [vmem:[#allocation2 + $0x1e8] sm:$0xf]
  %v11261 = vld [vmem:[#allocation2 + $0x1ec] sm:$0xf]
  %v11262 = vld [vmem:[#allocation2 + $0x1f0] sm:$0xf]
  %v11263 = vld [vmem:[#allocation2 + $0x1f4] sm:$0xf]
  %v11264 = vld [vmem:[#allocation2 + $0x1f8] sm:$0xf]
  %v11265 = vld [vmem:[#allocation2 + $0x1fc] sm:$0xf]
  %v11266 = vld [vmem:[#allocation2 + $0x200] sm:$0xf]
  %v11267 = vld [vmem:[#allocation2 + $0x204] sm:$0xf]
  %v11268 = vld [vmem:[#allocation2 + $0x208] sm:$0xf]
  %v11269 = vld [vmem:[#allocation2 + $0x20c] sm:$0xf]
  %v11270 = vld [vmem:[#allocation2 + $0x210] sm:$0xf]
  %v11271 = vld [vmem:[#allocation2 + $0x214] sm:$0xf]
  %v11272 = vld [vmem:[#allocation2 + $0x218] sm:$0xf]
  %v11273 = vld [vmem:[#allocation2 + $0x21c] sm:$0xf]
  %v11274 = vld [vmem:[#allocation2 + $0x220] sm:$0xf]
  %v11275 = vld [vmem:[#allocation2 + $0x224] sm:$0xf]
  %v11276 = vld [vmem:[#allocation2 + $0x228] sm:$0xf]
  %v11277 = vld [vmem:[#allocation2 + $0x22c] sm:$0xf]
  %v11278 = vld [vmem:[#allocation2 + $0x230] sm:$0xf]
  %v11279 = vld [vmem:[#allocation2 + $0x234] sm:$0xf]
  %v11280 = vld [vmem:[#allocation2 + $0x238] sm:$0xf]
  %v11281 = vld [vmem:[#allocation2 + $0x23c] sm:$0xf]
  %v11282 = vld [vmem:[#allocation2 + $0x240] sm:$0xf]
  %v11283 = vld [vmem:[#allocation2 + $0x244] sm:$0xf]
  %v11284 = vld [vmem:[#allocation2 + $0x248] sm:$0xf]
  %v11285 = vld [vmem:[#allocation2 + $0x24c] sm:$0xf]
  %v11286 = vld [vmem:[#allocation2 + $0x250] sm:$0xf]
  %v11287 = vld [vmem:[#allocation2 + $0x254] sm:$0xf]
  %v11288 = vld [vmem:[#allocation2 + $0x258] sm:$0xf]
  %v11289 = vld [vmem:[#allocation2 + $0x25c] sm:$0xf]
  %v11290 = vld [vmem:[#allocation2 + $0x260] sm:$0xf]
  %v11291 = vld [vmem:[#allocation2 + $0x264] sm:$0xf]
  %v11292 = vld [vmem:[#allocation2 + $0x268] sm:$0xf]
  %v11293 = vld [vmem:[#allocation2 + $0x26c] sm:$0xf]
  %v11294 = vld [vmem:[#allocation2 + $0x270] sm:$0xf]
  %v11295 = vld [vmem:[#allocation2 + $0x274] sm:$0xf]
  %v11296 = vld [vmem:[#allocation2 + $0x278] sm:$0xf]
  %v11297 = vld [vmem:[#allocation2 + $0x27c] sm:$0xf]
  %v11298 = vld [vmem:[#allocation2 + $0x280] sm:$0xf]
  %v11299 = vld [vmem:[#allocation2 + $0x284] sm:$0xf]
  %v11300 = vld [vmem:[#allocation2 + $0x288] sm:$0xf]
  %v11301 = vld [vmem:[#allocation2 + $0x28c] sm:$0xf]
  %v11302 = vld [vmem:[#allocation2 + $0x290] sm:$0xf]
  %v11303 = vld [vmem:[#allocation2 + $0x294] sm:$0xf]
  %v11304 = vld [vmem:[#allocation2 + $0x298] sm:$0xf]
  %v11305 = vld [vmem:[#allocation2 + $0x29c] sm:$0xf]
  %v11306 = vld [vmem:[#allocation2 + $0x2a0] sm:$0xf]
  %v11307 = vld [vmem:[#allocation2 + $0x2a4] sm:$0xf]
  %v11308 = vld [vmem:[#allocation2 + $0x2a8] sm:$0xf]
  %v11309 = vld [vmem:[#allocation2 + $0x2ac] sm:$0xf]
  %v11310 = vld [vmem:[#allocation2 + $0x2b0] sm:$0xf]
  %v11311 = vld [vmem:[#allocation2 + $0x2b4] sm:$0xf]
  %v11312 = vld [vmem:[#allocation2 + $0x2b8] sm:$0xf]
  %v11313 = vld [vmem:[#allocation2 + $0x2bc] sm:$0xf]
  %v11314 = vld [vmem:[#allocation2 + $0x2c0] sm:$0xf]
  %v11315 = vld [vmem:[#allocation2 + $0x2c4] sm:$0xf]
  %v11316 = vld [vmem:[#allocation2 + $0x2c8] sm:$0xf]
  %v11317 = vld [vmem:[#allocation2 + $0x2cc] sm:$0xf]
  %v11318 = vld [vmem:[#allocation2 + $0x2d0] sm:$0xf]
  %v11319 = vld [vmem:[#allocation2 + $0x2d4] sm:$0xf]
  %v11320 = vld [vmem:[#allocation2 + $0x2d8] sm:$0xf]
  %v11321 = vld [vmem:[#allocation2 + $0x2dc] sm:$0xf]
  %v11322 = vld [vmem:[#allocation2 + $0x2e0] sm:$0xf]
  %v11323 = vld [vmem:[#allocation2 + $0x2e4] sm:$0xf]
  %v11324 = vld [vmem:[#allocation2 + $0x2e8] sm:$0xf]
  %v11325 = vld [vmem:[#allocation2 + $0x2ec] sm:$0xf]
  %v11326 = vld [vmem:[#allocation2 + $0x2f0] sm:$0xf]
  %v11327 = vld [vmem:[#allocation2 + $0x2f4] sm:$0xf]
  %v11328 = vld [vmem:[#allocation2 + $0x2f8] sm:$0xf]
  %v11329 = vld [vmem:[#allocation2 + $0x2fc] sm:$0xf]
  %v11426 = vunpack.c.l.b16 %v11234
  %v11427 = vunpack.c.l.b16 %v11235
  %v11428 = vunpack.c.l.b16 %v11236
  %v11429 = vunpack.c.l.b16 %v11237
  %v11430 = vunpack.c.l.b16 %v11238
  %v11431 = vunpack.c.l.b16 %v11239
  %v11432 = vunpack.c.l.b16 %v11240
  %v11433 = vunpack.c.l.b16 %v11241
  %v11434 = vunpack.c.l.b16 %v11242
  %v11435 = vunpack.c.l.b16 %v11243
  %v11436 = vunpack.c.l.b16 %v11244
  %v11437 = vunpack.c.l.b16 %v11245
  %v11438 = vunpack.c.l.b16 %v11246
  %v11439 = vunpack.c.l.b16 %v11247
  %v11440 = vunpack.c.l.b16 %v11248
  %v11441 = vunpack.c.l.b16 %v11249
  %v11442 = vunpack.c.l.b16 %v11250
  %v11443 = vunpack.c.l.b16 %v11251
  %v11444 = vunpack.c.l.b16 %v11252
  %v11445 = vunpack.c.l.b16 %v11253
  %v11446 = vunpack.c.l.b16 %v11254
  %v11447 = vunpack.c.l.b16 %v11255
  %v11448 = vunpack.c.l.b16 %v11256
  %v11449 = vunpack.c.l.b16 %v11257
  %v11450 = vunpack.c.l.b16 %v11258
  %v11451 = vunpack.c.l.b16 %v11259
  %v11452 = vunpack.c.l.b16 %v11260
  %v11453 = vunpack.c.l.b16 %v11261
  %v11454 = vunpack.c.l.b16 %v11262
  %v11455 = vunpack.c.l.b16 %v11263
  %v11456 = vunpack.c.l.b16 %v11264
  %v11457 = vunpack.c.l.b16 %v11265
  %v11458 = vunpack.c.l.b16 %v11266
  %v11459 = vunpack.c.l.b16 %v11267
  %v11460 = vunpack.c.l.b16 %v11268
  %v11461 = vunpack.c.l.b16 %v11269
  %v11462 = vunpack.c.l.b16 %v11270
  %v11463 = vunpack.c.l.b16 %v11271
  %v11464 = vunpack.c.l.b16 %v11272
  %v11465 = vunpack.c.l.b16 %v11273
  %v11466 = vunpack.c.l.b16 %v11274
  %v11467 = vunpack.c.l.b16 %v11275
  %v11468 = vunpack.c.l.b16 %v11276
  %v11469 = vunpack.c.l.b16 %v11277
  %v11470 = vunpack.c.l.b16 %v11278
  %v11471 = vunpack.c.l.b16 %v11279
  %v11472 = vunpack.c.l.b16 %v11280
  %v11473 = vunpack.c.l.b16 %v11281
  %v11474 = vunpack.c.l.b16 %v11282
  %v11475 = vunpack.c.l.b16 %v11283
  %v11476 = vunpack.c.l.b16 %v11284
  %v11477 = vunpack.c.l.b16 %v11285
  %v11478 = vunpack.c.l.b16 %v11286
  %v11479 = vunpack.c.l.b16 %v11287
  %v11480 = vunpack.c.l.b16 %v11288
  %v11481 = vunpack.c.l.b16 %v11289
  %v11482 = vunpack.c.l.b16 %v11290
  %v11483 = vunpack.c.l.b16 %v11291
  %v11484 = vunpack.c.l.b16 %v11292
  %v11485 = vunpack.c.l.b16 %v11293
  %v11486 = vunpack.c.l.b16 %v11294
  %v11487 = vunpack.c.l.b16 %v11295
  %v11488 = vunpack.c.l.b16 %v11296
  %v11489 = vunpack.c.l.b16 %v11297
  %v11490 = vunpack.c.l.b16 %v11298
  %v11491 = vunpack.c.l.b16 %v11299
  %v11492 = vunpack.c.l.b16 %v11300
  %v11493 = vunpack.c.l.b16 %v11301
  %v11494 = vunpack.c.l.b16 %v11302
  %v11495 = vunpack.c.l.b16 %v11303
  %v11496 = vunpack.c.l.b16 %v11304
  %v11497 = vunpack.c.l.b16 %v11305
  %v11498 = vunpack.c.l.b16 %v11306
  %v11499 = vunpack.c.l.b16 %v11307
  %v11500 = vunpack.c.l.b16 %v11308
  %v11501 = vunpack.c.l.b16 %v11309
  %v11502 = vunpack.c.l.b16 %v11310
  %v11503 = vunpack.c.l.b16 %v11311
  %v11504 = vunpack.c.l.b16 %v11312
  %v11505 = vunpack.c.l.b16 %v11313
  %v11506 = vunpack.c.l.b16 %v11314
  %v11507 = vunpack.c.l.b16 %v11315
  %v11508 = vunpack.c.l.b16 %v11316
  %v11509 = vunpack.c.l.b16 %v11317
  %v11510 = vunpack.c.l.b16 %v11318
  %v11511 = vunpack.c.l.b16 %v11319
  %v11512 = vunpack.c.l.b16 %v11320
  %v11513 = vunpack.c.l.b16 %v11321
  %v11514 = vunpack.c.l.b16 %v11322
  %v11515 = vunpack.c.l.b16 %v11323
  %v11516 = vunpack.c.l.b16 %v11324
  %v11517 = vunpack.c.l.b16 %v11325
  %v11518 = vunpack.c.l.b16 %v11326
  %v11519 = vunpack.c.l.b16 %v11327
  %v11520 = vunpack.c.l.b16 %v11328
  %v11521 = vunpack.c.l.b16 %v11329
  %v11522 = vpack.c.b16 %v11427, %v11426
  %v11523 = vpack.c.b16 %v11429, %v11428
  %v11524 = vpack.c.b16 %v11431, %v11430
  %v11525 = vpack.c.b16 %v11433, %v11432
  %v11526 = vpack.c.b16 %v11435, %v11434
  %v11527 = vpack.c.b16 %v11437, %v11436
  %v11528 = vpack.c.b16 %v11439, %v11438
  %v11529 = vpack.c.b16 %v11441, %v11440
  %v11530 = vpack.c.b16 %v11443, %v11442
  %v11531 = vpack.c.b16 %v11445, %v11444
  %v11532 = vpack.c.b16 %v11447, %v11446
  %v11533 = vpack.c.b16 %v11449, %v11448
  %v11534 = vpack.c.b16 %v11451, %v11450
  %v11535 = vpack.c.b16 %v11453, %v11452
  %v11536 = vpack.c.b16 %v11455, %v11454
  %v11537 = vpack.c.b16 %v11457, %v11456
  %v11538 = vpack.c.b16 %v11459, %v11458
  %v11539 = vpack.c.b16 %v11461, %v11460
  %v11540 = vpack.c.b16 %v11463, %v11462
  %v11541 = vpack.c.b16 %v11465, %v11464
  %v11542 = vpack.c.b16 %v11467, %v11466
  %v11543 = vpack.c.b16 %v11469, %v11468
  %v11544 = vpack.c.b16 %v11471, %v11470
  %v11545 = vpack.c.b16 %v11473, %v11472
  %v11546 = vpack.c.b16 %v11475, %v11474
  %v11547 = vpack.c.b16 %v11477, %v11476
  %v11548 = vpack.c.b16 %v11479, %v11478
  %v11549 = vpack.c.b16 %v11481, %v11480
  %v11550 = vpack.c.b16 %v11483, %v11482
  %v11551 = vpack.c.b16 %v11485, %v11484
  %v11552 = vpack.c.b16 %v11487, %v11486
  %v11553 = vpack.c.b16 %v11489, %v11488
  %v11554 = vpack.c.b16 %v11491, %v11490
  %v11555 = vpack.c.b16 %v11493, %v11492
  %v11556 = vpack.c.b16 %v11495, %v11494
  %v11557 = vpack.c.b16 %v11497, %v11496
  %v11558 = vpack.c.b16 %v11499, %v11498
  %v11559 = vpack.c.b16 %v11501, %v11500
  %v11560 = vpack.c.b16 %v11503, %v11502
  %v11561 = vpack.c.b16 %v11505, %v11504
  %v11562 = vpack.c.b16 %v11507, %v11506
  %v11563 = vpack.c.b16 %v11509, %v11508
  %v11564 = vpack.c.b16 %v11511, %v11510
  %v11565 = vpack.c.b16 %v11513, %v11512
  %v11566 = vpack.c.b16 %v11515, %v11514
  %v11567 = vpack.c.b16 %v11517, %v11516
  %v11568 = vpack.c.b16 %v11519, %v11518
  %v11569 = vpack.c.b16 %v11521, %v11520
  %11618 = vmatpush.bf16.msra.mxu0 %v11529
  %11619 = vmatpush.bf16.msra.mxu0 %v11528
  %11620 = vmatpush.bf16.msra.mxu0 %v11527
  %11621 = vmatpush.bf16.msra.mxu0 %v11526
  %11622 = vmatpush.bf16.msra.mxu0 %v11525
  %11623 = vmatpush.bf16.msra.mxu0 %v11524
  %11624 = vmatpush.bf16.msra.mxu0 %v11523
  %11625 = vmatpush.bf16.msra.mxu0 %v11522
  %11626 = vmatmul.bf16.gmra.mxu0 %v7716
  %v11627 = vpop.f32.mrf.mxu0
  %v11628 = vadd.f32 0.0, %v11627
  %v11629 = vpop.f32.mrf.mxu0
  %v11630 = vadd.f32 0.0, %v11629
  %11631 = vmatmul.bf16.gmra.mxu0 %v7722
  %v11632 = vpop.f32.mrf.mxu0
  %v11633 = vadd.f32 0.0, %v11632
  %v11634 = vpop.f32.mrf.mxu0
  %v11635 = vadd.f32 0.0, %v11634
  %11636 = vmatmul.bf16.gmra.mxu0 %v7728
  %v11637 = vpop.f32.mrf.mxu0
  %v11638 = vadd.f32 0.0, %v11637
  %v11639 = vpop.f32.mrf.mxu0
  %v11640 = vadd.f32 0.0, %v11639
  %11641 = vmatmul.bf16.gmra.mxu0 %v7734
  %v11642 = vpop.f32.mrf.mxu0
  %v11643 = vadd.f32 0.0, %v11642
  %v11644 = vpop.f32.mrf.mxu0
  %v11645 = vadd.f32 0.0, %v11644
  %11646 = vmatmul.bf16.gmra.mxu0 %v7740
  %v11647 = vpop.f32.mrf.mxu0
  %v11648 = vadd.f32 0.0, %v11647
  %v11649 = vpop.f32.mrf.mxu0
  %v11650 = vadd.f32 0.0, %v11649
  %11651 = vmatmul.bf16.gmra.mxu0 %v7746
  %v11652 = vpop.f32.mrf.mxu0
  %v11653 = vadd.f32 0.0, %v11652
  %v11654 = vpop.f32.mrf.mxu0
  %v11655 = vadd.f32 0.0, %v11654
  %11656 = vmatmul.bf16.gmra.mxu0 %v7752
  %v11657 = vpop.f32.mrf.mxu0
  %v11658 = vadd.f32 0.0, %v11657
  %v11659 = vpop.f32.mrf.mxu0
  %v11660 = vadd.f32 0.0, %v11659
  %11661 = vmatmul.bf16.gmra.mxu0 %v7758
  %v11662 = vpop.f32.mrf.mxu0
  %v11663 = vadd.f32 0.0, %v11662
  %v11664 = vpop.f32.mrf.mxu0
  %v11665 = vadd.f32 0.0, %v11664
  %11666 = vmatmul.bf16.gmra.mxu0 %v7764
  %v11667 = vpop.f32.mrf.mxu0
  %v11668 = vadd.f32 0.0, %v11667
  %v11669 = vpop.f32.mrf.mxu0
  %v11670 = vadd.f32 0.0, %v11669
  %11671 = vmatmul.bf16.gmra.mxu0 %v7770
  %v11672 = vpop.f32.mrf.mxu0
  %v11673 = vadd.f32 0.0, %v11672
  %v11674 = vpop.f32.mrf.mxu0
  %v11675 = vadd.f32 0.0, %v11674
  %11676 = vmatmul.bf16.gmra.mxu0 %v7776
  %v11677 = vpop.f32.mrf.mxu0
  %v11678 = vadd.f32 0.0, %v11677
  %v11679 = vpop.f32.mrf.mxu0
  %v11680 = vadd.f32 0.0, %v11679
  %11681 = vmatmul.bf16.gmra.mxu0 %v7782
  %v11682 = vpop.f32.mrf.mxu0
  %v11683 = vadd.f32 0.0, %v11682
  %v11684 = vpop.f32.mrf.mxu0
  %v11685 = vadd.f32 0.0, %v11684
  %11686 = vmatmul.bf16.gmra.mxu0 %v7788
  %v11687 = vpop.f32.mrf.mxu0
  %v11688 = vadd.f32 0.0, %v11687
  %v11689 = vpop.f32.mrf.mxu0
  %v11690 = vadd.f32 0.0, %v11689
  %11691 = vmatmul.bf16.gmra.mxu0 %v7794
  %v11692 = vpop.f32.mrf.mxu0
  %v11693 = vadd.f32 0.0, %v11692
  %v11694 = vpop.f32.mrf.mxu0
  %v11695 = vadd.f32 0.0, %v11694
  %11696 = vmatmul.bf16.gmra.mxu0 %v7800
  %v11697 = vpop.f32.mrf.mxu0
  %v11698 = vadd.f32 0.0, %v11697
  %v11699 = vpop.f32.mrf.mxu0
  %v11700 = vadd.f32 0.0, %v11699
  %11701 = vmatmul.bf16.gmra.mxu0 %v7806
  %v11702 = vpop.f32.mrf.mxu0
  %v11703 = vadd.f32 0.0, %v11702
  %v11704 = vpop.f32.mrf.mxu0
  %v11705 = vadd.f32 0.0, %v11704
  %11706 = vmatmul.bf16.gmra.mxu0 %v7812
  %v11707 = vpop.f32.mrf.mxu0
  %v11708 = vadd.f32 0.0, %v11707
  %v11709 = vpop.f32.mrf.mxu0
  %v11710 = vadd.f32 0.0, %v11709
  %11711 = vmatmul.bf16.gmra.mxu0 %v7818
  %v11712 = vpop.f32.mrf.mxu0
  %v11713 = vadd.f32 0.0, %v11712
  %v11714 = vpop.f32.mrf.mxu0
  %v11715 = vadd.f32 0.0, %v11714
  %11716 = vmatmul.bf16.gmra.mxu0 %v7824
  %v11717 = vpop.f32.mrf.mxu0
  %v11718 = vadd.f32 0.0, %v11717
  %v11719 = vpop.f32.mrf.mxu0
  %v11720 = vadd.f32 0.0, %v11719
  %11721 = vmatmul.bf16.gmra.mxu0 %v7830
  %v11722 = vpop.f32.mrf.mxu0
  %v11723 = vadd.f32 0.0, %v11722
  %v11724 = vpop.f32.mrf.mxu0
  %v11725 = vadd.f32 0.0, %v11724
  %11726 = vdwg.mxu0
  %11727 = vmatpush.bf16.msra.mxu0 %v11537
  %11728 = vmatpush.bf16.msra.mxu0 %v11536
  %11729 = vmatpush.bf16.msra.mxu0 %v11535
  %11730 = vmatpush.bf16.msra.mxu0 %v11534
  %11731 = vmatpush.bf16.msra.mxu0 %v11533
  %11732 = vmatpush.bf16.msra.mxu0 %v11532
  %11733 = vmatpush.bf16.msra.mxu0 %v11531
  %11734 = vmatpush.bf16.msra.mxu0 %v11530
  %11735 = vmatmul.bf16.gmra.mxu0 %v7717
  %v11736 = vpop.f32.mrf.mxu0
  %v11737 = vadd.f32 %v11628, %v11736
  %v11738 = vpop.f32.mrf.mxu0
  %v11739 = vadd.f32 %v11630, %v11738
  %11740 = vmatmul.bf16.gmra.mxu0 %v7723
  %v11741 = vpop.f32.mrf.mxu0
  %v11742 = vadd.f32 %v11633, %v11741
  %v11743 = vpop.f32.mrf.mxu0
  %v11744 = vadd.f32 %v11635, %v11743
  %11745 = vmatmul.bf16.gmra.mxu0 %v7729
  %v11746 = vpop.f32.mrf.mxu0
  %v11747 = vadd.f32 %v11638, %v11746
  %v11748 = vpop.f32.mrf.mxu0
  %v11749 = vadd.f32 %v11640, %v11748
  %11750 = vmatmul.bf16.gmra.mxu0 %v7735
  %v11751 = vpop.f32.mrf.mxu0
  %v11752 = vadd.f32 %v11643, %v11751
  %v11753 = vpop.f32.mrf.mxu0
  %v11754 = vadd.f32 %v11645, %v11753
  %11755 = vmatmul.bf16.gmra.mxu0 %v7741
  %v11756 = vpop.f32.mrf.mxu0
  %v11757 = vadd.f32 %v11648, %v11756
  %v11758 = vpop.f32.mrf.mxu0
  %v11759 = vadd.f32 %v11650, %v11758
  %11760 = vmatmul.bf16.gmra.mxu0 %v7747
  %v11761 = vpop.f32.mrf.mxu0
  %v11762 = vadd.f32 %v11653, %v11761
  %v11763 = vpop.f32.mrf.mxu0
  %v11764 = vadd.f32 %v11655, %v11763
  %11765 = vmatmul.bf16.gmra.mxu0 %v7753
  %v11766 = vpop.f32.mrf.mxu0
  %v11767 = vadd.f32 %v11658, %v11766
  %v11768 = vpop.f32.mrf.mxu0
  %v11769 = vadd.f32 %v11660, %v11768
  %11770 = vmatmul.bf16.gmra.mxu0 %v7759
  %v11771 = vpop.f32.mrf.mxu0
  %v11772 = vadd.f32 %v11663, %v11771
  %v11773 = vpop.f32.mrf.mxu0
  %v11774 = vadd.f32 %v11665, %v11773
  %11775 = vmatmul.bf16.gmra.mxu0 %v7765
  %v11776 = vpop.f32.mrf.mxu0
  %v11777 = vadd.f32 %v11668, %v11776
  %v11778 = vpop.f32.mrf.mxu0
  %v11779 = vadd.f32 %v11670, %v11778
  %11780 = vmatmul.bf16.gmra.mxu0 %v7771
  %v11781 = vpop.f32.mrf.mxu0
  %v11782 = vadd.f32 %v11673, %v11781
  %v11783 = vpop.f32.mrf.mxu0
  %v11784 = vadd.f32 %v11675, %v11783
  %11785 = vmatmul.bf16.gmra.mxu0 %v7777
  %v11786 = vpop.f32.mrf.mxu0
  %v11787 = vadd.f32 %v11678, %v11786
  %v11788 = vpop.f32.mrf.mxu0
  %v11789 = vadd.f32 %v11680, %v11788
  %11790 = vmatmul.bf16.gmra.mxu0 %v7783
  %v11791 = vpop.f32.mrf.mxu0
  %v11792 = vadd.f32 %v11683, %v11791
  %v11793 = vpop.f32.mrf.mxu0
  %v11794 = vadd.f32 %v11685, %v11793
  %11795 = vmatmul.bf16.gmra.mxu0 %v7789
  %v11796 = vpop.f32.mrf.mxu0
  %v11797 = vadd.f32 %v11688, %v11796
  %v11798 = vpop.f32.mrf.mxu0
  %v11799 = vadd.f32 %v11690, %v11798
  %11800 = vmatmul.bf16.gmra.mxu0 %v7795
  %v11801 = vpop.f32.mrf.mxu0
  %v11802 = vadd.f32 %v11693, %v11801
  %v11803 = vpop.f32.mrf.mxu0
  %v11804 = vadd.f32 %v11695, %v11803
  %11805 = vmatmul.bf16.gmra.mxu0 %v7801
  %v11806 = vpop.f32.mrf.mxu0
  %v11807 = vadd.f32 %v11698, %v11806
  %v11808 = vpop.f32.mrf.mxu0
  %v11809 = vadd.f32 %v11700, %v11808
  %11810 = vmatmul.bf16.gmra.mxu0 %v7807
  %v11811 = vpop.f32.mrf.mxu0
  %v11812 = vadd.f32 %v11703, %v11811
  %v11813 = vpop.f32.mrf.mxu0
  %v11814 = vadd.f32 %v11705, %v11813
  %11815 = vmatmul.bf16.gmra.mxu0 %v7813
  %v11816 = vpop.f32.mrf.mxu0
  %v11817 = vadd.f32 %v11708, %v11816
  %v11818 = vpop.f32.mrf.mxu0
  %v11819 = vadd.f32 %v11710, %v11818
  %11820 = vmatmul.bf16.gmra.mxu0 %v7819
  %v11821 = vpop.f32.mrf.mxu0
  %v11822 = vadd.f32 %v11713, %v11821
  %v11823 = vpop.f32.mrf.mxu0
  %v11824 = vadd.f32 %v11715, %v11823
  %11825 = vmatmul.bf16.gmra.mxu0 %v7825
  %v11826 = vpop.f32.mrf.mxu0
  %v11827 = vadd.f32 %v11718, %v11826
  %v11828 = vpop.f32.mrf.mxu0
  %v11829 = vadd.f32 %v11720, %v11828
  %11830 = vmatmul.bf16.gmra.mxu0 %v7831
  %v11831 = vpop.f32.mrf.mxu0
  %v11832 = vadd.f32 %v11723, %v11831
  %v11833 = vpop.f32.mrf.mxu0
  %v11834 = vadd.f32 %v11725, %v11833
  %11835 = vdwg.mxu0
  %11836 = vmatpush.bf16.msra.mxu0 %v11545
  %11837 = vmatpush.bf16.msra.mxu0 %v11544
  %11838 = vmatpush.bf16.msra.mxu0 %v11543
  %11839 = vmatpush.bf16.msra.mxu0 %v11542
  %11840 = vmatpush.bf16.msra.mxu0 %v11541
  %11841 = vmatpush.bf16.msra.mxu0 %v11540
  %11842 = vmatpush.bf16.msra.mxu0 %v11539
  %11843 = vmatpush.bf16.msra.mxu0 %v11538
  %11844 = vmatmul.bf16.gmra.mxu0 %v7718
  %v11845 = vpop.f32.mrf.mxu0
  %v11846 = vadd.f32 %v11737, %v11845
  %v11847 = vpop.f32.mrf.mxu0
  %v11848 = vadd.f32 %v11739, %v11847
  %11849 = vmatmul.bf16.gmra.mxu0 %v7724
  %v11850 = vpop.f32.mrf.mxu0
  %v11851 = vadd.f32 %v11742, %v11850
  %v11852 = vpop.f32.mrf.mxu0
  %v11853 = vadd.f32 %v11744, %v11852
  %11854 = vmatmul.bf16.gmra.mxu0 %v7730
  %v11855 = vpop.f32.mrf.mxu0
  %v11856 = vadd.f32 %v11747, %v11855
  %v11857 = vpop.f32.mrf.mxu0
  %v11858 = vadd.f32 %v11749, %v11857
  %11859 = vmatmul.bf16.gmra.mxu0 %v7736
  %v11860 = vpop.f32.mrf.mxu0
  %v11861 = vadd.f32 %v11752, %v11860
  %v11862 = vpop.f32.mrf.mxu0
  %v11863 = vadd.f32 %v11754, %v11862
  %11864 = vmatmul.bf16.gmra.mxu0 %v7742
  %v11865 = vpop.f32.mrf.mxu0
  %v11866 = vadd.f32 %v11757, %v11865
  %v11867 = vpop.f32.mrf.mxu0
  %v11868 = vadd.f32 %v11759, %v11867
  %11869 = vmatmul.bf16.gmra.mxu0 %v7748
  %v11870 = vpop.f32.mrf.mxu0
  %v11871 = vadd.f32 %v11762, %v11870
  %v11872 = vpop.f32.mrf.mxu0
  %v11873 = vadd.f32 %v11764, %v11872
  %11874 = vmatmul.bf16.gmra.mxu0 %v7754
  %v11875 = vpop.f32.mrf.mxu0
  %v11876 = vadd.f32 %v11767, %v11875
  %v11877 = vpop.f32.mrf.mxu0
  %v11878 = vadd.f32 %v11769, %v11877
  %11879 = vmatmul.bf16.gmra.mxu0 %v7760
  %v11880 = vpop.f32.mrf.mxu0
  %v11881 = vadd.f32 %v11772, %v11880
  %v11882 = vpop.f32.mrf.mxu0
  %v11883 = vadd.f32 %v11774, %v11882
  %11884 = vmatmul.bf16.gmra.mxu0 %v7766
  %v11885 = vpop.f32.mrf.mxu0
  %v11886 = vadd.f32 %v11777, %v11885
  %v11887 = vpop.f32.mrf.mxu0
  %v11888 = vadd.f32 %v11779, %v11887
  %11889 = vmatmul.bf16.gmra.mxu0 %v7772
  %v11890 = vpop.f32.mrf.mxu0
  %v11891 = vadd.f32 %v11782, %v11890
  %v11892 = vpop.f32.mrf.mxu0
  %v11893 = vadd.f32 %v11784, %v11892
  %11894 = vmatmul.bf16.gmra.mxu0 %v7778
  %v11895 = vpop.f32.mrf.mxu0
  %v11896 = vadd.f32 %v11787, %v11895
  %v11897 = vpop.f32.mrf.mxu0
  %v11898 = vadd.f32 %v11789, %v11897
  %11899 = vmatmul.bf16.gmra.mxu0 %v7784
  %v11900 = vpop.f32.mrf.mxu0
  %v11901 = vadd.f32 %v11792, %v11900
  %v11902 = vpop.f32.mrf.mxu0
  %v11903 = vadd.f32 %v11794, %v11902
  %11904 = vmatmul.bf16.gmra.mxu0 %v7790
  %v11905 = vpop.f32.mrf.mxu0
  %v11906 = vadd.f32 %v11797, %v11905
  %v11907 = vpop.f32.mrf.mxu0
  %v11908 = vadd.f32 %v11799, %v11907
  %11909 = vmatmul.bf16.gmra.mxu0 %v7796
  %v11910 = vpop.f32.mrf.mxu0
  %v11911 = vadd.f32 %v11802, %v11910
  %v11912 = vpop.f32.mrf.mxu0
  %v11913 = vadd.f32 %v11804, %v11912
  %11914 = vmatmul.bf16.gmra.mxu0 %v7802
  %v11915 = vpop.f32.mrf.mxu0
  %v11916 = vadd.f32 %v11807, %v11915
  %v11917 = vpop.f32.mrf.mxu0
  %v11918 = vadd.f32 %v11809, %v11917
  %11919 = vmatmul.bf16.gmra.mxu0 %v7808
  %v11920 = vpop.f32.mrf.mxu0
  %v11921 = vadd.f32 %v11812, %v11920
  %v11922 = vpop.f32.mrf.mxu0
  %v11923 = vadd.f32 %v11814, %v11922
  %11924 = vmatmul.bf16.gmra.mxu0 %v7814
  %v11925 = vpop.f32.mrf.mxu0
  %v11926 = vadd.f32 %v11817, %v11925
  %v11927 = vpop.f32.mrf.mxu0
  %v11928 = vadd.f32 %v11819, %v11927
  %11929 = vmatmul.bf16.gmra.mxu0 %v7820
  %v11930 = vpop.f32.mrf.mxu0
  %v11931 = vadd.f32 %v11822, %v11930
  %v11932 = vpop.f32.mrf.mxu0
  %v11933 = vadd.f32 %v11824, %v11932
  %11934 = vmatmul.bf16.gmra.mxu0 %v7826
  %v11935 = vpop.f32.mrf.mxu0
  %v11936 = vadd.f32 %v11827, %v11935
  %v11937 = vpop.f32.mrf.mxu0
  %v11938 = vadd.f32 %v11829, %v11937
  %11939 = vmatmul.bf16.gmra.mxu0 %v7832
  %v11940 = vpop.f32.mrf.mxu0
  %v11941 = vadd.f32 %v11832, %v11940
  %v11942 = vpop.f32.mrf.mxu0
  %v11943 = vadd.f32 %v11834, %v11942
  %11944 = vdwg.mxu0
  %11945 = vmatpush.bf16.msra.mxu0 %v11553
  %11946 = vmatpush.bf16.msra.mxu0 %v11552
  %11947 = vmatpush.bf16.msra.mxu0 %v11551
  %11948 = vmatpush.bf16.msra.mxu0 %v11550
  %11949 = vmatpush.bf16.msra.mxu0 %v11549
  %11950 = vmatpush.bf16.msra.mxu0 %v11548
  %11951 = vmatpush.bf16.msra.mxu0 %v11547
  %11952 = vmatpush.bf16.msra.mxu0 %v11546
  %11953 = vmatmul.bf16.gmra.mxu0 %v7719
  %v11954 = vpop.f32.mrf.mxu0
  %v11955 = vadd.f32 %v11846, %v11954
  %v11956 = vpop.f32.mrf.mxu0
  %v11957 = vadd.f32 %v11848, %v11956
  %11958 = vmatmul.bf16.gmra.mxu0 %v7725
  %v11959 = vpop.f32.mrf.mxu0
  %v11960 = vadd.f32 %v11851, %v11959
  %v11961 = vpop.f32.mrf.mxu0
  %v11962 = vadd.f32 %v11853, %v11961
  %11963 = vmatmul.bf16.gmra.mxu0 %v7731
  %v11964 = vpop.f32.mrf.mxu0
  %v11965 = vadd.f32 %v11856, %v11964
  %v11966 = vpop.f32.mrf.mxu0
  %v11967 = vadd.f32 %v11858, %v11966
  %11968 = vmatmul.bf16.gmra.mxu0 %v7737
  %v11969 = vpop.f32.mrf.mxu0
  %v11970 = vadd.f32 %v11861, %v11969
  %v11971 = vpop.f32.mrf.mxu0
  %v11972 = vadd.f32 %v11863, %v11971
  %11973 = vmatmul.bf16.gmra.mxu0 %v7743
  %v11974 = vpop.f32.mrf.mxu0
  %v11975 = vadd.f32 %v11866, %v11974
  %v11976 = vpop.f32.mrf.mxu0
  %v11977 = vadd.f32 %v11868, %v11976
  %11978 = vmatmul.bf16.gmra.mxu0 %v7749
  %v11979 = vpop.f32.mrf.mxu0
  %v11980 = vadd.f32 %v11871, %v11979
  %v11981 = vpop.f32.mrf.mxu0
  %v11982 = vadd.f32 %v11873, %v11981
  %11983 = vmatmul.bf16.gmra.mxu0 %v7755
  %v11984 = vpop.f32.mrf.mxu0
  %v11985 = vadd.f32 %v11876, %v11984
  %v11986 = vpop.f32.mrf.mxu0
  %v11987 = vadd.f32 %v11878, %v11986
  %11988 = vmatmul.bf16.gmra.mxu0 %v7761
  %v11989 = vpop.f32.mrf.mxu0
  %v11990 = vadd.f32 %v11881, %v11989
  %v11991 = vpop.f32.mrf.mxu0
  %v11992 = vadd.f32 %v11883, %v11991
  %11993 = vmatmul.bf16.gmra.mxu0 %v7767
  %v11994 = vpop.f32.mrf.mxu0
  %v11995 = vadd.f32 %v11886, %v11994
  %v11996 = vpop.f32.mrf.mxu0
  %v11997 = vadd.f32 %v11888, %v11996
  %11998 = vmatmul.bf16.gmra.mxu0 %v7773
  %v11999 = vpop.f32.mrf.mxu0
  %v12000 = vadd.f32 %v11891, %v11999
  %v12001 = vpop.f32.mrf.mxu0
  %v12002 = vadd.f32 %v11893, %v12001
  %12003 = vmatmul.bf16.gmra.mxu0 %v7779
  %v12004 = vpop.f32.mrf.mxu0
  %v12005 = vadd.f32 %v11896, %v12004
  %v12006 = vpop.f32.mrf.mxu0
  %v12007 = vadd.f32 %v11898, %v12006
  %12008 = vmatmul.bf16.gmra.mxu0 %v7785
  %v12009 = vpop.f32.mrf.mxu0
  %v12010 = vadd.f32 %v11901, %v12009
  %v12011 = vpop.f32.mrf.mxu0
  %v12012 = vadd.f32 %v11903, %v12011
  %12013 = vmatmul.bf16.gmra.mxu0 %v7791
  %v12014 = vpop.f32.mrf.mxu0
  %v12015 = vadd.f32 %v11906, %v12014
  %v12016 = vpop.f32.mrf.mxu0
  %v12017 = vadd.f32 %v11908, %v12016
  %12018 = vmatmul.bf16.gmra.mxu0 %v7797
  %v12019 = vpop.f32.mrf.mxu0
  %v12020 = vadd.f32 %v11911, %v12019
  %v12021 = vpop.f32.mrf.mxu0
  %v12022 = vadd.f32 %v11913, %v12021
  %12023 = vmatmul.bf16.gmra.mxu0 %v7803
  %v12024 = vpop.f32.mrf.mxu0
  %v12025 = vadd.f32 %v11916, %v12024
  %v12026 = vpop.f32.mrf.mxu0
  %v12027 = vadd.f32 %v11918, %v12026
  %12028 = vmatmul.bf16.gmra.mxu0 %v7809
  %v12029 = vpop.f32.mrf.mxu0
  %v12030 = vadd.f32 %v11921, %v12029
  %v12031 = vpop.f32.mrf.mxu0
  %v12032 = vadd.f32 %v11923, %v12031
  %12033 = vmatmul.bf16.gmra.mxu0 %v7815
  %v12034 = vpop.f32.mrf.mxu0
  %v12035 = vadd.f32 %v11926, %v12034
  %v12036 = vpop.f32.mrf.mxu0
  %v12037 = vadd.f32 %v11928, %v12036
  %12038 = vmatmul.bf16.gmra.mxu0 %v7821
  %v12039 = vpop.f32.mrf.mxu0
  %v12040 = vadd.f32 %v11931, %v12039
  %v12041 = vpop.f32.mrf.mxu0
  %v12042 = vadd.f32 %v11933, %v12041
  %12043 = vmatmul.bf16.gmra.mxu0 %v7827
  %v12044 = vpop.f32.mrf.mxu0
  %v12045 = vadd.f32 %v11936, %v12044
  %v12046 = vpop.f32.mrf.mxu0
  %v12047 = vadd.f32 %v11938, %v12046
  %12048 = vmatmul.bf16.gmra.mxu0 %v7833
  %v12049 = vpop.f32.mrf.mxu0
  %v12050 = vadd.f32 %v11941, %v12049
  %v12051 = vpop.f32.mrf.mxu0
  %v12052 = vadd.f32 %v11943, %v12051
  %12053 = vdwg.mxu0
  %12054 = vmatpush.bf16.msra.mxu0 %v11561
  %12055 = vmatpush.bf16.msra.mxu0 %v11560
  %12056 = vmatpush.bf16.msra.mxu0 %v11559
  %12057 = vmatpush.bf16.msra.mxu0 %v11558
  %12058 = vmatpush.bf16.msra.mxu0 %v11557
  %12059 = vmatpush.bf16.msra.mxu0 %v11556
  %12060 = vmatpush.bf16.msra.mxu0 %v11555
  %12061 = vmatpush.bf16.msra.mxu0 %v11554
  %12062 = vmatmul.bf16.gmra.mxu0 %v7720
  %v12063 = vpop.f32.mrf.mxu0
  %v12064 = vadd.f32 %v11955, %v12063
  %v12065 = vpop.f32.mrf.mxu0
  %v12066 = vadd.f32 %v11957, %v12065
  %12067 = vmatmul.bf16.gmra.mxu0 %v7726
  %v12068 = vpop.f32.mrf.mxu0
  %v12069 = vadd.f32 %v11960, %v12068
  %v12070 = vpop.f32.mrf.mxu0
  %v12071 = vadd.f32 %v11962, %v12070
  %12072 = vmatmul.bf16.gmra.mxu0 %v7732
  %v12073 = vpop.f32.mrf.mxu0
  %v12074 = vadd.f32 %v11965, %v12073
  %v12075 = vpop.f32.mrf.mxu0
  %v12076 = vadd.f32 %v11967, %v12075
  %12077 = vmatmul.bf16.gmra.mxu0 %v7738
  %v12078 = vpop.f32.mrf.mxu0
  %v12079 = vadd.f32 %v11970, %v12078
  %v12080 = vpop.f32.mrf.mxu0
  %v12081 = vadd.f32 %v11972, %v12080
  %12082 = vmatmul.bf16.gmra.mxu0 %v7744
  %v12083 = vpop.f32.mrf.mxu0
  %v12084 = vadd.f32 %v11975, %v12083
  %v12085 = vpop.f32.mrf.mxu0
  %v12086 = vadd.f32 %v11977, %v12085
  %12087 = vmatmul.bf16.gmra.mxu0 %v7750
  %v12088 = vpop.f32.mrf.mxu0
  %v12089 = vadd.f32 %v11980, %v12088
  %v12090 = vpop.f32.mrf.mxu0
  %v12091 = vadd.f32 %v11982, %v12090
  %12092 = vmatmul.bf16.gmra.mxu0 %v7756
  %v12093 = vpop.f32.mrf.mxu0
  %v12094 = vadd.f32 %v11985, %v12093
  %v12095 = vpop.f32.mrf.mxu0
  %v12096 = vadd.f32 %v11987, %v12095
  %12097 = vmatmul.bf16.gmra.mxu0 %v7762
  %v12098 = vpop.f32.mrf.mxu0
  %v12099 = vadd.f32 %v11990, %v12098
  %v12100 = vpop.f32.mrf.mxu0
  %v12101 = vadd.f32 %v11992, %v12100
  %12102 = vmatmul.bf16.gmra.mxu0 %v7768
  %v12103 = vpop.f32.mrf.mxu0
  %v12104 = vadd.f32 %v11995, %v12103
  %v12105 = vpop.f32.mrf.mxu0
  %v12106 = vadd.f32 %v11997, %v12105
  %12107 = vmatmul.bf16.gmra.mxu0 %v7774
  %v12108 = vpop.f32.mrf.mxu0
  %v12109 = vadd.f32 %v12000, %v12108
  %v12110 = vpop.f32.mrf.mxu0
  %v12111 = vadd.f32 %v12002, %v12110
  %12112 = vmatmul.bf16.gmra.mxu0 %v7780
  %v12113 = vpop.f32.mrf.mxu0
  %v12114 = vadd.f32 %v12005, %v12113
  %v12115 = vpop.f32.mrf.mxu0
  %v12116 = vadd.f32 %v12007, %v12115
  %12117 = vmatmul.bf16.gmra.mxu0 %v7786
  %v12118 = vpop.f32.mrf.mxu0
  %v12119 = vadd.f32 %v12010, %v12118
  %v12120 = vpop.f32.mrf.mxu0
  %v12121 = vadd.f32 %v12012, %v12120
  %12122 = vmatmul.bf16.gmra.mxu0 %v7792
  %v12123 = vpop.f32.mrf.mxu0
  %v12124 = vadd.f32 %v12015, %v12123
  %v12125 = vpop.f32.mrf.mxu0
  %v12126 = vadd.f32 %v12017, %v12125
  %12127 = vmatmul.bf16.gmra.mxu0 %v7798
  %v12128 = vpop.f32.mrf.mxu0
  %v12129 = vadd.f32 %v12020, %v12128
  %v12130 = vpop.f32.mrf.mxu0
  %v12131 = vadd.f32 %v12022, %v12130
  %12132 = vmatmul.bf16.gmra.mxu0 %v7804
  %v12133 = vpop.f32.mrf.mxu0
  %v12134 = vadd.f32 %v12025, %v12133
  %v12135 = vpop.f32.mrf.mxu0
  %v12136 = vadd.f32 %v12027, %v12135
  %12137 = vmatmul.bf16.gmra.mxu0 %v7810
  %v12138 = vpop.f32.mrf.mxu0
  %v12139 = vadd.f32 %v12030, %v12138
  %v12140 = vpop.f32.mrf.mxu0
  %v12141 = vadd.f32 %v12032, %v12140
  %12142 = vmatmul.bf16.gmra.mxu0 %v7816
  %v12143 = vpop.f32.mrf.mxu0
  %v12144 = vadd.f32 %v12035, %v12143
  %v12145 = vpop.f32.mrf.mxu0
  %v12146 = vadd.f32 %v12037, %v12145
  %12147 = vmatmul.bf16.gmra.mxu0 %v7822
  %v12148 = vpop.f32.mrf.mxu0
  %v12149 = vadd.f32 %v12040, %v12148
  %v12150 = vpop.f32.mrf.mxu0
  %v12151 = vadd.f32 %v12042, %v12150
  %12152 = vmatmul.bf16.gmra.mxu0 %v7828
  %v12153 = vpop.f32.mrf.mxu0
  %v12154 = vadd.f32 %v12045, %v12153
  %v12155 = vpop.f32.mrf.mxu0
  %v12156 = vadd.f32 %v12047, %v12155
  %12157 = vmatmul.bf16.gmra.mxu0 %v7834
  %v12158 = vpop.f32.mrf.mxu0
  %v12159 = vadd.f32 %v12050, %v12158
  %v12160 = vpop.f32.mrf.mxu0
  %v12161 = vadd.f32 %v12052, %v12160
  %12162 = vdwg.mxu0
  %12163 = vmatpush.bf16.msra.mxu0 %v11569
  %12164 = vmatpush.bf16.msra.mxu0 %v11568
  %12165 = vmatpush.bf16.msra.mxu0 %v11567
  %12166 = vmatpush.bf16.msra.mxu0 %v11566
  %12167 = vmatpush.bf16.msra.mxu0 %v11565
  %12168 = vmatpush.bf16.msra.mxu0 %v11564
  %12169 = vmatpush.bf16.msra.mxu0 %v11563
  %12170 = vmatpush.bf16.msra.mxu0 %v11562
  %12171 = vmatmul.bf16.gmra.mxu0 %v7721
  %v12172 = vpop.f32.mrf.mxu0
  %v12173 = vadd.f32 %v12064, %v12172
  %v12174 = vpop.f32.mrf.mxu0
  %v12175 = vadd.f32 %v12066, %v12174
  %12176 = vmatmul.bf16.gmra.mxu0 %v7727
  %v12177 = vpop.f32.mrf.mxu0
  %v12178 = vadd.f32 %v12069, %v12177
  %v12179 = vpop.f32.mrf.mxu0
  %v12180 = vadd.f32 %v12071, %v12179
  %12181 = vmatmul.bf16.gmra.mxu0 %v7733
  %v12182 = vpop.f32.mrf.mxu0
  %v12183 = vadd.f32 %v12074, %v12182
  %v12184 = vpop.f32.mrf.mxu0
  %v12185 = vadd.f32 %v12076, %v12184
  %12186 = vmatmul.bf16.gmra.mxu0 %v7739
  %v12187 = vpop.f32.mrf.mxu0
  %v12188 = vadd.f32 %v12079, %v12187
  %v12189 = vpop.f32.mrf.mxu0
  %v12190 = vadd.f32 %v12081, %v12189
  %12191 = vmatmul.bf16.gmra.mxu0 %v7745
  %v12192 = vpop.f32.mrf.mxu0
  %v12193 = vadd.f32 %v12084, %v12192
  %v12194 = vpop.f32.mrf.mxu0
  %v12195 = vadd.f32 %v12086, %v12194
  %12196 = vmatmul.bf16.gmra.mxu0 %v7751
  %v12197 = vpop.f32.mrf.mxu0
  %v12198 = vadd.f32 %v12089, %v12197
  %v12199 = vpop.f32.mrf.mxu0
  %v12200 = vadd.f32 %v12091, %v12199
  %12201 = vmatmul.bf16.gmra.mxu0 %v7757
  %v12202 = vpop.f32.mrf.mxu0
  %v12203 = vadd.f32 %v12094, %v12202
  %v12204 = vpop.f32.mrf.mxu0
  %v12205 = vadd.f32 %v12096, %v12204
  %12206 = vmatmul.bf16.gmra.mxu0 %v7763
  %v12207 = vpop.f32.mrf.mxu0
  %v12208 = vadd.f32 %v12099, %v12207
  %v12209 = vpop.f32.mrf.mxu0
  %v12210 = vadd.f32 %v12101, %v12209
  %12211 = vmatmul.bf16.gmra.mxu0 %v7769
  %v12212 = vpop.f32.mrf.mxu0
  %v12213 = vadd.f32 %v12104, %v12212
  %v12214 = vpop.f32.mrf.mxu0
  %v12215 = vadd.f32 %v12106, %v12214
  %12216 = vmatmul.bf16.gmra.mxu0 %v7775
  %v12217 = vpop.f32.mrf.mxu0
  %v12218 = vadd.f32 %v12109, %v12217
  %v12219 = vpop.f32.mrf.mxu0
  %v12220 = vadd.f32 %v12111, %v12219
  %12221 = vmatmul.bf16.gmra.mxu0 %v7781
  %v12222 = vpop.f32.mrf.mxu0
  %v12223 = vadd.f32 %v12114, %v12222
  %v12224 = vpop.f32.mrf.mxu0
  %v12225 = vadd.f32 %v12116, %v12224
  %12226 = vmatmul.bf16.gmra.mxu0 %v7787
  %v12227 = vpop.f32.mrf.mxu0
  %v12228 = vadd.f32 %v12119, %v12227
  %v12229 = vpop.f32.mrf.mxu0
  %v12230 = vadd.f32 %v12121, %v12229
  %12231 = vmatmul.bf16.gmra.mxu0 %v7793
  %v12232 = vpop.f32.mrf.mxu0
  %v12233 = vadd.f32 %v12124, %v12232
  %v12234 = vpop.f32.mrf.mxu0
  %v12235 = vadd.f32 %v12126, %v12234
  %12236 = vmatmul.bf16.gmra.mxu0 %v7799
  %v12237 = vpop.f32.mrf.mxu0
  %v12238 = vadd.f32 %v12129, %v12237
  %v12239 = vpop.f32.mrf.mxu0
  %v12240 = vadd.f32 %v12131, %v12239
  %12241 = vmatmul.bf16.gmra.mxu0 %v7805
  %v12242 = vpop.f32.mrf.mxu0
  %v12243 = vadd.f32 %v12134, %v12242
  %v12244 = vpop.f32.mrf.mxu0
  %v12245 = vadd.f32 %v12136, %v12244
  %12246 = vmatmul.bf16.gmra.mxu0 %v7811
  %v12247 = vpop.f32.mrf.mxu0
  %v12248 = vadd.f32 %v12139, %v12247
  %v12249 = vpop.f32.mrf.mxu0
  %v12250 = vadd.f32 %v12141, %v12249
  %12251 = vmatmul.bf16.gmra.mxu0 %v7817
  %v12252 = vpop.f32.mrf.mxu0
  %v12253 = vadd.f32 %v12144, %v12252
  %v12254 = vpop.f32.mrf.mxu0
  %v12255 = vadd.f32 %v12146, %v12254
  %12256 = vmatmul.bf16.gmra.mxu0 %v7823
  %v12257 = vpop.f32.mrf.mxu0
  %v12258 = vadd.f32 %v12149, %v12257
  %v12259 = vpop.f32.mrf.mxu0
  %v12260 = vadd.f32 %v12151, %v12259
  %12261 = vmatmul.bf16.gmra.mxu0 %v7829
  %v12262 = vpop.f32.mrf.mxu0
  %v12263 = vadd.f32 %v12154, %v12262
  %v12264 = vpop.f32.mrf.mxu0
  %v12265 = vadd.f32 %v12156, %v12264
  %12266 = vmatmul.bf16.gmra.mxu0 %v7835
  %v12267 = vpop.f32.mrf.mxu0
  %v12268 = vadd.f32 %v12159, %v12267
  %v12269 = vpop.f32.mrf.mxu0
  %v12270 = vadd.f32 %v12161, %v12269
  %12271 = vdwg.mxu0
  %v12272 = vmax.f32 %v12173, %v12223
  %v12273 = vmax.f32 %v12175, %v12225
  %v12274 = vmax.f32 %v12178, %v12228
  %v12275 = vmax.f32 %v12180, %v12230
  %v12276 = vmax.f32 %v12183, %v12233
  %v12277 = vmax.f32 %v12185, %v12235
  %v12278 = vmax.f32 %v12188, %v12238
  %v12279 = vmax.f32 %v12190, %v12240
  %v12280 = vmax.f32 %v12193, %v12243
  %v12281 = vmax.f32 %v12195, %v12245
  %v12282 = vmax.f32 %v12198, %v12248
  %v12283 = vmax.f32 %v12200, %v12250
  %v12284 = vmax.f32 %v12203, %v12253
  %v12285 = vmax.f32 %v12205, %v12255
  %v12286 = vmax.f32 %v12208, %v12258
  %v12287 = vmax.f32 %v12210, %v12260
  %v12288 = vmax.f32 %v12213, %v12263
  %v12289 = vmax.f32 %v12215, %v12265
  %v12290 = vmax.f32 %v12218, %v12268
  %v12291 = vmax.f32 %v12220, %v12270
  %v12292 = vmax.f32 %v12272, %v12282
  %v12293 = vmax.f32 %v12273, %v12283
  %v12294 = vmax.f32 %v12274, %v12284
  %v12295 = vmax.f32 %v12275, %v12285
  %v12296 = vmax.f32 %v12276, %v12286
  %v12297 = vmax.f32 %v12277, %v12287
  %v12298 = vmax.f32 %v12278, %v12288
  %v12299 = vmax.f32 %v12279, %v12289
  %v12300 = vmax.f32 %v12280, %v12290
  %v12301 = vmax.f32 %v12281, %v12291
  %v12302 = vadd.f32 %v12292, %v8931
  %v12303 = vadd.f32 %v12293, %v8936
  %v12304 = vadd.f32 %v12294, %v8941
  %v12305 = vadd.f32 %v12295, %v8946
  %v12306 = vadd.f32 %v12296, %v8951
  %v12307 = vadd.f32 %v12297, %v8956
  %v12308 = vadd.f32 %v12298, %v8961
  %v12309 = vadd.f32 %v12299, %v8966
  %v12310 = vadd.f32 %v12300, %v8971
  %v12311 = vadd.f32 %v12301, %v8976
  %v12312 = vmax.f32 %v12302, 0.0
  %v12313 = vmax.f32 %v12303, 0.0
  %v12314 = vmax.f32 %v12304, 0.0
  %v12315 = vmax.f32 %v12305, 0.0
  %v12316 = vmax.f32 %v12306, 0.0
  %v12317 = vmax.f32 %v12307, 0.0
  %v12318 = vmax.f32 %v12308, 0.0
  %v12319 = vmax.f32 %v12309, 0.0
  %v12320 = vmax.f32 %v12310, 0.0
  %v12321 = vmax.f32 %v12311, 0.0
  %v12322 = vpack.c.bf16 %v12312, %v12312
  %v12323 = vpack.c.bf16 %v12313, %v12313
  %v12324 = vpack.c.bf16 %v12314, %v12314
  %v12325 = vpack.c.bf16 %v12315, %v12315
  %v12326 = vpack.c.bf16 %v12316, %v12316
  %v12327 = vpack.c.bf16 %v12317, %v12317
  %v12328 = vpack.c.bf16 %v12318, %v12318
  %v12329 = vpack.c.bf16 %v12319, %v12319
  %v12330 = vpack.c.bf16 %v12320, %v12320
  %v12331 = vpack.c.bf16 %v12321, %v12321
  %12332 = vst [vmem:[#allocation3 + $0x78] sm:$0xf] %v12322
  %12333 = vst [vmem:[#allocation3 + $0x7c] sm:$0xf] %v12323
  %12334 = vst [vmem:[#allocation3 + $0x80] sm:$0xf] %v12324
  %12335 = vst [vmem:[#allocation3 + $0x84] sm:$0xf] %v12325
  %12336 = vst [vmem:[#allocation3 + $0x88] sm:$0xf] %v12326
  %12337 = vst [vmem:[#allocation3 + $0x8c] sm:$0xf] %v12327
  %12338 = vst [vmem:[#allocation3 + $0x90] sm:$0xf] %v12328
  %12339 = vst [vmem:[#allocation3 + $0x94] sm:$0xf] %v12329
  %12340 = vst [vmem:[#allocation3 + $0x98] sm:$0xf] %v12330
  %12341 = vst [vmem:[#allocation3 + $0x9c] sm:$0xf] %v12331
  %v12342 = vld [vmem:[#allocation3] sm:$0xf]
  %v12343 = vld [vmem:[#allocation3 + $0x4] sm:$0xf]
  %v12344 = vld [vmem:[#allocation3 + $0x8] sm:$0xf]
  %v12345 = vld [vmem:[#allocation3 + $0xc] sm:$0xf]
  %v12346 = vld [vmem:[#allocation3 + $0x10] sm:$0xf]
  %v12347 = vld [vmem:[#allocation3 + $0x14] sm:$0xf]
  %v12348 = vld [vmem:[#allocation3 + $0x18] sm:$0xf]
  %v12349 = vld [vmem:[#allocation3 + $0x1c] sm:$0xf]
  %v12350 = vld [vmem:[#allocation3 + $0x20] sm:$0xf]
  %v12351 = vld [vmem:[#allocation3 + $0x24] sm:$0xf]
  %v12352 = vld [vmem:[#allocation3 + $0x28] sm:$0xf]
  %v12353 = vld [vmem:[#allocation3 + $0x2c] sm:$0xf]
  %v12354 = vld [vmem:[#allocation3 + $0x30] sm:$0xf]
  %v12355 = vld [vmem:[#allocation3 + $0x34] sm:$0xf]
  %v12356 = vld [vmem:[#allocation3 + $0x38] sm:$0xf]
  %v12357 = vld [vmem:[#allocation3 + $0x3c] sm:$0xf]
  %v12358 = vld [vmem:[#allocation3 + $0x40] sm:$0xf]
  %v12359 = vld [vmem:[#allocation3 + $0x44] sm:$0xf]
  %v12360 = vld [vmem:[#allocation3 + $0x48] sm:$0xf]
  %v12361 = vld [vmem:[#allocation3 + $0x4c] sm:$0xf]
  %v12362 = vld [vmem:[#allocation3 + $0x50] sm:$0xf]
  %v12363 = vld [vmem:[#allocation3 + $0x54] sm:$0xf]
  %v12364 = vld [vmem:[#allocation3 + $0x58] sm:$0xf]
  %v12365 = vld [vmem:[#allocation3 + $0x5c] sm:$0xf]
  %v12366 = vld [vmem:[#allocation3 + $0x60] sm:$0xf]
  %v12367 = vld [vmem:[#allocation3 + $0x64] sm:$0xf]
  %v12368 = vld [vmem:[#allocation3 + $0x68] sm:$0xf]
  %v12369 = vld [vmem:[#allocation3 + $0x6c] sm:$0xf]
  %v12370 = vld [vmem:[#allocation3 + $0x70] sm:$0xf]
  %v12371 = vld [vmem:[#allocation3 + $0x74] sm:$0xf]
  %v12372 = vld [vmem:[#allocation3 + $0x78] sm:$0xf]
  %v12373 = vld [vmem:[#allocation3 + $0x7c] sm:$0xf]
  %v12374 = vld [vmem:[#allocation3 + $0x80] sm:$0xf]
  %v12375 = vld [vmem:[#allocation3 + $0x84] sm:$0xf]
  %v12376 = vld [vmem:[#allocation3 + $0x88] sm:$0xf]
  %v12377 = vld [vmem:[#allocation3 + $0x8c] sm:$0xf]
  %v12378 = vld [vmem:[#allocation3 + $0x90] sm:$0xf]
  %v12379 = vld [vmem:[#allocation3 + $0x94] sm:$0xf]
  %v12380 = vld [vmem:[#allocation3 + $0x98] sm:$0xf]
  %v12381 = vld [vmem:[#allocation3 + $0x9c] sm:$0xf]
  %v12382 = vld [vmem:[%s5] sm:$0xff]
  %v12383 = vld [vmem:[%s5 + $0x8] sm:$0xf]
  %v12384 = vld [vmem:[%s5 + $0xc] sm:$0xff]
  %v12385 = vld [vmem:[%s5 + $0x14] sm:$0xf]
  %v12386 = vld [vmem:[%s5 + $0x18] sm:$0xff]
  %v12387 = vld [vmem:[%s5 + $0x20] sm:$0xf]
  %v12388 = vld [vmem:[%s5 + $0x24] sm:$0xff]
  %v12389 = vld [vmem:[%s5 + $0x2c] sm:$0xf]
  %v12390 = vld [vmem:[%s5 + $0x30] sm:$0xff]
  %v12391 = vld [vmem:[%s5 + $0x38] sm:$0xf]
  %v12392 = vld [vmem:[%s5 + $0x3c] sm:$0xff]
  %v12393 = vld [vmem:[%s5 + $0x44] sm:$0xf]
  %v12394 = vld [vmem:[%s5 + $0x48] sm:$0x11]
  %v12395 = vld [vmem:[%s5 + $0x50] sm:$0x1]
  %v12396 = vld [vmem:[%s6] sm:$0xff]
  %v12397 = vld [vmem:[%s6 + $0x8] sm:$0xff]
  %v12398 = vld [vmem:[%s6 + $0x10] sm:$0xff]
  %v12399 = vld [vmem:[%s6 + $0x18] sm:$0xff]
  %v12400 = vld [vmem:[%s6 + $0x20] sm:$0xff]
  %v12401 = vld [vmem:[%s6 + $0x28] sm:$0xff]
  %v12402 = vld [vmem:[%s6 + $0x30] sm:$0x3]
  %12404 = vset.pattern.permute.xlu0 0
  %12405 = vperm.xlu0 %12404, %v12396
  %v12406 = vpop.permute.xlu0 %12405
  %12409 = vset.pattern.permute.xlu0 0
  %12410 = vperm.xlu0 %12409, %v12397
  %v12411 = vpop.permute.xlu0 %12410
  %12414 = vset.pattern.permute.xlu0 0
  %12415 = vperm.xlu0 %12414, %v12398
  %v12416 = vpop.permute.xlu0 %12415
  %12419 = vset.pattern.permute.xlu0 0
  %12420 = vperm.xlu0 %12419, %v12399
  %v12421 = vpop.permute.xlu0 %12420
  %12424 = vset.pattern.permute.xlu0 0
  %12425 = vperm.xlu0 %12424, %v12400
  %v12426 = vpop.permute.xlu0 %12425
  %12429 = vset.pattern.permute.xlu0 0
  %12430 = vperm.xlu0 %12429, %v12401
  %v12431 = vpop.permute.xlu0 %12430
  %12434 = vset.pattern.permute.xlu0 0
  %12435 = vperm.xlu0 %12434, %v12402
  %v12436 = vpop.permute.xlu0 %12435
  %v12452 = vunpack.c.l.b16 %v12382
  %v12453 = vunpack.c.h.b16 %v12382
  %v12454 = vunpack.c.l.b16 %v12383
  %v12455 = vunpack.c.l.b16 %v12384
  %v12456 = vunpack.c.h.b16 %v12384
  %v12457 = vunpack.c.l.b16 %v12385
  %v12458 = vunpack.c.l.b16 %v12386
  %v12459 = vunpack.c.h.b16 %v12386
  %v12460 = vunpack.c.l.b16 %v12387
  %v12461 = vunpack.c.l.b16 %v12388
  %v12462 = vunpack.c.h.b16 %v12388
  %v12463 = vunpack.c.l.b16 %v12389
  %v12464 = vunpack.c.l.b16 %v12390
  %v12465 = vunpack.c.h.b16 %v12390
  %v12466 = vunpack.c.l.b16 %v12391
  %v12467 = vunpack.c.l.b16 %v12392
  %v12468 = vunpack.c.h.b16 %v12392
  %v12469 = vunpack.c.l.b16 %v12393
  %v12470 = vunpack.c.l.b16 %v12394
  %v12471 = vunpack.c.h.b16 %v12394
  %v12472 = vunpack.c.l.b16 %v12395
  %v12473 = vpack.c.b16 %v12455, %v12452
  %v12474 = vpack.c.b16 %v12456, %v12453
  %v12475 = vpack.c.b16 %v12457, %v12454
  %v12476 = vpack.c.b16 %v12461, %v12458
  %v12477 = vpack.c.b16 %v12462, %v12459
  %v12478 = vpack.c.b16 %v12463, %v12460
  %v12479 = vpack.c.b16 %v12467, %v12464
  %v12480 = vpack.c.b16 %v12468, %v12465
  %v12481 = vpack.c.b16 %v12469, %v12466
  %v12482 = vpack.c.b16 %v12470, %v12470
  %v12483 = vpack.c.b16 %v12471, %v12471
  %v12484 = vpack.c.b16 %v12472, %v12472
  %v12533 = vunpack.c.l.b16 %v12342
  %v12534 = vunpack.c.l.b16 %v12343
  %v12535 = vunpack.c.l.b16 %v12344
  %v12536 = vunpack.c.l.b16 %v12345
  %v12537 = vunpack.c.l.b16 %v12346
  %v12538 = vunpack.c.l.b16 %v12347
  %v12539 = vunpack.c.l.b16 %v12348
  %v12540 = vunpack.c.l.b16 %v12349
  %v12541 = vunpack.c.l.b16 %v12350
  %v12542 = vunpack.c.l.b16 %v12351
  %v12543 = vunpack.c.l.b16 %v12352
  %v12544 = vunpack.c.l.b16 %v12353
  %v12545 = vunpack.c.l.b16 %v12354
  %v12546 = vunpack.c.l.b16 %v12355
  %v12547 = vunpack.c.l.b16 %v12356
  %v12548 = vunpack.c.l.b16 %v12357
  %v12549 = vunpack.c.l.b16 %v12358
  %v12550 = vunpack.c.l.b16 %v12359
  %v12551 = vunpack.c.l.b16 %v12360
  %v12552 = vunpack.c.l.b16 %v12361
  %v12553 = vunpack.c.l.b16 %v12362
  %v12554 = vunpack.c.l.b16 %v12363
  %v12555 = vunpack.c.l.b16 %v12364
  %v12556 = vunpack.c.l.b16 %v12365
  %v12557 = vunpack.c.l.b16 %v12366
  %v12558 = vunpack.c.l.b16 %v12367
  %v12559 = vunpack.c.l.b16 %v12368
  %v12560 = vunpack.c.l.b16 %v12369
  %v12561 = vunpack.c.l.b16 %v12370
  %v12562 = vunpack.c.l.b16 %v12371
  %v12563 = vunpack.c.l.b16 %v12372
  %v12564 = vunpack.c.l.b16 %v12373
  %v12565 = vunpack.c.l.b16 %v12374
  %v12566 = vunpack.c.l.b16 %v12375
  %v12567 = vunpack.c.l.b16 %v12376
  %v12568 = vunpack.c.l.b16 %v12377
  %v12569 = vunpack.c.l.b16 %v12378
  %v12570 = vunpack.c.l.b16 %v12379
  %v12571 = vunpack.c.l.b16 %v12380
  %v12572 = vunpack.c.l.b16 %v12381
  %v12573 = vpack.c.b16 %v12534, %v12533
  %v12574 = vpack.c.b16 %v12536, %v12535
  %v12575 = vpack.c.b16 %v12538, %v12537
  %v12576 = vpack.c.b16 %v12540, %v12539
  %v12577 = vpack.c.b16 %v12542, %v12541
  %v12578 = vpack.c.b16 %v12544, %v12543
  %v12579 = vpack.c.b16 %v12546, %v12545
  %v12580 = vpack.c.b16 %v12548, %v12547
  %v12581 = vpack.c.b16 %v12550, %v12549
  %v12582 = vpack.c.b16 %v12552, %v12551
  %v12583 = vpack.c.b16 %v12554, %v12553
  %v12584 = vpack.c.b16 %v12556, %v12555
  %v12585 = vpack.c.b16 %v12558, %v12557
  %v12586 = vpack.c.b16 %v12560, %v12559
  %v12587 = vpack.c.b16 %v12562, %v12561
  %v12588 = vpack.c.b16 %v12564, %v12563
  %v12589 = vpack.c.b16 %v12566, %v12565
  %v12590 = vpack.c.b16 %v12568, %v12567
  %v12591 = vpack.c.b16 %v12570, %v12569
  %v12592 = vpack.c.b16 %v12572, %v12571
  %v12614 = vsel %vm627, %v12475, 0
  %v12617 = vsel %vm627, %v12478, 0
  %v12620 = vsel %vm627, %v12481, 0
  %v12623 = vsel %vm627, %v12484, 0
  %12625 = vmatpush.bf16.msra.mxu0 %v12580
  %12626 = vmatpush.bf16.msra.mxu0 %v12579
  %12627 = vmatpush.bf16.msra.mxu0 %v12578
  %12628 = vmatpush.bf16.msra.mxu0 %v12577
  %12629 = vmatpush.bf16.msra.mxu0 %v12576
  %12630 = vmatpush.bf16.msra.mxu0 %v12575
  %12631 = vmatpush.bf16.msra.mxu0 %v12574
  %12632 = vmatpush.bf16.msra.mxu0 %v12573
  %12633 = vmatmul.bf16.gmra.mxu0 %v12473
  %v12634 = vpop.f32.mrf.mxu0
  %v12635 = vadd.f32 %v12406, %v12634
  %v12636 = vpop.f32.mrf.mxu0
  %v12637 = vadd.f32 %v12411, %v12636
  %12638 = vmatmul.bf16.gmra.mxu0 %v12476
  %v12639 = vpop.f32.mrf.mxu0
  %v12640 = vadd.f32 %v12416, %v12639
  %v12641 = vpop.f32.mrf.mxu0
  %v12642 = vadd.f32 %v12421, %v12641
  %12643 = vmatmul.bf16.gmra.mxu0 %v12479
  %v12644 = vpop.f32.mrf.mxu0
  %v12645 = vadd.f32 %v12426, %v12644
  %v12646 = vpop.f32.mrf.mxu0
  %v12647 = vadd.f32 %v12431, %v12646
  %12648 = vmatmul.bf16.gmra.mxu0 %v12482
  %v12649 = vpop.f32.mrf.mxu0
  %v12650 = vadd.f32 %v12436, %v12649
  %v12651 = vpop.f32.mrf.mxu0
  %12652 = vdwg.mxu0
  %12653 = vmatpush.bf16.msra.mxu0 %v12588
  %12654 = vmatpush.bf16.msra.mxu0 %v12587
  %12655 = vmatpush.bf16.msra.mxu0 %v12586
  %12656 = vmatpush.bf16.msra.mxu0 %v12585
  %12657 = vmatpush.bf16.msra.mxu0 %v12584
  %12658 = vmatpush.bf16.msra.mxu0 %v12583
  %12659 = vmatpush.bf16.msra.mxu0 %v12582
  %12660 = vmatpush.bf16.msra.mxu0 %v12581
  %12661 = vmatmul.bf16.gmra.mxu0 %v12474
  %v12662 = vpop.f32.mrf.mxu0
  %v12663 = vadd.f32 %v12635, %v12662
  %v12664 = vpop.f32.mrf.mxu0
  %v12665 = vadd.f32 %v12637, %v12664
  %12666 = vmatmul.bf16.gmra.mxu0 %v12477
  %v12667 = vpop.f32.mrf.mxu0
  %v12668 = vadd.f32 %v12640, %v12667
  %v12669 = vpop.f32.mrf.mxu0
  %v12670 = vadd.f32 %v12642, %v12669
  %12671 = vmatmul.bf16.gmra.mxu0 %v12480
  %v12672 = vpop.f32.mrf.mxu0
  %v12673 = vadd.f32 %v12645, %v12672
  %v12674 = vpop.f32.mrf.mxu0
  %v12675 = vadd.f32 %v12647, %v12674
  %12676 = vmatmul.bf16.gmra.mxu0 %v12483
  %v12677 = vpop.f32.mrf.mxu0
  %v12678 = vadd.f32 %v12650, %v12677
  %v12679 = vpop.f32.mrf.mxu0
  %12680 = vdwg.mxu0
  %12681 = vmatpush.bf16.msra.mxu0 0
  %12682 = vmatpush.bf16.msra.mxu0 0
  %12683 = vmatpush.bf16.msra.mxu0 0
  %12684 = vmatpush.bf16.msra.mxu0 0
  %12685 = vmatpush.bf16.msra.mxu0 %v12592
  %12686 = vmatpush.bf16.msra.mxu0 %v12591
  %12687 = vmatpush.bf16.msra.mxu0 %v12590
  %12688 = vmatpush.bf16.msra.mxu0 %v12589
  %12689 = vmatmul.bf16.gmra.mxu0 %v12614
  %v12690 = vpop.f32.mrf.mxu0
  %v12691 = vadd.f32 %v12663, %v12690
  %v12692 = vpop.f32.mrf.mxu0
  %v12693 = vadd.f32 %v12665, %v12692
  %12694 = vmatmul.bf16.gmra.mxu0 %v12617
  %v12695 = vpop.f32.mrf.mxu0
  %v12696 = vadd.f32 %v12668, %v12695
  %v12697 = vpop.f32.mrf.mxu0
  %v12698 = vadd.f32 %v12670, %v12697
  %12699 = vmatmul.bf16.gmra.mxu0 %v12620
  %v12700 = vpop.f32.mrf.mxu0
  %v12701 = vadd.f32 %v12673, %v12700
  %v12702 = vpop.f32.mrf.mxu0
  %v12703 = vadd.f32 %v12675, %v12702
  %12704 = vmatmul.bf16.gmra.mxu0 %v12623
  %v12705 = vpop.f32.mrf.mxu0
  %v12706 = vadd.f32 %v12678, %v12705
  %v12707 = vpop.f32.mrf.mxu0
  %12708 = vdwg.mxu0
  %v12709 = vmax.f32 %v12691, 0.0
  %v12710 = vmax.f32 %v12693, 0.0
  %v12711 = vmax.f32 %v12696, 0.0
  %v12712 = vmax.f32 %v12698, 0.0
  %v12713 = vmax.f32 %v12701, 0.0
  %v12714 = vmax.f32 %v12703, 0.0
  %v12715 = vmax.f32 %v12706, 0.0
  %v12716 = vpack.c.bf16 %v12710, %v12709
  %v12717 = vpack.c.bf16 %v12712, %v12711
  %v12718 = vpack.c.bf16 %v12714, %v12713
  %v12719 = vpack.c.bf16 %v12715, %v12715
  %v12720 = vld [vmem:[%s7] sm:$0xf]
  %v12721 = vld [vmem:[%s7 + $0x4] sm:$0x1]
  %v12722 = vld [vmem:[%s8] sm:$0xff]
  %v12723 = vld [vmem:[%s8 + $0x8] sm:$0x3]
  %12725 = vset.pattern.permute.xlu0 0
  %12726 = vperm.xlu0 %12725, %v12722
  %v12727 = vpop.permute.xlu0 %12726
  %12730 = vset.pattern.permute.xlu0 0
  %12731 = vperm.xlu0 %12730, %v12723
  %v12732 = vpop.permute.xlu0 %12731
  %v12736 = vunpack.c.l.b16 %v12720
  %v12737 = vunpack.c.l.b16 %v12721
  %v12738 = vpack.c.b16 %v12737, %v12736
  %vm12739 = vcmask 408576
  %v12741 = vsel %vm12739, %v12738, 0
  %vm12743 = vcmask 1040384
  %v12745 = vsel %vm12743, %v12719, 0
  %12747 = vmatpush.bf16.msra.mxu0 0
  %12748 = vmatpush.bf16.msra.mxu0 0
  %12749 = vmatpush.bf16.msra.mxu0 0
  %12750 = vmatpush.bf16.msra.mxu0 0
  %12751 = vmatpush.bf16.msra.mxu0 %v12745
  %12752 = vmatpush.bf16.msra.mxu0 %v12718
  %12753 = vmatpush.bf16.msra.mxu0 %v12717
  %12754 = vmatpush.bf16.msra.mxu0 %v12716
  %12755 = vmatmul.bf16.gmra.mxu0 %v12741
  %v12756 = vpop.f32.mrf.mxu0
  %v12757 = vadd.f32 %v12727, %v12756
  %v12758 = vpop.f32.mrf.mxu0
  %v12759 = vadd.f32 %v12732, %v12758
  %12760 = vdwg.mxu0
  %12761 = vst [vmem:[%s9] sm:$0xff] %v12757
  %12762 = vst [vmem:[%s9 + $0x8] sm:$0x3] %v12759
  // Predicated region
  $region38: #{mnist_cnn_forward.1} parent=0 // pred_check
    _
  $region39: #{mnist_cnn_forward.1} parent=0 // pred_check_branch
    %12764 = sbr.rel (0) target = $region41
  $region40: #{mnist_cnn_forward.1} parent=0 // pred_region
    _
  $region41: #{mnist_cnn_forward.1} parent=0 // pred_fallthru
    _
  // Predicated region
  $region42: #{mnist_cnn_forward.1} parent=0 // pred_check
    _
  $region43: #{mnist_cnn_forward.1} parent=0 // pred_check_branch
    %12766 = sbr.rel (0) target = $region45
  $region44: #{mnist_cnn_forward.1} parent=0 // pred_region
    _
  $region45: #{mnist_cnn_forward.1} parent=0 // pred_fallthru
    _

</llo_original>
